<compile_context>
chip_gen: v5e
topology: v5e:2x2
jax: 0.10.0
libtpu: 0.0.40
codegen_flags: <defaults>
</compile_context>

<pallas_src>
import functools

import jax
import jax.numpy as jnp
from jax import lax
from jax.experimental import pallas as pl
from jax.experimental.pallas import tpu as pltpu

NEG_SLOPE = 0.01          # nn.LeakyReLU() default
BN_EPS = 0.8              # nn.BatchNorm2d(out_filters, 0.8) -> eps=0.8
CIN0_PAD = 8              # image channels 3 padded to 8 for aligned bf16 K-dim
LANES = 128               # all activation channels padded to 128 lanes

# (in_channels, out_channels, use_batchnorm) per discriminator_block
BLOCK_CFG = [(3, 16, False), (16, 32, True), (32, 64, True), (64, 128, True)]


# ---------------------------------------------------------------------------
# Fused Pallas kernel: one grid step == one image
# ---------------------------------------------------------------------------
def disc_kernel(x_ref, w1, bv1, w2, bv2, w3, bv3, w4, bv4, wl_ref, bl_ref,
                o_ref, buf1, buf2, buf3, buf4, *, img_size):
    # Zero the padded scratch activations so their 1-pixel halo acts as the
    # conv padding (interior rows are fully overwritten each grid step).
    buf1[...] = jnp.zeros_like(buf1)
    buf2[...] = jnp.zeros_like(buf2)
    buf3[...] = jnp.zeros_like(buf3)

    def conv_block(in_ref, w_ref, bv_ref, out_ref, s_in, cin, pad_out):
        """3x3 / stride-2 / pad-1 conv + bias + LeakyReLU + folded-BN shift.

        in_ref : ((s_in+2)*(s_in+2), cin)  padded activation, row-major spatial
        w_ref  : (9*cin, 128) bf16, BN-scale folded in, tap-major
        bv_ref : (2, 128) f32: row0 = pre-activation bias (BN-scaled),
                               row1 = post-activation BN shift
        out_ref: padded ((s_out+2)^2, 128) if pad_out else (s_out^2, 128)
        """
        s_out = s_in // 2
        wp_in = s_in + 2
        wp_out = (s_out + 2) if pad_out else s_out
        b_pre = bv_ref[0:1, :]            # (1, 128)
        t_post = bv_ref[1:2, :]           # (1, 128)
        for i in range(s_out):            # static unroll: s_out <= img_size//2
            acc = jnp.zeros((s_out, LANES), jnp.float32)
            for kdy in range(3):
                for kdx in range(3):
                    start = (2 * i + kdy) * wp_in + kdx
                    if s_out > 1:
                        tap = in_ref[pl.ds(start, s_out, stride=2), :]
                    else:
                        tap = in_ref[pl.ds(start, 1), :]
                    t = kdy * 3 + kdx
                    wt = w_ref[t * cin:(t + 1) * cin, :]          # (cin, 128)
                    acc = acc + jnp.dot(tap.astype(jnp.bfloat16), wt,
                                        preferred_element_type=jnp.float32)
            acc = acc + b_pre                                   # conv bias * s
            acc = jnp.where(acc >= 0.0, acc, NEG_SLOPE * acc)   # LeakyReLU
            acc = acc + t_post            # inference-BN shift (0 for fresh BN)
            # Dropout2d(0.25) is identity at inference.
            row0 = (i + 1) * wp_out + 1 if pad_out else i * s_out
            out_ref[pl.ds(row0, s_out), :] = acc                # 128-lane store

    conv_block(x_ref, w1, bv1, buf1, img_size,       CIN0_PAD, True)
    conv_block(buf1,  w2, bv2, buf2, img_size // 2,  LANES,    True)
    conv_block(buf2,  w3, bv3, buf3, img_size // 4,  LANES,    True)
    conv_block(buf3,  w4, bv4, buf4, img_size // 8,  LANES,    False)

    # adv_layer: Linear(128*ds*ds, 1) + Sigmoid as a VPU multiply + reduce.
    # The NCHW flatten permutation is already folded into wl at init time.
    act = buf4[...]                                    # (ds*ds, 128) f32
    prod = act * wl_ref[...]
    logit = jnp.sum(jnp.sum(prod, axis=1, keepdims=True), axis=0, keepdims=True)
    logit = logit + bl_ref[...]                        # (1, 1)
    z = jnp.exp(-jnp.abs(logit))                       # stable sigmoid
    o_ref[...] = jnp.where(logit >= 0.0, 1.0 / (1.0 + z), z / (1.0 + z))


# ---------------------------------------------------------------------------
# Parameter packing: fold BN into weights, pad to lane-dense layout, bf16
# ---------------------------------------------------------------------------
def _fold_and_pack(w_pt, b_pt, gamma, beta, mean, var, use_bn, cin_pad):
    """PyTorch (Cout,Cin,3,3)+(Cout,) + BN stats -> (9*cin_pad,128) bf16 and
    (2,128) f32 [pre-bias, post-shift].  Valid because the BN scale s>0 here
    (gamma=1), so leaky(s*z) == s*leaky(z)."""
    cout, cin = w_pt.shape[0], w_pt.shape[1]
    if use_bn:
        s = gamma * lax.rsqrt(var + BN_EPS)           # (Cout,)  s > 0
        t = beta - mean * s
    else:
        s = jnp.ones((cout,), jnp.float32)
        t = jnp.zeros((cout,), jnp.float32)
    taps = []
    for kdy in range(3):
        for kdx in range(3):
            w_tap = jnp.transpose(w_pt[:, :, kdy, kdx]) * s[None, :]  # (Cin,Cout)
            w_tap = jnp.pad(w_tap, ((0, cin_pad - cin), (0, LANES - cout)))
            taps.append(w_tap)
    w_packed = jnp.concatenate(taps, axis=0).astype(jnp.bfloat16)
    b_pre = jnp.pad(b_pt * s, (0, LANES - cout))
    t_post = jnp.pad(t, (0, LANES - cout))
    bvec = jnp.stack([b_pre, t_post], axis=0).astype(jnp.float32)
    return w_packed, bvec


def init_params(key, img_shape):
    ds = img_shape // 2 ** 4
    keys = jax.random.split(key, 2 * len(BLOCK_CFG) + 2)
    raw_blocks, packed_blocks = [], []
    for l, (cin, cout, use_bn) in enumerate(BLOCK_CFG):
        kw, kb = keys[2 * l], keys[2 * l + 1]
        fan_in = cin * 9
        w_pt = jax.random.normal(kw, (cout, cin, 3, 3), jnp.float32) / jnp.sqrt(
            jnp.float32(fan_in))
        b_pt = jax.random.normal(kb, (cout,), jnp.float32) * 0.01
        gamma = jnp.ones((cout,), jnp.float32)
        beta = jnp.zeros((cout,), jnp.float32)
        mean = jnp.zeros((cout,), jnp.float32)
        var = jnp.ones((cout,), jnp.float32)
        raw_blocks.append((w_pt, b_pt, gamma, beta, mean, var))
        cin_pad = CIN0_PAD if l == 0 else LANES
        packed_blocks.append(
            _fold_and_pack(w_pt, b_pt, gamma, beta, mean, var, use_bn, cin_pad))

    in_feat = 128 * ds * ds
    kw, kb = keys[-2], keys[-1]
    w_lin = jax.random.normal(kw, (1, in_feat), jnp.float32) / jnp.sqrt(
        jnp.float32(in_feat))
    b_lin = jax.random.normal(kb, (1,), jnp.float32) * 0.01
    # Fold PyTorch's NCHW .view(N,-1) flatten order (c, i, j) into the weight:
    # kernel rows are (i*ds + j), lanes are channels.
    wl = w_lin.reshape(128, ds, ds).transpose(1, 2, 0).reshape(ds * ds, 128)
    bl = b_lin.reshape(1, 1)

    raw = {"blocks": raw_blocks, "w_lin": w_lin, "b_lin": b_lin}
    packed = {"blocks": packed_blocks, "wl": wl.astype(jnp.float32), "bl": bl}
    return raw, packed


# ---------------------------------------------------------------------------
# Wrapper
# ---------------------------------------------------------------------------
def discriminator_forward(img_nchw, packed, img_size):
    assert img_size % 16 == 0
    N = img_nchw.shape[0]
    S = img_size
    ds = S // 2 ** 4
    rows0 = (S + 2) * (S + 2)

    # NCHW -> NHWC, 1-pixel spatial halo, channels 3 -> 8, flatten spatial rows.
    x = jnp.transpose(img_nchw, (0, 2, 3, 1)).astype(jnp.float32)
    x = jnp.pad(x, ((0, 0), (1, 1), (1, 1), (0, CIN0_PAD - 3)))
    x = x.reshape(N, rows0, CIN0_PAD)

    flat_args = []
    for w, bv in packed["blocks"]:
        flat_args += [w, bv]
    flat_args += [packed["wl"], packed["bl"]]

    kernel = functools.partial(disc_kernel, img_size=S)
    grid_spec = pltpu.PrefetchScalarGridSpec(
        num_scalar_prefetch=0,
        grid=(N,),
        in_specs=[pl.BlockSpec((None, rows0, CIN0_PAD), lambda n: (n, 0, 0))]
        + [pl.BlockSpec(a.shape, lambda n: (0, 0)) for a in flat_args],
        out_specs=pl.BlockSpec((None, 1, 1), lambda n: (n, 0, 0)),
        scratch_shapes=[
            pltpu.VMEM(((S // 2 + 2) ** 2, LANES), jnp.float32),
            pltpu.VMEM(((S // 4 + 2) ** 2, LANES), jnp.float32),
            pltpu.VMEM(((S // 8 + 2) ** 2, LANES), jnp.float32),
            pltpu.VMEM((ds * ds, LANES), jnp.float32),
        ],
    )
    out = pl.pallas_call(
        kernel,
        out_shape=jax.ShapeDtypeStruct((N, 1, 1), jnp.float32),
        grid_spec=grid_spec,
        compiler_params=pltpu.CompilerParams(
            dimension_semantics=("parallel",)),   # v7x: 2 TCs split the batch
    )(x, *flat_args)
    return out.reshape(N, 1)


# ---------------------------------------------------------------------------
# Pure-JAX reference (eval-mode semantics) for correctness checking
# ---------------------------------------------------------------------------
def reference_forward(img_nchw, raw):
    x = img_nchw.astype(jnp.float32)
    for (w, b, gamma, beta, mean, var), (_, _, use_bn) in zip(raw["blocks"],
                                                              BLOCK_CFG):
        x = lax.conv_general_dilated(
            x, w, window_strides=(2, 2), padding=((1, 1), (1, 1)),
            dimension_numbers=("NCHW", "OIHW", "NCHW"))
        x = x + b[None, :, None, None]
        x = jnp.where(x >= 0.0, x, NEG_SLOPE * x)
        if use_bn:
            inv = lax.rsqrt(var + BN_EPS)
            x = ((x - mean[None, :, None, None])
                 * (inv * gamma)[None, :, None, None]
                 + beta[None, :, None, None])
    n = x.shape[0]
    flat = x.reshape(n, -1)
    logit = flat @ raw["w_lin"].T + raw["b_lin"][None, :]
    return jax.nn.sigmoid(logit)


if __name__ == "__main__":
    img_shape = 16                      # Discriminator(img_shape=16) -> ds=1
    key = jax.random.PRNGKey(0)
    k_img, k_params = jax.random.split(key)

    img = jax.random.normal(k_img, (2, 3, img_shape, img_shape), jnp.float32)
    raw, packed = init_params(k_params, img_shape)

    forward = jax.jit(functools.partial(discriminator_forward,
                                        img_size=img_shape))
    out = forward(img, packed)
    out = jax.block_until_ready(out)

    ref = reference_forward(img, raw)
    assert out.shape == (2, 1)
    assert bool(jnp.all((out >= 0.0) & (out <= 1.0)))
    # bf16 MXU inputs with f32 accumulation: stay well within a loose tolerance.
    assert float(jnp.max(jnp.abs(out - ref))) < 5e-2
    print("KERNEL_OK")
</pallas_src>

<mosaic_0001>
module attributes {stable_mosaic.version = 11 : i64} {
  func.func @disc_kernel(%arg0: i32, %arg1: memref<1x324x8xf32, #tpu.memory_space<vmem>>, %arg2: memref<72x128xbf16, #tpu.memory_space<vmem>>, %arg3: memref<2x128xf32, #tpu.memory_space<vmem>>, %arg4: memref<1152x128xbf16, #tpu.memory_space<vmem>>, %arg5: memref<2x128xf32, #tpu.memory_space<vmem>>, %arg6: memref<1152x128xbf16, #tpu.memory_space<vmem>>, %arg7: memref<2x128xf32, #tpu.memory_space<vmem>>, %arg8: memref<1152x128xbf16, #tpu.memory_space<vmem>>, %arg9: memref<2x128xf32, #tpu.memory_space<vmem>>, %arg10: memref<1x128xf32, #tpu.memory_space<vmem>>, %arg11: memref<1x1xf32, #tpu.memory_space<vmem>>, %arg12: memref<1x1x1xf32, #tpu.memory_space<vmem>>, %arg13: memref<100x128xf32, #tpu.memory_space<vmem>>, %arg14: memref<36x128xf32, #tpu.memory_space<vmem>>, %arg15: memref<16x128xf32, #tpu.memory_space<vmem>>, %arg16: memref<1x128xf32, #tpu.memory_space<vmem>>) attributes {dimension_semantics = [#tpu.dimension_semantics<parallel>], iteration_bounds = array<i64: 2>, scalar_prefetch = 0 : i64, scratch_operands = 4 : i64, tpu.core_type = #tpu.core_type<tc>, window_params = [{transform_indices = @transform_0, window_bounds = array<i64: 1, 324, 8>}, {pipeline_mode = #tpu.pipeline_mode<synchronous>, transform_indices = @transform_1, window_bounds = array<i64: 72, 128>}, {pipeline_mode = #tpu.pipeline_mode<synchronous>, transform_indices = @transform_2, window_bounds = array<i64: 2, 128>}, {pipeline_mode = #tpu.pipeline_mode<synchronous>, transform_indices = @transform_3, window_bounds = array<i64: 1152, 128>}, {pipeline_mode = #tpu.pipeline_mode<synchronous>, transform_indices = @transform_4, window_bounds = array<i64: 2, 128>}, {pipeline_mode = #tpu.pipeline_mode<synchronous>, transform_indices = @transform_5, window_bounds = array<i64: 1152, 128>}, {pipeline_mode = #tpu.pipeline_mode<synchronous>, transform_indices = @transform_6, window_bounds = array<i64: 2, 128>}, {pipeline_mode = #tpu.pipeline_mode<synchronous>, transform_indices = @transform_7, window_bounds = array<i64: 1152, 128>}, {pipeline_mode = #tpu.pipeline_mode<synchronous>, transform_indices = @transform_8, window_bounds = array<i64: 2, 128>}, {pipeline_mode = #tpu.pipeline_mode<synchronous>, transform_indices = @transform_9, window_bounds = array<i64: 1, 128>}, {pipeline_mode = #tpu.pipeline_mode<synchronous>, transform_indices = @transform_10, window_bounds = array<i64: 1, 1>}, {transform_indices = @transform_11, window_bounds = array<i64: 1, 1, 1>}]} {
    %cst = arith.constant 0.000000e+00 : f32
    %0 = vector.broadcast %cst : f32 to vector<100x128xf32>
    %c0 = arith.constant 0 : index
    %c0_0 = arith.constant 0 : index
    %1 = vector.load %arg13[%c0, %c0_0] : memref<100x128xf32, #tpu.memory_space<vmem>>, vector<100x128xf32>
    tpu.vector_store %arg13[%c0, %c0_0], %0 {strides = array<i32>} : memref<100x128xf32, #tpu.memory_space<vmem>>, vector<100x128xf32>,
    %cst_1 = arith.constant 0.000000e+00 : f32
    %2 = vector.broadcast %cst_1 : f32 to vector<36x128xf32>
    %c0_2 = arith.constant 0 : index
    %c0_3 = arith.constant 0 : index
    %3 = vector.load %arg14[%c0_2, %c0_3] : memref<36x128xf32, #tpu.memory_space<vmem>>, vector<36x128xf32>
    tpu.vector_store %arg14[%c0_2, %c0_3], %2 {strides = array<i32>} : memref<36x128xf32, #tpu.memory_space<vmem>>, vector<36x128xf32>,
    %cst_4 = arith.constant 0.000000e+00 : f32
    %4 = vector.broadcast %cst_4 : f32 to vector<16x128xf32>
    %c0_5 = arith.constant 0 : index
    %c0_6 = arith.constant 0 : index
    %5 = vector.load %arg15[%c0_5, %c0_6] : memref<16x128xf32, #tpu.memory_space<vmem>>, vector<16x128xf32>
    tpu.vector_store %arg15[%c0_5, %c0_6], %4 {strides = array<i32>} : memref<16x128xf32, #tpu.memory_space<vmem>>, vector<16x128xf32>,
    %c0_7 = arith.constant 0 : index
    %c0_8 = arith.constant 0 : index
    %6 = vector.load %arg3[%c0_7, %c0_8] : memref<2x128xf32, #tpu.memory_space<vmem>>, vector<1x128xf32>
    %c1 = arith.constant 1 : index
    %c0_9 = arith.constant 0 : index
    %7 = vector.load %arg3[%c1, %c0_9] : memref<2x128xf32, #tpu.memory_space<vmem>>, vector<1x128xf32>
    %cst_10 = arith.constant 0.000000e+00 : f32
    %8 = vector.broadcast %cst_10 : f32 to vector<8x128xf32>
    %c0_11 = arith.constant 0 : index
    %c0_12 = arith.constant 0 : index
    %c0_13 = arith.constant 0 : index
    %9 = tpu.strided_load %arg1[%c0_11, %c0_12, %c0_13] {strides = array<i32: 1, 2, 1>} : memref<1x324x8xf32, #tpu.memory_space<vmem>>, vector<1x8x8xf32>
    %10 = vector.shape_cast %9 : vector<1x8x8xf32> to vector<8x8xf32>
    %c0_14 = arith.constant 0 : index
    %c0_15 = arith.constant 0 : index
    %11 = vector.load %arg2[%c0_14, %c0_15] : memref<72x128xbf16, #tpu.memory_space<vmem>>, vector<8x128xbf16>
    %12 = arith.truncf %10 : vector<8x8xf32> to vector<8x8xbf16>
    %cst_16 = arith.constant dense<0.000000e+00> : vector<8x128xf32>
    %13 = tpu.matmul %12, %11, %cst_16 {dimension_numbers = #tpu.dot_dimension_numbers<[1], [0], [0], [1], [0, 0, 1, 1], [], []>} : vector<8x8xbf16>, vector<8x128xbf16>, vector<8x128xf32> -> vector<8x128xf32>
    %14 = arith.addf %8, %13 : vector<8x128xf32>
    %c0_17 = arith.constant 0 : index
    %c1_18 = arith.constant 1 : index
    %c0_19 = arith.constant 0 : index
    %15 = tpu.strided_load %arg1[%c0_17, %c1_18, %c0_19] {strides = array<i32: 1, 2, 1>} : memref<1x324x8xf32, #tpu.memory_space<vmem>>, vector<1x8x8xf32>
    %16 = vector.shape_cast %15 : vector<1x8x8xf32> to vector<8x8xf32>
    %c8 = arith.constant 8 : index
    %c0_20 = arith.constant 0 : index
    %17 = vector.load %arg2[%c8, %c0_20] : memref<72x128xbf16, #tpu.memory_space<vmem>>, vector<8x128xbf16>
    %18 = arith.truncf %16 : vector<8x8xf32> to vector<8x8xbf16>
    %cst_21 = arith.constant dense<0.000000e+00> : vector<8x128xf32>
    %19 = tpu.matmul %18, %17, %cst_21 {dimension_numbers = #tpu.dot_dimension_numbers<[1], [0], [0], [1], [0, 0, 1, 1], [], []>} : vector<8x8xbf16>, vector<8x128xbf16>, vector<8x128xf32> -> vector<8x128xf32>
    %20 = arith.addf %14, %19 : vector<8x128xf32>
    %c0_22 = arith.constant 0 : index
    %c2 = arith.constant 2 : index
    %c0_23 = arith.constant 0 : index
    %21 = tpu.strided_load %arg1[%c0_22, %c2, %c0_23] {strides = array<i32: 1, 2, 1>} : memref<1x324x8xf32, #tpu.memory_space<vmem>>, vector<1x8x8xf32>
    %22 = vector.shape_cast %21 : vector<1x8x8xf32> to vector<8x8xf32>
    %c16 = arith.constant 16 : index
    %c0_24 = arith.constant 0 : index
    %23 = vector.load %arg2[%c16, %c0_24] : memref<72x128xbf16, #tpu.memory_space<vmem>>, vector<8x128xbf16>
    %24 = arith.truncf %22 : vector<8x8xf32> to vector<8x8xbf16>
    %cst_25 = arith.constant dense<0.000000e+00> : vector<8x128xf32>
    %25 = tpu.matmul %24, %23, %cst_25 {dimension_numbers = #tpu.dot_dimension_numbers<[1], [0], [0], [1], [0, 0, 1, 1], [], []>} : vector<8x8xbf16>, vector<8x128xbf16>, vector<8x128xf32> -> vector<8x128xf32>
    %26 = arith.addf %20, %25 : vector<8x128xf32>
    %c0_26 = arith.constant 0 : index
    %c18 = arith.constant 18 : index
    %c0_27 = arith.constant 0 : index
    %27 = tpu.strided_load %arg1[%c0_26, %c18, %c0_27] {strides = array<i32: 1, 2, 1>} : memref<1x324x8xf32, #tpu.memory_space<vmem>>, vector<1x8x8xf32>
    %28 = vector.shape_cast %27 : vector<1x8x8xf32> to vector<8x8xf32>
    %c24 = arith.constant 24 : index
    %c0_28 = arith.constant 0 : index
    %29 = vector.load %arg2[%c24, %c0_28] : memref<72x128xbf16, #tpu.memory_space<vmem>>, vector<8x128xbf16>
    %30 = arith.truncf %28 : vector<8x8xf32> to vector<8x8xbf16>
    %cst_29 = arith.constant dense<0.000000e+00> : vector<8x128xf32>
    %31 = tpu.matmul %30, %29, %cst_29 {dimension_numbers = #tpu.dot_dimension_numbers<[1], [0], [0], [1], [0, 0, 1, 1], [], []>} : vector<8x8xbf16>, vector<8x128xbf16>, vector<8x128xf32> -> vector<8x128xf32>
    %32 = arith.addf %26, %31 : vector<8x128xf32>
    %c0_30 = arith.constant 0 : index
    %c19 = arith.constant 19 : index
    %c0_31 = arith.constant 0 : index
    %33 = tpu.strided_load %arg1[%c0_30, %c19, %c0_31] {strides = array<i32: 1, 2, 1>} : memref<1x324x8xf32, #tpu.memory_space<vmem>>, vector<1x8x8xf32>
    %34 = vector.shape_cast %33 : vector<1x8x8xf32> to vector<8x8xf32>
    %c32 = arith.constant 32 : index
    %c0_32 = arith.constant 0 : index
    %35 = vector.load %arg2[%c32, %c0_32] : memref<72x128xbf16, #tpu.memory_space<vmem>>, vector<8x128xbf16>
    %36 = arith.truncf %34 : vector<8x8xf32> to vector<8x8xbf16>
    %cst_33 = arith.constant dense<0.000000e+00> : vector<8x128xf32>
    %37 = tpu.matmul %36, %35, %cst_33 {dimension_numbers = #tpu.dot_dimension_numbers<[1], [0], [0], [1], [0, 0, 1, 1], [], []>} : vector<8x8xbf16>, vector<8x128xbf16>, vector<8x128xf32> -> vector<8x128xf32>
    %38 = arith.addf %32, %37 : vector<8x128xf32>
    %c0_34 = arith.constant 0 : index
    %c20 = arith.constant 20 : index
    %c0_35 = arith.constant 0 : index
    %39 = tpu.strided_load %arg1[%c0_34, %c20, %c0_35] {strides = array<i32: 1, 2, 1>} : memref<1x324x8xf32, #tpu.memory_space<vmem>>, vector<1x8x8xf32>
    %40 = vector.shape_cast %39 : vector<1x8x8xf32> to vector<8x8xf32>
    %c40 = arith.constant 40 : index
    %c0_36 = arith.constant 0 : index
    %41 = vector.load %arg2[%c40, %c0_36] : memref<72x128xbf16, #tpu.memory_space<vmem>>, vector<8x128xbf16>
    %42 = arith.truncf %40 : vector<8x8xf32> to vector<8x8xbf16>
    %cst_37 = arith.constant dense<0.000000e+00> : vector<8x128xf32>
    %43 = tpu.matmul %42, %41, %cst_37 {dimension_numbers = #tpu.dot_dimension_numbers<[1], [0], [0], [1], [0, 0, 1, 1], [], []>} : vector<8x8xbf16>, vector<8x128xbf16>, vector<8x128xf32> -> vector<8x128xf32>
    %44 = arith.addf %38, %43 : vector<8x128xf32>
    %c0_38 = arith.constant 0 : index
    %c36 = arith.constant 36 : index
    %c0_39 = arith.constant 0 : index
    %45 = tpu.strided_load %arg1[%c0_38, %c36, %c0_39] {strides = array<i32: 1, 2, 1>} : memref<1x324x8xf32, #tpu.memory_space<vmem>>, vector<1x8x8xf32>
    %46 = vector.shape_cast %45 : vector<1x8x8xf32> to vector<8x8xf32>
    %c48 = arith.constant 48 : index
    %c0_40 = arith.constant 0 : index
    %47 = vector.load %arg2[%c48, %c0_40] : memref<72x128xbf16, #tpu.memory_space<vmem>>, vector<8x128xbf16>
    %48 = arith.truncf %46 : vector<8x8xf32> to vector<8x8xbf16>
    %cst_41 = arith.constant dense<0.000000e+00> : vector<8x128xf32>
    %49 = tpu.matmul %48, %47, %cst_41 {dimension_numbers = #tpu.dot_dimension_numbers<[1], [0], [0], [1], [0, 0, 1, 1], [], []>} : vector<8x8xbf16>, vector<8x128xbf16>, vector<8x128xf32> -> vector<8x128xf32>
    %50 = arith.addf %44, %49 : vector<8x128xf32>
    %c0_42 = arith.constant 0 : index
    %c37 = arith.constant 37 : index
    %c0_43 = arith.constant 0 : index
    %51 = tpu.strided_load %arg1[%c0_42, %c37, %c0_43] {strides = array<i32: 1, 2, 1>} : memref<1x324x8xf32, #tpu.memory_space<vmem>>, vector<1x8x8xf32>
    %52 = vector.shape_cast %51 : vector<1x8x8xf32> to vector<8x8xf32>
    %c56 = arith.constant 56 : index
    %c0_44 = arith.constant 0 : index
    %53 = vector.load %arg2[%c56, %c0_44] : memref<72x128xbf16, #tpu.memory_space<vmem>>, vector<8x128xbf16>
    %54 = arith.truncf %52 : vector<8x8xf32> to vector<8x8xbf16>
    %cst_45 = arith.constant dense<0.000000e+00> : vector<8x128xf32>
    %55 = tpu.matmul %54, %53, %cst_45 {dimension_numbers = #tpu.dot_dimension_numbers<[1], [0], [0], [1], [0, 0, 1, 1], [], []>} : vector<8x8xbf16>, vector<8x128xbf16>, vector<8x128xf32> -> vector<8x128xf32>
    %56 = arith.addf %50, %55 : vector<8x128xf32>
    %c0_46 = arith.constant 0 : index
    %c38 = arith.constant 38 : index
    %c0_47 = arith.constant 0 : index
    %57 = tpu.strided_load %arg1[%c0_46, %c38, %c0_47] {strides = array<i32: 1, 2, 1>} : memref<1x324x8xf32, #tpu.memory_space<vmem>>, vector<1x8x8xf32>
    %58 = vector.shape_cast %57 : vector<1x8x8xf32> to vector<8x8xf32>
    %c64 = arith.constant 64 : index
    %c0_48 = arith.constant 0 : index
    %59 = vector.load %arg2[%c64, %c0_48] : memref<72x128xbf16, #tpu.memory_space<vmem>>, vector<8x128xbf16>
    %60 = arith.truncf %58 : vector<8x8xf32> to vector<8x8xbf16>
    %cst_49 = arith.constant dense<0.000000e+00> : vector<8x128xf32>
    %61 = tpu.matmul %60, %59, %cst_49 {dimension_numbers = #tpu.dot_dimension_numbers<[1], [0], [0], [1], [0, 0, 1, 1], [], []>} : vector<8x8xbf16>, vector<8x128xbf16>, vector<8x128xf32> -> vector<8x128xf32>
    %62 = arith.addf %56, %61 : vector<8x128xf32>
    %63 = vector.broadcast %6 : vector<1x128xf32> to vector<8x128xf32>
    %64 = arith.addf %62, %63 : vector<8x128xf32>
    %cst_50 = arith.constant 0.000000e+00 : f32
    %65 = vector.broadcast %cst_50 : f32 to vector<8x128xf32>
    %66 = arith.cmpf oge, %64, %65 : vector<8x128xf32>
    %cst_51 = arith.constant 0.00999999977 : f32
    %67 = vector.broadcast %cst_51 : f32 to vector<8x128xf32>
    %68 = arith.mulf %67, %64 : vector<8x128xf32>
    %69 = arith.select %66, %64, %68 : vector<8x128xi1>, vector<8x128xf32>
    %70 = vector.broadcast %7 : vector<1x128xf32> to vector<8x128xf32>
    %71 = arith.addf %69, %70 : vector<8x128xf32>
    %c11 = arith.constant 11 : index
    %c0_52 = arith.constant 0 : index
    %72 = vector.load %arg13[%c11, %c0_52] : memref<100x128xf32, #tpu.memory_space<vmem>>, vector<8x128xf32>
    tpu.vector_store %arg13[%c11, %c0_52], %71 {strides = array<i32>} : memref<100x128xf32, #tpu.memory_space<vmem>>, vector<8x128xf32>,
    %cst_53 = arith.constant 0.000000e+00 : f32
    %73 = vector.broadcast %cst_53 : f32 to vector<8x128xf32>
    %c0_54 = arith.constant 0 : index
    %c36_55 = arith.constant 36 : index
    %c0_56 = arith.constant 0 : index
    %74 = tpu.strided_load %arg1[%c0_54, %c36_55, %c0_56] {strides = array<i32: 1, 2, 1>} : memref<1x324x8xf32, #tpu.memory_space<vmem>>, vector<1x8x8xf32>
    %75 = vector.shape_cast %74 : vector<1x8x8xf32> to vector<8x8xf32>
    %c0_57 = arith.constant 0 : index
    %c0_58 = arith.constant 0 : index
    %76 = vector.load %arg2[%c0_57, %c0_58] : memref<72x128xbf16, #tpu.memory_space<vmem>>, vector<8x128xbf16>
    %77 = arith.truncf %75 : vector<8x8xf32> to vector<8x8xbf16>
    %cst_59 = arith.constant dense<0.000000e+00> : vector<8x128xf32>
    %78 = tpu.matmul %77, %76, %cst_59 {dimension_numbers = #tpu.dot_dimension_numbers<[1], [0], [0], [1], [0, 0, 1, 1], [], []>} : vector<8x8xbf16>, vector<8x128xbf16>, vector<8x128xf32> -> vector<8x128xf32>
    %79 = arith.addf %73, %78 : vector<8x128xf32>
    %c0_60 = arith.constant 0 : index
    %c37_61 = arith.constant 37 : index
    %c0_62 = arith.constant 0 : index
    %80 = tpu.strided_load %arg1[%c0_60, %c37_61, %c0_62] {strides = array<i32: 1, 2, 1>} : memref<1x324x8xf32, #tpu.memory_space<vmem>>, vector<1x8x8xf32>
    %81 = vector.shape_cast %80 : vector<1x8x8xf32> to vector<8x8xf32>
    %c8_63 = arith.constant 8 : index
    %c0_64 = arith.constant 0 : index
    %82 = vector.load %arg2[%c8_63, %c0_64] : memref<72x128xbf16, #tpu.memory_space<vmem>>, vector<8x128xbf16>
    %83 = arith.truncf %81 : vector<8x8xf32> to vector<8x8xbf16>
    %cst_65 = arith.constant dense<0.000000e+00> : vector<8x128xf32>
    %84 = tpu.matmul %83, %82, %cst_65 {dimension_numbers = #tpu.dot_dimension_numbers<[1], [0], [0], [1], [0, 0, 1, 1], [], []>} : vector<8x8xbf16>, vector<8x128xbf16>, vector<8x128xf32> -> vector<8x128xf32>
    %85 = arith.addf %79, %84 : vector<8x128xf32>
    %c0_66 = arith.constant 0 : index
    %c38_67 = arith.constant 38 : index
    %c0_68 = arith.constant 0 : index
    %86 = tpu.strided_load %arg1[%c0_66, %c38_67, %c0_68] {strides = array<i32: 1, 2, 1>} : memref<1x324x8xf32, #tpu.memory_space<vmem>>, vector<1x8x8xf32>
    %87 = vector.shape_cast %86 : vector<1x8x8xf32> to vector<8x8xf32>
    %c16_69 = arith.constant 16 : index
    %c0_70 = arith.constant 0 : index
    %88 = vector.load %arg2[%c16_69, %c0_70] : memref<72x128xbf16, #tpu.memory_space<vmem>>, vector<8x128xbf16>
    %89 = arith.truncf %87 : vector<8x8xf32> to vector<8x8xbf16>
    %cst_71 = arith.constant dense<0.000000e+00> : vector<8x128xf32>
    %90 = tpu.matmul %89, %88, %cst_71 {dimension_numbers = #tpu.dot_dimension_numbers<[1], [0], [0], [1], [0, 0, 1, 1], [], []>} : vector<8x8xbf16>, vector<8x128xbf16>, vector<8x128xf32> -> vector<8x128xf32>
    %91 = arith.addf %85, %90 : vector<8x128xf32>
    %c0_72 = arith.constant 0 : index
    %c54 = arith.constant 54 : index
    %c0_73 = arith.constant 0 : index
    %92 = tpu.strided_load %arg1[%c0_72, %c54, %c0_73] {strides = array<i32: 1, 2, 1>} : memref<1x324x8xf32, #tpu.memory_space<vmem>>, vector<1x8x8xf32>
    %93 = vector.shape_cast %92 : vector<1x8x8xf32> to vector<8x8xf32>
    %c24_74 = arith.constant 24 : index
    %c0_75 = arith.constant 0 : index
    %94 = vector.load %arg2[%c24_74, %c0_75] : memref<72x128xbf16, #tpu.memory_space<vmem>>, vector<8x128xbf16>
    %95 = arith.truncf %93 : vector<8x8xf32> to vector<8x8xbf16>
    %cst_76 = arith.constant dense<0.000000e+00> : vector<8x128xf32>
    %96 = tpu.matmul %95, %94, %cst_76 {dimension_numbers = #tpu.dot_dimension_numbers<[1], [0], [0], [1], [0, 0, 1, 1], [], []>} : vector<8x8xbf16>, vector<8x128xbf16>, vector<8x128xf32> -> vector<8x128xf32>
    %97 = arith.addf %91, %96 : vector<8x128xf32>
    %c0_77 = arith.constant 0 : index
    %c55 = arith.constant 55 : index
    %c0_78 = arith.constant 0 : index
    %98 = tpu.strided_load %arg1[%c0_77, %c55, %c0_78] {strides = array<i32: 1, 2, 1>} : memref<1x324x8xf32, #tpu.memory_space<vmem>>, vector<1x8x8xf32>
    %99 = vector.shape_cast %98 : vector<1x8x8xf32> to vector<8x8xf32>
    %c32_79 = arith.constant 32 : index
    %c0_80 = arith.constant 0 : index
    %100 = vector.load %arg2[%c32_79, %c0_80] : memref<72x128xbf16, #tpu.memory_space<vmem>>, vector<8x128xbf16>
    %101 = arith.truncf %99 : vector<8x8xf32> to vector<8x8xbf16>
    %cst_81 = arith.constant dense<0.000000e+00> : vector<8x128xf32>
    %102 = tpu.matmul %101, %100, %cst_81 {dimension_numbers = #tpu.dot_dimension_numbers<[1], [0], [0], [1], [0, 0, 1, 1], [], []>} : vector<8x8xbf16>, vector<8x128xbf16>, vector<8x128xf32> -> vector<8x128xf32>
    %103 = arith.addf %97, %102 : vector<8x128xf32>
    %c0_82 = arith.constant 0 : index
    %c56_83 = arith.constant 56 : index
    %c0_84 = arith.constant 0 : index
    %104 = tpu.strided_load %arg1[%c0_82, %c56_83, %c0_84] {strides = array<i32: 1, 2, 1>} : memref<1x324x8xf32, #tpu.memory_space<vmem>>, vector<1x8x8xf32>
    %105 = vector.shape_cast %104 : vector<1x8x8xf32> to vector<8x8xf32>
    %c40_85 = arith.constant 40 : index
    %c0_86 = arith.constant 0 : index
    %106 = vector.load %arg2[%c40_85, %c0_86] : memref<72x128xbf16, #tpu.memory_space<vmem>>, vector<8x128xbf16>
    %107 = arith.truncf %105 : vector<8x8xf32> to vector<8x8xbf16>
    %cst_87 = arith.constant dense<0.000000e+00> : vector<8x128xf32>
    %108 = tpu.matmul %107, %106, %cst_87 {dimension_numbers = #tpu.dot_dimension_numbers<[1], [0], [0], [1], [0, 0, 1, 1], [], []>} : vector<8x8xbf16>, vector<8x128xbf16>, vector<8x128xf32> -> vector<8x128xf32>
    %109 = arith.addf %103, %108 : vector<8x128xf32>
    %c0_88 = arith.constant 0 : index
    %c72 = arith.constant 72 : index
    %c0_89 = arith.constant 0 : index
    %110 = tpu.strided_load %arg1[%c0_88, %c72, %c0_89] {strides = array<i32: 1, 2, 1>} : memref<1x324x8xf32, #tpu.memory_space<vmem>>, vector<1x8x8xf32>
    %111 = vector.shape_cast %110 : vector<1x8x8xf32> to vector<8x8xf32>
    %c48_90 = arith.constant 48 : index
    %c0_91 = arith.constant 0 : index
    %112 = vector.load %arg2[%c48_90, %c0_91] : memref<72x128xbf16, #tpu.memory_space<vmem>>, vector<8x128xbf16>
    %113 = arith.truncf %111 : vector<8x8xf32> to vector<8x8xbf16>
    %cst_92 = arith.constant dense<0.000000e+00> : vector<8x128xf32>
    %114 = tpu.matmul %113, %112, %cst_92 {dimension_numbers = #tpu.dot_dimension_numbers<[1], [0], [0], [1], [0, 0, 1, 1], [], []>} : vector<8x8xbf16>, vector<8x128xbf16>, vector<8x128xf32> -> vector<8x128xf32>
    %115 = arith.addf %109, %114 : vector<8x128xf32>
    %c0_93 = arith.constant 0 : index
    %c73 = arith.constant 73 : index
    %c0_94 = arith.constant 0 : index
    %116 = tpu.strided_load %arg1[%c0_93, %c73, %c0_94] {strides = array<i32: 1, 2, 1>} : memref<1x324x8xf32, #tpu.memory_space<vmem>>, vector<1x8x8xf32>
    %117 = vector.shape_cast %116 : vector<1x8x8xf32> to vector<8x8xf32>
    %c56_95 = arith.constant 56 : index
    %c0_96 = arith.constant 0 : index
    %118 = vector.load %arg2[%c56_95, %c0_96] : memref<72x128xbf16, #tpu.memory_space<vmem>>, vector<8x128xbf16>
    %119 = arith.truncf %117 : vector<8x8xf32> to vector<8x8xbf16>
    %cst_97 = arith.constant dense<0.000000e+00> : vector<8x128xf32>
    %120 = tpu.matmul %119, %118, %cst_97 {dimension_numbers = #tpu.dot_dimension_numbers<[1], [0], [0], [1], [0, 0, 1, 1], [], []>} : vector<8x8xbf16>, vector<8x128xbf16>, vector<8x128xf32> -> vector<8x128xf32>
    %121 = arith.addf %115, %120 : vector<8x128xf32>
    %c0_98 = arith.constant 0 : index
    %c74 = arith.constant 74 : index
    %c0_99 = arith.constant 0 : index
    %122 = tpu.strided_load %arg1[%c0_98, %c74, %c0_99] {strides = array<i32: 1, 2, 1>} : memref<1x324x8xf32, #tpu.memory_space<vmem>>, vector<1x8x8xf32>
    %123 = vector.shape_cast %122 : vector<1x8x8xf32> to vector<8x8xf32>
    %c64_100 = arith.constant 64 : index
    %c0_101 = arith.constant 0 : index
    %124 = vector.load %arg2[%c64_100, %c0_101] : memref<72x128xbf16, #tpu.memory_space<vmem>>, vector<8x128xbf16>
    %125 = arith.truncf %123 : vector<8x8xf32> to vector<8x8xbf16>
    %cst_102 = arith.constant dense<0.000000e+00> : vector<8x128xf32>
    %126 = tpu.matmul %125, %124, %cst_102 {dimension_numbers = #tpu.dot_dimension_numbers<[1], [0], [0], [1], [0, 0, 1, 1], [], []>} : vector<8x8xbf16>, vector<8x128xbf16>, vector<8x128xf32> -> vector<8x128xf32>
    %127 = arith.addf %121, %126 : vector<8x128xf32>
    %128 = vector.broadcast %6 : vector<1x128xf32> to vector<8x128xf32>
    %129 = arith.addf %127, %128 : vector<8x128xf32>
    %cst_103 = arith.constant 0.000000e+00 : f32
    %130 = vector.broadcast %cst_103 : f32 to vector<8x128xf32>
    %131 = arith.cmpf oge, %129, %130 : vector<8x128xf32>
    %cst_104 = arith.constant 0.00999999977 : f32
    %132 = vector.broadcast %cst_104 : f32 to vector<8x128xf32>
    %133 = arith.mulf %132, %129 : vector<8x128xf32>
    %134 = arith.select %131, %129, %133 : vector<8x128xi1>, vector<8x128xf32>
    %135 = vector.broadcast %7 : vector<1x128xf32> to vector<8x128xf32>
    %136 = arith.addf %134, %135 : vector<8x128xf32>
    %c21 = arith.constant 21 : index
    %c0_105 = arith.constant 0 : index
    %137 = vector.load %arg13[%c21, %c0_105] : memref<100x128xf32, #tpu.memory_space<vmem>>, vector<8x128xf32>
    tpu.vector_store %arg13[%c21, %c0_105], %136 {strides = array<i32>} : memref<100x128xf32, #tpu.memory_space<vmem>>, vector<8x128xf32>,
    %cst_106 = arith.constant 0.000000e+00 : f32
    %138 = vector.broadcast %cst_106 : f32 to vector<8x128xf32>
    %c0_107 = arith.constant 0 : index
    %c72_108 = arith.constant 72 : index
    %c0_109 = arith.constant 0 : index
    %139 = tpu.strided_load %arg1[%c0_107, %c72_108, %c0_109] {strides = array<i32: 1, 2, 1>} : memref<1x324x8xf32, #tpu.memory_space<vmem>>, vector<1x8x8xf32>
    %140 = vector.shape_cast %139 : vector<1x8x8xf32> to vector<8x8xf32>
    %c0_110 = arith.constant 0 : index
    %c0_111 = arith.constant 0 : index
    %141 = vector.load %arg2[%c0_110, %c0_111] : memref<72x128xbf16, #tpu.memory_space<vmem>>, vector<8x128xbf16>
    %142 = arith.truncf %140 : vector<8x8xf32> to vector<8x8xbf16>
    %cst_112 = arith.constant dense<0.000000e+00> : vector<8x128xf32>
    %143 = tpu.matmul %142, %141, %cst_112 {dimension_numbers = #tpu.dot_dimension_numbers<[1], [0], [0], [1], [0, 0, 1, 1], [], []>} : vector<8x8xbf16>, vector<8x128xbf16>, vector<8x128xf32> -> vector<8x128xf32>
    %144 = arith.addf %138, %143 : vector<8x128xf32>
    %c0_113 = arith.constant 0 : index
    %c73_114 = arith.constant 73 : index
    %c0_115 = arith.constant 0 : index
    %145 = tpu.strided_load %arg1[%c0_113, %c73_114, %c0_115] {strides = array<i32: 1, 2, 1>} : memref<1x324x8xf32, #tpu.memory_space<vmem>>, vector<1x8x8xf32>
    %146 = vector.shape_cast %145 : vector<1x8x8xf32> to vector<8x8xf32>
    %c8_116 = arith.constant 8 : index
    %c0_117 = arith.constant 0 : index
    %147 = vector.load %arg2[%c8_116, %c0_117] : memref<72x128xbf16, #tpu.memory_space<vmem>>, vector<8x128xbf16>
    %148 = arith.truncf %146 : vector<8x8xf32> to vector<8x8xbf16>
    %cst_118 = arith.constant dense<0.000000e+00> : vector<8x128xf32>
    %149 = tpu.matmul %148, %147, %cst_118 {dimension_numbers = #tpu.dot_dimension_numbers<[1], [0], [0], [1], [0, 0, 1, 1], [], []>} : vector<8x8xbf16>, vector<8x128xbf16>, vector<8x128xf32> -> vector<8x128xf32>
    %150 = arith.addf %144, %149 : vector<8x128xf32>
    %c0_119 = arith.constant 0 : index
    %c74_120 = arith.constant 74 : index
    %c0_121 = arith.constant 0 : index
    %151 = tpu.strided_load %arg1[%c0_119, %c74_120, %c0_121] {strides = array<i32: 1, 2, 1>} : memref<1x324x8xf32, #tpu.memory_space<vmem>>, vector<1x8x8xf32>
    %152 = vector.shape_cast %151 : vector<1x8x8xf32> to vector<8x8xf32>
    %c16_122 = arith.constant 16 : index
    %c0_123 = arith.constant 0 : index
    %153 = vector.load %arg2[%c16_122, %c0_123] : memref<72x128xbf16, #tpu.memory_space<vmem>>, vector<8x128xbf16>
    %154 = arith.truncf %152 : vector<8x8xf32> to vector<8x8xbf16>
    %cst_124 = arith.constant dense<0.000000e+00> : vector<8x128xf32>
    %155 = tpu.matmul %154, %153, %cst_124 {dimension_numbers = #tpu.dot_dimension_numbers<[1], [0], [0], [1], [0, 0, 1, 1], [], []>} : vector<8x8xbf16>, vector<8x128xbf16>, vector<8x128xf32> -> vector<8x128xf32>
    %156 = arith.addf %150, %155 : vector<8x128xf32>
    %c0_125 = arith.constant 0 : index
    %c90 = arith.constant 90 : index
    %c0_126 = arith.constant 0 : index
    %157 = tpu.strided_load %arg1[%c0_125, %c90, %c0_126] {strides = array<i32: 1, 2, 1>} : memref<1x324x8xf32, #tpu.memory_space<vmem>>, vector<1x8x8xf32>
    %158 = vector.shape_cast %157 : vector<1x8x8xf32> to vector<8x8xf32>
    %c24_127 = arith.constant 24 : index
    %c0_128 = arith.constant 0 : index
    %159 = vector.load %arg2[%c24_127, %c0_128] : memref<72x128xbf16, #tpu.memory_space<vmem>>, vector<8x128xbf16>
    %160 = arith.truncf %158 : vector<8x8xf32> to vector<8x8xbf16>
    %cst_129 = arith.constant dense<0.000000e+00> : vector<8x128xf32>
    %161 = tpu.matmul %160, %159, %cst_129 {dimension_numbers = #tpu.dot_dimension_numbers<[1], [0], [0], [1], [0, 0, 1, 1], [], []>} : vector<8x8xbf16>, vector<8x128xbf16>, vector<8x128xf32> -> vector<8x128xf32>
    %162 = arith.addf %156, %161 : vector<8x128xf32>
    %c0_130 = arith.constant 0 : index
    %c91 = arith.constant 91 : index
    %c0_131 = arith.constant 0 : index
    %163 = tpu.strided_load %arg1[%c0_130, %c91, %c0_131] {strides = array<i32: 1, 2, 1>} : memref<1x324x8xf32, #tpu.memory_space<vmem>>, vector<1x8x8xf32>
    %164 = vector.shape_cast %163 : vector<1x8x8xf32> to vector<8x8xf32>
    %c32_132 = arith.constant 32 : index
    %c0_133 = arith.constant 0 : index
    %165 = vector.load %arg2[%c32_132, %c0_133] : memref<72x128xbf16, #tpu.memory_space<vmem>>, vector<8x128xbf16>
    %166 = arith.truncf %164 : vector<8x8xf32> to vector<8x8xbf16>
    %cst_134 = arith.constant dense<0.000000e+00> : vector<8x128xf32>
    %167 = tpu.matmul %166, %165, %cst_134 {dimension_numbers = #tpu.dot_dimension_numbers<[1], [0], [0], [1], [0, 0, 1, 1], [], []>} : vector<8x8xbf16>, vector<8x128xbf16>, vector<8x128xf32> -> vector<8x128xf32>
    %168 = arith.addf %162, %167 : vector<8x128xf32>
    %c0_135 = arith.constant 0 : index
    %c92 = arith.constant 92 : index
    %c0_136 = arith.constant 0 : index
    %169 = tpu.strided_load %arg1[%c0_135, %c92, %c0_136] {strides = array<i32: 1, 2, 1>} : memref<1x324x8xf32, #tpu.memory_space<vmem>>, vector<1x8x8xf32>
    %170 = vector.shape_cast %169 : vector<1x8x8xf32> to vector<8x8xf32>
    %c40_137 = arith.constant 40 : index
    %c0_138 = arith.constant 0 : index
    %171 = vector.load %arg2[%c40_137, %c0_138] : memref<72x128xbf16, #tpu.memory_space<vmem>>, vector<8x128xbf16>
    %172 = arith.truncf %170 : vector<8x8xf32> to vector<8x8xbf16>
    %cst_139 = arith.constant dense<0.000000e+00> : vector<8x128xf32>
    %173 = tpu.matmul %172, %171, %cst_139 {dimension_numbers = #tpu.dot_dimension_numbers<[1], [0], [0], [1], [0, 0, 1, 1], [], []>} : vector<8x8xbf16>, vector<8x128xbf16>, vector<8x128xf32> -> vector<8x128xf32>
    %174 = arith.addf %168, %173 : vector<8x128xf32>
    %c0_140 = arith.constant 0 : index
    %c108 = arith.constant 108 : index
    %c0_141 = arith.constant 0 : index
    %175 = tpu.strided_load %arg1[%c0_140, %c108, %c0_141] {strides = array<i32: 1, 2, 1>} : memref<1x324x8xf32, #tpu.memory_space<vmem>>, vector<1x8x8xf32>
    %176 = vector.shape_cast %175 : vector<1x8x8xf32> to vector<8x8xf32>
    %c48_142 = arith.constant 48 : index
    %c0_143 = arith.constant 0 : index
    %177 = vector.load %arg2[%c48_142, %c0_143] : memref<72x128xbf16, #tpu.memory_space<vmem>>, vector<8x128xbf16>
    %178 = arith.truncf %176 : vector<8x8xf32> to vector<8x8xbf16>
    %cst_144 = arith.constant dense<0.000000e+00> : vector<8x128xf32>
    %179 = tpu.matmul %178, %177, %cst_144 {dimension_numbers = #tpu.dot_dimension_numbers<[1], [0], [0], [1], [0, 0, 1, 1], [], []>} : vector<8x8xbf16>, vector<8x128xbf16>, vector<8x128xf32> -> vector<8x128xf32>
    %180 = arith.addf %174, %179 : vector<8x128xf32>
    %c0_145 = arith.constant 0 : index
    %c109 = arith.constant 109 : index
    %c0_146 = arith.constant 0 : index
    %181 = tpu.strided_load %arg1[%c0_145, %c109, %c0_146] {strides = array<i32: 1, 2, 1>} : memref<1x324x8xf32, #tpu.memory_space<vmem>>, vector<1x8x8xf32>
    %182 = vector.shape_cast %181 : vector<1x8x8xf32> to vector<8x8xf32>
    %c56_147 = arith.constant 56 : index
    %c0_148 = arith.constant 0 : index
    %183 = vector.load %arg2[%c56_147, %c0_148] : memref<72x128xbf16, #tpu.memory_space<vmem>>, vector<8x128xbf16>
    %184 = arith.truncf %182 : vector<8x8xf32> to vector<8x8xbf16>
    %cst_149 = arith.constant dense<0.000000e+00> : vector<8x128xf32>
    %185 = tpu.matmul %184, %183, %cst_149 {dimension_numbers = #tpu.dot_dimension_numbers<[1], [0], [0], [1], [0, 0, 1, 1], [], []>} : vector<8x8xbf16>, vector<8x128xbf16>, vector<8x128xf32> -> vector<8x128xf32>
    %186 = arith.addf %180, %185 : vector<8x128xf32>
    %c0_150 = arith.constant 0 : index
    %c110 = arith.constant 110 : index
    %c0_151 = arith.constant 0 : index
    %187 = tpu.strided_load %arg1[%c0_150, %c110, %c0_151] {strides = array<i32: 1, 2, 1>} : memref<1x324x8xf32, #tpu.memory_space<vmem>>, vector<1x8x8xf32>
    %188 = vector.shape_cast %187 : vector<1x8x8xf32> to vector<8x8xf32>
    %c64_152 = arith.constant 64 : index
    %c0_153 = arith.constant 0 : index
    %189 = vector.load %arg2[%c64_152, %c0_153] : memref<72x128xbf16, #tpu.memory_space<vmem>>, vector<8x128xbf16>
    %190 = arith.truncf %188 : vector<8x8xf32> to vector<8x8xbf16>
    %cst_154 = arith.constant dense<0.000000e+00> : vector<8x128xf32>
    %191 = tpu.matmul %190, %189, %cst_154 {dimension_numbers = #tpu.dot_dimension_numbers<[1], [0], [0], [1], [0, 0, 1, 1], [], []>} : vector<8x8xbf16>, vector<8x128xbf16>, vector<8x128xf32> -> vector<8x128xf32>
    %192 = arith.addf %186, %191 : vector<8x128xf32>
    %193 = vector.broadcast %6 : vector<1x128xf32> to vector<8x128xf32>
    %194 = arith.addf %192, %193 : vector<8x128xf32>
    %cst_155 = arith.constant 0.000000e+00 : f32
    %195 = vector.broadcast %cst_155 : f32 to vector<8x128xf32>
    %196 = arith.cmpf oge, %194, %195 : vector<8x128xf32>
    %cst_156 = arith.constant 0.00999999977 : f32
    %197 = vector.broadcast %cst_156 : f32 to vector<8x128xf32>
    %198 = arith.mulf %197, %194 : vector<8x128xf32>
    %199 = arith.select %196, %194, %198 : vector<8x128xi1>, vector<8x128xf32>
    %200 = vector.broadcast %7 : vector<1x128xf32> to vector<8x128xf32>
    %201 = arith.addf %199, %200 : vector<8x128xf32>
    %c31 = arith.constant 31 : index
    %c0_157 = arith.constant 0 : index
    %202 = vector.load %arg13[%c31, %c0_157] : memref<100x128xf32, #tpu.memory_space<vmem>>, vector<8x128xf32>
    tpu.vector_store %arg13[%c31, %c0_157], %201 {strides = array<i32>} : memref<100x128xf32, #tpu.memory_space<vmem>>, vector<8x128xf32>,
    %cst_158 = arith.constant 0.000000e+00 : f32
    %203 = vector.broadcast %cst_158 : f32 to vector<8x128xf32>
    %c0_159 = arith.constant 0 : index
    %c108_160 = arith.constant 108 : index
    %c0_161 = arith.constant 0 : index
    %204 = tpu.strided_load %arg1[%c0_159, %c108_160, %c0_161] {strides = array<i32: 1, 2, 1>} : memref<1x324x8xf32, #tpu.memory_space<vmem>>, vector<1x8x8xf32>
    %205 = vector.shape_cast %204 : vector<1x8x8xf32> to vector<8x8xf32>
    %c0_162 = arith.constant 0 : index
    %c0_163 = arith.constant 0 : index
    %206 = vector.load %arg2[%c0_162, %c0_163] : memref<72x128xbf16, #tpu.memory_space<vmem>>, vector<8x128xbf16>
    %207 = arith.truncf %205 : vector<8x8xf32> to vector<8x8xbf16>
    %cst_164 = arith.constant dense<0.000000e+00> : vector<8x128xf32>
    %208 = tpu.matmul %207, %206, %cst_164 {dimension_numbers = #tpu.dot_dimension_numbers<[1], [0], [0], [1], [0, 0, 1, 1], [], []>} : vector<8x8xbf16>, vector<8x128xbf16>, vector<8x128xf32> -> vector<8x128xf32>
    %209 = arith.addf %203, %208 : vector<8x128xf32>
    %c0_165 = arith.constant 0 : index
    %c109_166 = arith.constant 109 : index
    %c0_167 = arith.constant 0 : index
    %210 = tpu.strided_load %arg1[%c0_165, %c109_166, %c0_167] {strides = array<i32: 1, 2, 1>} : memref<1x324x8xf32, #tpu.memory_space<vmem>>, vector<1x8x8xf32>
    %211 = vector.shape_cast %210 : vector<1x8x8xf32> to vector<8x8xf32>
    %c8_168 = arith.constant 8 : index
    %c0_169 = arith.constant 0 : index
    %212 = vector.load %arg2[%c8_168, %c0_169] : memref<72x128xbf16, #tpu.memory_space<vmem>>, vector<8x128xbf16>
    %213 = arith.truncf %211 : vector<8x8xf32> to vector<8x8xbf16>
    %cst_170 = arith.constant dense<0.000000e+00> : vector<8x128xf32>
    %214 = tpu.matmul %213, %212, %cst_170 {dimension_numbers = #tpu.dot_dimension_numbers<[1], [0], [0], [1], [0, 0, 1, 1], [], []>} : vector<8x8xbf16>, vector<8x128xbf16>, vector<8x128xf32> -> vector<8x128xf32>
    %215 = arith.addf %209, %214 : vector<8x128xf32>
    %c0_171 = arith.constant 0 : index
    %c110_172 = arith.constant 110 : index
    %c0_173 = arith.constant 0 : index
    %216 = tpu.strided_load %arg1[%c0_171, %c110_172, %c0_173] {strides = array<i32: 1, 2, 1>} : memref<1x324x8xf32, #tpu.memory_space<vmem>>, vector<1x8x8xf32>
    %217 = vector.shape_cast %216 : vector<1x8x8xf32> to vector<8x8xf32>
    %c16_174 = arith.constant 16 : index
    %c0_175 = arith.constant 0 : index
    %218 = vector.load %arg2[%c16_174, %c0_175] : memref<72x128xbf16, #tpu.memory_space<vmem>>, vector<8x128xbf16>
    %219 = arith.truncf %217 : vector<8x8xf32> to vector<8x8xbf16>
    %cst_176 = arith.constant dense<0.000000e+00> : vector<8x128xf32>
    %220 = tpu.matmul %219, %218, %cst_176 {dimension_numbers = #tpu.dot_dimension_numbers<[1], [0], [0], [1], [0, 0, 1, 1], [], []>} : vector<8x8xbf16>, vector<8x128xbf16>, vector<8x128xf32> -> vector<8x128xf32>
    %221 = arith.addf %215, %220 : vector<8x128xf32>
    %c0_177 = arith.constant 0 : index
    %c126 = arith.constant 126 : index
    %c0_178 = arith.constant 0 : index
    %222 = tpu.strided_load %arg1[%c0_177, %c126, %c0_178] {strides = array<i32: 1, 2, 1>} : memref<1x324x8xf32, #tpu.memory_space<vmem>>, vector<1x8x8xf32>
    %223 = vector.shape_cast %222 : vector<1x8x8xf32> to vector<8x8xf32>
    %c24_179 = arith.constant 24 : index
    %c0_180 = arith.constant 0 : index
    %224 = vector.load %arg2[%c24_179, %c0_180] : memref<72x128xbf16, #tpu.memory_space<vmem>>, vector<8x128xbf16>
    %225 = arith.truncf %223 : vector<8x8xf32> to vector<8x8xbf16>
    %cst_181 = arith.constant dense<0.000000e+00> : vector<8x128xf32>
    %226 = tpu.matmul %225, %224, %cst_181 {dimension_numbers = #tpu.dot_dimension_numbers<[1], [0], [0], [1], [0, 0, 1, 1], [], []>} : vector<8x8xbf16>, vector<8x128xbf16>, vector<8x128xf32> -> vector<8x128xf32>
    %227 = arith.addf %221, %226 : vector<8x128xf32>
    %c0_182 = arith.constant 0 : index
    %c127 = arith.constant 127 : index
    %c0_183 = arith.constant 0 : index
    %228 = tpu.strided_load %arg1[%c0_182, %c127, %c0_183] {strides = array<i32: 1, 2, 1>} : memref<1x324x8xf32, #tpu.memory_space<vmem>>, vector<1x8x8xf32>
    %229 = vector.shape_cast %228 : vector<1x8x8xf32> to vector<8x8xf32>
    %c32_184 = arith.constant 32 : index
    %c0_185 = arith.constant 0 : index
    %230 = vector.load %arg2[%c32_184, %c0_185] : memref<72x128xbf16, #tpu.memory_space<vmem>>, vector<8x128xbf16>
    %231 = arith.truncf %229 : vector<8x8xf32> to vector<8x8xbf16>
    %cst_186 = arith.constant dense<0.000000e+00> : vector<8x128xf32>
    %232 = tpu.matmul %231, %230, %cst_186 {dimension_numbers = #tpu.dot_dimension_numbers<[1], [0], [0], [1], [0, 0, 1, 1], [], []>} : vector<8x8xbf16>, vector<8x128xbf16>, vector<8x128xf32> -> vector<8x128xf32>
    %233 = arith.addf %227, %232 : vector<8x128xf32>
    %c0_187 = arith.constant 0 : index
    %c128 = arith.constant 128 : index
    %c0_188 = arith.constant 0 : index
    %234 = tpu.strided_load %arg1[%c0_187, %c128, %c0_188] {strides = array<i32: 1, 2, 1>} : memref<1x324x8xf32, #tpu.memory_space<vmem>>, vector<1x8x8xf32>
    %235 = vector.shape_cast %234 : vector<1x8x8xf32> to vector<8x8xf32>
    %c40_189 = arith.constant 40 : index
    %c0_190 = arith.constant 0 : index
    %236 = vector.load %arg2[%c40_189, %c0_190] : memref<72x128xbf16, #tpu.memory_space<vmem>>, vector<8x128xbf16>
    %237 = arith.truncf %235 : vector<8x8xf32> to vector<8x8xbf16>
    %cst_191 = arith.constant dense<0.000000e+00> : vector<8x128xf32>
    %238 = tpu.matmul %237, %236, %cst_191 {dimension_numbers = #tpu.dot_dimension_numbers<[1], [0], [0], [1], [0, 0, 1, 1], [], []>} : vector<8x8xbf16>, vector<8x128xbf16>, vector<8x128xf32> -> vector<8x128xf32>
    %239 = arith.addf %233, %238 : vector<8x128xf32>
    %c0_192 = arith.constant 0 : index
    %c144 = arith.constant 144 : index
    %c0_193 = arith.constant 0 : index
    %240 = tpu.strided_load %arg1[%c0_192, %c144, %c0_193] {strides = array<i32: 1, 2, 1>} : memref<1x324x8xf32, #tpu.memory_space<vmem>>, vector<1x8x8xf32>
    %241 = vector.shape_cast %240 : vector<1x8x8xf32> to vector<8x8xf32>
    %c48_194 = arith.constant 48 : index
    %c0_195 = arith.constant 0 : index
    %242 = vector.load %arg2[%c48_194, %c0_195] : memref<72x128xbf16, #tpu.memory_space<vmem>>, vector<8x128xbf16>
    %243 = arith.truncf %241 : vector<8x8xf32> to vector<8x8xbf16>
    %cst_196 = arith.constant dense<0.000000e+00> : vector<8x128xf32>
    %244 = tpu.matmul %243, %242, %cst_196 {dimension_numbers = #tpu.dot_dimension_numbers<[1], [0], [0], [1], [0, 0, 1, 1], [], []>} : vector<8x8xbf16>, vector<8x128xbf16>, vector<8x128xf32> -> vector<8x128xf32>
    %245 = arith.addf %239, %244 : vector<8x128xf32>
    %c0_197 = arith.constant 0 : index
    %c145 = arith.constant 145 : index
    %c0_198 = arith.constant 0 : index
    %246 = tpu.strided_load %arg1[%c0_197, %c145, %c0_198] {strides = array<i32: 1, 2, 1>} : memref<1x324x8xf32, #tpu.memory_space<vmem>>, vector<1x8x8xf32>
    %247 = vector.shape_cast %246 : vector<1x8x8xf32> to vector<8x8xf32>
    %c56_199 = arith.constant 56 : index
    %c0_200 = arith.constant 0 : index
    %248 = vector.load %arg2[%c56_199, %c0_200] : memref<72x128xbf16, #tpu.memory_space<vmem>>, vector<8x128xbf16>
    %249 = arith.truncf %247 : vector<8x8xf32> to vector<8x8xbf16>
    %cst_201 = arith.constant dense<0.000000e+00> : vector<8x128xf32>
    %250 = tpu.matmul %249, %248, %cst_201 {dimension_numbers = #tpu.dot_dimension_numbers<[1], [0], [0], [1], [0, 0, 1, 1], [], []>} : vector<8x8xbf16>, vector<8x128xbf16>, vector<8x128xf32> -> vector<8x128xf32>
    %251 = arith.addf %245, %250 : vector<8x128xf32>
    %c0_202 = arith.constant 0 : index
    %c146 = arith.constant 146 : index
    %c0_203 = arith.constant 0 : index
    %252 = tpu.strided_load %arg1[%c0_202, %c146, %c0_203] {strides = array<i32: 1, 2, 1>} : memref<1x324x8xf32, #tpu.memory_space<vmem>>, vector<1x8x8xf32>
    %253 = vector.shape_cast %252 : vector<1x8x8xf32> to vector<8x8xf32>
    %c64_204 = arith.constant 64 : index
    %c0_205 = arith.constant 0 : index
    %254 = vector.load %arg2[%c64_204, %c0_205] : memref<72x128xbf16, #tpu.memory_space<vmem>>, vector<8x128xbf16>
    %255 = arith.truncf %253 : vector<8x8xf32> to vector<8x8xbf16>
    %cst_206 = arith.constant dense<0.000000e+00> : vector<8x128xf32>
    %256 = tpu.matmul %255, %254, %cst_206 {dimension_numbers = #tpu.dot_dimension_numbers<[1], [0], [0], [1], [0, 0, 1, 1], [], []>} : vector<8x8xbf16>, vector<8x128xbf16>, vector<8x128xf32> -> vector<8x128xf32>
    %257 = arith.addf %251, %256 : vector<8x128xf32>
    %258 = vector.broadcast %6 : vector<1x128xf32> to vector<8x128xf32>
    %259 = arith.addf %257, %258 : vector<8x128xf32>
    %cst_207 = arith.constant 0.000000e+00 : f32
    %260 = vector.broadcast %cst_207 : f32 to vector<8x128xf32>
    %261 = arith.cmpf oge, %259, %260 : vector<8x128xf32>
    %cst_208 = arith.constant 0.00999999977 : f32
    %262 = vector.broadcast %cst_208 : f32 to vector<8x128xf32>
    %263 = arith.mulf %262, %259 : vector<8x128xf32>
    %264 = arith.select %261, %259, %263 : vector<8x128xi1>, vector<8x128xf32>
    %265 = vector.broadcast %7 : vector<1x128xf32> to vector<8x128xf32>
    %266 = arith.addf %264, %265 : vector<8x128xf32>
    %c41 = arith.constant 41 : index
    %c0_209 = arith.constant 0 : index
    %267 = vector.load %arg13[%c41, %c0_209] : memref<100x128xf32, #tpu.memory_space<vmem>>, vector<8x128xf32>
    tpu.vector_store %arg13[%c41, %c0_209], %266 {strides = array<i32>} : memref<100x128xf32, #tpu.memory_space<vmem>>, vector<8x128xf32>,
    %cst_210 = arith.constant 0.000000e+00 : f32
    %268 = vector.broadcast %cst_210 : f32 to vector<8x128xf32>
    %c0_211 = arith.constant 0 : index
    %c144_212 = arith.constant 144 : index
    %c0_213 = arith.constant 0 : index
    %269 = tpu.strided_load %arg1[%c0_211, %c144_212, %c0_213] {strides = array<i32: 1, 2, 1>} : memref<1x324x8xf32, #tpu.memory_space<vmem>>, vector<1x8x8xf32>
    %270 = vector.shape_cast %269 : vector<1x8x8xf32> to vector<8x8xf32>
    %c0_214 = arith.constant 0 : index
    %c0_215 = arith.constant 0 : index
    %271 = vector.load %arg2[%c0_214, %c0_215] : memref<72x128xbf16, #tpu.memory_space<vmem>>, vector<8x128xbf16>
    %272 = arith.truncf %270 : vector<8x8xf32> to vector<8x8xbf16>
    %cst_216 = arith.constant dense<0.000000e+00> : vector<8x128xf32>
    %273 = tpu.matmul %272, %271, %cst_216 {dimension_numbers = #tpu.dot_dimension_numbers<[1], [0], [0], [1], [0, 0, 1, 1], [], []>} : vector<8x8xbf16>, vector<8x128xbf16>, vector<8x128xf32> -> vector<8x128xf32>
    %274 = arith.addf %268, %273 : vector<8x128xf32>
    %c0_217 = arith.constant 0 : index
    %c145_218 = arith.constant 145 : index
    %c0_219 = arith.constant 0 : index
    %275 = tpu.strided_load %arg1[%c0_217, %c145_218, %c0_219] {strides = array<i32: 1, 2, 1>} : memref<1x324x8xf32, #tpu.memory_space<vmem>>, vector<1x8x8xf32>
    %276 = vector.shape_cast %275 : vector<1x8x8xf32> to vector<8x8xf32>
    %c8_220 = arith.constant 8 : index
    %c0_221 = arith.constant 0 : index
    %277 = vector.load %arg2[%c8_220, %c0_221] : memref<72x128xbf16, #tpu.memory_space<vmem>>, vector<8x128xbf16>
    %278 = arith.truncf %276 : vector<8x8xf32> to vector<8x8xbf16>
    %cst_222 = arith.constant dense<0.000000e+00> : vector<8x128xf32>
    %279 = tpu.matmul %278, %277, %cst_222 {dimension_numbers = #tpu.dot_dimension_numbers<[1], [0], [0], [1], [0, 0, 1, 1], [], []>} : vector<8x8xbf16>, vector<8x128xbf16>, vector<8x128xf32> -> vector<8x128xf32>
    %280 = arith.addf %274, %279 : vector<8x128xf32>
    %c0_223 = arith.constant 0 : index
    %c146_224 = arith.constant 146 : index
    %c0_225 = arith.constant 0 : index
    %281 = tpu.strided_load %arg1[%c0_223, %c146_224, %c0_225] {strides = array<i32: 1, 2, 1>} : memref<1x324x8xf32, #tpu.memory_space<vmem>>, vector<1x8x8xf32>
    %282 = vector.shape_cast %281 : vector<1x8x8xf32> to vector<8x8xf32>
    %c16_226 = arith.constant 16 : index
    %c0_227 = arith.constant 0 : index
    %283 = vector.load %arg2[%c16_226, %c0_227] : memref<72x128xbf16, #tpu.memory_space<vmem>>, vector<8x128xbf16>
    %284 = arith.truncf %282 : vector<8x8xf32> to vector<8x8xbf16>
    %cst_228 = arith.constant dense<0.000000e+00> : vector<8x128xf32>
    %285 = tpu.matmul %284, %283, %cst_228 {dimension_numbers = #tpu.dot_dimension_numbers<[1], [0], [0], [1], [0, 0, 1, 1], [], []>} : vector<8x8xbf16>, vector<8x128xbf16>, vector<8x128xf32> -> vector<8x128xf32>
    %286 = arith.addf %280, %285 : vector<8x128xf32>
    %c0_229 = arith.constant 0 : index
    %c162 = arith.constant 162 : index
    %c0_230 = arith.constant 0 : index
    %287 = tpu.strided_load %arg1[%c0_229, %c162, %c0_230] {strides = array<i32: 1, 2, 1>} : memref<1x324x8xf32, #tpu.memory_space<vmem>>, vector<1x8x8xf32>
    %288 = vector.shape_cast %287 : vector<1x8x8xf32> to vector<8x8xf32>
    %c24_231 = arith.constant 24 : index
    %c0_232 = arith.constant 0 : index
    %289 = vector.load %arg2[%c24_231, %c0_232] : memref<72x128xbf16, #tpu.memory_space<vmem>>, vector<8x128xbf16>
    %290 = arith.truncf %288 : vector<8x8xf32> to vector<8x8xbf16>
    %cst_233 = arith.constant dense<0.000000e+00> : vector<8x128xf32>
    %291 = tpu.matmul %290, %289, %cst_233 {dimension_numbers = #tpu.dot_dimension_numbers<[1], [0], [0], [1], [0, 0, 1, 1], [], []>} : vector<8x8xbf16>, vector<8x128xbf16>, vector<8x128xf32> -> vector<8x128xf32>
    %292 = arith.addf %286, %291 : vector<8x128xf32>
    %c0_234 = arith.constant 0 : index
    %c163 = arith.constant 163 : index
    %c0_235 = arith.constant 0 : index
    %293 = tpu.strided_load %arg1[%c0_234, %c163, %c0_235] {strides = array<i32: 1, 2, 1>} : memref<1x324x8xf32, #tpu.memory_space<vmem>>, vector<1x8x8xf32>
    %294 = vector.shape_cast %293 : vector<1x8x8xf32> to vector<8x8xf32>
    %c32_236 = arith.constant 32 : index
    %c0_237 = arith.constant 0 : index
    %295 = vector.load %arg2[%c32_236, %c0_237] : memref<72x128xbf16, #tpu.memory_space<vmem>>, vector<8x128xbf16>
    %296 = arith.truncf %294 : vector<8x8xf32> to vector<8x8xbf16>
    %cst_238 = arith.constant dense<0.000000e+00> : vector<8x128xf32>
    %297 = tpu.matmul %296, %295, %cst_238 {dimension_numbers = #tpu.dot_dimension_numbers<[1], [0], [0], [1], [0, 0, 1, 1], [], []>} : vector<8x8xbf16>, vector<8x128xbf16>, vector<8x128xf32> -> vector<8x128xf32>
    %298 = arith.addf %292, %297 : vector<8x128xf32>
    %c0_239 = arith.constant 0 : index
    %c164 = arith.constant 164 : index
    %c0_240 = arith.constant 0 : index
    %299 = tpu.strided_load %arg1[%c0_239, %c164, %c0_240] {strides = array<i32: 1, 2, 1>} : memref<1x324x8xf32, #tpu.memory_space<vmem>>, vector<1x8x8xf32>
    %300 = vector.shape_cast %299 : vector<1x8x8xf32> to vector<8x8xf32>
    %c40_241 = arith.constant 40 : index
    %c0_242 = arith.constant 0 : index
    %301 = vector.load %arg2[%c40_241, %c0_242] : memref<72x128xbf16, #tpu.memory_space<vmem>>, vector<8x128xbf16>
    %302 = arith.truncf %300 : vector<8x8xf32> to vector<8x8xbf16>
    %cst_243 = arith.constant dense<0.000000e+00> : vector<8x128xf32>
    %303 = tpu.matmul %302, %301, %cst_243 {dimension_numbers = #tpu.dot_dimension_numbers<[1], [0], [0], [1], [0, 0, 1, 1], [], []>} : vector<8x8xbf16>, vector<8x128xbf16>, vector<8x128xf32> -> vector<8x128xf32>
    %304 = arith.addf %298, %303 : vector<8x128xf32>
    %c0_244 = arith.constant 0 : index
    %c180 = arith.constant 180 : index
    %c0_245 = arith.constant 0 : index
    %305 = tpu.strided_load %arg1[%c0_244, %c180, %c0_245] {strides = array<i32: 1, 2, 1>} : memref<1x324x8xf32, #tpu.memory_space<vmem>>, vector<1x8x8xf32>
    %306 = vector.shape_cast %305 : vector<1x8x8xf32> to vector<8x8xf32>
    %c48_246 = arith.constant 48 : index
    %c0_247 = arith.constant 0 : index
    %307 = vector.load %arg2[%c48_246, %c0_247] : memref<72x128xbf16, #tpu.memory_space<vmem>>, vector<8x128xbf16>
    %308 = arith.truncf %306 : vector<8x8xf32> to vector<8x8xbf16>
    %cst_248 = arith.constant dense<0.000000e+00> : vector<8x128xf32>
    %309 = tpu.matmul %308, %307, %cst_248 {dimension_numbers = #tpu.dot_dimension_numbers<[1], [0], [0], [1], [0, 0, 1, 1], [], []>} : vector<8x8xbf16>, vector<8x128xbf16>, vector<8x128xf32> -> vector<8x128xf32>
    %310 = arith.addf %304, %309 : vector<8x128xf32>
    %c0_249 = arith.constant 0 : index
    %c181 = arith.constant 181 : index
    %c0_250 = arith.constant 0 : index
    %311 = tpu.strided_load %arg1[%c0_249, %c181, %c0_250] {strides = array<i32: 1, 2, 1>} : memref<1x324x8xf32, #tpu.memory_space<vmem>>, vector<1x8x8xf32>
    %312 = vector.shape_cast %311 : vector<1x8x8xf32> to vector<8x8xf32>
    %c56_251 = arith.constant 56 : index
    %c0_252 = arith.constant 0 : index
    %313 = vector.load %arg2[%c56_251, %c0_252] : memref<72x128xbf16, #tpu.memory_space<vmem>>, vector<8x128xbf16>
    %314 = arith.truncf %312 : vector<8x8xf32> to vector<8x8xbf16>
    %cst_253 = arith.constant dense<0.000000e+00> : vector<8x128xf32>
    %315 = tpu.matmul %314, %313, %cst_253 {dimension_numbers = #tpu.dot_dimension_numbers<[1], [0], [0], [1], [0, 0, 1, 1], [], []>} : vector<8x8xbf16>, vector<8x128xbf16>, vector<8x128xf32> -> vector<8x128xf32>
    %316 = arith.addf %310, %315 : vector<8x128xf32>
    %c0_254 = arith.constant 0 : index
    %c182 = arith.constant 182 : index
    %c0_255 = arith.constant 0 : index
    %317 = tpu.strided_load %arg1[%c0_254, %c182, %c0_255] {strides = array<i32: 1, 2, 1>} : memref<1x324x8xf32, #tpu.memory_space<vmem>>, vector<1x8x8xf32>
    %318 = vector.shape_cast %317 : vector<1x8x8xf32> to vector<8x8xf32>
    %c64_256 = arith.constant 64 : index
    %c0_257 = arith.constant 0 : index
    %319 = vector.load %arg2[%c64_256, %c0_257] : memref<72x128xbf16, #tpu.memory_space<vmem>>, vector<8x128xbf16>
    %320 = arith.truncf %318 : vector<8x8xf32> to vector<8x8xbf16>
    %cst_258 = arith.constant dense<0.000000e+00> : vector<8x128xf32>
    %321 = tpu.matmul %320, %319, %cst_258 {dimension_numbers = #tpu.dot_dimension_numbers<[1], [0], [0], [1], [0, 0, 1, 1], [], []>} : vector<8x8xbf16>, vector<8x128xbf16>, vector<8x128xf32> -> vector<8x128xf32>
    %322 = arith.addf %316, %321 : vector<8x128xf32>
    %323 = vector.broadcast %6 : vector<1x128xf32> to vector<8x128xf32>
    %324 = arith.addf %322, %323 : vector<8x128xf32>
    %cst_259 = arith.constant 0.000000e+00 : f32
    %325 = vector.broadcast %cst_259 : f32 to vector<8x128xf32>
    %326 = arith.cmpf oge, %324, %325 : vector<8x128xf32>
    %cst_260 = arith.constant 0.00999999977 : f32
    %327 = vector.broadcast %cst_260 : f32 to vector<8x128xf32>
    %328 = arith.mulf %327, %324 : vector<8x128xf32>
    %329 = arith.select %326, %324, %328 : vector<8x128xi1>, vector<8x128xf32>
    %330 = vector.broadcast %7 : vector<1x128xf32> to vector<8x128xf32>
    %331 = arith.addf %329, %330 : vector<8x128xf32>
    %c51 = arith.constant 51 : index
    %c0_261 = arith.constant 0 : index
    %332 = vector.load %arg13[%c51, %c0_261] : memref<100x128xf32, #tpu.memory_space<vmem>>, vector<8x128xf32>
    tpu.vector_store %arg13[%c51, %c0_261], %331 {strides = array<i32>} : memref<100x128xf32, #tpu.memory_space<vmem>>, vector<8x128xf32>,
    %cst_262 = arith.constant 0.000000e+00 : f32
    %333 = vector.broadcast %cst_262 : f32 to vector<8x128xf32>
    %c0_263 = arith.constant 0 : index
    %c180_264 = arith.constant 180 : index
    %c0_265 = arith.constant 0 : index
    %334 = tpu.strided_load %arg1[%c0_263, %c180_264, %c0_265] {strides = array<i32: 1, 2, 1>} : memref<1x324x8xf32, #tpu.memory_space<vmem>>, vector<1x8x8xf32>
    %335 = vector.shape_cast %334 : vector<1x8x8xf32> to vector<8x8xf32>
    %c0_266 = arith.constant 0 : index
    %c0_267 = arith.constant 0 : index
    %336 = vector.load %arg2[%c0_266, %c0_267] : memref<72x128xbf16, #tpu.memory_space<vmem>>, vector<8x128xbf16>
    %337 = arith.truncf %335 : vector<8x8xf32> to vector<8x8xbf16>
    %cst_268 = arith.constant dense<0.000000e+00> : vector<8x128xf32>
    %338 = tpu.matmul %337, %336, %cst_268 {dimension_numbers = #tpu.dot_dimension_numbers<[1], [0], [0], [1], [0, 0, 1, 1], [], []>} : vector<8x8xbf16>, vector<8x128xbf16>, vector<8x128xf32> -> vector<8x128xf32>
    %339 = arith.addf %333, %338 : vector<8x128xf32>
    %c0_269 = arith.constant 0 : index
    %c181_270 = arith.constant 181 : index
    %c0_271 = arith.constant 0 : index
    %340 = tpu.strided_load %arg1[%c0_269, %c181_270, %c0_271] {strides = array<i32: 1, 2, 1>} : memref<1x324x8xf32, #tpu.memory_space<vmem>>, vector<1x8x8xf32>
    %341 = vector.shape_cast %340 : vector<1x8x8xf32> to vector<8x8xf32>
    %c8_272 = arith.constant 8 : index
    %c0_273 = arith.constant 0 : index
    %342 = vector.load %arg2[%c8_272, %c0_273] : memref<72x128xbf16, #tpu.memory_space<vmem>>, vector<8x128xbf16>
    %343 = arith.truncf %341 : vector<8x8xf32> to vector<8x8xbf16>
    %cst_274 = arith.constant dense<0.000000e+00> : vector<8x128xf32>
    %344 = tpu.matmul %343, %342, %cst_274 {dimension_numbers = #tpu.dot_dimension_numbers<[1], [0], [0], [1], [0, 0, 1, 1], [], []>} : vector<8x8xbf16>, vector<8x128xbf16>, vector<8x128xf32> -> vector<8x128xf32>
    %345 = arith.addf %339, %344 : vector<8x128xf32>
    %c0_275 = arith.constant 0 : index
    %c182_276 = arith.constant 182 : index
    %c0_277 = arith.constant 0 : index
    %346 = tpu.strided_load %arg1[%c0_275, %c182_276, %c0_277] {strides = array<i32: 1, 2, 1>} : memref<1x324x8xf32, #tpu.memory_space<vmem>>, vector<1x8x8xf32>
    %347 = vector.shape_cast %346 : vector<1x8x8xf32> to vector<8x8xf32>
    %c16_278 = arith.constant 16 : index
    %c0_279 = arith.constant 0 : index
    %348 = vector.load %arg2[%c16_278, %c0_279] : memref<72x128xbf16, #tpu.memory_space<vmem>>, vector<8x128xbf16>
    %349 = arith.truncf %347 : vector<8x8xf32> to vector<8x8xbf16>
    %cst_280 = arith.constant dense<0.000000e+00> : vector<8x128xf32>
    %350 = tpu.matmul %349, %348, %cst_280 {dimension_numbers = #tpu.dot_dimension_numbers<[1], [0], [0], [1], [0, 0, 1, 1], [], []>} : vector<8x8xbf16>, vector<8x128xbf16>, vector<8x128xf32> -> vector<8x128xf32>
    %351 = arith.addf %345, %350 : vector<8x128xf32>
    %c0_281 = arith.constant 0 : index
    %c198 = arith.constant 198 : index
    %c0_282 = arith.constant 0 : index
    %352 = tpu.strided_load %arg1[%c0_281, %c198, %c0_282] {strides = array<i32: 1, 2, 1>} : memref<1x324x8xf32, #tpu.memory_space<vmem>>, vector<1x8x8xf32>
    %353 = vector.shape_cast %352 : vector<1x8x8xf32> to vector<8x8xf32>
    %c24_283 = arith.constant 24 : index
    %c0_284 = arith.constant 0 : index
    %354 = vector.load %arg2[%c24_283, %c0_284] : memref<72x128xbf16, #tpu.memory_space<vmem>>, vector<8x128xbf16>
    %355 = arith.truncf %353 : vector<8x8xf32> to vector<8x8xbf16>
    %cst_285 = arith.constant dense<0.000000e+00> : vector<8x128xf32>
    %356 = tpu.matmul %355, %354, %cst_285 {dimension_numbers = #tpu.dot_dimension_numbers<[1], [0], [0], [1], [0, 0, 1, 1], [], []>} : vector<8x8xbf16>, vector<8x128xbf16>, vector<8x128xf32> -> vector<8x128xf32>
    %357 = arith.addf %351, %356 : vector<8x128xf32>
    %c0_286 = arith.constant 0 : index
    %c199 = arith.constant 199 : index
    %c0_287 = arith.constant 0 : index
    %358 = tpu.strided_load %arg1[%c0_286, %c199, %c0_287] {strides = array<i32: 1, 2, 1>} : memref<1x324x8xf32, #tpu.memory_space<vmem>>, vector<1x8x8xf32>
    %359 = vector.shape_cast %358 : vector<1x8x8xf32> to vector<8x8xf32>
    %c32_288 = arith.constant 32 : index
    %c0_289 = arith.constant 0 : index
    %360 = vector.load %arg2[%c32_288, %c0_289] : memref<72x128xbf16, #tpu.memory_space<vmem>>, vector<8x128xbf16>
    %361 = arith.truncf %359 : vector<8x8xf32> to vector<8x8xbf16>
    %cst_290 = arith.constant dense<0.000000e+00> : vector<8x128xf32>
    %362 = tpu.matmul %361, %360, %cst_290 {dimension_numbers = #tpu.dot_dimension_numbers<[1], [0], [0], [1], [0, 0, 1, 1], [], []>} : vector<8x8xbf16>, vector<8x128xbf16>, vector<8x128xf32> -> vector<8x128xf32>
    %363 = arith.addf %357, %362 : vector<8x128xf32>
    %c0_291 = arith.constant 0 : index
    %c200 = arith.constant 200 : index
    %c0_292 = arith.constant 0 : index
    %364 = tpu.strided_load %arg1[%c0_291, %c200, %c0_292] {strides = array<i32: 1, 2, 1>} : memref<1x324x8xf32, #tpu.memory_space<vmem>>, vector<1x8x8xf32>
    %365 = vector.shape_cast %364 : vector<1x8x8xf32> to vector<8x8xf32>
    %c40_293 = arith.constant 40 : index
    %c0_294 = arith.constant 0 : index
    %366 = vector.load %arg2[%c40_293, %c0_294] : memref<72x128xbf16, #tpu.memory_space<vmem>>, vector<8x128xbf16>
    %367 = arith.truncf %365 : vector<8x8xf32> to vector<8x8xbf16>
    %cst_295 = arith.constant dense<0.000000e+00> : vector<8x128xf32>
    %368 = tpu.matmul %367, %366, %cst_295 {dimension_numbers = #tpu.dot_dimension_numbers<[1], [0], [0], [1], [0, 0, 1, 1], [], []>} : vector<8x8xbf16>, vector<8x128xbf16>, vector<8x128xf32> -> vector<8x128xf32>
    %369 = arith.addf %363, %368 : vector<8x128xf32>
    %c0_296 = arith.constant 0 : index
    %c216 = arith.constant 216 : index
    %c0_297 = arith.constant 0 : index
    %370 = tpu.strided_load %arg1[%c0_296, %c216, %c0_297] {strides = array<i32: 1, 2, 1>} : memref<1x324x8xf32, #tpu.memory_space<vmem>>, vector<1x8x8xf32>
    %371 = vector.shape_cast %370 : vector<1x8x8xf32> to vector<8x8xf32>
    %c48_298 = arith.constant 48 : index
    %c0_299 = arith.constant 0 : index
    %372 = vector.load %arg2[%c48_298, %c0_299] : memref<72x128xbf16, #tpu.memory_space<vmem>>, vector<8x128xbf16>
    %373 = arith.truncf %371 : vector<8x8xf32> to vector<8x8xbf16>
    %cst_300 = arith.constant dense<0.000000e+00> : vector<8x128xf32>
    %374 = tpu.matmul %373, %372, %cst_300 {dimension_numbers = #tpu.dot_dimension_numbers<[1], [0], [0], [1], [0, 0, 1, 1], [], []>} : vector<8x8xbf16>, vector<8x128xbf16>, vector<8x128xf32> -> vector<8x128xf32>
    %375 = arith.addf %369, %374 : vector<8x128xf32>
    %c0_301 = arith.constant 0 : index
    %c217 = arith.constant 217 : index
    %c0_302 = arith.constant 0 : index
    %376 = tpu.strided_load %arg1[%c0_301, %c217, %c0_302] {strides = array<i32: 1, 2, 1>} : memref<1x324x8xf32, #tpu.memory_space<vmem>>, vector<1x8x8xf32>
    %377 = vector.shape_cast %376 : vector<1x8x8xf32> to vector<8x8xf32>
    %c56_303 = arith.constant 56 : index
    %c0_304 = arith.constant 0 : index
    %378 = vector.load %arg2[%c56_303, %c0_304] : memref<72x128xbf16, #tpu.memory_space<vmem>>, vector<8x128xbf16>
    %379 = arith.truncf %377 : vector<8x8xf32> to vector<8x8xbf16>
    %cst_305 = arith.constant dense<0.000000e+00> : vector<8x128xf32>
    %380 = tpu.matmul %379, %378, %cst_305 {dimension_numbers = #tpu.dot_dimension_numbers<[1], [0], [0], [1], [0, 0, 1, 1], [], []>} : vector<8x8xbf16>, vector<8x128xbf16>, vector<8x128xf32> -> vector<8x128xf32>
    %381 = arith.addf %375, %380 : vector<8x128xf32>
    %c0_306 = arith.constant 0 : index
    %c218 = arith.constant 218 : index
    %c0_307 = arith.constant 0 : index
    %382 = tpu.strided_load %arg1[%c0_306, %c218, %c0_307] {strides = array<i32: 1, 2, 1>} : memref<1x324x8xf32, #tpu.memory_space<vmem>>, vector<1x8x8xf32>
    %383 = vector.shape_cast %382 : vector<1x8x8xf32> to vector<8x8xf32>
    %c64_308 = arith.constant 64 : index
    %c0_309 = arith.constant 0 : index
    %384 = vector.load %arg2[%c64_308, %c0_309] : memref<72x128xbf16, #tpu.memory_space<vmem>>, vector<8x128xbf16>
    %385 = arith.truncf %383 : vector<8x8xf32> to vector<8x8xbf16>
    %cst_310 = arith.constant dense<0.000000e+00> : vector<8x128xf32>
    %386 = tpu.matmul %385, %384, %cst_310 {dimension_numbers = #tpu.dot_dimension_numbers<[1], [0], [0], [1], [0, 0, 1, 1], [], []>} : vector<8x8xbf16>, vector<8x128xbf16>, vector<8x128xf32> -> vector<8x128xf32>
    %387 = arith.addf %381, %386 : vector<8x128xf32>
    %388 = vector.broadcast %6 : vector<1x128xf32> to vector<8x128xf32>
    %389 = arith.addf %387, %388 : vector<8x128xf32>
    %cst_311 = arith.constant 0.000000e+00 : f32
    %390 = vector.broadcast %cst_311 : f32 to vector<8x128xf32>
    %391 = arith.cmpf oge, %389, %390 : vector<8x128xf32>
    %cst_312 = arith.constant 0.00999999977 : f32
    %392 = vector.broadcast %cst_312 : f32 to vector<8x128xf32>
    %393 = arith.mulf %392, %389 : vector<8x128xf32>
    %394 = arith.select %391, %389, %393 : vector<8x128xi1>, vector<8x128xf32>
    %395 = vector.broadcast %7 : vector<1x128xf32> to vector<8x128xf32>
    %396 = arith.addf %394, %395 : vector<8x128xf32>
    %c61 = arith.constant 61 : index
    %c0_313 = arith.constant 0 : index
    %397 = vector.load %arg13[%c61, %c0_313] : memref<100x128xf32, #tpu.memory_space<vmem>>, vector<8x128xf32>
    tpu.vector_store %arg13[%c61, %c0_313], %396 {strides = array<i32>} : memref<100x128xf32, #tpu.memory_space<vmem>>, vector<8x128xf32>,
    %cst_314 = arith.constant 0.000000e+00 : f32
    %398 = vector.broadcast %cst_314 : f32 to vector<8x128xf32>
    %c0_315 = arith.constant 0 : index
    %c216_316 = arith.constant 216 : index
    %c0_317 = arith.constant 0 : index
    %399 = tpu.strided_load %arg1[%c0_315, %c216_316, %c0_317] {strides = array<i32: 1, 2, 1>} : memref<1x324x8xf32, #tpu.memory_space<vmem>>, vector<1x8x8xf32>
    %400 = vector.shape_cast %399 : vector<1x8x8xf32> to vector<8x8xf32>
    %c0_318 = arith.constant 0 : index
    %c0_319 = arith.constant 0 : index
    %401 = vector.load %arg2[%c0_318, %c0_319] : memref<72x128xbf16, #tpu.memory_space<vmem>>, vector<8x128xbf16>
    %402 = arith.truncf %400 : vector<8x8xf32> to vector<8x8xbf16>
    %cst_320 = arith.constant dense<0.000000e+00> : vector<8x128xf32>
    %403 = tpu.matmul %402, %401, %cst_320 {dimension_numbers = #tpu.dot_dimension_numbers<[1], [0], [0], [1], [0, 0, 1, 1], [], []>} : vector<8x8xbf16>, vector<8x128xbf16>, vector<8x128xf32> -> vector<8x128xf32>
    %404 = arith.addf %398, %403 : vector<8x128xf32>
    %c0_321 = arith.constant 0 : index
    %c217_322 = arith.constant 217 : index
    %c0_323 = arith.constant 0 : index
    %405 = tpu.strided_load %arg1[%c0_321, %c217_322, %c0_323] {strides = array<i32: 1, 2, 1>} : memref<1x324x8xf32, #tpu.memory_space<vmem>>, vector<1x8x8xf32>
    %406 = vector.shape_cast %405 : vector<1x8x8xf32> to vector<8x8xf32>
    %c8_324 = arith.constant 8 : index
    %c0_325 = arith.constant 0 : index
    %407 = vector.load %arg2[%c8_324, %c0_325] : memref<72x128xbf16, #tpu.memory_space<vmem>>, vector<8x128xbf16>
    %408 = arith.truncf %406 : vector<8x8xf32> to vector<8x8xbf16>
    %cst_326 = arith.constant dense<0.000000e+00> : vector<8x128xf32>
    %409 = tpu.matmul %408, %407, %cst_326 {dimension_numbers = #tpu.dot_dimension_numbers<[1], [0], [0], [1], [0, 0, 1, 1], [], []>} : vector<8x8xbf16>, vector<8x128xbf16>, vector<8x128xf32> -> vector<8x128xf32>
    %410 = arith.addf %404, %409 : vector<8x128xf32>
    %c0_327 = arith.constant 0 : index
    %c218_328 = arith.constant 218 : index
    %c0_329 = arith.constant 0 : index
    %411 = tpu.strided_load %arg1[%c0_327, %c218_328, %c0_329] {strides = array<i32: 1, 2, 1>} : memref<1x324x8xf32, #tpu.memory_space<vmem>>, vector<1x8x8xf32>
    %412 = vector.shape_cast %411 : vector<1x8x8xf32> to vector<8x8xf32>
    %c16_330 = arith.constant 16 : index
    %c0_331 = arith.constant 0 : index
    %413 = vector.load %arg2[%c16_330, %c0_331] : memref<72x128xbf16, #tpu.memory_space<vmem>>, vector<8x128xbf16>
    %414 = arith.truncf %412 : vector<8x8xf32> to vector<8x8xbf16>
    %cst_332 = arith.constant dense<0.000000e+00> : vector<8x128xf32>
    %415 = tpu.matmul %414, %413, %cst_332 {dimension_numbers = #tpu.dot_dimension_numbers<[1], [0], [0], [1], [0, 0, 1, 1], [], []>} : vector<8x8xbf16>, vector<8x128xbf16>, vector<8x128xf32> -> vector<8x128xf32>
    %416 = arith.addf %410, %415 : vector<8x128xf32>
    %c0_333 = arith.constant 0 : index
    %c234 = arith.constant 234 : index
    %c0_334 = arith.constant 0 : index
    %417 = tpu.strided_load %arg1[%c0_333, %c234, %c0_334] {strides = array<i32: 1, 2, 1>} : memref<1x324x8xf32, #tpu.memory_space<vmem>>, vector<1x8x8xf32>
    %418 = vector.shape_cast %417 : vector<1x8x8xf32> to vector<8x8xf32>
    %c24_335 = arith.constant 24 : index
    %c0_336 = arith.constant 0 : index
    %419 = vector.load %arg2[%c24_335, %c0_336] : memref<72x128xbf16, #tpu.memory_space<vmem>>, vector<8x128xbf16>
    %420 = arith.truncf %418 : vector<8x8xf32> to vector<8x8xbf16>
    %cst_337 = arith.constant dense<0.000000e+00> : vector<8x128xf32>
    %421 = tpu.matmul %420, %419, %cst_337 {dimension_numbers = #tpu.dot_dimension_numbers<[1], [0], [0], [1], [0, 0, 1, 1], [], []>} : vector<8x8xbf16>, vector<8x128xbf16>, vector<8x128xf32> -> vector<8x128xf32>
    %422 = arith.addf %416, %421 : vector<8x128xf32>
    %c0_338 = arith.constant 0 : index
    %c235 = arith.constant 235 : index
    %c0_339 = arith.constant 0 : index
    %423 = tpu.strided_load %arg1[%c0_338, %c235, %c0_339] {strides = array<i32: 1, 2, 1>} : memref<1x324x8xf32, #tpu.memory_space<vmem>>, vector<1x8x8xf32>
    %424 = vector.shape_cast %423 : vector<1x8x8xf32> to vector<8x8xf32>
    %c32_340 = arith.constant 32 : index
    %c0_341 = arith.constant 0 : index
    %425 = vector.load %arg2[%c32_340, %c0_341] : memref<72x128xbf16, #tpu.memory_space<vmem>>, vector<8x128xbf16>
    %426 = arith.truncf %424 : vector<8x8xf32> to vector<8x8xbf16>
    %cst_342 = arith.constant dense<0.000000e+00> : vector<8x128xf32>
    %427 = tpu.matmul %426, %425, %cst_342 {dimension_numbers = #tpu.dot_dimension_numbers<[1], [0], [0], [1], [0, 0, 1, 1], [], []>} : vector<8x8xbf16>, vector<8x128xbf16>, vector<8x128xf32> -> vector<8x128xf32>
    %428 = arith.addf %422, %427 : vector<8x128xf32>
    %c0_343 = arith.constant 0 : index
    %c236 = arith.constant 236 : index
    %c0_344 = arith.constant 0 : index
    %429 = tpu.strided_load %arg1[%c0_343, %c236, %c0_344] {strides = array<i32: 1, 2, 1>} : memref<1x324x8xf32, #tpu.memory_space<vmem>>, vector<1x8x8xf32>
    %430 = vector.shape_cast %429 : vector<1x8x8xf32> to vector<8x8xf32>
    %c40_345 = arith.constant 40 : index
    %c0_346 = arith.constant 0 : index
    %431 = vector.load %arg2[%c40_345, %c0_346] : memref<72x128xbf16, #tpu.memory_space<vmem>>, vector<8x128xbf16>
    %432 = arith.truncf %430 : vector<8x8xf32> to vector<8x8xbf16>
    %cst_347 = arith.constant dense<0.000000e+00> : vector<8x128xf32>
    %433 = tpu.matmul %432, %431, %cst_347 {dimension_numbers = #tpu.dot_dimension_numbers<[1], [0], [0], [1], [0, 0, 1, 1], [], []>} : vector<8x8xbf16>, vector<8x128xbf16>, vector<8x128xf32> -> vector<8x128xf32>
    %434 = arith.addf %428, %433 : vector<8x128xf32>
    %c0_348 = arith.constant 0 : index
    %c252 = arith.constant 252 : index
    %c0_349 = arith.constant 0 : index
    %435 = tpu.strided_load %arg1[%c0_348, %c252, %c0_349] {strides = array<i32: 1, 2, 1>} : memref<1x324x8xf32, #tpu.memory_space<vmem>>, vector<1x8x8xf32>
    %436 = vector.shape_cast %435 : vector<1x8x8xf32> to vector<8x8xf32>
    %c48_350 = arith.constant 48 : index
    %c0_351 = arith.constant 0 : index
    %437 = vector.load %arg2[%c48_350, %c0_351] : memref<72x128xbf16, #tpu.memory_space<vmem>>, vector<8x128xbf16>
    %438 = arith.truncf %436 : vector<8x8xf32> to vector<8x8xbf16>
    %cst_352 = arith.constant dense<0.000000e+00> : vector<8x128xf32>
    %439 = tpu.matmul %438, %437, %cst_352 {dimension_numbers = #tpu.dot_dimension_numbers<[1], [0], [0], [1], [0, 0, 1, 1], [], []>} : vector<8x8xbf16>, vector<8x128xbf16>, vector<8x128xf32> -> vector<8x128xf32>
    %440 = arith.addf %434, %439 : vector<8x128xf32>
    %c0_353 = arith.constant 0 : index
    %c253 = arith.constant 253 : index
    %c0_354 = arith.constant 0 : index
    %441 = tpu.strided_load %arg1[%c0_353, %c253, %c0_354] {strides = array<i32: 1, 2, 1>} : memref<1x324x8xf32, #tpu.memory_space<vmem>>, vector<1x8x8xf32>
    %442 = vector.shape_cast %441 : vector<1x8x8xf32> to vector<8x8xf32>
    %c56_355 = arith.constant 56 : index
    %c0_356 = arith.constant 0 : index
    %443 = vector.load %arg2[%c56_355, %c0_356] : memref<72x128xbf16, #tpu.memory_space<vmem>>, vector<8x128xbf16>
    %444 = arith.truncf %442 : vector<8x8xf32> to vector<8x8xbf16>
    %cst_357 = arith.constant dense<0.000000e+00> : vector<8x128xf32>
    %445 = tpu.matmul %444, %443, %cst_357 {dimension_numbers = #tpu.dot_dimension_numbers<[1], [0], [0], [1], [0, 0, 1, 1], [], []>} : vector<8x8xbf16>, vector<8x128xbf16>, vector<8x128xf32> -> vector<8x128xf32>
    %446 = arith.addf %440, %445 : vector<8x128xf32>
    %c0_358 = arith.constant 0 : index
    %c254 = arith.constant 254 : index
    %c0_359 = arith.constant 0 : index
    %447 = tpu.strided_load %arg1[%c0_358, %c254, %c0_359] {strides = array<i32: 1, 2, 1>} : memref<1x324x8xf32, #tpu.memory_space<vmem>>, vector<1x8x8xf32>
    %448 = vector.shape_cast %447 : vector<1x8x8xf32> to vector<8x8xf32>
    %c64_360 = arith.constant 64 : index
    %c0_361 = arith.constant 0 : index
    %449 = vector.load %arg2[%c64_360, %c0_361] : memref<72x128xbf16, #tpu.memory_space<vmem>>, vector<8x128xbf16>
    %450 = arith.truncf %448 : vector<8x8xf32> to vector<8x8xbf16>
    %cst_362 = arith.constant dense<0.000000e+00> : vector<8x128xf32>
    %451 = tpu.matmul %450, %449, %cst_362 {dimension_numbers = #tpu.dot_dimension_numbers<[1], [0], [0], [1], [0, 0, 1, 1], [], []>} : vector<8x8xbf16>, vector<8x128xbf16>, vector<8x128xf32> -> vector<8x128xf32>
    %452 = arith.addf %446, %451 : vector<8x128xf32>
    %453 = vector.broadcast %6 : vector<1x128xf32> to vector<8x128xf32>
    %454 = arith.addf %452, %453 : vector<8x128xf32>
    %cst_363 = arith.constant 0.000000e+00 : f32
    %455 = vector.broadcast %cst_363 : f32 to vector<8x128xf32>
    %456 = arith.cmpf oge, %454, %455 : vector<8x128xf32>
    %cst_364 = arith.constant 0.00999999977 : f32
    %457 = vector.broadcast %cst_364 : f32 to vector<8x128xf32>
    %458 = arith.mulf %457, %454 : vector<8x128xf32>
    %459 = arith.select %456, %454, %458 : vector<8x128xi1>, vector<8x128xf32>
    %460 = vector.broadcast %7 : vector<1x128xf32> to vector<8x128xf32>
    %461 = arith.addf %459, %460 : vector<8x128xf32>
    %c71 = arith.constant 71 : index
    %c0_365 = arith.constant 0 : index
    %462 = vector.load %arg13[%c71, %c0_365] : memref<100x128xf32, #tpu.memory_space<vmem>>, vector<8x128xf32>
    tpu.vector_store %arg13[%c71, %c0_365], %461 {strides = array<i32>} : memref<100x128xf32, #tpu.memory_space<vmem>>, vector<8x128xf32>,
    %cst_366 = arith.constant 0.000000e+00 : f32
    %463 = vector.broadcast %cst_366 : f32 to vector<8x128xf32>
    %c0_367 = arith.constant 0 : index
    %c252_368 = arith.constant 252 : index
    %c0_369 = arith.constant 0 : index
    %464 = tpu.strided_load %arg1[%c0_367, %c252_368, %c0_369] {strides = array<i32: 1, 2, 1>} : memref<1x324x8xf32, #tpu.memory_space<vmem>>, vector<1x8x8xf32>
    %465 = vector.shape_cast %464 : vector<1x8x8xf32> to vector<8x8xf32>
    %c0_370 = arith.constant 0 : index
    %c0_371 = arith.constant 0 : index
    %466 = vector.load %arg2[%c0_370, %c0_371] : memref<72x128xbf16, #tpu.memory_space<vmem>>, vector<8x128xbf16>
    %467 = arith.truncf %465 : vector<8x8xf32> to vector<8x8xbf16>
    %cst_372 = arith.constant dense<0.000000e+00> : vector<8x128xf32>
    %468 = tpu.matmul %467, %466, %cst_372 {dimension_numbers = #tpu.dot_dimension_numbers<[1], [0], [0], [1], [0, 0, 1, 1], [], []>} : vector<8x8xbf16>, vector<8x128xbf16>, vector<8x128xf32> -> vector<8x128xf32>
    %469 = arith.addf %463, %468 : vector<8x128xf32>
    %c0_373 = arith.constant 0 : index
    %c253_374 = arith.constant 253 : index
    %c0_375 = arith.constant 0 : index
    %470 = tpu.strided_load %arg1[%c0_373, %c253_374, %c0_375] {strides = array<i32: 1, 2, 1>} : memref<1x324x8xf32, #tpu.memory_space<vmem>>, vector<1x8x8xf32>
    %471 = vector.shape_cast %470 : vector<1x8x8xf32> to vector<8x8xf32>
    %c8_376 = arith.constant 8 : index
    %c0_377 = arith.constant 0 : index
    %472 = vector.load %arg2[%c8_376, %c0_377] : memref<72x128xbf16, #tpu.memory_space<vmem>>, vector<8x128xbf16>
    %473 = arith.truncf %471 : vector<8x8xf32> to vector<8x8xbf16>
    %cst_378 = arith.constant dense<0.000000e+00> : vector<8x128xf32>
    %474 = tpu.matmul %473, %472, %cst_378 {dimension_numbers = #tpu.dot_dimension_numbers<[1], [0], [0], [1], [0, 0, 1, 1], [], []>} : vector<8x8xbf16>, vector<8x128xbf16>, vector<8x128xf32> -> vector<8x128xf32>
    %475 = arith.addf %469, %474 : vector<8x128xf32>
    %c0_379 = arith.constant 0 : index
    %c254_380 = arith.constant 254 : index
    %c0_381 = arith.constant 0 : index
    %476 = tpu.strided_load %arg1[%c0_379, %c254_380, %c0_381] {strides = array<i32: 1, 2, 1>} : memref<1x324x8xf32, #tpu.memory_space<vmem>>, vector<1x8x8xf32>
    %477 = vector.shape_cast %476 : vector<1x8x8xf32> to vector<8x8xf32>
    %c16_382 = arith.constant 16 : index
    %c0_383 = arith.constant 0 : index
    %478 = vector.load %arg2[%c16_382, %c0_383] : memref<72x128xbf16, #tpu.memory_space<vmem>>, vector<8x128xbf16>
    %479 = arith.truncf %477 : vector<8x8xf32> to vector<8x8xbf16>
    %cst_384 = arith.constant dense<0.000000e+00> : vector<8x128xf32>
    %480 = tpu.matmul %479, %478, %cst_384 {dimension_numbers = #tpu.dot_dimension_numbers<[1], [0], [0], [1], [0, 0, 1, 1], [], []>} : vector<8x8xbf16>, vector<8x128xbf16>, vector<8x128xf32> -> vector<8x128xf32>
    %481 = arith.addf %475, %480 : vector<8x128xf32>
    %c0_385 = arith.constant 0 : index
    %c270 = arith.constant 270 : index
    %c0_386 = arith.constant 0 : index
    %482 = tpu.strided_load %arg1[%c0_385, %c270, %c0_386] {strides = array<i32: 1, 2, 1>} : memref<1x324x8xf32, #tpu.memory_space<vmem>>, vector<1x8x8xf32>
    %483 = vector.shape_cast %482 : vector<1x8x8xf32> to vector<8x8xf32>
    %c24_387 = arith.constant 24 : index
    %c0_388 = arith.constant 0 : index
    %484 = vector.load %arg2[%c24_387, %c0_388] : memref<72x128xbf16, #tpu.memory_space<vmem>>, vector<8x128xbf16>
    %485 = arith.truncf %483 : vector<8x8xf32> to vector<8x8xbf16>
    %cst_389 = arith.constant dense<0.000000e+00> : vector<8x128xf32>
    %486 = tpu.matmul %485, %484, %cst_389 {dimension_numbers = #tpu.dot_dimension_numbers<[1], [0], [0], [1], [0, 0, 1, 1], [], []>} : vector<8x8xbf16>, vector<8x128xbf16>, vector<8x128xf32> -> vector<8x128xf32>
    %487 = arith.addf %481, %486 : vector<8x128xf32>
    %c0_390 = arith.constant 0 : index
    %c271 = arith.constant 271 : index
    %c0_391 = arith.constant 0 : index
    %488 = tpu.strided_load %arg1[%c0_390, %c271, %c0_391] {strides = array<i32: 1, 2, 1>} : memref<1x324x8xf32, #tpu.memory_space<vmem>>, vector<1x8x8xf32>
    %489 = vector.shape_cast %488 : vector<1x8x8xf32> to vector<8x8xf32>
    %c32_392 = arith.constant 32 : index
    %c0_393 = arith.constant 0 : index
    %490 = vector.load %arg2[%c32_392, %c0_393] : memref<72x128xbf16, #tpu.memory_space<vmem>>, vector<8x128xbf16>
    %491 = arith.truncf %489 : vector<8x8xf32> to vector<8x8xbf16>
    %cst_394 = arith.constant dense<0.000000e+00> : vector<8x128xf32>
    %492 = tpu.matmul %491, %490, %cst_394 {dimension_numbers = #tpu.dot_dimension_numbers<[1], [0], [0], [1], [0, 0, 1, 1], [], []>} : vector<8x8xbf16>, vector<8x128xbf16>, vector<8x128xf32> -> vector<8x128xf32>
    %493 = arith.addf %487, %492 : vector<8x128xf32>
    %c0_395 = arith.constant 0 : index
    %c272 = arith.constant 272 : index
    %c0_396 = arith.constant 0 : index
    %494 = tpu.strided_load %arg1[%c0_395, %c272, %c0_396] {strides = array<i32: 1, 2, 1>} : memref<1x324x8xf32, #tpu.memory_space<vmem>>, vector<1x8x8xf32>
    %495 = vector.shape_cast %494 : vector<1x8x8xf32> to vector<8x8xf32>
    %c40_397 = arith.constant 40 : index
    %c0_398 = arith.constant 0 : index
    %496 = vector.load %arg2[%c40_397, %c0_398] : memref<72x128xbf16, #tpu.memory_space<vmem>>, vector<8x128xbf16>
    %497 = arith.truncf %495 : vector<8x8xf32> to vector<8x8xbf16>
    %cst_399 = arith.constant dense<0.000000e+00> : vector<8x128xf32>
    %498 = tpu.matmul %497, %496, %cst_399 {dimension_numbers = #tpu.dot_dimension_numbers<[1], [0], [0], [1], [0, 0, 1, 1], [], []>} : vector<8x8xbf16>, vector<8x128xbf16>, vector<8x128xf32> -> vector<8x128xf32>
    %499 = arith.addf %493, %498 : vector<8x128xf32>
    %c0_400 = arith.constant 0 : index
    %c288 = arith.constant 288 : index
    %c0_401 = arith.constant 0 : index
    %500 = tpu.strided_load %arg1[%c0_400, %c288, %c0_401] {strides = array<i32: 1, 2, 1>} : memref<1x324x8xf32, #tpu.memory_space<vmem>>, vector<1x8x8xf32>
    %501 = vector.shape_cast %500 : vector<1x8x8xf32> to vector<8x8xf32>
    %c48_402 = arith.constant 48 : index
    %c0_403 = arith.constant 0 : index
    %502 = vector.load %arg2[%c48_402, %c0_403] : memref<72x128xbf16, #tpu.memory_space<vmem>>, vector<8x128xbf16>
    %503 = arith.truncf %501 : vector<8x8xf32> to vector<8x8xbf16>
    %cst_404 = arith.constant dense<0.000000e+00> : vector<8x128xf32>
    %504 = tpu.matmul %503, %502, %cst_404 {dimension_numbers = #tpu.dot_dimension_numbers<[1], [0], [0], [1], [0, 0, 1, 1], [], []>} : vector<8x8xbf16>, vector<8x128xbf16>, vector<8x128xf32> -> vector<8x128xf32>
    %505 = arith.addf %499, %504 : vector<8x128xf32>
    %c0_405 = arith.constant 0 : index
    %c289 = arith.constant 289 : index
    %c0_406 = arith.constant 0 : index
    %506 = tpu.strided_load %arg1[%c0_405, %c289, %c0_406] {strides = array<i32: 1, 2, 1>} : memref<1x324x8xf32, #tpu.memory_space<vmem>>, vector<1x8x8xf32>
    %507 = vector.shape_cast %506 : vector<1x8x8xf32> to vector<8x8xf32>
    %c56_407 = arith.constant 56 : index
    %c0_408 = arith.constant 0 : index
    %508 = vector.load %arg2[%c56_407, %c0_408] : memref<72x128xbf16, #tpu.memory_space<vmem>>, vector<8x128xbf16>
    %509 = arith.truncf %507 : vector<8x8xf32> to vector<8x8xbf16>
    %cst_409 = arith.constant dense<0.000000e+00> : vector<8x128xf32>
    %510 = tpu.matmul %509, %508, %cst_409 {dimension_numbers = #tpu.dot_dimension_numbers<[1], [0], [0], [1], [0, 0, 1, 1], [], []>} : vector<8x8xbf16>, vector<8x128xbf16>, vector<8x128xf32> -> vector<8x128xf32>
    %511 = arith.addf %505, %510 : vector<8x128xf32>
    %c0_410 = arith.constant 0 : index
    %c290 = arith.constant 290 : index
    %c0_411 = arith.constant 0 : index
    %512 = tpu.strided_load %arg1[%c0_410, %c290, %c0_411] {strides = array<i32: 1, 2, 1>} : memref<1x324x8xf32, #tpu.memory_space<vmem>>, vector<1x8x8xf32>
    %513 = vector.shape_cast %512 : vector<1x8x8xf32> to vector<8x8xf32>
    %c64_412 = arith.constant 64 : index
    %c0_413 = arith.constant 0 : index
    %514 = vector.load %arg2[%c64_412, %c0_413] : memref<72x128xbf16, #tpu.memory_space<vmem>>, vector<8x128xbf16>
    %515 = arith.truncf %513 : vector<8x8xf32> to vector<8x8xbf16>
    %cst_414 = arith.constant dense<0.000000e+00> : vector<8x128xf32>
    %516 = tpu.matmul %515, %514, %cst_414 {dimension_numbers = #tpu.dot_dimension_numbers<[1], [0], [0], [1], [0, 0, 1, 1], [], []>} : vector<8x8xbf16>, vector<8x128xbf16>, vector<8x128xf32> -> vector<8x128xf32>
    %517 = arith.addf %511, %516 : vector<8x128xf32>
    %518 = vector.broadcast %6 : vector<1x128xf32> to vector<8x128xf32>
    %519 = arith.addf %517, %518 : vector<8x128xf32>
    %cst_415 = arith.constant 0.000000e+00 : f32
    %520 = vector.broadcast %cst_415 : f32 to vector<8x128xf32>
    %521 = arith.cmpf oge, %519, %520 : vector<8x128xf32>
    %cst_416 = arith.constant 0.00999999977 : f32
    %522 = vector.broadcast %cst_416 : f32 to vector<8x128xf32>
    %523 = arith.mulf %522, %519 : vector<8x128xf32>
    %524 = arith.select %521, %519, %523 : vector<8x128xi1>, vector<8x128xf32>
    %525 = vector.broadcast %7 : vector<1x128xf32> to vector<8x128xf32>
    %526 = arith.addf %524, %525 : vector<8x128xf32>
    %c81 = arith.constant 81 : index
    %c0_417 = arith.constant 0 : index
    %527 = vector.load %arg13[%c81, %c0_417] : memref<100x128xf32, #tpu.memory_space<vmem>>, vector<8x128xf32>
    tpu.vector_store %arg13[%c81, %c0_417], %526 {strides = array<i32>} : memref<100x128xf32, #tpu.memory_space<vmem>>, vector<8x128xf32>,
    %c0_418 = arith.constant 0 : index
    %c0_419 = arith.constant 0 : index
    %528 = vector.load %arg5[%c0_418, %c0_419] : memref<2x128xf32, #tpu.memory_space<vmem>>, vector<1x128xf32>
    %c1_420 = arith.constant 1 : index
    %c0_421 = arith.constant 0 : index
    %529 = vector.load %arg5[%c1_420, %c0_421] : memref<2x128xf32, #tpu.memory_space<vmem>>, vector<1x128xf32>
    %cst_422 = arith.constant 0.000000e+00 : f32
    %530 = vector.broadcast %cst_422 : f32 to vector<4x128xf32>
    %c0_423 = arith.constant 0 : index
    %c0_424 = arith.constant 0 : index
    %531 = tpu.strided_load %arg13[%c0_423, %c0_424] {strides = array<i32: 2, 1>} : memref<100x128xf32, #tpu.memory_space<vmem>>, vector<4x128xf32>
    %c0_425 = arith.constant 0 : index
    %c0_426 = arith.constant 0 : index
    %532 = vector.load %arg4[%c0_425, %c0_426] : memref<1152x128xbf16, #tpu.memory_space<vmem>>, vector<128x128xbf16>
    %533 = arith.truncf %531 : vector<4x128xf32> to vector<4x128xbf16>
    %cst_427 = arith.constant dense<0.000000e+00> : vector<4x128xf32>
    %534 = tpu.matmul %533, %532, %cst_427 {dimension_numbers = #tpu.dot_dimension_numbers<[1], [0], [0], [1], [0, 0, 1, 1], [], []>} : vector<4x128xbf16>, vector<128x128xbf16>, vector<4x128xf32> -> vector<4x128xf32>
    %535 = arith.addf %530, %534 : vector<4x128xf32>
    %c1_428 = arith.constant 1 : index
    %c0_429 = arith.constant 0 : index
    %536 = tpu.strided_load %arg13[%c1_428, %c0_429] {strides = array<i32: 2, 1>} : memref<100x128xf32, #tpu.memory_space<vmem>>, vector<4x128xf32>
    %c128_430 = arith.constant 128 : index
    %c0_431 = arith.constant 0 : index
    %537 = vector.load %arg4[%c128_430, %c0_431] : memref<1152x128xbf16, #tpu.memory_space<vmem>>, vector<128x128xbf16>
    %538 = arith.truncf %536 : vector<4x128xf32> to vector<4x128xbf16>
    %cst_432 = arith.constant dense<0.000000e+00> : vector<4x128xf32>
    %539 = tpu.matmul %538, %537, %cst_432 {dimension_numbers = #tpu.dot_dimension_numbers<[1], [0], [0], [1], [0, 0, 1, 1], [], []>} : vector<4x128xbf16>, vector<128x128xbf16>, vector<4x128xf32> -> vector<4x128xf32>
    %540 = arith.addf %535, %539 : vector<4x128xf32>
    %c2_433 = arith.constant 2 : index
    %c0_434 = arith.constant 0 : index
    %541 = tpu.strided_load %arg13[%c2_433, %c0_434] {strides = array<i32: 2, 1>} : memref<100x128xf32, #tpu.memory_space<vmem>>, vector<4x128xf32>
    %c256 = arith.constant 256 : index
    %c0_435 = arith.constant 0 : index
    %542 = vector.load %arg4[%c256, %c0_435] : memref<1152x128xbf16, #tpu.memory_space<vmem>>, vector<128x128xbf16>
    %543 = arith.truncf %541 : vector<4x128xf32> to vector<4x128xbf16>
    %cst_436 = arith.constant dense<0.000000e+00> : vector<4x128xf32>
    %544 = tpu.matmul %543, %542, %cst_436 {dimension_numbers = #tpu.dot_dimension_numbers<[1], [0], [0], [1], [0, 0, 1, 1], [], []>} : vector<4x128xbf16>, vector<128x128xbf16>, vector<4x128xf32> -> vector<4x128xf32>
    %545 = arith.addf %540, %544 : vector<4x128xf32>
    %c10 = arith.constant 10 : index
    %c0_437 = arith.constant 0 : index
    %546 = tpu.strided_load %arg13[%c10, %c0_437] {strides = array<i32: 2, 1>} : memref<100x128xf32, #tpu.memory_space<vmem>>, vector<4x128xf32>
    %c384 = arith.constant 384 : index
    %c0_438 = arith.constant 0 : index
    %547 = vector.load %arg4[%c384, %c0_438] : memref<1152x128xbf16, #tpu.memory_space<vmem>>, vector<128x128xbf16>
    %548 = arith.truncf %546 : vector<4x128xf32> to vector<4x128xbf16>
    %cst_439 = arith.constant dense<0.000000e+00> : vector<4x128xf32>
    %549 = tpu.matmul %548, %547, %cst_439 {dimension_numbers = #tpu.dot_dimension_numbers<[1], [0], [0], [1], [0, 0, 1, 1], [], []>} : vector<4x128xbf16>, vector<128x128xbf16>, vector<4x128xf32> -> vector<4x128xf32>
    %550 = arith.addf %545, %549 : vector<4x128xf32>
    %c11_440 = arith.constant 11 : index
    %c0_441 = arith.constant 0 : index
    %551 = tpu.strided_load %arg13[%c11_440, %c0_441] {strides = array<i32: 2, 1>} : memref<100x128xf32, #tpu.memory_space<vmem>>, vector<4x128xf32>
    %c512 = arith.constant 512 : index
    %c0_442 = arith.constant 0 : index
    %552 = vector.load %arg4[%c512, %c0_442] : memref<1152x128xbf16, #tpu.memory_space<vmem>>, vector<128x128xbf16>
    %553 = arith.truncf %551 : vector<4x128xf32> to vector<4x128xbf16>
    %cst_443 = arith.constant dense<0.000000e+00> : vector<4x128xf32>
    %554 = tpu.matmul %553, %552, %cst_443 {dimension_numbers = #tpu.dot_dimension_numbers<[1], [0], [0], [1], [0, 0, 1, 1], [], []>} : vector<4x128xbf16>, vector<128x128xbf16>, vector<4x128xf32> -> vector<4x128xf32>
    %555 = arith.addf %550, %554 : vector<4x128xf32>
    %c12 = arith.constant 12 : index
    %c0_444 = arith.constant 0 : index
    %556 = tpu.strided_load %arg13[%c12, %c0_444] {strides = array<i32: 2, 1>} : memref<100x128xf32, #tpu.memory_space<vmem>>, vector<4x128xf32>
    %c640 = arith.constant 640 : index
    %c0_445 = arith.constant 0 : index
    %557 = vector.load %arg4[%c640, %c0_445] : memref<1152x128xbf16, #tpu.memory_space<vmem>>, vector<128x128xbf16>
    %558 = arith.truncf %556 : vector<4x128xf32> to vector<4x128xbf16>
    %cst_446 = arith.constant dense<0.000000e+00> : vector<4x128xf32>
    %559 = tpu.matmul %558, %557, %cst_446 {dimension_numbers = #tpu.dot_dimension_numbers<[1], [0], [0], [1], [0, 0, 1, 1], [], []>} : vector<4x128xbf16>, vector<128x128xbf16>, vector<4x128xf32> -> vector<4x128xf32>
    %560 = arith.addf %555, %559 : vector<4x128xf32>
    %c20_447 = arith.constant 20 : index
    %c0_448 = arith.constant 0 : index
    %561 = tpu.strided_load %arg13[%c20_447, %c0_448] {strides = array<i32: 2, 1>} : memref<100x128xf32, #tpu.memory_space<vmem>>, vector<4x128xf32>
    %c768 = arith.constant 768 : index
    %c0_449 = arith.constant 0 : index
    %562 = vector.load %arg4[%c768, %c0_449] : memref<1152x128xbf16, #tpu.memory_space<vmem>>, vector<128x128xbf16>
    %563 = arith.truncf %561 : vector<4x128xf32> to vector<4x128xbf16>
    %cst_450 = arith.constant dense<0.000000e+00> : vector<4x128xf32>
    %564 = tpu.matmul %563, %562, %cst_450 {dimension_numbers = #tpu.dot_dimension_numbers<[1], [0], [0], [1], [0, 0, 1, 1], [], []>} : vector<4x128xbf16>, vector<128x128xbf16>, vector<4x128xf32> -> vector<4x128xf32>
    %565 = arith.addf %560, %564 : vector<4x128xf32>
    %c21_451 = arith.constant 21 : index
    %c0_452 = arith.constant 0 : index
    %566 = tpu.strided_load %arg13[%c21_451, %c0_452] {strides = array<i32: 2, 1>} : memref<100x128xf32, #tpu.memory_space<vmem>>, vector<4x128xf32>
    %c896 = arith.constant 896 : index
    %c0_453 = arith.constant 0 : index
    %567 = vector.load %arg4[%c896, %c0_453] : memref<1152x128xbf16, #tpu.memory_space<vmem>>, vector<128x128xbf16>
    %568 = arith.truncf %566 : vector<4x128xf32> to vector<4x128xbf16>
    %cst_454 = arith.constant dense<0.000000e+00> : vector<4x128xf32>
    %569 = tpu.matmul %568, %567, %cst_454 {dimension_numbers = #tpu.dot_dimension_numbers<[1], [0], [0], [1], [0, 0, 1, 1], [], []>} : vector<4x128xbf16>, vector<128x128xbf16>, vector<4x128xf32> -> vector<4x128xf32>
    %570 = arith.addf %565, %569 : vector<4x128xf32>
    %c22 = arith.constant 22 : index
    %c0_455 = arith.constant 0 : index
    %571 = tpu.strided_load %arg13[%c22, %c0_455] {strides = array<i32: 2, 1>} : memref<100x128xf32, #tpu.memory_space<vmem>>, vector<4x128xf32>
    %c1024 = arith.constant 1024 : index
    %c0_456 = arith.constant 0 : index
    %572 = vector.load %arg4[%c1024, %c0_456] : memref<1152x128xbf16, #tpu.memory_space<vmem>>, vector<128x128xbf16>
    %573 = arith.truncf %571 : vector<4x128xf32> to vector<4x128xbf16>
    %cst_457 = arith.constant dense<0.000000e+00> : vector<4x128xf32>
    %574 = tpu.matmul %573, %572, %cst_457 {dimension_numbers = #tpu.dot_dimension_numbers<[1], [0], [0], [1], [0, 0, 1, 1], [], []>} : vector<4x128xbf16>, vector<128x128xbf16>, vector<4x128xf32> -> vector<4x128xf32>
    %575 = arith.addf %570, %574 : vector<4x128xf32>
    %576 = vector.broadcast %528 : vector<1x128xf32> to vector<4x128xf32>
    %577 = arith.addf %575, %576 : vector<4x128xf32>
    %cst_458 = arith.constant 0.000000e+00 : f32
    %578 = vector.broadcast %cst_458 : f32 to vector<4x128xf32>
    %579 = arith.cmpf oge, %577, %578 : vector<4x128xf32>
    %cst_459 = arith.constant 0.00999999977 : f32
    %580 = vector.broadcast %cst_459 : f32 to vector<4x128xf32>
    %581 = arith.mulf %580, %577 : vector<4x128xf32>
    %582 = arith.select %579, %577, %581 : vector<4x128xi1>, vector<4x128xf32>
    %583 = vector.broadcast %529 : vector<1x128xf32> to vector<4x128xf32>
    %584 = arith.addf %582, %583 : vector<4x128xf32>
    %c7 = arith.constant 7 : index
    %c0_460 = arith.constant 0 : index
    %585 = vector.load %arg14[%c7, %c0_460] : memref<36x128xf32, #tpu.memory_space<vmem>>, vector<4x128xf32>
    tpu.vector_store %arg14[%c7, %c0_460], %584 {strides = array<i32>} : memref<36x128xf32, #tpu.memory_space<vmem>>, vector<4x128xf32>,
    %cst_461 = arith.constant 0.000000e+00 : f32
    %586 = vector.broadcast %cst_461 : f32 to vector<4x128xf32>
    %c20_462 = arith.constant 20 : index
    %c0_463 = arith.constant 0 : index
    %587 = tpu.strided_load %arg13[%c20_462, %c0_463] {strides = array<i32: 2, 1>} : memref<100x128xf32, #tpu.memory_space<vmem>>, vector<4x128xf32>
    %c0_464 = arith.constant 0 : index
    %c0_465 = arith.constant 0 : index
    %588 = vector.load %arg4[%c0_464, %c0_465] : memref<1152x128xbf16, #tpu.memory_space<vmem>>, vector<128x128xbf16>
    %589 = arith.truncf %587 : vector<4x128xf32> to vector<4x128xbf16>
    %cst_466 = arith.constant dense<0.000000e+00> : vector<4x128xf32>
    %590 = tpu.matmul %589, %588, %cst_466 {dimension_numbers = #tpu.dot_dimension_numbers<[1], [0], [0], [1], [0, 0, 1, 1], [], []>} : vector<4x128xbf16>, vector<128x128xbf16>, vector<4x128xf32> -> vector<4x128xf32>
    %591 = arith.addf %586, %590 : vector<4x128xf32>
    %c21_467 = arith.constant 21 : index
    %c0_468 = arith.constant 0 : index
    %592 = tpu.strided_load %arg13[%c21_467, %c0_468] {strides = array<i32: 2, 1>} : memref<100x128xf32, #tpu.memory_space<vmem>>, vector<4x128xf32>
    %c128_469 = arith.constant 128 : index
    %c0_470 = arith.constant 0 : index
    %593 = vector.load %arg4[%c128_469, %c0_470] : memref<1152x128xbf16, #tpu.memory_space<vmem>>, vector<128x128xbf16>
    %594 = arith.truncf %592 : vector<4x128xf32> to vector<4x128xbf16>
    %cst_471 = arith.constant dense<0.000000e+00> : vector<4x128xf32>
    %595 = tpu.matmul %594, %593, %cst_471 {dimension_numbers = #tpu.dot_dimension_numbers<[1], [0], [0], [1], [0, 0, 1, 1], [], []>} : vector<4x128xbf16>, vector<128x128xbf16>, vector<4x128xf32> -> vector<4x128xf32>
    %596 = arith.addf %591, %595 : vector<4x128xf32>
    %c22_472 = arith.constant 22 : index
    %c0_473 = arith.constant 0 : index
    %597 = tpu.strided_load %arg13[%c22_472, %c0_473] {strides = array<i32: 2, 1>} : memref<100x128xf32, #tpu.memory_space<vmem>>, vector<4x128xf32>
    %c256_474 = arith.constant 256 : index
    %c0_475 = arith.constant 0 : index
    %598 = vector.load %arg4[%c256_474, %c0_475] : memref<1152x128xbf16, #tpu.memory_space<vmem>>, vector<128x128xbf16>
    %599 = arith.truncf %597 : vector<4x128xf32> to vector<4x128xbf16>
    %cst_476 = arith.constant dense<0.000000e+00> : vector<4x128xf32>
    %600 = tpu.matmul %599, %598, %cst_476 {dimension_numbers = #tpu.dot_dimension_numbers<[1], [0], [0], [1], [0, 0, 1, 1], [], []>} : vector<4x128xbf16>, vector<128x128xbf16>, vector<4x128xf32> -> vector<4x128xf32>
    %601 = arith.addf %596, %600 : vector<4x128xf32>
    %c30 = arith.constant 30 : index
    %c0_477 = arith.constant 0 : index
    %602 = tpu.strided_load %arg13[%c30, %c0_477] {strides = array<i32: 2, 1>} : memref<100x128xf32, #tpu.memory_space<vmem>>, vector<4x128xf32>
    %c384_478 = arith.constant 384 : index
    %c0_479 = arith.constant 0 : index
    %603 = vector.load %arg4[%c384_478, %c0_479] : memref<1152x128xbf16, #tpu.memory_space<vmem>>, vector<128x128xbf16>
    %604 = arith.truncf %602 : vector<4x128xf32> to vector<4x128xbf16>
    %cst_480 = arith.constant dense<0.000000e+00> : vector<4x128xf32>
    %605 = tpu.matmul %604, %603, %cst_480 {dimension_numbers = #tpu.dot_dimension_numbers<[1], [0], [0], [1], [0, 0, 1, 1], [], []>} : vector<4x128xbf16>, vector<128x128xbf16>, vector<4x128xf32> -> vector<4x128xf32>
    %606 = arith.addf %601, %605 : vector<4x128xf32>
    %c31_481 = arith.constant 31 : index
    %c0_482 = arith.constant 0 : index
    %607 = tpu.strided_load %arg13[%c31_481, %c0_482] {strides = array<i32: 2, 1>} : memref<100x128xf32, #tpu.memory_space<vmem>>, vector<4x128xf32>
    %c512_483 = arith.constant 512 : index
    %c0_484 = arith.constant 0 : index
    %608 = vector.load %arg4[%c512_483, %c0_484] : memref<1152x128xbf16, #tpu.memory_space<vmem>>, vector<128x128xbf16>
    %609 = arith.truncf %607 : vector<4x128xf32> to vector<4x128xbf16>
    %cst_485 = arith.constant dense<0.000000e+00> : vector<4x128xf32>
    %610 = tpu.matmul %609, %608, %cst_485 {dimension_numbers = #tpu.dot_dimension_numbers<[1], [0], [0], [1], [0, 0, 1, 1], [], []>} : vector<4x128xbf16>, vector<128x128xbf16>, vector<4x128xf32> -> vector<4x128xf32>
    %611 = arith.addf %606, %610 : vector<4x128xf32>
    %c32_486 = arith.constant 32 : index
    %c0_487 = arith.constant 0 : index
    %612 = tpu.strided_load %arg13[%c32_486, %c0_487] {strides = array<i32: 2, 1>} : memref<100x128xf32, #tpu.memory_space<vmem>>, vector<4x128xf32>
    %c640_488 = arith.constant 640 : index
    %c0_489 = arith.constant 0 : index
    %613 = vector.load %arg4[%c640_488, %c0_489] : memref<1152x128xbf16, #tpu.memory_space<vmem>>, vector<128x128xbf16>
    %614 = arith.truncf %612 : vector<4x128xf32> to vector<4x128xbf16>
    %cst_490 = arith.constant dense<0.000000e+00> : vector<4x128xf32>
    %615 = tpu.matmul %614, %613, %cst_490 {dimension_numbers = #tpu.dot_dimension_numbers<[1], [0], [0], [1], [0, 0, 1, 1], [], []>} : vector<4x128xbf16>, vector<128x128xbf16>, vector<4x128xf32> -> vector<4x128xf32>
    %616 = arith.addf %611, %615 : vector<4x128xf32>
    %c40_491 = arith.constant 40 : index
    %c0_492 = arith.constant 0 : index
    %617 = tpu.strided_load %arg13[%c40_491, %c0_492] {strides = array<i32: 2, 1>} : memref<100x128xf32, #tpu.memory_space<vmem>>, vector<4x128xf32>
    %c768_493 = arith.constant 768 : index
    %c0_494 = arith.constant 0 : index
    %618 = vector.load %arg4[%c768_493, %c0_494] : memref<1152x128xbf16, #tpu.memory_space<vmem>>, vector<128x128xbf16>
    %619 = arith.truncf %617 : vector<4x128xf32> to vector<4x128xbf16>
    %cst_495 = arith.constant dense<0.000000e+00> : vector<4x128xf32>
    %620 = tpu.matmul %619, %618, %cst_495 {dimension_numbers = #tpu.dot_dimension_numbers<[1], [0], [0], [1], [0, 0, 1, 1], [], []>} : vector<4x128xbf16>, vector<128x128xbf16>, vector<4x128xf32> -> vector<4x128xf32>
    %621 = arith.addf %616, %620 : vector<4x128xf32>
    %c41_496 = arith.constant 41 : index
    %c0_497 = arith.constant 0 : index
    %622 = tpu.strided_load %arg13[%c41_496, %c0_497] {strides = array<i32: 2, 1>} : memref<100x128xf32, #tpu.memory_space<vmem>>, vector<4x128xf32>
    %c896_498 = arith.constant 896 : index
    %c0_499 = arith.constant 0 : index
    %623 = vector.load %arg4[%c896_498, %c0_499] : memref<1152x128xbf16, #tpu.memory_space<vmem>>, vector<128x128xbf16>
    %624 = arith.truncf %622 : vector<4x128xf32> to vector<4x128xbf16>
    %cst_500 = arith.constant dense<0.000000e+00> : vector<4x128xf32>
    %625 = tpu.matmul %624, %623, %cst_500 {dimension_numbers = #tpu.dot_dimension_numbers<[1], [0], [0], [1], [0, 0, 1, 1], [], []>} : vector<4x128xbf16>, vector<128x128xbf16>, vector<4x128xf32> -> vector<4x128xf32>
    %626 = arith.addf %621, %625 : vector<4x128xf32>
    %c42 = arith.constant 42 : index
    %c0_501 = arith.constant 0 : index
    %627 = tpu.strided_load %arg13[%c42, %c0_501] {strides = array<i32: 2, 1>} : memref<100x128xf32, #tpu.memory_space<vmem>>, vector<4x128xf32>
    %c1024_502 = arith.constant 1024 : index
    %c0_503 = arith.constant 0 : index
    %628 = vector.load %arg4[%c1024_502, %c0_503] : memref<1152x128xbf16, #tpu.memory_space<vmem>>, vector<128x128xbf16>
    %629 = arith.truncf %627 : vector<4x128xf32> to vector<4x128xbf16>
    %cst_504 = arith.constant dense<0.000000e+00> : vector<4x128xf32>
    %630 = tpu.matmul %629, %628, %cst_504 {dimension_numbers = #tpu.dot_dimension_numbers<[1], [0], [0], [1], [0, 0, 1, 1], [], []>} : vector<4x128xbf16>, vector<128x128xbf16>, vector<4x128xf32> -> vector<4x128xf32>
    %631 = arith.addf %626, %630 : vector<4x128xf32>
    %632 = vector.broadcast %528 : vector<1x128xf32> to vector<4x128xf32>
    %633 = arith.addf %631, %632 : vector<4x128xf32>
    %cst_505 = arith.constant 0.000000e+00 : f32
    %634 = vector.broadcast %cst_505 : f32 to vector<4x128xf32>
    %635 = arith.cmpf oge, %633, %634 : vector<4x128xf32>
    %cst_506 = arith.constant 0.00999999977 : f32
    %636 = vector.broadcast %cst_506 : f32 to vector<4x128xf32>
    %637 = arith.mulf %636, %633 : vector<4x128xf32>
    %638 = arith.select %635, %633, %637 : vector<4x128xi1>, vector<4x128xf32>
    %639 = vector.broadcast %529 : vector<1x128xf32> to vector<4x128xf32>
    %640 = arith.addf %638, %639 : vector<4x128xf32>
    %c13 = arith.constant 13 : index
    %c0_507 = arith.constant 0 : index
    %641 = vector.load %arg14[%c13, %c0_507] : memref<36x128xf32, #tpu.memory_space<vmem>>, vector<4x128xf32>
    tpu.vector_store %arg14[%c13, %c0_507], %640 {strides = array<i32>} : memref<36x128xf32, #tpu.memory_space<vmem>>, vector<4x128xf32>,
    %cst_508 = arith.constant 0.000000e+00 : f32
    %642 = vector.broadcast %cst_508 : f32 to vector<4x128xf32>
    %c40_509 = arith.constant 40 : index
    %c0_510 = arith.constant 0 : index
    %643 = tpu.strided_load %arg13[%c40_509, %c0_510] {strides = array<i32: 2, 1>} : memref<100x128xf32, #tpu.memory_space<vmem>>, vector<4x128xf32>
    %c0_511 = arith.constant 0 : index
    %c0_512 = arith.constant 0 : index
    %644 = vector.load %arg4[%c0_511, %c0_512] : memref<1152x128xbf16, #tpu.memory_space<vmem>>, vector<128x128xbf16>
    %645 = arith.truncf %643 : vector<4x128xf32> to vector<4x128xbf16>
    %cst_513 = arith.constant dense<0.000000e+00> : vector<4x128xf32>
    %646 = tpu.matmul %645, %644, %cst_513 {dimension_numbers = #tpu.dot_dimension_numbers<[1], [0], [0], [1], [0, 0, 1, 1], [], []>} : vector<4x128xbf16>, vector<128x128xbf16>, vector<4x128xf32> -> vector<4x128xf32>
    %647 = arith.addf %642, %646 : vector<4x128xf32>
    %c41_514 = arith.constant 41 : index
    %c0_515 = arith.constant 0 : index
    %648 = tpu.strided_load %arg13[%c41_514, %c0_515] {strides = array<i32: 2, 1>} : memref<100x128xf32, #tpu.memory_space<vmem>>, vector<4x128xf32>
    %c128_516 = arith.constant 128 : index
    %c0_517 = arith.constant 0 : index
    %649 = vector.load %arg4[%c128_516, %c0_517] : memref<1152x128xbf16, #tpu.memory_space<vmem>>, vector<128x128xbf16>
    %650 = arith.truncf %648 : vector<4x128xf32> to vector<4x128xbf16>
    %cst_518 = arith.constant dense<0.000000e+00> : vector<4x128xf32>
    %651 = tpu.matmul %650, %649, %cst_518 {dimension_numbers = #tpu.dot_dimension_numbers<[1], [0], [0], [1], [0, 0, 1, 1], [], []>} : vector<4x128xbf16>, vector<128x128xbf16>, vector<4x128xf32> -> vector<4x128xf32>
    %652 = arith.addf %647, %651 : vector<4x128xf32>
    %c42_519 = arith.constant 42 : index
    %c0_520 = arith.constant 0 : index
    %653 = tpu.strided_load %arg13[%c42_519, %c0_520] {strides = array<i32: 2, 1>} : memref<100x128xf32, #tpu.memory_space<vmem>>, vector<4x128xf32>
    %c256_521 = arith.constant 256 : index
    %c0_522 = arith.constant 0 : index
    %654 = vector.load %arg4[%c256_521, %c0_522] : memref<1152x128xbf16, #tpu.memory_space<vmem>>, vector<128x128xbf16>
    %655 = arith.truncf %653 : vector<4x128xf32> to vector<4x128xbf16>
    %cst_523 = arith.constant dense<0.000000e+00> : vector<4x128xf32>
    %656 = tpu.matmul %655, %654, %cst_523 {dimension_numbers = #tpu.dot_dimension_numbers<[1], [0], [0], [1], [0, 0, 1, 1], [], []>} : vector<4x128xbf16>, vector<128x128xbf16>, vector<4x128xf32> -> vector<4x128xf32>
    %657 = arith.addf %652, %656 : vector<4x128xf32>
    %c50 = arith.constant 50 : index
    %c0_524 = arith.constant 0 : index
    %658 = tpu.strided_load %arg13[%c50, %c0_524] {strides = array<i32: 2, 1>} : memref<100x128xf32, #tpu.memory_space<vmem>>, vector<4x128xf32>
    %c384_525 = arith.constant 384 : index
    %c0_526 = arith.constant 0 : index
    %659 = vector.load %arg4[%c384_525, %c0_526] : memref<1152x128xbf16, #tpu.memory_space<vmem>>, vector<128x128xbf16>
    %660 = arith.truncf %658 : vector<4x128xf32> to vector<4x128xbf16>
    %cst_527 = arith.constant dense<0.000000e+00> : vector<4x128xf32>
    %661 = tpu.matmul %660, %659, %cst_527 {dimension_numbers = #tpu.dot_dimension_numbers<[1], [0], [0], [1], [0, 0, 1, 1], [], []>} : vector<4x128xbf16>, vector<128x128xbf16>, vector<4x128xf32> -> vector<4x128xf32>
    %662 = arith.addf %657, %661 : vector<4x128xf32>
    %c51_528 = arith.constant 51 : index
    %c0_529 = arith.constant 0 : index
    %663 = tpu.strided_load %arg13[%c51_528, %c0_529] {strides = array<i32: 2, 1>} : memref<100x128xf32, #tpu.memory_space<vmem>>, vector<4x128xf32>
    %c512_530 = arith.constant 512 : index
    %c0_531 = arith.constant 0 : index
    %664 = vector.load %arg4[%c512_530, %c0_531] : memref<1152x128xbf16, #tpu.memory_space<vmem>>, vector<128x128xbf16>
    %665 = arith.truncf %663 : vector<4x128xf32> to vector<4x128xbf16>
    %cst_532 = arith.constant dense<0.000000e+00> : vector<4x128xf32>
    %666 = tpu.matmul %665, %664, %cst_532 {dimension_numbers = #tpu.dot_dimension_numbers<[1], [0], [0], [1], [0, 0, 1, 1], [], []>} : vector<4x128xbf16>, vector<128x128xbf16>, vector<4x128xf32> -> vector<4x128xf32>
    %667 = arith.addf %662, %666 : vector<4x128xf32>
    %c52 = arith.constant 52 : index
    %c0_533 = arith.constant 0 : index
    %668 = tpu.strided_load %arg13[%c52, %c0_533] {strides = array<i32: 2, 1>} : memref<100x128xf32, #tpu.memory_space<vmem>>, vector<4x128xf32>
    %c640_534 = arith.constant 640 : index
    %c0_535 = arith.constant 0 : index
    %669 = vector.load %arg4[%c640_534, %c0_535] : memref<1152x128xbf16, #tpu.memory_space<vmem>>, vector<128x128xbf16>
    %670 = arith.truncf %668 : vector<4x128xf32> to vector<4x128xbf16>
    %cst_536 = arith.constant dense<0.000000e+00> : vector<4x128xf32>
    %671 = tpu.matmul %670, %669, %cst_536 {dimension_numbers = #tpu.dot_dimension_numbers<[1], [0], [0], [1], [0, 0, 1, 1], [], []>} : vector<4x128xbf16>, vector<128x128xbf16>, vector<4x128xf32> -> vector<4x128xf32>
    %672 = arith.addf %667, %671 : vector<4x128xf32>
    %c60 = arith.constant 60 : index
    %c0_537 = arith.constant 0 : index
    %673 = tpu.strided_load %arg13[%c60, %c0_537] {strides = array<i32: 2, 1>} : memref<100x128xf32, #tpu.memory_space<vmem>>, vector<4x128xf32>
    %c768_538 = arith.constant 768 : index
    %c0_539 = arith.constant 0 : index
    %674 = vector.load %arg4[%c768_538, %c0_539] : memref<1152x128xbf16, #tpu.memory_space<vmem>>, vector<128x128xbf16>
    %675 = arith.truncf %673 : vector<4x128xf32> to vector<4x128xbf16>
    %cst_540 = arith.constant dense<0.000000e+00> : vector<4x128xf32>
    %676 = tpu.matmul %675, %674, %cst_540 {dimension_numbers = #tpu.dot_dimension_numbers<[1], [0], [0], [1], [0, 0, 1, 1], [], []>} : vector<4x128xbf16>, vector<128x128xbf16>, vector<4x128xf32> -> vector<4x128xf32>
    %677 = arith.addf %672, %676 : vector<4x128xf32>
    %c61_541 = arith.constant 61 : index
    %c0_542 = arith.constant 0 : index
    %678 = tpu.strided_load %arg13[%c61_541, %c0_542] {strides = array<i32: 2, 1>} : memref<100x128xf32, #tpu.memory_space<vmem>>, vector<4x128xf32>
    %c896_543 = arith.constant 896 : index
    %c0_544 = arith.constant 0 : index
    %679 = vector.load %arg4[%c896_543, %c0_544] : memref<1152x128xbf16, #tpu.memory_space<vmem>>, vector<128x128xbf16>
    %680 = arith.truncf %678 : vector<4x128xf32> to vector<4x128xbf16>
    %cst_545 = arith.constant dense<0.000000e+00> : vector<4x128xf32>
    %681 = tpu.matmul %680, %679, %cst_545 {dimension_numbers = #tpu.dot_dimension_numbers<[1], [0], [0], [1], [0, 0, 1, 1], [], []>} : vector<4x128xbf16>, vector<128x128xbf16>, vector<4x128xf32> -> vector<4x128xf32>
    %682 = arith.addf %677, %681 : vector<4x128xf32>
    %c62 = arith.constant 62 : index
    %c0_546 = arith.constant 0 : index
    %683 = tpu.strided_load %arg13[%c62, %c0_546] {strides = array<i32: 2, 1>} : memref<100x128xf32, #tpu.memory_space<vmem>>, vector<4x128xf32>
    %c1024_547 = arith.constant 1024 : index
    %c0_548 = arith.constant 0 : index
    %684 = vector.load %arg4[%c1024_547, %c0_548] : memref<1152x128xbf16, #tpu.memory_space<vmem>>, vector<128x128xbf16>
    %685 = arith.truncf %683 : vector<4x128xf32> to vector<4x128xbf16>
    %cst_549 = arith.constant dense<0.000000e+00> : vector<4x128xf32>
    %686 = tpu.matmul %685, %684, %cst_549 {dimension_numbers = #tpu.dot_dimension_numbers<[1], [0], [0], [1], [0, 0, 1, 1], [], []>} : vector<4x128xbf16>, vector<128x128xbf16>, vector<4x128xf32> -> vector<4x128xf32>
    %687 = arith.addf %682, %686 : vector<4x128xf32>
    %688 = vector.broadcast %528 : vector<1x128xf32> to vector<4x128xf32>
    %689 = arith.addf %687, %688 : vector<4x128xf32>
    %cst_550 = arith.constant 0.000000e+00 : f32
    %690 = vector.broadcast %cst_550 : f32 to vector<4x128xf32>
    %691 = arith.cmpf oge, %689, %690 : vector<4x128xf32>
    %cst_551 = arith.constant 0.00999999977 : f32
    %692 = vector.broadcast %cst_551 : f32 to vector<4x128xf32>
    %693 = arith.mulf %692, %689 : vector<4x128xf32>
    %694 = arith.select %691, %689, %693 : vector<4x128xi1>, vector<4x128xf32>
    %695 = vector.broadcast %529 : vector<1x128xf32> to vector<4x128xf32>
    %696 = arith.addf %694, %695 : vector<4x128xf32>
    %c19_552 = arith.constant 19 : index
    %c0_553 = arith.constant 0 : index
    %697 = vector.load %arg14[%c19_552, %c0_553] : memref<36x128xf32, #tpu.memory_space<vmem>>, vector<4x128xf32>
    tpu.vector_store %arg14[%c19_552, %c0_553], %696 {strides = array<i32>} : memref<36x128xf32, #tpu.memory_space<vmem>>, vector<4x128xf32>,
    %cst_554 = arith.constant 0.000000e+00 : f32
    %698 = vector.broadcast %cst_554 : f32 to vector<4x128xf32>
    %c60_555 = arith.constant 60 : index
    %c0_556 = arith.constant 0 : index
    %699 = tpu.strided_load %arg13[%c60_555, %c0_556] {strides = array<i32: 2, 1>} : memref<100x128xf32, #tpu.memory_space<vmem>>, vector<4x128xf32>
    %c0_557 = arith.constant 0 : index
    %c0_558 = arith.constant 0 : index
    %700 = vector.load %arg4[%c0_557, %c0_558] : memref<1152x128xbf16, #tpu.memory_space<vmem>>, vector<128x128xbf16>
    %701 = arith.truncf %699 : vector<4x128xf32> to vector<4x128xbf16>
    %cst_559 = arith.constant dense<0.000000e+00> : vector<4x128xf32>
    %702 = tpu.matmul %701, %700, %cst_559 {dimension_numbers = #tpu.dot_dimension_numbers<[1], [0], [0], [1], [0, 0, 1, 1], [], []>} : vector<4x128xbf16>, vector<128x128xbf16>, vector<4x128xf32> -> vector<4x128xf32>
    %703 = arith.addf %698, %702 : vector<4x128xf32>
    %c61_560 = arith.constant 61 : index
    %c0_561 = arith.constant 0 : index
    %704 = tpu.strided_load %arg13[%c61_560, %c0_561] {strides = array<i32: 2, 1>} : memref<100x128xf32, #tpu.memory_space<vmem>>, vector<4x128xf32>
    %c128_562 = arith.constant 128 : index
    %c0_563 = arith.constant 0 : index
    %705 = vector.load %arg4[%c128_562, %c0_563] : memref<1152x128xbf16, #tpu.memory_space<vmem>>, vector<128x128xbf16>
    %706 = arith.truncf %704 : vector<4x128xf32> to vector<4x128xbf16>
    %cst_564 = arith.constant dense<0.000000e+00> : vector<4x128xf32>
    %707 = tpu.matmul %706, %705, %cst_564 {dimension_numbers = #tpu.dot_dimension_numbers<[1], [0], [0], [1], [0, 0, 1, 1], [], []>} : vector<4x128xbf16>, vector<128x128xbf16>, vector<4x128xf32> -> vector<4x128xf32>
    %708 = arith.addf %703, %707 : vector<4x128xf32>
    %c62_565 = arith.constant 62 : index
    %c0_566 = arith.constant 0 : index
    %709 = tpu.strided_load %arg13[%c62_565, %c0_566] {strides = array<i32: 2, 1>} : memref<100x128xf32, #tpu.memory_space<vmem>>, vector<4x128xf32>
    %c256_567 = arith.constant 256 : index
    %c0_568 = arith.constant 0 : index
    %710 = vector.load %arg4[%c256_567, %c0_568] : memref<1152x128xbf16, #tpu.memory_space<vmem>>, vector<128x128xbf16>
    %711 = arith.truncf %709 : vector<4x128xf32> to vector<4x128xbf16>
    %cst_569 = arith.constant dense<0.000000e+00> : vector<4x128xf32>
    %712 = tpu.matmul %711, %710, %cst_569 {dimension_numbers = #tpu.dot_dimension_numbers<[1], [0], [0], [1], [0, 0, 1, 1], [], []>} : vector<4x128xbf16>, vector<128x128xbf16>, vector<4x128xf32> -> vector<4x128xf32>
    %713 = arith.addf %708, %712 : vector<4x128xf32>
    %c70 = arith.constant 70 : index
    %c0_570 = arith.constant 0 : index
    %714 = tpu.strided_load %arg13[%c70, %c0_570] {strides = array<i32: 2, 1>} : memref<100x128xf32, #tpu.memory_space<vmem>>, vector<4x128xf32>
    %c384_571 = arith.constant 384 : index
    %c0_572 = arith.constant 0 : index
    %715 = vector.load %arg4[%c384_571, %c0_572] : memref<1152x128xbf16, #tpu.memory_space<vmem>>, vector<128x128xbf16>
    %716 = arith.truncf %714 : vector<4x128xf32> to vector<4x128xbf16>
    %cst_573 = arith.constant dense<0.000000e+00> : vector<4x128xf32>
    %717 = tpu.matmul %716, %715, %cst_573 {dimension_numbers = #tpu.dot_dimension_numbers<[1], [0], [0], [1], [0, 0, 1, 1], [], []>} : vector<4x128xbf16>, vector<128x128xbf16>, vector<4x128xf32> -> vector<4x128xf32>
    %718 = arith.addf %713, %717 : vector<4x128xf32>
    %c71_574 = arith.constant 71 : index
    %c0_575 = arith.constant 0 : index
    %719 = tpu.strided_load %arg13[%c71_574, %c0_575] {strides = array<i32: 2, 1>} : memref<100x128xf32, #tpu.memory_space<vmem>>, vector<4x128xf32>
    %c512_576 = arith.constant 512 : index
    %c0_577 = arith.constant 0 : index
    %720 = vector.load %arg4[%c512_576, %c0_577] : memref<1152x128xbf16, #tpu.memory_space<vmem>>, vector<128x128xbf16>
    %721 = arith.truncf %719 : vector<4x128xf32> to vector<4x128xbf16>
    %cst_578 = arith.constant dense<0.000000e+00> : vector<4x128xf32>
    %722 = tpu.matmul %721, %720, %cst_578 {dimension_numbers = #tpu.dot_dimension_numbers<[1], [0], [0], [1], [0, 0, 1, 1], [], []>} : vector<4x128xbf16>, vector<128x128xbf16>, vector<4x128xf32> -> vector<4x128xf32>
    %723 = arith.addf %718, %722 : vector<4x128xf32>
    %c72_579 = arith.constant 72 : index
    %c0_580 = arith.constant 0 : index
    %724 = tpu.strided_load %arg13[%c72_579, %c0_580] {strides = array<i32: 2, 1>} : memref<100x128xf32, #tpu.memory_space<vmem>>, vector<4x128xf32>
    %c640_581 = arith.constant 640 : index
    %c0_582 = arith.constant 0 : index
    %725 = vector.load %arg4[%c640_581, %c0_582] : memref<1152x128xbf16, #tpu.memory_space<vmem>>, vector<128x128xbf16>
    %726 = arith.truncf %724 : vector<4x128xf32> to vector<4x128xbf16>
    %cst_583 = arith.constant dense<0.000000e+00> : vector<4x128xf32>
    %727 = tpu.matmul %726, %725, %cst_583 {dimension_numbers = #tpu.dot_dimension_numbers<[1], [0], [0], [1], [0, 0, 1, 1], [], []>} : vector<4x128xbf16>, vector<128x128xbf16>, vector<4x128xf32> -> vector<4x128xf32>
    %728 = arith.addf %723, %727 : vector<4x128xf32>
    %c80 = arith.constant 80 : index
    %c0_584 = arith.constant 0 : index
    %729 = tpu.strided_load %arg13[%c80, %c0_584] {strides = array<i32: 2, 1>} : memref<100x128xf32, #tpu.memory_space<vmem>>, vector<4x128xf32>
    %c768_585 = arith.constant 768 : index
    %c0_586 = arith.constant 0 : index
    %730 = vector.load %arg4[%c768_585, %c0_586] : memref<1152x128xbf16, #tpu.memory_space<vmem>>, vector<128x128xbf16>
    %731 = arith.truncf %729 : vector<4x128xf32> to vector<4x128xbf16>
    %cst_587 = arith.constant dense<0.000000e+00> : vector<4x128xf32>
    %732 = tpu.matmul %731, %730, %cst_587 {dimension_numbers = #tpu.dot_dimension_numbers<[1], [0], [0], [1], [0, 0, 1, 1], [], []>} : vector<4x128xbf16>, vector<128x128xbf16>, vector<4x128xf32> -> vector<4x128xf32>
    %733 = arith.addf %728, %732 : vector<4x128xf32>
    %c81_588 = arith.constant 81 : index
    %c0_589 = arith.constant 0 : index
    %734 = tpu.strided_load %arg13[%c81_588, %c0_589] {strides = array<i32: 2, 1>} : memref<100x128xf32, #tpu.memory_space<vmem>>, vector<4x128xf32>
    %c896_590 = arith.constant 896 : index
    %c0_591 = arith.constant 0 : index
    %735 = vector.load %arg4[%c896_590, %c0_591] : memref<1152x128xbf16, #tpu.memory_space<vmem>>, vector<128x128xbf16>
    %736 = arith.truncf %734 : vector<4x128xf32> to vector<4x128xbf16>
    %cst_592 = arith.constant dense<0.000000e+00> : vector<4x128xf32>
    %737 = tpu.matmul %736, %735, %cst_592 {dimension_numbers = #tpu.dot_dimension_numbers<[1], [0], [0], [1], [0, 0, 1, 1], [], []>} : vector<4x128xbf16>, vector<128x128xbf16>, vector<4x128xf32> -> vector<4x128xf32>
    %738 = arith.addf %733, %737 : vector<4x128xf32>
    %c82 = arith.constant 82 : index
    %c0_593 = arith.constant 0 : index
    %739 = tpu.strided_load %arg13[%c82, %c0_593] {strides = array<i32: 2, 1>} : memref<100x128xf32, #tpu.memory_space<vmem>>, vector<4x128xf32>
    %c1024_594 = arith.constant 1024 : index
    %c0_595 = arith.constant 0 : index
    %740 = vector.load %arg4[%c1024_594, %c0_595] : memref<1152x128xbf16, #tpu.memory_space<vmem>>, vector<128x128xbf16>
    %741 = arith.truncf %739 : vector<4x128xf32> to vector<4x128xbf16>
    %cst_596 = arith.constant dense<0.000000e+00> : vector<4x128xf32>
    %742 = tpu.matmul %741, %740, %cst_596 {dimension_numbers = #tpu.dot_dimension_numbers<[1], [0], [0], [1], [0, 0, 1, 1], [], []>} : vector<4x128xbf16>, vector<128x128xbf16>, vector<4x128xf32> -> vector<4x128xf32>
    %743 = arith.addf %738, %742 : vector<4x128xf32>
    %744 = vector.broadcast %528 : vector<1x128xf32> to vector<4x128xf32>
    %745 = arith.addf %743, %744 : vector<4x128xf32>
    %cst_597 = arith.constant 0.000000e+00 : f32
    %746 = vector.broadcast %cst_597 : f32 to vector<4x128xf32>
    %747 = arith.cmpf oge, %745, %746 : vector<4x128xf32>
    %cst_598 = arith.constant 0.00999999977 : f32
    %748 = vector.broadcast %cst_598 : f32 to vector<4x128xf32>
    %749 = arith.mulf %748, %745 : vector<4x128xf32>
    %750 = arith.select %747, %745, %749 : vector<4x128xi1>, vector<4x128xf32>
    %751 = vector.broadcast %529 : vector<1x128xf32> to vector<4x128xf32>
    %752 = arith.addf %750, %751 : vector<4x128xf32>
    %c25 = arith.constant 25 : index
    %c0_599 = arith.constant 0 : index
    %753 = vector.load %arg14[%c25, %c0_599] : memref<36x128xf32, #tpu.memory_space<vmem>>, vector<4x128xf32>
    tpu.vector_store %arg14[%c25, %c0_599], %752 {strides = array<i32>} : memref<36x128xf32, #tpu.memory_space<vmem>>, vector<4x128xf32>,
    %c0_600 = arith.constant 0 : index
    %c0_601 = arith.constant 0 : index
    %754 = vector.load %arg7[%c0_600, %c0_601] : memref<2x128xf32, #tpu.memory_space<vmem>>, vector<1x128xf32>
    %c1_602 = arith.constant 1 : index
    %c0_603 = arith.constant 0 : index
    %755 = vector.load %arg7[%c1_602, %c0_603] : memref<2x128xf32, #tpu.memory_space<vmem>>, vector<1x128xf32>
    %cst_604 = arith.constant 0.000000e+00 : f32
    %756 = vector.broadcast %cst_604 : f32 to vector<2x128xf32>
    %c0_605 = arith.constant 0 : index
    %c0_606 = arith.constant 0 : index
    %757 = tpu.strided_load %arg14[%c0_605, %c0_606] {strides = array<i32: 2, 1>} : memref<36x128xf32, #tpu.memory_space<vmem>>, vector<2x128xf32>
    %c0_607 = arith.constant 0 : index
    %c0_608 = arith.constant 0 : index
    %758 = vector.load %arg6[%c0_607, %c0_608] : memref<1152x128xbf16, #tpu.memory_space<vmem>>, vector<128x128xbf16>
    %759 = arith.truncf %757 : vector<2x128xf32> to vector<2x128xbf16>
    %cst_609 = arith.constant dense<0.000000e+00> : vector<2x128xf32>
    %760 = tpu.matmul %759, %758, %cst_609 {dimension_numbers = #tpu.dot_dimension_numbers<[1], [0], [0], [1], [0, 0, 1, 1], [], []>} : vector<2x128xbf16>, vector<128x128xbf16>, vector<2x128xf32> -> vector<2x128xf32>
    %761 = arith.addf %756, %760 : vector<2x128xf32>
    %c1_610 = arith.constant 1 : index
    %c0_611 = arith.constant 0 : index
    %762 = tpu.strided_load %arg14[%c1_610, %c0_611] {strides = array<i32: 2, 1>} : memref<36x128xf32, #tpu.memory_space<vmem>>, vector<2x128xf32>
    %c128_612 = arith.constant 128 : index
    %c0_613 = arith.constant 0 : index
    %763 = vector.load %arg6[%c128_612, %c0_613] : memref<1152x128xbf16, #tpu.memory_space<vmem>>, vector<128x128xbf16>
    %764 = arith.truncf %762 : vector<2x128xf32> to vector<2x128xbf16>
    %cst_614 = arith.constant dense<0.000000e+00> : vector<2x128xf32>
    %765 = tpu.matmul %764, %763, %cst_614 {dimension_numbers = #tpu.dot_dimension_numbers<[1], [0], [0], [1], [0, 0, 1, 1], [], []>} : vector<2x128xbf16>, vector<128x128xbf16>, vector<2x128xf32> -> vector<2x128xf32>
    %766 = arith.addf %761, %765 : vector<2x128xf32>
    %c2_615 = arith.constant 2 : index
    %c0_616 = arith.constant 0 : index
    %767 = tpu.strided_load %arg14[%c2_615, %c0_616] {strides = array<i32: 2, 1>} : memref<36x128xf32, #tpu.memory_space<vmem>>, vector<2x128xf32>
    %c256_617 = arith.constant 256 : index
    %c0_618 = arith.constant 0 : index
    %768 = vector.load %arg6[%c256_617, %c0_618] : memref<1152x128xbf16, #tpu.memory_space<vmem>>, vector<128x128xbf16>
    %769 = arith.truncf %767 : vector<2x128xf32> to vector<2x128xbf16>
    %cst_619 = arith.constant dense<0.000000e+00> : vector<2x128xf32>
    %770 = tpu.matmul %769, %768, %cst_619 {dimension_numbers = #tpu.dot_dimension_numbers<[1], [0], [0], [1], [0, 0, 1, 1], [], []>} : vector<2x128xbf16>, vector<128x128xbf16>, vector<2x128xf32> -> vector<2x128xf32>
    %771 = arith.addf %766, %770 : vector<2x128xf32>
    %c6 = arith.constant 6 : index
    %c0_620 = arith.constant 0 : index
    %772 = tpu.strided_load %arg14[%c6, %c0_620] {strides = array<i32: 2, 1>} : memref<36x128xf32, #tpu.memory_space<vmem>>, vector<2x128xf32>
    %c384_621 = arith.constant 384 : index
    %c0_622 = arith.constant 0 : index
    %773 = vector.load %arg6[%c384_621, %c0_622] : memref<1152x128xbf16, #tpu.memory_space<vmem>>, vector<128x128xbf16>
    %774 = arith.truncf %772 : vector<2x128xf32> to vector<2x128xbf16>
    %cst_623 = arith.constant dense<0.000000e+00> : vector<2x128xf32>
    %775 = tpu.matmul %774, %773, %cst_623 {dimension_numbers = #tpu.dot_dimension_numbers<[1], [0], [0], [1], [0, 0, 1, 1], [], []>} : vector<2x128xbf16>, vector<128x128xbf16>, vector<2x128xf32> -> vector<2x128xf32>
    %776 = arith.addf %771, %775 : vector<2x128xf32>
    %c7_624 = arith.constant 7 : index
    %c0_625 = arith.constant 0 : index
    %777 = tpu.strided_load %arg14[%c7_624, %c0_625] {strides = array<i32: 2, 1>} : memref<36x128xf32, #tpu.memory_space<vmem>>, vector<2x128xf32>
    %c512_626 = arith.constant 512 : index
    %c0_627 = arith.constant 0 : index
    %778 = vector.load %arg6[%c512_626, %c0_627] : memref<1152x128xbf16, #tpu.memory_space<vmem>>, vector<128x128xbf16>
    %779 = arith.truncf %777 : vector<2x128xf32> to vector<2x128xbf16>
    %cst_628 = arith.constant dense<0.000000e+00> : vector<2x128xf32>
    %780 = tpu.matmul %779, %778, %cst_628 {dimension_numbers = #tpu.dot_dimension_numbers<[1], [0], [0], [1], [0, 0, 1, 1], [], []>} : vector<2x128xbf16>, vector<128x128xbf16>, vector<2x128xf32> -> vector<2x128xf32>
    %781 = arith.addf %776, %780 : vector<2x128xf32>
    %c8_629 = arith.constant 8 : index
    %c0_630 = arith.constant 0 : index
    %782 = tpu.strided_load %arg14[%c8_629, %c0_630] {strides = array<i32: 2, 1>} : memref<36x128xf32, #tpu.memory_space<vmem>>, vector<2x128xf32>
    %c640_631 = arith.constant 640 : index
    %c0_632 = arith.constant 0 : index
    %783 = vector.load %arg6[%c640_631, %c0_632] : memref<1152x128xbf16, #tpu.memory_space<vmem>>, vector<128x128xbf16>
    %784 = arith.truncf %782 : vector<2x128xf32> to vector<2x128xbf16>
    %cst_633 = arith.constant dense<0.000000e+00> : vector<2x128xf32>
    %785 = tpu.matmul %784, %783, %cst_633 {dimension_numbers = #tpu.dot_dimension_numbers<[1], [0], [0], [1], [0, 0, 1, 1], [], []>} : vector<2x128xbf16>, vector<128x128xbf16>, vector<2x128xf32> -> vector<2x128xf32>
    %786 = arith.addf %781, %785 : vector<2x128xf32>
    %c12_634 = arith.constant 12 : index
    %c0_635 = arith.constant 0 : index
    %787 = tpu.strided_load %arg14[%c12_634, %c0_635] {strides = array<i32: 2, 1>} : memref<36x128xf32, #tpu.memory_space<vmem>>, vector<2x128xf32>
    %c768_636 = arith.constant 768 : index
    %c0_637 = arith.constant 0 : index
    %788 = vector.load %arg6[%c768_636, %c0_637] : memref<1152x128xbf16, #tpu.memory_space<vmem>>, vector<128x128xbf16>
    %789 = arith.truncf %787 : vector<2x128xf32> to vector<2x128xbf16>
    %cst_638 = arith.constant dense<0.000000e+00> : vector<2x128xf32>
    %790 = tpu.matmul %789, %788, %cst_638 {dimension_numbers = #tpu.dot_dimension_numbers<[1], [0], [0], [1], [0, 0, 1, 1], [], []>} : vector<2x128xbf16>, vector<128x128xbf16>, vector<2x128xf32> -> vector<2x128xf32>
    %791 = arith.addf %786, %790 : vector<2x128xf32>
    %c13_639 = arith.constant 13 : index
    %c0_640 = arith.constant 0 : index
    %792 = tpu.strided_load %arg14[%c13_639, %c0_640] {strides = array<i32: 2, 1>} : memref<36x128xf32, #tpu.memory_space<vmem>>, vector<2x128xf32>
    %c896_641 = arith.constant 896 : index
    %c0_642 = arith.constant 0 : index
    %793 = vector.load %arg6[%c896_641, %c0_642] : memref<1152x128xbf16, #tpu.memory_space<vmem>>, vector<128x128xbf16>
    %794 = arith.truncf %792 : vector<2x128xf32> to vector<2x128xbf16>
    %cst_643 = arith.constant dense<0.000000e+00> : vector<2x128xf32>
    %795 = tpu.matmul %794, %793, %cst_643 {dimension_numbers = #tpu.dot_dimension_numbers<[1], [0], [0], [1], [0, 0, 1, 1], [], []>} : vector<2x128xbf16>, vector<128x128xbf16>, vector<2x128xf32> -> vector<2x128xf32>
    %796 = arith.addf %791, %795 : vector<2x128xf32>
    %c14 = arith.constant 14 : index
    %c0_644 = arith.constant 0 : index
    %797 = tpu.strided_load %arg14[%c14, %c0_644] {strides = array<i32: 2, 1>} : memref<36x128xf32, #tpu.memory_space<vmem>>, vector<2x128xf32>
    %c1024_645 = arith.constant 1024 : index
    %c0_646 = arith.constant 0 : index
    %798 = vector.load %arg6[%c1024_645, %c0_646] : memref<1152x128xbf16, #tpu.memory_space<vmem>>, vector<128x128xbf16>
    %799 = arith.truncf %797 : vector<2x128xf32> to vector<2x128xbf16>
    %cst_647 = arith.constant dense<0.000000e+00> : vector<2x128xf32>
    %800 = tpu.matmul %799, %798, %cst_647 {dimension_numbers = #tpu.dot_dimension_numbers<[1], [0], [0], [1], [0, 0, 1, 1], [], []>} : vector<2x128xbf16>, vector<128x128xbf16>, vector<2x128xf32> -> vector<2x128xf32>
    %801 = arith.addf %796, %800 : vector<2x128xf32>
    %802 = vector.broadcast %754 : vector<1x128xf32> to vector<2x128xf32>
    %803 = arith.addf %801, %802 : vector<2x128xf32>
    %cst_648 = arith.constant 0.000000e+00 : f32
    %804 = vector.broadcast %cst_648 : f32 to vector<2x128xf32>
    %805 = arith.cmpf oge, %803, %804 : vector<2x128xf32>
    %cst_649 = arith.constant 0.00999999977 : f32
    %806 = vector.broadcast %cst_649 : f32 to vector<2x128xf32>
    %807 = arith.mulf %806, %803 : vector<2x128xf32>
    %808 = arith.select %805, %803, %807 : vector<2x128xi1>, vector<2x128xf32>
    %809 = vector.broadcast %755 : vector<1x128xf32> to vector<2x128xf32>
    %810 = arith.addf %808, %809 : vector<2x128xf32>
    %c5 = arith.constant 5 : index
    %c0_650 = arith.constant 0 : index
    %811 = vector.load %arg15[%c5, %c0_650] : memref<16x128xf32, #tpu.memory_space<vmem>>, vector<2x128xf32>
    tpu.vector_store %arg15[%c5, %c0_650], %810 {strides = array<i32>} : memref<16x128xf32, #tpu.memory_space<vmem>>, vector<2x128xf32>,
    %cst_651 = arith.constant 0.000000e+00 : f32
    %812 = vector.broadcast %cst_651 : f32 to vector<2x128xf32>
    %c12_652 = arith.constant 12 : index
    %c0_653 = arith.constant 0 : index
    %813 = tpu.strided_load %arg14[%c12_652, %c0_653] {strides = array<i32: 2, 1>} : memref<36x128xf32, #tpu.memory_space<vmem>>, vector<2x128xf32>
    %c0_654 = arith.constant 0 : index
    %c0_655 = arith.constant 0 : index
    %814 = vector.load %arg6[%c0_654, %c0_655] : memref<1152x128xbf16, #tpu.memory_space<vmem>>, vector<128x128xbf16>
    %815 = arith.truncf %813 : vector<2x128xf32> to vector<2x128xbf16>
    %cst_656 = arith.constant dense<0.000000e+00> : vector<2x128xf32>
    %816 = tpu.matmul %815, %814, %cst_656 {dimension_numbers = #tpu.dot_dimension_numbers<[1], [0], [0], [1], [0, 0, 1, 1], [], []>} : vector<2x128xbf16>, vector<128x128xbf16>, vector<2x128xf32> -> vector<2x128xf32>
    %817 = arith.addf %812, %816 : vector<2x128xf32>
    %c13_657 = arith.constant 13 : index
    %c0_658 = arith.constant 0 : index
    %818 = tpu.strided_load %arg14[%c13_657, %c0_658] {strides = array<i32: 2, 1>} : memref<36x128xf32, #tpu.memory_space<vmem>>, vector<2x128xf32>
    %c128_659 = arith.constant 128 : index
    %c0_660 = arith.constant 0 : index
    %819 = vector.load %arg6[%c128_659, %c0_660] : memref<1152x128xbf16, #tpu.memory_space<vmem>>, vector<128x128xbf16>
    %820 = arith.truncf %818 : vector<2x128xf32> to vector<2x128xbf16>
    %cst_661 = arith.constant dense<0.000000e+00> : vector<2x128xf32>
    %821 = tpu.matmul %820, %819, %cst_661 {dimension_numbers = #tpu.dot_dimension_numbers<[1], [0], [0], [1], [0, 0, 1, 1], [], []>} : vector<2x128xbf16>, vector<128x128xbf16>, vector<2x128xf32> -> vector<2x128xf32>
    %822 = arith.addf %817, %821 : vector<2x128xf32>
    %c14_662 = arith.constant 14 : index
    %c0_663 = arith.constant 0 : index
    %823 = tpu.strided_load %arg14[%c14_662, %c0_663] {strides = array<i32: 2, 1>} : memref<36x128xf32, #tpu.memory_space<vmem>>, vector<2x128xf32>
    %c256_664 = arith.constant 256 : index
    %c0_665 = arith.constant 0 : index
    %824 = vector.load %arg6[%c256_664, %c0_665] : memref<1152x128xbf16, #tpu.memory_space<vmem>>, vector<128x128xbf16>
    %825 = arith.truncf %823 : vector<2x128xf32> to vector<2x128xbf16>
    %cst_666 = arith.constant dense<0.000000e+00> : vector<2x128xf32>
    %826 = tpu.matmul %825, %824, %cst_666 {dimension_numbers = #tpu.dot_dimension_numbers<[1], [0], [0], [1], [0, 0, 1, 1], [], []>} : vector<2x128xbf16>, vector<128x128xbf16>, vector<2x128xf32> -> vector<2x128xf32>
    %827 = arith.addf %822, %826 : vector<2x128xf32>
    %c18_667 = arith.constant 18 : index
    %c0_668 = arith.constant 0 : index
    %828 = tpu.strided_load %arg14[%c18_667, %c0_668] {strides = array<i32: 2, 1>} : memref<36x128xf32, #tpu.memory_space<vmem>>, vector<2x128xf32>
    %c384_669 = arith.constant 384 : index
    %c0_670 = arith.constant 0 : index
    %829 = vector.load %arg6[%c384_669, %c0_670] : memref<1152x128xbf16, #tpu.memory_space<vmem>>, vector<128x128xbf16>
    %830 = arith.truncf %828 : vector<2x128xf32> to vector<2x128xbf16>
    %cst_671 = arith.constant dense<0.000000e+00> : vector<2x128xf32>
    %831 = tpu.matmul %830, %829, %cst_671 {dimension_numbers = #tpu.dot_dimension_numbers<[1], [0], [0], [1], [0, 0, 1, 1], [], []>} : vector<2x128xbf16>, vector<128x128xbf16>, vector<2x128xf32> -> vector<2x128xf32>
    %832 = arith.addf %827, %831 : vector<2x128xf32>
    %c19_672 = arith.constant 19 : index
    %c0_673 = arith.constant 0 : index
    %833 = tpu.strided_load %arg14[%c19_672, %c0_673] {strides = array<i32: 2, 1>} : memref<36x128xf32, #tpu.memory_space<vmem>>, vector<2x128xf32>
    %c512_674 = arith.constant 512 : index
    %c0_675 = arith.constant 0 : index
    %834 = vector.load %arg6[%c512_674, %c0_675] : memref<1152x128xbf16, #tpu.memory_space<vmem>>, vector<128x128xbf16>
    %835 = arith.truncf %833 : vector<2x128xf32> to vector<2x128xbf16>
    %cst_676 = arith.constant dense<0.000000e+00> : vector<2x128xf32>
    %836 = tpu.matmul %835, %834, %cst_676 {dimension_numbers = #tpu.dot_dimension_numbers<[1], [0], [0], [1], [0, 0, 1, 1], [], []>} : vector<2x128xbf16>, vector<128x128xbf16>, vector<2x128xf32> -> vector<2x128xf32>
    %837 = arith.addf %832, %836 : vector<2x128xf32>
    %c20_677 = arith.constant 20 : index
    %c0_678 = arith.constant 0 : index
    %838 = tpu.strided_load %arg14[%c20_677, %c0_678] {strides = array<i32: 2, 1>} : memref<36x128xf32, #tpu.memory_space<vmem>>, vector<2x128xf32>
    %c640_679 = arith.constant 640 : index
    %c0_680 = arith.constant 0 : index
    %839 = vector.load %arg6[%c640_679, %c0_680] : memref<1152x128xbf16, #tpu.memory_space<vmem>>, vector<128x128xbf16>
    %840 = arith.truncf %838 : vector<2x128xf32> to vector<2x128xbf16>
    %cst_681 = arith.constant dense<0.000000e+00> : vector<2x128xf32>
    %841 = tpu.matmul %840, %839, %cst_681 {dimension_numbers = #tpu.dot_dimension_numbers<[1], [0], [0], [1], [0, 0, 1, 1], [], []>} : vector<2x128xbf16>, vector<128x128xbf16>, vector<2x128xf32> -> vector<2x128xf32>
    %842 = arith.addf %837, %841 : vector<2x128xf32>
    %c24_682 = arith.constant 24 : index
    %c0_683 = arith.constant 0 : index
    %843 = tpu.strided_load %arg14[%c24_682, %c0_683] {strides = array<i32: 2, 1>} : memref<36x128xf32, #tpu.memory_space<vmem>>, vector<2x128xf32>
    %c768_684 = arith.constant 768 : index
    %c0_685 = arith.constant 0 : index
    %844 = vector.load %arg6[%c768_684, %c0_685] : memref<1152x128xbf16, #tpu.memory_space<vmem>>, vector<128x128xbf16>
    %845 = arith.truncf %843 : vector<2x128xf32> to vector<2x128xbf16>
    %cst_686 = arith.constant dense<0.000000e+00> : vector<2x128xf32>
    %846 = tpu.matmul %845, %844, %cst_686 {dimension_numbers = #tpu.dot_dimension_numbers<[1], [0], [0], [1], [0, 0, 1, 1], [], []>} : vector<2x128xbf16>, vector<128x128xbf16>, vector<2x128xf32> -> vector<2x128xf32>
    %847 = arith.addf %842, %846 : vector<2x128xf32>
    %c25_687 = arith.constant 25 : index
    %c0_688 = arith.constant 0 : index
    %848 = tpu.strided_load %arg14[%c25_687, %c0_688] {strides = array<i32: 2, 1>} : memref<36x128xf32, #tpu.memory_space<vmem>>, vector<2x128xf32>
    %c896_689 = arith.constant 896 : index
    %c0_690 = arith.constant 0 : index
    %849 = vector.load %arg6[%c896_689, %c0_690] : memref<1152x128xbf16, #tpu.memory_space<vmem>>, vector<128x128xbf16>
    %850 = arith.truncf %848 : vector<2x128xf32> to vector<2x128xbf16>
    %cst_691 = arith.constant dense<0.000000e+00> : vector<2x128xf32>
    %851 = tpu.matmul %850, %849, %cst_691 {dimension_numbers = #tpu.dot_dimension_numbers<[1], [0], [0], [1], [0, 0, 1, 1], [], []>} : vector<2x128xbf16>, vector<128x128xbf16>, vector<2x128xf32> -> vector<2x128xf32>
    %852 = arith.addf %847, %851 : vector<2x128xf32>
    %c26 = arith.constant 26 : index
    %c0_692 = arith.constant 0 : index
    %853 = tpu.strided_load %arg14[%c26, %c0_692] {strides = array<i32: 2, 1>} : memref<36x128xf32, #tpu.memory_space<vmem>>, vector<2x128xf32>
    %c1024_693 = arith.constant 1024 : index
    %c0_694 = arith.constant 0 : index
    %854 = vector.load %arg6[%c1024_693, %c0_694] : memref<1152x128xbf16, #tpu.memory_space<vmem>>, vector<128x128xbf16>
    %855 = arith.truncf %853 : vector<2x128xf32> to vector<2x128xbf16>
    %cst_695 = arith.constant dense<0.000000e+00> : vector<2x128xf32>
    %856 = tpu.matmul %855, %854, %cst_695 {dimension_numbers = #tpu.dot_dimension_numbers<[1], [0], [0], [1], [0, 0, 1, 1], [], []>} : vector<2x128xbf16>, vector<128x128xbf16>, vector<2x128xf32> -> vector<2x128xf32>
    %857 = arith.addf %852, %856 : vector<2x128xf32>
    %858 = vector.broadcast %754 : vector<1x128xf32> to vector<2x128xf32>
    %859 = arith.addf %857, %858 : vector<2x128xf32>
    %cst_696 = arith.constant 0.000000e+00 : f32
    %860 = vector.broadcast %cst_696 : f32 to vector<2x128xf32>
    %861 = arith.cmpf oge, %859, %860 : vector<2x128xf32>
    %cst_697 = arith.constant 0.00999999977 : f32
    %862 = vector.broadcast %cst_697 : f32 to vector<2x128xf32>
    %863 = arith.mulf %862, %859 : vector<2x128xf32>
    %864 = arith.select %861, %859, %863 : vector<2x128xi1>, vector<2x128xf32>
    %865 = vector.broadcast %755 : vector<1x128xf32> to vector<2x128xf32>
    %866 = arith.addf %864, %865 : vector<2x128xf32>
    %c9 = arith.constant 9 : index
    %c0_698 = arith.constant 0 : index
    %867 = vector.load %arg15[%c9, %c0_698] : memref<16x128xf32, #tpu.memory_space<vmem>>, vector<2x128xf32>
    tpu.vector_store %arg15[%c9, %c0_698], %866 {strides = array<i32>} : memref<16x128xf32, #tpu.memory_space<vmem>>, vector<2x128xf32>,
    %c0_699 = arith.constant 0 : index
    %c0_700 = arith.constant 0 : index
    %868 = vector.load %arg9[%c0_699, %c0_700] : memref<2x128xf32, #tpu.memory_space<vmem>>, vector<1x128xf32>
    %c1_701 = arith.constant 1 : index
    %c0_702 = arith.constant 0 : index
    %869 = vector.load %arg9[%c1_701, %c0_702] : memref<2x128xf32, #tpu.memory_space<vmem>>, vector<1x128xf32>
    %cst_703 = arith.constant 0.000000e+00 : f32
    %870 = vector.broadcast %cst_703 : f32 to vector<1x128xf32>
    %c0_704 = arith.constant 0 : index
    %c0_705 = arith.constant 0 : index
    %871 = vector.load %arg15[%c0_704, %c0_705] : memref<16x128xf32, #tpu.memory_space<vmem>>, vector<1x128xf32>
    %c0_706 = arith.constant 0 : index
    %c0_707 = arith.constant 0 : index
    %872 = vector.load %arg8[%c0_706, %c0_707] : memref<1152x128xbf16, #tpu.memory_space<vmem>>, vector<128x128xbf16>
    %873 = arith.truncf %871 : vector<1x128xf32> to vector<1x128xbf16>
    %cst_708 = arith.constant dense<0.000000e+00> : vector<1x128xf32>
    %874 = tpu.matmul %873, %872, %cst_708 {dimension_numbers = #tpu.dot_dimension_numbers<[1], [0], [0], [1], [0, 0, 1, 1], [], []>} : vector<1x128xbf16>, vector<128x128xbf16>, vector<1x128xf32> -> vector<1x128xf32>
    %875 = arith.addf %870, %874 : vector<1x128xf32>
    %c1_709 = arith.constant 1 : index
    %c0_710 = arith.constant 0 : index
    %876 = vector.load %arg15[%c1_709, %c0_710] : memref<16x128xf32, #tpu.memory_space<vmem>>, vector<1x128xf32>
    %c128_711 = arith.constant 128 : index
    %c0_712 = arith.constant 0 : index
    %877 = vector.load %arg8[%c128_711, %c0_712] : memref<1152x128xbf16, #tpu.memory_space<vmem>>, vector<128x128xbf16>
    %878 = arith.truncf %876 : vector<1x128xf32> to vector<1x128xbf16>
    %cst_713 = arith.constant dense<0.000000e+00> : vector<1x128xf32>
    %879 = tpu.matmul %878, %877, %cst_713 {dimension_numbers = #tpu.dot_dimension_numbers<[1], [0], [0], [1], [0, 0, 1, 1], [], []>} : vector<1x128xbf16>, vector<128x128xbf16>, vector<1x128xf32> -> vector<1x128xf32>
    %880 = arith.addf %875, %879 : vector<1x128xf32>
    %c2_714 = arith.constant 2 : index
    %c0_715 = arith.constant 0 : index
    %881 = vector.load %arg15[%c2_714, %c0_715] : memref<16x128xf32, #tpu.memory_space<vmem>>, vector<1x128xf32>
    %c256_716 = arith.constant 256 : index
    %c0_717 = arith.constant 0 : index
    %882 = vector.load %arg8[%c256_716, %c0_717] : memref<1152x128xbf16, #tpu.memory_space<vmem>>, vector<128x128xbf16>
    %883 = arith.truncf %881 : vector<1x128xf32> to vector<1x128xbf16>
    %cst_718 = arith.constant dense<0.000000e+00> : vector<1x128xf32>
    %884 = tpu.matmul %883, %882, %cst_718 {dimension_numbers = #tpu.dot_dimension_numbers<[1], [0], [0], [1], [0, 0, 1, 1], [], []>} : vector<1x128xbf16>, vector<128x128xbf16>, vector<1x128xf32> -> vector<1x128xf32>
    %885 = arith.addf %880, %884 : vector<1x128xf32>
    %c4 = arith.constant 4 : index
    %c0_719 = arith.constant 0 : index
    %886 = vector.load %arg15[%c4, %c0_719] : memref<16x128xf32, #tpu.memory_space<vmem>>, vector<1x128xf32>
    %c384_720 = arith.constant 384 : index
    %c0_721 = arith.constant 0 : index
    %887 = vector.load %arg8[%c384_720, %c0_721] : memref<1152x128xbf16, #tpu.memory_space<vmem>>, vector<128x128xbf16>
    %888 = arith.truncf %886 : vector<1x128xf32> to vector<1x128xbf16>
    %cst_722 = arith.constant dense<0.000000e+00> : vector<1x128xf32>
    %889 = tpu.matmul %888, %887, %cst_722 {dimension_numbers = #tpu.dot_dimension_numbers<[1], [0], [0], [1], [0, 0, 1, 1], [], []>} : vector<1x128xbf16>, vector<128x128xbf16>, vector<1x128xf32> -> vector<1x128xf32>
    %890 = arith.addf %885, %889 : vector<1x128xf32>
    %c5_723 = arith.constant 5 : index
    %c0_724 = arith.constant 0 : index
    %891 = vector.load %arg15[%c5_723, %c0_724] : memref<16x128xf32, #tpu.memory_space<vmem>>, vector<1x128xf32>
    %c512_725 = arith.constant 512 : index
    %c0_726 = arith.constant 0 : index
    %892 = vector.load %arg8[%c512_725, %c0_726] : memref<1152x128xbf16, #tpu.memory_space<vmem>>, vector<128x128xbf16>
    %893 = arith.truncf %891 : vector<1x128xf32> to vector<1x128xbf16>
    %cst_727 = arith.constant dense<0.000000e+00> : vector<1x128xf32>
    %894 = tpu.matmul %893, %892, %cst_727 {dimension_numbers = #tpu.dot_dimension_numbers<[1], [0], [0], [1], [0, 0, 1, 1], [], []>} : vector<1x128xbf16>, vector<128x128xbf16>, vector<1x128xf32> -> vector<1x128xf32>
    %895 = arith.addf %890, %894 : vector<1x128xf32>
    %c6_728 = arith.constant 6 : index
    %c0_729 = arith.constant 0 : index
    %896 = vector.load %arg15[%c6_728, %c0_729] : memref<16x128xf32, #tpu.memory_space<vmem>>, vector<1x128xf32>
    %c640_730 = arith.constant 640 : index
    %c0_731 = arith.constant 0 : index
    %897 = vector.load %arg8[%c640_730, %c0_731] : memref<1152x128xbf16, #tpu.memory_space<vmem>>, vector<128x128xbf16>
    %898 = arith.truncf %896 : vector<1x128xf32> to vector<1x128xbf16>
    %cst_732 = arith.constant dense<0.000000e+00> : vector<1x128xf32>
    %899 = tpu.matmul %898, %897, %cst_732 {dimension_numbers = #tpu.dot_dimension_numbers<[1], [0], [0], [1], [0, 0, 1, 1], [], []>} : vector<1x128xbf16>, vector<128x128xbf16>, vector<1x128xf32> -> vector<1x128xf32>
    %900 = arith.addf %895, %899 : vector<1x128xf32>
    %c8_733 = arith.constant 8 : index
    %c0_734 = arith.constant 0 : index
    %901 = vector.load %arg15[%c8_733, %c0_734] : memref<16x128xf32, #tpu.memory_space<vmem>>, vector<1x128xf32>
    %c768_735 = arith.constant 768 : index
    %c0_736 = arith.constant 0 : index
    %902 = vector.load %arg8[%c768_735, %c0_736] : memref<1152x128xbf16, #tpu.memory_space<vmem>>, vector<128x128xbf16>
    %903 = arith.truncf %901 : vector<1x128xf32> to vector<1x128xbf16>
    %cst_737 = arith.constant dense<0.000000e+00> : vector<1x128xf32>
    %904 = tpu.matmul %903, %902, %cst_737 {dimension_numbers = #tpu.dot_dimension_numbers<[1], [0], [0], [1], [0, 0, 1, 1], [], []>} : vector<1x128xbf16>, vector<128x128xbf16>, vector<1x128xf32> -> vector<1x128xf32>
    %905 = arith.addf %900, %904 : vector<1x128xf32>
    %c9_738 = arith.constant 9 : index
    %c0_739 = arith.constant 0 : index
    %906 = vector.load %arg15[%c9_738, %c0_739] : memref<16x128xf32, #tpu.memory_space<vmem>>, vector<1x128xf32>
    %c896_740 = arith.constant 896 : index
    %c0_741 = arith.constant 0 : index
    %907 = vector.load %arg8[%c896_740, %c0_741] : memref<1152x128xbf16, #tpu.memory_space<vmem>>, vector<128x128xbf16>
    %908 = arith.truncf %906 : vector<1x128xf32> to vector<1x128xbf16>
    %cst_742 = arith.constant dense<0.000000e+00> : vector<1x128xf32>
    %909 = tpu.matmul %908, %907, %cst_742 {dimension_numbers = #tpu.dot_dimension_numbers<[1], [0], [0], [1], [0, 0, 1, 1], [], []>} : vector<1x128xbf16>, vector<128x128xbf16>, vector<1x128xf32> -> vector<1x128xf32>
    %910 = arith.addf %905, %909 : vector<1x128xf32>
    %c10_743 = arith.constant 10 : index
    %c0_744 = arith.constant 0 : index
    %911 = vector.load %arg15[%c10_743, %c0_744] : memref<16x128xf32, #tpu.memory_space<vmem>>, vector<1x128xf32>
    %c1024_745 = arith.constant 1024 : index
    %c0_746 = arith.constant 0 : index
    %912 = vector.load %arg8[%c1024_745, %c0_746] : memref<1152x128xbf16, #tpu.memory_space<vmem>>, vector<128x128xbf16>
    %913 = arith.truncf %911 : vector<1x128xf32> to vector<1x128xbf16>
    %cst_747 = arith.constant dense<0.000000e+00> : vector<1x128xf32>
    %914 = tpu.matmul %913, %912, %cst_747 {dimension_numbers = #tpu.dot_dimension_numbers<[1], [0], [0], [1], [0, 0, 1, 1], [], []>} : vector<1x128xbf16>, vector<128x128xbf16>, vector<1x128xf32> -> vector<1x128xf32>
    %915 = arith.addf %910, %914 : vector<1x128xf32>
    %916 = arith.addf %915, %868 : vector<1x128xf32>
    %cst_748 = arith.constant 0.000000e+00 : f32
    %917 = vector.broadcast %cst_748 : f32 to vector<1x128xf32>
    %918 = arith.cmpf oge, %916, %917 : vector<1x128xf32>
    %cst_749 = arith.constant 0.00999999977 : f32
    %919 = vector.broadcast %cst_749 : f32 to vector<1x128xf32>
    %920 = arith.mulf %919, %916 : vector<1x128xf32>
    %921 = arith.select %918, %916, %920 : vector<1x128xi1>, vector<1x128xf32>
    %922 = arith.addf %921, %869 : vector<1x128xf32>
    %c0_750 = arith.constant 0 : index
    %c0_751 = arith.constant 0 : index
    %923 = vector.load %arg16[%c0_750, %c0_751] : memref<1x128xf32, #tpu.memory_space<vmem>>, vector<1x128xf32>
    tpu.vector_store %arg16[%c0_750, %c0_751], %922 {strides = array<i32>} : memref<1x128xf32, #tpu.memory_space<vmem>>, vector<1x128xf32>,
    %c0_752 = arith.constant 0 : index
    %c0_753 = arith.constant 0 : index
    %924 = vector.load %arg16[%c0_752, %c0_753] : memref<1x128xf32, #tpu.memory_space<vmem>>, vector<1x128xf32>
    %c0_754 = arith.constant 0 : index
    %c0_755 = arith.constant 0 : index
    %925 = vector.load %arg10[%c0_754, %c0_755] : memref<1x128xf32, #tpu.memory_space<vmem>>, vector<1x128xf32>
    %926 = arith.mulf %924, %925 : vector<1x128xf32>
    %cst_756 = arith.constant dense<0.000000e+00> : vector<1xf32>
    %927 = vector.multi_reduction <add>, %926, %cst_756 [1] : vector<1x128xf32> to vector<1xf32>
    %928 = vector.shape_cast %927 : vector<1xf32> to vector<1x1xf32>
    %cst_757 = arith.constant dense<0.000000e+00> : vector<1xf32>
    %929 = vector.multi_reduction <add>, %928, %cst_757 [0] : vector<1x1xf32> to vector<1xf32>
    %930 = vector.shape_cast %929 : vector<1xf32> to vector<1x1xf32>
    %c0_758 = arith.constant 0 : index
    %c0_759 = arith.constant 0 : index
    %931 = vector.load %arg11[%c0_758, %c0_759] : memref<1x1xf32, #tpu.memory_space<vmem>>, vector<1x1xf32>
    %932 = arith.addf %930, %931 : vector<1x1xf32>
    %933 = math.absf %932 : vector<1x1xf32>
    %cst_760 = arith.constant 0.000000e+00 : f32
    %934 = vector.broadcast %cst_760 : f32 to vector<1x1xf32>
    %935 = arith.subf %934, %933 : vector<1x1xf32>
    %936 = math.exp %935 : vector<1x1xf32>
    %cst_761 = arith.constant 0.000000e+00 : f32
    %937 = vector.broadcast %cst_761 : f32 to vector<1x1xf32>
    %938 = arith.cmpf oge, %932, %937 : vector<1x1xf32>
    %cst_762 = arith.constant 1.000000e+00 : f32
    %939 = vector.broadcast %cst_762 : f32 to vector<1x1xf32>
    %940 = arith.addf %939, %936 : vector<1x1xf32>
    %cst_763 = arith.constant 1.000000e+00 : f32
    %941 = vector.broadcast %cst_763 : f32 to vector<1x1xf32>
    %942 = arith.divf %941, %940 : vector<1x1xf32>
    %cst_764 = arith.constant 1.000000e+00 : f32
    %943 = vector.broadcast %cst_764 : f32 to vector<1x1xf32>
    %944 = arith.addf %943, %936 : vector<1x1xf32>
    %945 = arith.divf %936, %944 : vector<1x1xf32>
    %946 = arith.select %938, %942, %945 : vector<1x1xi1>, vector<1x1xf32>
    %c0_765 = arith.constant 0 : index
    %c0_766 = arith.constant 0 : index
    %c0_767 = arith.constant 0 : index
    %947 = vector.load %arg12[%c0_765, %c0_766, %c0_767] : memref<1x1x1xf32, #tpu.memory_space<vmem>>, vector<1x1x1xf32>
    %948 = vector.shape_cast %947 : vector<1x1x1xf32> to vector<1x1xf32>
    %949 = vector.shape_cast %946 : vector<1x1xf32> to vector<1x1x1xf32>
    tpu.vector_store %arg12[%c0_765, %c0_766, %c0_767], %949 {strides = array<i32>} : memref<1x1x1xf32, #tpu.memory_space<vmem>>, vector<1x1x1xf32>,
    return
  }
  func.func @transform_0(%arg0: i32) -> (i32, i32, i32) {
    %c0_i32 = arith.constant 0 : i32
    %c0_i32_0 = arith.constant 0 : i32
    %c0_i32_1 = arith.constant 0 : i32
    return %arg0, %c0_i32, %c0_i32_0 : i32, i32, i32
  }
  func.func @transform_1(%arg0: i32) -> (i32, i32) {
    %c0_i32 = arith.constant 0 : i32
    %c0_i32_0 = arith.constant 0 : i32
    %c0_i32_1 = arith.constant 0 : i32
    return %c0_i32, %c0_i32_0 : i32, i32
  }
  func.func @transform_2(%arg0: i32) -> (i32, i32) {
    %c0_i32 = arith.constant 0 : i32
    %c0_i32_0 = arith.constant 0 : i32
    %c0_i32_1 = arith.constant 0 : i32
    return %c0_i32, %c0_i32_0 : i32, i32
  }
  func.func @transform_3(%arg0: i32) -> (i32, i32) {
    %c0_i32 = arith.constant 0 : i32
    %c0_i32_0 = arith.constant 0 : i32
    %c0_i32_1 = arith.constant 0 : i32
    return %c0_i32, %c0_i32_0 : i32, i32
  }
  func.func @transform_4(%arg0: i32) -> (i32, i32) {
    %c0_i32 = arith.constant 0 : i32
    %c0_i32_0 = arith.constant 0 : i32
    %c0_i32_1 = arith.constant 0 : i32
    return %c0_i32, %c0_i32_0 : i32, i32
  }
  func.func @transform_5(%arg0: i32) -> (i32, i32) {
    %c0_i32 = arith.constant 0 : i32
    %c0_i32_0 = arith.constant 0 : i32
    %c0_i32_1 = arith.constant 0 : i32
    return %c0_i32, %c0_i32_0 : i32, i32
  }
  func.func @transform_6(%arg0: i32) -> (i32, i32) {
    %c0_i32 = arith.constant 0 : i32
    %c0_i32_0 = arith.constant 0 : i32
    %c0_i32_1 = arith.constant 0 : i32
    return %c0_i32, %c0_i32_0 : i32, i32
  }
  func.func @transform_7(%arg0: i32) -> (i32, i32) {
    %c0_i32 = arith.constant 0 : i32
    %c0_i32_0 = arith.constant 0 : i32
    %c0_i32_1 = arith.constant 0 : i32
    return %c0_i32, %c0_i32_0 : i32, i32
  }
  func.func @transform_8(%arg0: i32) -> (i32, i32) {
    %c0_i32 = arith.constant 0 : i32
    %c0_i32_0 = arith.constant 0 : i32
    %c0_i32_1 = arith.constant 0 : i32
    return %c0_i32, %c0_i32_0 : i32, i32
  }
  func.func @transform_9(%arg0: i32) -> (i32, i32) {
    %c0_i32 = arith.constant 0 : i32
    %c0_i32_0 = arith.constant 0 : i32
    %c0_i32_1 = arith.constant 0 : i32
    return %c0_i32, %c0_i32_0 : i32, i32
  }
  func.func @transform_10(%arg0: i32) -> (i32, i32) {
    %c0_i32 = arith.constant 0 : i32
    %c0_i32_0 = arith.constant 0 : i32
    %c0_i32_1 = arith.constant 0 : i32
    return %c0_i32, %c0_i32_0 : i32, i32
  }
  func.func @transform_11(%arg0: i32) -> (i32, i32, i32) {
    %c0_i32 = arith.constant 0 : i32
    %c0_i32_0 = arith.constant 0 : i32
    %c0_i32_1 = arith.constant 0 : i32
    return %arg0, %c0_i32, %c0_i32_0 : i32, i32, i32
  }
}

</mosaic_0001>

<llo_original>
// kernel: discriminator_forward.1
$region0: #{discriminator_forward.1}
  #allocation0 [shape = 'u32[]', space=smem, size = 0x4, offset = 0x4, fixed_abs, tag = 'smem constant byte address 0x4 - core index']
  #allocation1 [shape = 'u32[72,128]{1,0:T(1,128)}', space=vmem, size = 0x9000, scoped, tag = 'internal scratch']
  #allocation2 [shape = 'f32[100,128]{1,0:T(8,128)}', space=vmem, size = 0xd000, scoped, tag = 'scratch operand']
  #allocation3 [shape = 'f32[36,128]{1,0:T(8,128)}', space=vmem, size = 0x5000, scoped, tag = 'scratch operand']
  #allocation4 [shape = 'f32[16,128]{1,0:T(8,128)}', space=vmem, size = 0x2000, scoped, tag = 'scratch operand']
  #allocation5 [shape = 'f32[1,128]{1,0:T(1,128)}', space=vmem, size = 0x200, scoped, tag = 'scratch operand']
  #allocation6 [shape = 'f32[1,1]{1,0:T(1,128)S(1)}', space=vmem, size = 0x200, scoped, tag = 'scoped memory for discriminator_forward.1']
  %s0 = inlined_call_operand.vmem [shape: f32[2,324,8], index: 0, kind: input, shape index: {}]
  %s1 = inlined_call_operand.vmem [shape: bf16[72,128], index: 1, kind: input, shape index: {}]
  %s2 = inlined_call_operand.vmem [shape: f32[2,128], index: 2, kind: input, shape index: {}]
  %s3 = inlined_call_operand.vmem [shape: bf16[1152,128], index: 3, kind: input, shape index: {}]
  %s4 = inlined_call_operand.vmem [shape: f32[2,128], index: 4, kind: input, shape index: {}]
  %s5 = inlined_call_operand.vmem [shape: bf16[1152,128], index: 5, kind: input, shape index: {}]
  %s6 = inlined_call_operand.vmem [shape: f32[2,128], index: 6, kind: input, shape index: {}]
  %s7 = inlined_call_operand.hbm [shape: bf16[1152,128], index: 7, kind: input, shape index: {}]
  %s8 = inlined_call_operand.vmem [shape: f32[2,128], index: 8, kind: input, shape index: {}]
  %s9 = inlined_call_operand.vmem [shape: f32[1,128], index: 9, kind: input, shape index: {}]
  %s10 = inlined_call_operand.<no memory space> [shape: f32[1,1], index: 10, kind: input, shape index: {}]
  %s11 = inlined_call_operand.vmem [shape: f32[2,1,1], index: 11, kind: output, shape index: {}]
  %s12 = sld [smem:[#allocation0]]
  $region81: #{discriminator_forward.1} parent=0
    _
  %s14 = ssub.s32 1, %s12
  %s15 = scalar_select 0, %s14, %s12
  %v16 = vstv %s10
  %17 = vst [vmem:[#allocation6] sm:$0x1] %v16
  $region1: #{discriminator_forward.1} parent=0
    #allocation7 [shape = 'u8[294912]{0}', space=vmem, size = 0x48000, scoped, tag = 'input window, operand 7, single buffered']
    #allocation8 [shape = 's32[2]{0}', space=sflag, size = 0x8, scoped, tag = 'scoped memory for discriminator_forward.1']
    %18 = vsyncpa [#allocation8], 0
    loop: start=0, step=1, limit=4
    $region2: #{discriminator_forward.1} parent=1 // loop_pre_header
      _
    $region3: #{discriminator_forward.1} parent=1 // loop_header
      %s20 = sphi 0, %s24
      %p21 = scmp.ge.s32.totalorder %s20, 4
      %s30 = sphi 0, %s32
      %s33 = sphi 0, %s30
      %s34 = sphi 0, %s33
      %s50 = sphi 0, %s34
      %s54 = sphi 0, %s54
      %s56 = sphi 0, %s54
      %s57 = sphi 0, %s56
      %s71 = sphi 0, %s57
      %s75 = sphi 0, %s75
      %s77 = sphi 0, %s75
      %s78 = sphi 0, %s77
      %s92 = sphi 0, %s78
      %s96 = sphi 0, %s96
      %s98 = sphi 0, %s96
      %s99 = sphi 0, %s98
      %s113 = sphi 0, %s99
      %s117 = sphi 0, %s117
      %s119 = sphi 0, %s117
      %s120 = sphi 0, %s119
      %s134 = sphi 0, %s120
      %s138 = sphi 0, %s138
      %s140 = sphi 0, %s138
      %s141 = sphi 0, %s140
      %s155 = sphi 0, %s141
      %s159 = sphi 0, %s159
      %s161 = sphi 0, %s159
      %s162 = sphi 0, %s161
      %s176 = sphi 0, %s162
      %s180 = sphi 0, %s180
      %s182 = sphi 0, %s180
      %s183 = sphi 0, %s182
      %s197 = sphi 0, %s183
      %s201 = sphi 0, %s201
      %s203 = sphi 0, %s201
      %s204 = sphi 0, %s203
      %s218 = sphi 0, %s204
      %s222 = sphi 0, %s222
      %s224 = sphi 0, %s222
      %s225 = sphi 0, %s224
      %s239 = sphi 0, %s225
      %s243 = sphi 0, %s243
      %s245 = sphi 0, %s243
      %s246 = sphi 0, %s245
      %s260 = sphi 0, %s246
      %s266 = sphi 0, %s268
      %s269 = sphi 0, %s266
      %s270 = sphi 0, %s269
      %s286 = sphi 0, %s270
    $region4: #{discriminator_forward.1} parent=1 // loop_header_branch
      %23 = sbr.rel (%p21) target = $region8
    $region5: #{discriminator_forward.1} parent=1 // loop_body
      %s25 = ssub.s32 %s20, 1
      %s26 = ssub.s32 %s20, 2
      %s27 = sadd.s32 %s20, 1
      %s28 = ssub.s32 %s20, %s27
      %p29 = scmp.eq.s32.totalorder %s28, 0
      %s31 = sadd.s32 %s30, 1
      %s32 = scalar_select %p29, %s30, %s31
      %p35 = pneg %p29
      %p36 = scmp.eq.s32.totalorder %s20, 1
      %p37 = por %p35, %p36
      %p38 = scmp.ne.s32.totalorder %s30, %s33
      %p39 = scmp.eq.s32.totalorder %s20, 0
      %p40 = por %p38, %p39
      %p41 = scmp.ne.s32.totalorder %s30, %s33
      %p42 = scmp.eq.s32.totalorder %s25, 1
      %p43 = por %p41, %p42
      %p44 = scmp.ne.s32.totalorder %s33, %s34
      %p45 = scmp.eq.s32.totalorder %s25, 0
      %p46 = por %p44, %p45
      %p47 = scmp.ne.s32.totalorder %s33, %s34
      %p48 = scmp.eq.s32.totalorder %s26, 1
      %p49 = por %p47, %p48
      %p51 = scmp.ne.s32.totalorder %s34, %s50
      %p52 = scmp.eq.s32.totalorder %s26, 0
      %p53 = por %p51, %p52
      %s55 = sadd.s32 %s54, 1
      %p58 = scmp.eq.s32.totalorder %s20, 1
      %p59 = scmp.ne.s32.totalorder %s54, %s56
      %p60 = scmp.eq.s32.totalorder %s20, 0
      %p61 = por %p59, %p60
      %p62 = scmp.ne.s32.totalorder %s54, %s56
      %p63 = scmp.eq.s32.totalorder %s25, 1
      %p64 = por %p62, %p63
      %p65 = scmp.ne.s32.totalorder %s56, %s57
      %p66 = scmp.eq.s32.totalorder %s25, 0
      %p67 = por %p65, %p66
      %p68 = scmp.ne.s32.totalorder %s56, %s57
      %p69 = scmp.eq.s32.totalorder %s26, 1
      %p70 = por %p68, %p69
      %p72 = scmp.ne.s32.totalorder %s57, %s71
      %p73 = scmp.eq.s32.totalorder %s26, 0
      %p74 = por %p72, %p73
      %s76 = sadd.s32 %s75, 1
      %p79 = scmp.eq.s32.totalorder %s20, 1
      %p80 = scmp.ne.s32.totalorder %s75, %s77
      %p81 = scmp.eq.s32.totalorder %s20, 0
      %p82 = por %p80, %p81
      %p83 = scmp.ne.s32.totalorder %s75, %s77
      %p84 = scmp.eq.s32.totalorder %s25, 1
      %p85 = por %p83, %p84
      %p86 = scmp.ne.s32.totalorder %s77, %s78
      %p87 = scmp.eq.s32.totalorder %s25, 0
      %p88 = por %p86, %p87
      %p89 = scmp.ne.s32.totalorder %s77, %s78
      %p90 = scmp.eq.s32.totalorder %s26, 1
      %p91 = por %p89, %p90
      %p93 = scmp.ne.s32.totalorder %s78, %s92
      %p94 = scmp.eq.s32.totalorder %s26, 0
      %p95 = por %p93, %p94
      %s97 = sadd.s32 %s96, 1
      %p100 = scmp.eq.s32.totalorder %s20, 1
      %p101 = scmp.ne.s32.totalorder %s96, %s98
      %p102 = scmp.eq.s32.totalorder %s20, 0
      %p103 = por %p101, %p102
      %p104 = scmp.ne.s32.totalorder %s96, %s98
      %p105 = scmp.eq.s32.totalorder %s25, 1
      %p106 = por %p104, %p105
      %p107 = scmp.ne.s32.totalorder %s98, %s99
      %p108 = scmp.eq.s32.totalorder %s25, 0
      %p109 = por %p107, %p108
      %p110 = scmp.ne.s32.totalorder %s98, %s99
      %p111 = scmp.eq.s32.totalorder %s26, 1
      %p112 = por %p110, %p111
      %p114 = scmp.ne.s32.totalorder %s99, %s113
      %p115 = scmp.eq.s32.totalorder %s26, 0
      %p116 = por %p114, %p115
      %s118 = sadd.s32 %s117, 1
      %p121 = scmp.eq.s32.totalorder %s20, 1
      %p122 = scmp.ne.s32.totalorder %s117, %s119
      %p123 = scmp.eq.s32.totalorder %s20, 0
      %p124 = por %p122, %p123
      %p125 = scmp.ne.s32.totalorder %s117, %s119
      %p126 = scmp.eq.s32.totalorder %s25, 1
      %p127 = por %p125, %p126
      %p128 = scmp.ne.s32.totalorder %s119, %s120
      %p129 = scmp.eq.s32.totalorder %s25, 0
      %p130 = por %p128, %p129
      %p131 = scmp.ne.s32.totalorder %s119, %s120
      %p132 = scmp.eq.s32.totalorder %s26, 1
      %p133 = por %p131, %p132
      %p135 = scmp.ne.s32.totalorder %s120, %s134
      %p136 = scmp.eq.s32.totalorder %s26, 0
      %p137 = por %p135, %p136
      %s139 = sadd.s32 %s138, 1
      %p142 = scmp.eq.s32.totalorder %s20, 1
      %p143 = scmp.ne.s32.totalorder %s138, %s140
      %p144 = scmp.eq.s32.totalorder %s20, 0
      %p145 = por %p143, %p144
      %p146 = scmp.ne.s32.totalorder %s138, %s140
      %p147 = scmp.eq.s32.totalorder %s25, 1
      %p148 = por %p146, %p147
      %p149 = scmp.ne.s32.totalorder %s140, %s141
      %p150 = scmp.eq.s32.totalorder %s25, 0
      %p151 = por %p149, %p150
      %p152 = scmp.ne.s32.totalorder %s140, %s141
      %p153 = scmp.eq.s32.totalorder %s26, 1
      %p154 = por %p152, %p153
      %p156 = scmp.ne.s32.totalorder %s141, %s155
      %p157 = scmp.eq.s32.totalorder %s26, 0
      %p158 = por %p156, %p157
      %s160 = sadd.s32 %s159, 1
      %p163 = scmp.eq.s32.totalorder %s20, 1
      %p164 = scmp.ne.s32.totalorder %s159, %s161
      %p165 = scmp.eq.s32.totalorder %s20, 0
      %p166 = por %p164, %p165
      %p167 = scmp.ne.s32.totalorder %s159, %s161
      %p168 = scmp.eq.s32.totalorder %s25, 1
      %p169 = por %p167, %p168
      %p170 = scmp.ne.s32.totalorder %s161, %s162
      %p171 = scmp.eq.s32.totalorder %s25, 0
      %p172 = por %p170, %p171
      %p173 = scmp.ne.s32.totalorder %s161, %s162
      %p174 = scmp.eq.s32.totalorder %s26, 1
      %p175 = por %p173, %p174
      %p177 = scmp.ne.s32.totalorder %s162, %s176
      %p178 = scmp.eq.s32.totalorder %s26, 0
      %p179 = por %p177, %p178
      %s181 = sadd.s32 %s180, 1
      %p184 = scmp.eq.s32.totalorder %s20, 1
      %p185 = scmp.ne.s32.totalorder %s180, %s182
      %p186 = scmp.eq.s32.totalorder %s20, 0
      %p187 = por %p185, %p186
      %p188 = scmp.ne.s32.totalorder %s180, %s182
      %p189 = scmp.eq.s32.totalorder %s25, 1
      %p190 = por %p188, %p189
      %p191 = scmp.ne.s32.totalorder %s182, %s183
      %p192 = scmp.eq.s32.totalorder %s25, 0
      %p193 = por %p191, %p192
      %p194 = scmp.ne.s32.totalorder %s182, %s183
      %p195 = scmp.eq.s32.totalorder %s26, 1
      %p196 = por %p194, %p195
      %p198 = scmp.ne.s32.totalorder %s183, %s197
      %p199 = scmp.eq.s32.totalorder %s26, 0
      %p200 = por %p198, %p199
      %s202 = sadd.s32 %s201, 1
      %p205 = scmp.eq.s32.totalorder %s20, 1
      %p206 = scmp.ne.s32.totalorder %s201, %s203
      %p207 = scmp.eq.s32.totalorder %s20, 0
      %p208 = por %p206, %p207
      %p209 = scmp.ne.s32.totalorder %s201, %s203
      %p210 = scmp.eq.s32.totalorder %s25, 1
      %p211 = por %p209, %p210
      %p212 = scmp.ne.s32.totalorder %s203, %s204
      %p213 = scmp.eq.s32.totalorder %s25, 0
      %p214 = por %p212, %p213
      %p215 = scmp.ne.s32.totalorder %s203, %s204
      %p216 = scmp.eq.s32.totalorder %s26, 1
      %p217 = por %p215, %p216
      %p219 = scmp.ne.s32.totalorder %s204, %s218
      %p220 = scmp.eq.s32.totalorder %s26, 0
      %p221 = por %p219, %p220
      %s223 = sadd.s32 %s222, 1
      %p226 = scmp.eq.s32.totalorder %s20, 1
      %p227 = scmp.ne.s32.totalorder %s222, %s224
      %p228 = scmp.eq.s32.totalorder %s20, 0
      %p229 = por %p227, %p228
      %p230 = scmp.ne.s32.totalorder %s222, %s224
      %p231 = scmp.eq.s32.totalorder %s25, 1
      %p232 = por %p230, %p231
      %p233 = scmp.ne.s32.totalorder %s224, %s225
      %p234 = scmp.eq.s32.totalorder %s25, 0
      %p235 = por %p233, %p234
      %p236 = scmp.ne.s32.totalorder %s224, %s225
      %p237 = scmp.eq.s32.totalorder %s26, 1
      %p238 = por %p236, %p237
      %p240 = scmp.ne.s32.totalorder %s225, %s239
      %p241 = scmp.eq.s32.totalorder %s26, 0
      %p242 = por %p240, %p241
      %s244 = sadd.s32 %s243, 1
      %p247 = scmp.eq.s32.totalorder %s20, 1
      %p248 = scmp.ne.s32.totalorder %s243, %s245
      %p249 = scmp.eq.s32.totalorder %s20, 0
      %p250 = por %p248, %p249
      %p251 = scmp.ne.s32.totalorder %s243, %s245
      %p252 = scmp.eq.s32.totalorder %s25, 1
      %p253 = por %p251, %p252
      %p254 = scmp.ne.s32.totalorder %s245, %s246
      %p255 = scmp.eq.s32.totalorder %s25, 0
      %p256 = por %p254, %p255
      %p257 = scmp.ne.s32.totalorder %s245, %s246
      %p258 = scmp.eq.s32.totalorder %s26, 1
      %p259 = por %p257, %p258
      %p261 = scmp.ne.s32.totalorder %s246, %s260
      %p262 = scmp.eq.s32.totalorder %s26, 0
      %p263 = por %p261, %p262
      %s264 = ssub.s32 %s20, %s27
      %p265 = scmp.eq.s32.totalorder %s264, 0
      %s267 = sadd.s32 %s266, 1
      %s268 = scalar_select %p265, %s266, %s267
      %p271 = pneg %p265
      %p272 = scmp.eq.s32.totalorder %s20, 1
      %p273 = por %p271, %p272
      %p274 = scmp.ne.s32.totalorder %s266, %s269
      %p275 = scmp.eq.s32.totalorder %s20, 0
      %p276 = por %p274, %p275
      %p277 = scmp.ne.s32.totalorder %s266, %s269
      %p278 = scmp.eq.s32.totalorder %s25, 1
      %p279 = por %p277, %p278
      %p280 = scmp.ne.s32.totalorder %s269, %s270
      %p281 = scmp.eq.s32.totalorder %s25, 0
      %p282 = por %p280, %p281
      %p283 = scmp.ne.s32.totalorder %s269, %s270
      %p284 = scmp.eq.s32.totalorder %s26, 1
      %p285 = por %p283, %p284
      %p287 = scmp.ne.s32.totalorder %s270, %s286
      %p288 = scmp.eq.s32.totalorder %s26, 0
      %p289 = por %p287, %p288
      %p290 = scmp.le.s32.totalorder 1, %s20
      %p291 = scmp.lt.s32.totalorder %s20, 3
      %p292 = pnand %p290, %p291
      %p293 = pneg %p292
      // Predicated region
      $region9: #{discriminator_forward.1} parent=5 // pred_check
        _
      $region10: #{discriminator_forward.1} parent=5 // pred_check_branch
        %295 = sbr.rel (%p292) target = $region12
      $region11: #{discriminator_forward.1} parent=5 // pred_region
        %s296 = ssub.s32 %s20, 1
        // Predicated region
        $region13: #{discriminator_forward.1} parent=11 // pred_check
          %p297 = pneg %p67
        $region14: #{discriminator_forward.1} parent=11 // pred_check_branch
          %299 = sbr.rel (%p297) target = $region16
        $region15: #{discriminator_forward.1} parent=11 // pred_region
          _
        $region16: #{discriminator_forward.1} parent=11 // pred_fallthru
          _
        // Predicated region
        $region17: #{discriminator_forward.1} parent=11 // pred_check
          %p300 = pneg %p88
        $region18: #{discriminator_forward.1} parent=11 // pred_check_branch
          %302 = sbr.rel (%p300) target = $region20
        $region19: #{discriminator_forward.1} parent=11 // pred_region
          _
        $region20: #{discriminator_forward.1} parent=11 // pred_fallthru
          _
        // Predicated region
        $region21: #{discriminator_forward.1} parent=11 // pred_check
          %p303 = pneg %p109
        $region22: #{discriminator_forward.1} parent=11 // pred_check_branch
          %305 = sbr.rel (%p303) target = $region24
        $region23: #{discriminator_forward.1} parent=11 // pred_region
          _
        $region24: #{discriminator_forward.1} parent=11 // pred_fallthru
          _
        // Predicated region
        $region25: #{discriminator_forward.1} parent=11 // pred_check
          %p306 = pneg %p130
        $region26: #{discriminator_forward.1} parent=11 // pred_check_branch
          %308 = sbr.rel (%p306) target = $region28
        $region27: #{discriminator_forward.1} parent=11 // pred_region
          _
        $region28: #{discriminator_forward.1} parent=11 // pred_fallthru
          _
        // Predicated region
        $region29: #{discriminator_forward.1} parent=11 // pred_check
          %p309 = pneg %p151
        $region30: #{discriminator_forward.1} parent=11 // pred_check_branch
          %311 = sbr.rel (%p309) target = $region32
        $region31: #{discriminator_forward.1} parent=11 // pred_region
          _
        $region32: #{discriminator_forward.1} parent=11 // pred_fallthru
          _
        // Predicated region
        $region33: #{discriminator_forward.1} parent=11 // pred_check
          %p312 = pneg %p172
        $region34: #{discriminator_forward.1} parent=11 // pred_check_branch
          %314 = sbr.rel (%p312) target = $region36
        $region35: #{discriminator_forward.1} parent=11 // pred_region
          _
        $region36: #{discriminator_forward.1} parent=11 // pred_fallthru
          _
        // Predicated region
        $region37: #{discriminator_forward.1} parent=11 // pred_check
          %p315 = pneg %p193
        $region38: #{discriminator_forward.1} parent=11 // pred_check_branch
          %317 = sbr.rel (%p315) target = $region40
        $region39: #{discriminator_forward.1} parent=11 // pred_region
          %319 = vsyncadd [#allocation8], 0
          %s320 = sshll.u32 %s7, 4
          %s321 = int_to_ptr.hbm [resolvable:$true] %s320
          %s322 = sshll.u32 [#allocation7], 4
          %s323 = int_to_ptr.vmem [resolvable:$true] %s322
          %328 = dma.hbm_to_vmem [thread:$0]  %s321, 9216, %s323, [#allocation8], 64, 64, 4
        $region40: #{discriminator_forward.1} parent=11 // pred_fallthru
          _
        // Predicated region
        $region41: #{discriminator_forward.1} parent=11 // pred_check
          %p329 = pneg %p214
        $region42: #{discriminator_forward.1} parent=11 // pred_check_branch
          %331 = sbr.rel (%p329) target = $region44
        $region43: #{discriminator_forward.1} parent=11 // pred_region
          _
        $region44: #{discriminator_forward.1} parent=11 // pred_fallthru
          _
        // Predicated region
        $region45: #{discriminator_forward.1} parent=11 // pred_check
          %p332 = pneg %p235
        $region46: #{discriminator_forward.1} parent=11 // pred_check_branch
          %334 = sbr.rel (%p332) target = $region48
        $region47: #{discriminator_forward.1} parent=11 // pred_region
          _
        $region48: #{discriminator_forward.1} parent=11 // pred_fallthru
          _
        // Predicated region
        $region49: #{discriminator_forward.1} parent=11 // pred_check
          %p335 = pneg %p256
        $region50: #{discriminator_forward.1} parent=11 // pred_check_branch
          %337 = sbr.rel (%p335) target = $region52
        $region51: #{discriminator_forward.1} parent=11 // pred_region
          _
        $region52: #{discriminator_forward.1} parent=11 // pred_fallthru
          _
      $region12: #{discriminator_forward.1} parent=5 // pred_fallthru
        _
      %p338 = scmp.lt.s32.totalorder %s20, 2
      // Predicated region
      $region53: #{discriminator_forward.1} parent=5 // pred_check
        %p339 = pneg %p338
      $region54: #{discriminator_forward.1} parent=5 // pred_check_branch
        %341 = sbr.rel (%p339) target = $region56
      $region55: #{discriminator_forward.1} parent=5 // pred_region
        // Predicated region
        $region57: #{discriminator_forward.1} parent=55 // pred_check
          %p342 = pneg %p40
        $region58: #{discriminator_forward.1} parent=55 // pred_check_branch
          %344 = sbr.rel (%p342) target = $region60
        $region59: #{discriminator_forward.1} parent=55 // pred_region
          %p345 = scmp.lt.s32.totalorder %s20, 1
          %s346 = scalar_select %p345, %s20, 1
          %s347 = smul.addr %s346, 41
          %s348 = smul.addr %s347, 8
          %s349 = scalar_lea.vmem %s0, %s348
        $region60: #{discriminator_forward.1} parent=55 // pred_fallthru
          _
      $region56: #{discriminator_forward.1} parent=5 // pred_fallthru
        _
      %p350 = scmp.le.s32.totalorder 1, %s20
      %p351 = scmp.lt.s32.totalorder %s20, 3
      %p352 = pnand %p350, %p351
      %p353 = pneg %p352
      // Predicated region
      $region61: #{discriminator_forward.1} parent=5 // pred_check
        _
      $region62: #{discriminator_forward.1} parent=5 // pred_check_branch
        %355 = sbr.rel (%p352) target = $region64
      $region63: #{discriminator_forward.1} parent=5 // pred_region
        %s356 = ssub.s32 %s20, 1
        // Predicated region
        $region65: #{discriminator_forward.1} parent=63 // pred_check
          %p357 = pneg %p193
        $region66: #{discriminator_forward.1} parent=63 // pred_check_branch
          %359 = sbr.rel (%p357) target = $region68
        $region67: #{discriminator_forward.1} parent=63 // pred_region
          %361 = dma.done [#allocation8], 9216
        $region68: #{discriminator_forward.1} parent=63 // pred_fallthru
          _
        %p362 = scmp.lt.s32.totalorder %s25, 1
        %s363 = scalar_select %p362, %s25, 1
        %s364 = smul.addr %s363, 41
        %s365 = smul.addr %s364, 8
        %s366 = scalar_lea.vmem %s0, %s365
        %p367 = pneg %p46
        %p368 = pneg %p43
        %p369 = pneg %p67
        %p370 = pneg %p64
        %p371 = pneg %p88
        %p372 = pneg %p85
        %p373 = pneg %p109
        %p374 = pneg %p106
        %p375 = pneg %p130
        %p376 = pneg %p127
        %p377 = pneg %p151
        %p378 = pneg %p148
        %p379 = pneg %p172
        %p380 = pneg %p169
        %p381 = pneg %p193
        %p382 = pneg %p190
        %p383 = pneg %p214
        %p384 = pneg %p211
        %p385 = pneg %p235
        %p386 = pneg %p232
        %p387 = pneg %p256
        %p388 = pneg %p253
        %p389 = pneg %p282
        %p390 = pneg %p279
        %p391 = scmp.lt.s32.totalorder %s25, 1
        %s392 = scalar_select %p391, %s25, 1
        %s393 = scalar_lea.vmem %s11, %s392
        %p394 = scmp.lt.s32.totalorder %s25, 1
        %s395 = scalar_select %p394, %s25, 1
        %s396 = smul.addr %s395, 41
        %s397 = smul.addr %s396, 8
        %s398 = scalar_lea.vmem %s0, %s397
        %p399 = scmp.lt.s32.totalorder %s25, 1
        %s400 = scalar_select %p399, %s25, 1
        %s401 = scalar_lea.vmem %s11, %s400
        %403 = vst [vmem:[#allocation2] sm:$0xff] 0.0
        %404 = vst [vmem:[#allocation2 + $0x8] sm:$0xff] 0.0
        %405 = vst [vmem:[#allocation2 + $0x10] sm:$0xff] 0.0
        %406 = vst [vmem:[#allocation2 + $0x18] sm:$0xff] 0.0
        %407 = vst [vmem:[#allocation2 + $0x20] sm:$0xff] 0.0
        %408 = vst [vmem:[#allocation2 + $0x28] sm:$0xff] 0.0
        %409 = vst [vmem:[#allocation2 + $0x30] sm:$0xff] 0.0
        %410 = vst [vmem:[#allocation2 + $0x38] sm:$0xff] 0.0
        %411 = vst [vmem:[#allocation2 + $0x40] sm:$0xff] 0.0
        %412 = vst [vmem:[#allocation2 + $0x48] sm:$0xff] 0.0
        %413 = vst [vmem:[#allocation2 + $0x50] sm:$0xff] 0.0
        %414 = vst [vmem:[#allocation2 + $0x58] sm:$0xff] 0.0
        %415 = vst [vmem:[#allocation2 + $0x60] sm:$0xf] 0.0
        %416 = vst [vmem:[#allocation3] sm:$0xff] 0.0
        %417 = vst [vmem:[#allocation3 + $0x8] sm:$0xff] 0.0
        %418 = vst [vmem:[#allocation3 + $0x10] sm:$0xff] 0.0
        %419 = vst [vmem:[#allocation3 + $0x18] sm:$0xff] 0.0
        %420 = vst [vmem:[#allocation3 + $0x20] sm:$0xf] 0.0
        %421 = vst [vmem:[#allocation4] sm:$0xff] 0.0
        %422 = vst [vmem:[#allocation4 + $0x8] sm:$0xff] 0.0
        %v423 = vld [vmem:[%s2] sm:$0x1]
        %v424 = vld [vmem:[%s2 + $0x1] sm:$0x1]
        %v425 = vld [vmem:[%s398] ss:$2 sm:$0xff]
        %v426 = vld [vmem:[%s1] sm:$0xf]
        %v427 = vpack.c.bf16 %v425, %v425
        %s428 = scalar_lea.vmem %s398, 1
        %v429 = vld [vmem:[%s428] ss:$2 sm:$0xff]
        %v430 = vld [vmem:[%s1 + $0x4] sm:$0xf]
        %v431 = vpack.c.bf16 %v429, %v429
        %vm432 = vcmask 64512
        %v434 = vsel %vm432, %v431, 0
        %vm436 = vcmask 1043456
        %v438 = vsel %vm436, %v430, 0
        %440 = vmatpush.bf16.msra.mxu0 0
        %441 = vmatpush.bf16.msra.mxu0 0
        %442 = vmatpush.bf16.msra.mxu0 0
        %443 = vmatpush.bf16.msra.mxu0 0
        %444 = vmatpush.bf16.msra.mxu0 0
        %445 = vmatpush.bf16.msra.mxu0 0
        %446 = vmatpush.bf16.msra.mxu0 0
        %447 = vmatpush.bf16.msra.mxu0 %v438
        %448 = vmatmul.bf16.gmra.mxu0 %v434
        %v449 = vpop.f32.mrf.mxu0
        %v450 = vadd.f32 0.0, %v449
        %v451 = vpop.f32.mrf.mxu0
        %452 = vdwg.mxu0
        %v454 = vsel %vm432, %v427, 0
        %v457 = vsel %vm436, %v426, 0
        %459 = vmatpush.bf16.msra.mxu0 0
        %460 = vmatpush.bf16.msra.mxu0 0
        %461 = vmatpush.bf16.msra.mxu0 0
        %462 = vmatpush.bf16.msra.mxu0 0
        %463 = vmatpush.bf16.msra.mxu0 0
        %464 = vmatpush.bf16.msra.mxu0 0
        %465 = vmatpush.bf16.msra.mxu0 0
        %466 = vmatpush.bf16.msra.mxu0 %v457
        %467 = vmatmul.bf16.gmra.mxu0 %v454
        %v468 = vpop.f32.mrf.mxu0
        %v469 = vadd.f32 %v450, %v468
        %v470 = vpop.f32.mrf.mxu0
        %471 = vdwg.mxu0
        %s472 = scalar_lea.vmem %s398, 2
        %v473 = vld [vmem:[%s472] ss:$2 sm:$0xff]
        %v474 = vld [vmem:[%s1 + $0x8] sm:$0xf]
        %v475 = vpack.c.bf16 %v473, %v473
        %v477 = vsel %vm432, %v475, 0
        %v480 = vsel %vm436, %v474, 0
        %482 = vmatpush.bf16.msra.mxu0 0
        %483 = vmatpush.bf16.msra.mxu0 0
        %484 = vmatpush.bf16.msra.mxu0 0
        %485 = vmatpush.bf16.msra.mxu0 0
        %486 = vmatpush.bf16.msra.mxu0 0
        %487 = vmatpush.bf16.msra.mxu0 0
        %488 = vmatpush.bf16.msra.mxu0 0
        %489 = vmatpush.bf16.msra.mxu0 %v480
        %490 = vmatmul.bf16.gmra.mxu0 %v477
        %v491 = vpop.f32.mrf.mxu0
        %v492 = vadd.f32 0.0, %v491
        %v493 = vpop.f32.mrf.mxu0
        %494 = vdwg.mxu0
        %v495 = vadd.f32 %v469, %v492
        %s496 = scalar_lea.vmem %s398, 18
        %v497 = vld [vmem:[%s496] ss:$2 sm:$0xff]
        %v498 = vld [vmem:[%s1 + $0xc] sm:$0xf]
        %v499 = vpack.c.bf16 %v497, %v497
        %v501 = vsel %vm432, %v499, 0
        %v504 = vsel %vm436, %v498, 0
        %506 = vmatpush.bf16.msra.mxu0 0
        %507 = vmatpush.bf16.msra.mxu0 0
        %508 = vmatpush.bf16.msra.mxu0 0
        %509 = vmatpush.bf16.msra.mxu0 0
        %510 = vmatpush.bf16.msra.mxu0 0
        %511 = vmatpush.bf16.msra.mxu0 0
        %512 = vmatpush.bf16.msra.mxu0 0
        %513 = vmatpush.bf16.msra.mxu0 %v504
        %514 = vmatmul.bf16.gmra.mxu0 %v501
        %v515 = vpop.f32.mrf.mxu0
        %v516 = vadd.f32 0.0, %v515
        %v517 = vpop.f32.mrf.mxu0
        %518 = vdwg.mxu0
        %v519 = vadd.f32 %v495, %v516
        %s520 = scalar_lea.vmem %s398, 19
        %v521 = vld [vmem:[%s520] ss:$2 sm:$0xff]
        %v522 = vld [vmem:[%s1 + $0x10] sm:$0xf]
        %v523 = vpack.c.bf16 %v521, %v521
        %v525 = vsel %vm432, %v523, 0
        %v528 = vsel %vm436, %v522, 0
        %530 = vmatpush.bf16.msra.mxu0 0
        %531 = vmatpush.bf16.msra.mxu0 0
        %532 = vmatpush.bf16.msra.mxu0 0
        %533 = vmatpush.bf16.msra.mxu0 0
        %534 = vmatpush.bf16.msra.mxu0 0
        %535 = vmatpush.bf16.msra.mxu0 0
        %536 = vmatpush.bf16.msra.mxu0 0
        %537 = vmatpush.bf16.msra.mxu0 %v528
        %538 = vmatmul.bf16.gmra.mxu0 %v525
        %v539 = vpop.f32.mrf.mxu0
        %v540 = vadd.f32 0.0, %v539
        %v541 = vpop.f32.mrf.mxu0
        %542 = vdwg.mxu0
        %v543 = vadd.f32 %v519, %v540
        %s544 = scalar_lea.vmem %s398, 20
        %v545 = vld [vmem:[%s544] ss:$2 sm:$0xff]
        %v546 = vld [vmem:[%s1 + $0x14] sm:$0xf]
        %v547 = vpack.c.bf16 %v545, %v545
        %v549 = vsel %vm432, %v547, 0
        %v552 = vsel %vm436, %v546, 0
        %554 = vmatpush.bf16.msra.mxu0 0
        %555 = vmatpush.bf16.msra.mxu0 0
        %556 = vmatpush.bf16.msra.mxu0 0
        %557 = vmatpush.bf16.msra.mxu0 0
        %558 = vmatpush.bf16.msra.mxu0 0
        %559 = vmatpush.bf16.msra.mxu0 0
        %560 = vmatpush.bf16.msra.mxu0 0
        %561 = vmatpush.bf16.msra.mxu0 %v552
        %562 = vmatmul.bf16.gmra.mxu0 %v549
        %v563 = vpop.f32.mrf.mxu0
        %v564 = vadd.f32 0.0, %v563
        %v565 = vpop.f32.mrf.mxu0
        %566 = vdwg.mxu0
        %v567 = vadd.f32 %v543, %v564
        %s568 = scalar_lea.vmem %s398, 36
        %v569 = vld [vmem:[%s568] ss:$2 sm:$0xff]
        %v570 = vld [vmem:[%s1 + $0x18] sm:$0xf]
        %v571 = vpack.c.bf16 %v569, %v569
        %v573 = vsel %vm432, %v571, 0
        %v576 = vsel %vm436, %v570, 0
        %578 = vmatpush.bf16.msra.mxu0 0
        %579 = vmatpush.bf16.msra.mxu0 0
        %580 = vmatpush.bf16.msra.mxu0 0
        %581 = vmatpush.bf16.msra.mxu0 0
        %582 = vmatpush.bf16.msra.mxu0 0
        %583 = vmatpush.bf16.msra.mxu0 0
        %584 = vmatpush.bf16.msra.mxu0 0
        %585 = vmatpush.bf16.msra.mxu0 %v576
        %586 = vmatmul.bf16.gmra.mxu0 %v573
        %v587 = vpop.f32.mrf.mxu0
        %v588 = vadd.f32 0.0, %v587
        %v589 = vpop.f32.mrf.mxu0
        %590 = vdwg.mxu0
        %v591 = vadd.f32 %v567, %v588
        %s592 = scalar_lea.vmem %s398, 37
        %v593 = vld [vmem:[%s592] ss:$2 sm:$0xff]
        %v594 = vld [vmem:[%s1 + $0x1c] sm:$0xf]
        %v595 = vpack.c.bf16 %v593, %v593
        %v597 = vsel %vm432, %v595, 0
        %v600 = vsel %vm436, %v594, 0
        %602 = vmatpush.bf16.msra.mxu0 0
        %603 = vmatpush.bf16.msra.mxu0 0
        %604 = vmatpush.bf16.msra.mxu0 0
        %605 = vmatpush.bf16.msra.mxu0 0
        %606 = vmatpush.bf16.msra.mxu0 0
        %607 = vmatpush.bf16.msra.mxu0 0
        %608 = vmatpush.bf16.msra.mxu0 0
        %609 = vmatpush.bf16.msra.mxu0 %v600
        %610 = vmatmul.bf16.gmra.mxu0 %v597
        %v611 = vpop.f32.mrf.mxu0
        %v612 = vadd.f32 0.0, %v611
        %v613 = vpop.f32.mrf.mxu0
        %614 = vdwg.mxu0
        %v615 = vadd.f32 %v591, %v612
        %s616 = scalar_lea.vmem %s398, 38
        %v617 = vld [vmem:[%s616] ss:$2 sm:$0xff]
        %v618 = vld [vmem:[%s1 + $0x20] sm:$0xf]
        %v619 = vpack.c.bf16 %v617, %v617
        %v621 = vsel %vm432, %v619, 0
        %v624 = vsel %vm436, %v618, 0
        %626 = vmatpush.bf16.msra.mxu0 0
        %627 = vmatpush.bf16.msra.mxu0 0
        %628 = vmatpush.bf16.msra.mxu0 0
        %629 = vmatpush.bf16.msra.mxu0 0
        %630 = vmatpush.bf16.msra.mxu0 0
        %631 = vmatpush.bf16.msra.mxu0 0
        %632 = vmatpush.bf16.msra.mxu0 0
        %633 = vmatpush.bf16.msra.mxu0 %v624
        %634 = vmatmul.bf16.gmra.mxu0 %v621
        %v635 = vpop.f32.mrf.mxu0
        %v636 = vadd.f32 0.0, %v635
        %v637 = vpop.f32.mrf.mxu0
        %638 = vdwg.mxu0
        %v639 = vadd.f32 %v615, %v636
        %v640 = vperm.slane %v423, 0
        %v641 = vadd.f32 %v639, %v640
        %vm642 = vcmp.ge.f32.partialorder %v641, 0.0
        %v643 = vmul.f32 %v641, 0.01
        %v644 = vsel %vm642, %v641, %v643
        %v645 = vperm.slane %v424, 0
        %v646 = vadd.f32 %v644, %v645
        %647 = vst [vmem:[#allocation2 + $0xb] sm:$0xff] %v646
        %v648 = vld [vmem:[%s568] ss:$2 sm:$0xff]
        %v649 = vld [vmem:[%s1] sm:$0xf]
        %v650 = vpack.c.bf16 %v648, %v648
        %v651 = vld [vmem:[%s592] ss:$2 sm:$0xff]
        %v652 = vld [vmem:[%s1 + $0x4] sm:$0xf]
        %v653 = vpack.c.bf16 %v651, %v651
        %v655 = vsel %vm432, %v653, 0
        %v658 = vsel %vm436, %v652, 0
        %660 = vmatpush.bf16.msra.mxu0 0
        %661 = vmatpush.bf16.msra.mxu0 0
        %662 = vmatpush.bf16.msra.mxu0 0
        %663 = vmatpush.bf16.msra.mxu0 0
        %664 = vmatpush.bf16.msra.mxu0 0
        %665 = vmatpush.bf16.msra.mxu0 0
        %666 = vmatpush.bf16.msra.mxu0 0
        %667 = vmatpush.bf16.msra.mxu0 %v658
        %668 = vmatmul.bf16.gmra.mxu0 %v655
        %v669 = vpop.f32.mrf.mxu0
        %v670 = vadd.f32 0.0, %v669
        %v671 = vpop.f32.mrf.mxu0
        %672 = vdwg.mxu0
        %v674 = vsel %vm432, %v650, 0
        %v677 = vsel %vm436, %v649, 0
        %679 = vmatpush.bf16.msra.mxu0 0
        %680 = vmatpush.bf16.msra.mxu0 0
        %681 = vmatpush.bf16.msra.mxu0 0
        %682 = vmatpush.bf16.msra.mxu0 0
        %683 = vmatpush.bf16.msra.mxu0 0
        %684 = vmatpush.bf16.msra.mxu0 0
        %685 = vmatpush.bf16.msra.mxu0 0
        %686 = vmatpush.bf16.msra.mxu0 %v677
        %687 = vmatmul.bf16.gmra.mxu0 %v674
        %v688 = vpop.f32.mrf.mxu0
        %v689 = vadd.f32 %v670, %v688
        %v690 = vpop.f32.mrf.mxu0
        %691 = vdwg.mxu0
        %v692 = vld [vmem:[%s616] ss:$2 sm:$0xff]
        %v693 = vld [vmem:[%s1 + $0x8] sm:$0xf]
        %v694 = vpack.c.bf16 %v692, %v692
        %v696 = vsel %vm432, %v694, 0
        %v699 = vsel %vm436, %v693, 0
        %701 = vmatpush.bf16.msra.mxu0 0
        %702 = vmatpush.bf16.msra.mxu0 0
        %703 = vmatpush.bf16.msra.mxu0 0
        %704 = vmatpush.bf16.msra.mxu0 0
        %705 = vmatpush.bf16.msra.mxu0 0
        %706 = vmatpush.bf16.msra.mxu0 0
        %707 = vmatpush.bf16.msra.mxu0 0
        %708 = vmatpush.bf16.msra.mxu0 %v699
        %709 = vmatmul.bf16.gmra.mxu0 %v696
        %v710 = vpop.f32.mrf.mxu0
        %v711 = vadd.f32 0.0, %v710
        %v712 = vpop.f32.mrf.mxu0
        %713 = vdwg.mxu0
        %v714 = vadd.f32 %v689, %v711
        %s715 = scalar_lea.vmem %s398, 54
        %v716 = vld [vmem:[%s715] ss:$2 sm:$0xff]
        %v717 = vld [vmem:[%s1 + $0xc] sm:$0xf]
        %v718 = vpack.c.bf16 %v716, %v716
        %v720 = vsel %vm432, %v718, 0
        %v723 = vsel %vm436, %v717, 0
        %725 = vmatpush.bf16.msra.mxu0 0
        %726 = vmatpush.bf16.msra.mxu0 0
        %727 = vmatpush.bf16.msra.mxu0 0
        %728 = vmatpush.bf16.msra.mxu0 0
        %729 = vmatpush.bf16.msra.mxu0 0
        %730 = vmatpush.bf16.msra.mxu0 0
        %731 = vmatpush.bf16.msra.mxu0 0
        %732 = vmatpush.bf16.msra.mxu0 %v723
        %733 = vmatmul.bf16.gmra.mxu0 %v720
        %v734 = vpop.f32.mrf.mxu0
        %v735 = vadd.f32 0.0, %v734
        %v736 = vpop.f32.mrf.mxu0
        %737 = vdwg.mxu0
        %v738 = vadd.f32 %v714, %v735
        %s739 = scalar_lea.vmem %s398, 55
        %v740 = vld [vmem:[%s739] ss:$2 sm:$0xff]
        %v741 = vld [vmem:[%s1 + $0x10] sm:$0xf]
        %v742 = vpack.c.bf16 %v740, %v740
        %v744 = vsel %vm432, %v742, 0
        %v747 = vsel %vm436, %v741, 0
        %749 = vmatpush.bf16.msra.mxu0 0
        %750 = vmatpush.bf16.msra.mxu0 0
        %751 = vmatpush.bf16.msra.mxu0 0
        %752 = vmatpush.bf16.msra.mxu0 0
        %753 = vmatpush.bf16.msra.mxu0 0
        %754 = vmatpush.bf16.msra.mxu0 0
        %755 = vmatpush.bf16.msra.mxu0 0
        %756 = vmatpush.bf16.msra.mxu0 %v747
        %757 = vmatmul.bf16.gmra.mxu0 %v744
        %v758 = vpop.f32.mrf.mxu0
        %v759 = vadd.f32 0.0, %v758
        %v760 = vpop.f32.mrf.mxu0
        %761 = vdwg.mxu0
        %v762 = vadd.f32 %v738, %v759
        %s763 = scalar_lea.vmem %s398, 56
        %v764 = vld [vmem:[%s763] ss:$2 sm:$0xff]
        %v765 = vld [vmem:[%s1 + $0x14] sm:$0xf]
        %v766 = vpack.c.bf16 %v764, %v764
        %v768 = vsel %vm432, %v766, 0
        %v771 = vsel %vm436, %v765, 0
        %773 = vmatpush.bf16.msra.mxu0 0
        %774 = vmatpush.bf16.msra.mxu0 0
        %775 = vmatpush.bf16.msra.mxu0 0
        %776 = vmatpush.bf16.msra.mxu0 0
        %777 = vmatpush.bf16.msra.mxu0 0
        %778 = vmatpush.bf16.msra.mxu0 0
        %779 = vmatpush.bf16.msra.mxu0 0
        %780 = vmatpush.bf16.msra.mxu0 %v771
        %781 = vmatmul.bf16.gmra.mxu0 %v768
        %v782 = vpop.f32.mrf.mxu0
        %v783 = vadd.f32 0.0, %v782
        %v784 = vpop.f32.mrf.mxu0
        %785 = vdwg.mxu0
        %v786 = vadd.f32 %v762, %v783
        %s787 = scalar_lea.vmem %s398, 72
        %v788 = vld [vmem:[%s787] ss:$2 sm:$0xff]
        %v789 = vld [vmem:[%s1 + $0x18] sm:$0xf]
        %v790 = vpack.c.bf16 %v788, %v788
        %v792 = vsel %vm432, %v790, 0
        %v795 = vsel %vm436, %v789, 0
        %797 = vmatpush.bf16.msra.mxu0 0
        %798 = vmatpush.bf16.msra.mxu0 0
        %799 = vmatpush.bf16.msra.mxu0 0
        %800 = vmatpush.bf16.msra.mxu0 0
        %801 = vmatpush.bf16.msra.mxu0 0
        %802 = vmatpush.bf16.msra.mxu0 0
        %803 = vmatpush.bf16.msra.mxu0 0
        %804 = vmatpush.bf16.msra.mxu0 %v795
        %805 = vmatmul.bf16.gmra.mxu0 %v792
        %v806 = vpop.f32.mrf.mxu0
        %v807 = vadd.f32 0.0, %v806
        %v808 = vpop.f32.mrf.mxu0
        %809 = vdwg.mxu0
        %v810 = vadd.f32 %v786, %v807
        %s811 = scalar_lea.vmem %s398, 73
        %v812 = vld [vmem:[%s811] ss:$2 sm:$0xff]
        %v813 = vld [vmem:[%s1 + $0x1c] sm:$0xf]
        %v814 = vpack.c.bf16 %v812, %v812
        %v816 = vsel %vm432, %v814, 0
        %v819 = vsel %vm436, %v813, 0
        %821 = vmatpush.bf16.msra.mxu0 0
        %822 = vmatpush.bf16.msra.mxu0 0
        %823 = vmatpush.bf16.msra.mxu0 0
        %824 = vmatpush.bf16.msra.mxu0 0
        %825 = vmatpush.bf16.msra.mxu0 0
        %826 = vmatpush.bf16.msra.mxu0 0
        %827 = vmatpush.bf16.msra.mxu0 0
        %828 = vmatpush.bf16.msra.mxu0 %v819
        %829 = vmatmul.bf16.gmra.mxu0 %v816
        %v830 = vpop.f32.mrf.mxu0
        %v831 = vadd.f32 0.0, %v830
        %v832 = vpop.f32.mrf.mxu0
        %833 = vdwg.mxu0
        %v834 = vadd.f32 %v810, %v831
        %s835 = scalar_lea.vmem %s398, 74
        %v836 = vld [vmem:[%s835] ss:$2 sm:$0xff]
        %v837 = vld [vmem:[%s1 + $0x20] sm:$0xf]
        %v838 = vpack.c.bf16 %v836, %v836
        %v840 = vsel %vm432, %v838, 0
        %v843 = vsel %vm436, %v837, 0
        %845 = vmatpush.bf16.msra.mxu0 0
        %846 = vmatpush.bf16.msra.mxu0 0
        %847 = vmatpush.bf16.msra.mxu0 0
        %848 = vmatpush.bf16.msra.mxu0 0
        %849 = vmatpush.bf16.msra.mxu0 0
        %850 = vmatpush.bf16.msra.mxu0 0
        %851 = vmatpush.bf16.msra.mxu0 0
        %852 = vmatpush.bf16.msra.mxu0 %v843
        %853 = vmatmul.bf16.gmra.mxu0 %v840
        %v854 = vpop.f32.mrf.mxu0
        %v855 = vadd.f32 0.0, %v854
        %v856 = vpop.f32.mrf.mxu0
        %857 = vdwg.mxu0
        %v858 = vadd.f32 %v834, %v855
        %v859 = vadd.f32 %v858, %v640
        %vm860 = vcmp.ge.f32.partialorder %v859, 0.0
        %v861 = vmul.f32 %v859, 0.01
        %v862 = vsel %vm860, %v859, %v861
        %v863 = vadd.f32 %v862, %v645
        %864 = vst [vmem:[#allocation2 + $0x15] sm:$0xff] %v863
        %v865 = vld [vmem:[%s787] ss:$2 sm:$0xff]
        %v866 = vld [vmem:[%s1] sm:$0xf]
        %v867 = vpack.c.bf16 %v865, %v865
        %v868 = vld [vmem:[%s811] ss:$2 sm:$0xff]
        %v869 = vld [vmem:[%s1 + $0x4] sm:$0xf]
        %v870 = vpack.c.bf16 %v868, %v868
        %v872 = vsel %vm432, %v870, 0
        %v875 = vsel %vm436, %v869, 0
        %877 = vmatpush.bf16.msra.mxu0 0
        %878 = vmatpush.bf16.msra.mxu0 0
        %879 = vmatpush.bf16.msra.mxu0 0
        %880 = vmatpush.bf16.msra.mxu0 0
        %881 = vmatpush.bf16.msra.mxu0 0
        %882 = vmatpush.bf16.msra.mxu0 0
        %883 = vmatpush.bf16.msra.mxu0 0
        %884 = vmatpush.bf16.msra.mxu0 %v875
        %885 = vmatmul.bf16.gmra.mxu0 %v872
        %v886 = vpop.f32.mrf.mxu0
        %v887 = vadd.f32 0.0, %v886
        %v888 = vpop.f32.mrf.mxu0
        %889 = vdwg.mxu0
        %v891 = vsel %vm432, %v867, 0
        %v894 = vsel %vm436, %v866, 0
        %896 = vmatpush.bf16.msra.mxu0 0
        %897 = vmatpush.bf16.msra.mxu0 0
        %898 = vmatpush.bf16.msra.mxu0 0
        %899 = vmatpush.bf16.msra.mxu0 0
        %900 = vmatpush.bf16.msra.mxu0 0
        %901 = vmatpush.bf16.msra.mxu0 0
        %902 = vmatpush.bf16.msra.mxu0 0
        %903 = vmatpush.bf16.msra.mxu0 %v894
        %904 = vmatmul.bf16.gmra.mxu0 %v891
        %v905 = vpop.f32.mrf.mxu0
        %v906 = vadd.f32 %v887, %v905
        %v907 = vpop.f32.mrf.mxu0
        %908 = vdwg.mxu0
        %v909 = vld [vmem:[%s835] ss:$2 sm:$0xff]
        %v910 = vld [vmem:[%s1 + $0x8] sm:$0xf]
        %v911 = vpack.c.bf16 %v909, %v909
        %v913 = vsel %vm432, %v911, 0
        %v916 = vsel %vm436, %v910, 0
        %918 = vmatpush.bf16.msra.mxu0 0
        %919 = vmatpush.bf16.msra.mxu0 0
        %920 = vmatpush.bf16.msra.mxu0 0
        %921 = vmatpush.bf16.msra.mxu0 0
        %922 = vmatpush.bf16.msra.mxu0 0
        %923 = vmatpush.bf16.msra.mxu0 0
        %924 = vmatpush.bf16.msra.mxu0 0
        %925 = vmatpush.bf16.msra.mxu0 %v916
        %926 = vmatmul.bf16.gmra.mxu0 %v913
        %v927 = vpop.f32.mrf.mxu0
        %v928 = vadd.f32 0.0, %v927
        %v929 = vpop.f32.mrf.mxu0
        %930 = vdwg.mxu0
        %v931 = vadd.f32 %v906, %v928
        %s932 = scalar_lea.vmem %s398, 90
        %v933 = vld [vmem:[%s932] ss:$2 sm:$0xff]
        %v934 = vld [vmem:[%s1 + $0xc] sm:$0xf]
        %v935 = vpack.c.bf16 %v933, %v933
        %v937 = vsel %vm432, %v935, 0
        %v940 = vsel %vm436, %v934, 0
        %942 = vmatpush.bf16.msra.mxu0 0
        %943 = vmatpush.bf16.msra.mxu0 0
        %944 = vmatpush.bf16.msra.mxu0 0
        %945 = vmatpush.bf16.msra.mxu0 0
        %946 = vmatpush.bf16.msra.mxu0 0
        %947 = vmatpush.bf16.msra.mxu0 0
        %948 = vmatpush.bf16.msra.mxu0 0
        %949 = vmatpush.bf16.msra.mxu0 %v940
        %950 = vmatmul.bf16.gmra.mxu0 %v937
        %v951 = vpop.f32.mrf.mxu0
        %v952 = vadd.f32 0.0, %v951
        %v953 = vpop.f32.mrf.mxu0
        %954 = vdwg.mxu0
        %v955 = vadd.f32 %v931, %v952
        %s956 = scalar_lea.vmem %s398, 91
        %v957 = vld [vmem:[%s956] ss:$2 sm:$0xff]
        %v958 = vld [vmem:[%s1 + $0x10] sm:$0xf]
        %v959 = vpack.c.bf16 %v957, %v957
        %v961 = vsel %vm432, %v959, 0
        %v964 = vsel %vm436, %v958, 0
        %966 = vmatpush.bf16.msra.mxu0 0
        %967 = vmatpush.bf16.msra.mxu0 0
        %968 = vmatpush.bf16.msra.mxu0 0
        %969 = vmatpush.bf16.msra.mxu0 0
        %970 = vmatpush.bf16.msra.mxu0 0
        %971 = vmatpush.bf16.msra.mxu0 0
        %972 = vmatpush.bf16.msra.mxu0 0
        %973 = vmatpush.bf16.msra.mxu0 %v964
        %974 = vmatmul.bf16.gmra.mxu0 %v961
        %v975 = vpop.f32.mrf.mxu0
        %v976 = vadd.f32 0.0, %v975
        %v977 = vpop.f32.mrf.mxu0
        %978 = vdwg.mxu0
        %v979 = vadd.f32 %v955, %v976
        %s980 = scalar_lea.vmem %s398, 92
        %v981 = vld [vmem:[%s980] ss:$2 sm:$0xff]
        %v982 = vld [vmem:[%s1 + $0x14] sm:$0xf]
        %v983 = vpack.c.bf16 %v981, %v981
        %v985 = vsel %vm432, %v983, 0
        %v988 = vsel %vm436, %v982, 0
        %990 = vmatpush.bf16.msra.mxu0 0
        %991 = vmatpush.bf16.msra.mxu0 0
        %992 = vmatpush.bf16.msra.mxu0 0
        %993 = vmatpush.bf16.msra.mxu0 0
        %994 = vmatpush.bf16.msra.mxu0 0
        %995 = vmatpush.bf16.msra.mxu0 0
        %996 = vmatpush.bf16.msra.mxu0 0
        %997 = vmatpush.bf16.msra.mxu0 %v988
        %998 = vmatmul.bf16.gmra.mxu0 %v985
        %v999 = vpop.f32.mrf.mxu0
        %v1000 = vadd.f32 0.0, %v999
        %v1001 = vpop.f32.mrf.mxu0
        %1002 = vdwg.mxu0
        %v1003 = vadd.f32 %v979, %v1000
        %s1004 = scalar_lea.vmem %s398, 108
        %v1005 = vld [vmem:[%s1004] ss:$2 sm:$0xff]
        %v1006 = vld [vmem:[%s1 + $0x18] sm:$0xf]
        %v1007 = vpack.c.bf16 %v1005, %v1005
        %v1009 = vsel %vm432, %v1007, 0
        %v1012 = vsel %vm436, %v1006, 0
        %1014 = vmatpush.bf16.msra.mxu0 0
        %1015 = vmatpush.bf16.msra.mxu0 0
        %1016 = vmatpush.bf16.msra.mxu0 0
        %1017 = vmatpush.bf16.msra.mxu0 0
        %1018 = vmatpush.bf16.msra.mxu0 0
        %1019 = vmatpush.bf16.msra.mxu0 0
        %1020 = vmatpush.bf16.msra.mxu0 0
        %1021 = vmatpush.bf16.msra.mxu0 %v1012
        %1022 = vmatmul.bf16.gmra.mxu0 %v1009
        %v1023 = vpop.f32.mrf.mxu0
        %v1024 = vadd.f32 0.0, %v1023
        %v1025 = vpop.f32.mrf.mxu0
        %1026 = vdwg.mxu0
        %v1027 = vadd.f32 %v1003, %v1024
        %s1028 = scalar_lea.vmem %s398, 109
        %v1029 = vld [vmem:[%s1028] ss:$2 sm:$0xff]
        %v1030 = vld [vmem:[%s1 + $0x1c] sm:$0xf]
        %v1031 = vpack.c.bf16 %v1029, %v1029
        %v1033 = vsel %vm432, %v1031, 0
        %v1036 = vsel %vm436, %v1030, 0
        %1038 = vmatpush.bf16.msra.mxu0 0
        %1039 = vmatpush.bf16.msra.mxu0 0
        %1040 = vmatpush.bf16.msra.mxu0 0
        %1041 = vmatpush.bf16.msra.mxu0 0
        %1042 = vmatpush.bf16.msra.mxu0 0
        %1043 = vmatpush.bf16.msra.mxu0 0
        %1044 = vmatpush.bf16.msra.mxu0 0
        %1045 = vmatpush.bf16.msra.mxu0 %v1036
        %1046 = vmatmul.bf16.gmra.mxu0 %v1033
        %v1047 = vpop.f32.mrf.mxu0
        %v1048 = vadd.f32 0.0, %v1047
        %v1049 = vpop.f32.mrf.mxu0
        %1050 = vdwg.mxu0
        %v1051 = vadd.f32 %v1027, %v1048
        %s1052 = scalar_lea.vmem %s398, 110
        %v1053 = vld [vmem:[%s1052] ss:$2 sm:$0xff]
        %v1054 = vld [vmem:[%s1 + $0x20] sm:$0xf]
        %v1055 = vpack.c.bf16 %v1053, %v1053
        %v1057 = vsel %vm432, %v1055, 0
        %v1060 = vsel %vm436, %v1054, 0
        %1062 = vmatpush.bf16.msra.mxu0 0
        %1063 = vmatpush.bf16.msra.mxu0 0
        %1064 = vmatpush.bf16.msra.mxu0 0
        %1065 = vmatpush.bf16.msra.mxu0 0
        %1066 = vmatpush.bf16.msra.mxu0 0
        %1067 = vmatpush.bf16.msra.mxu0 0
        %1068 = vmatpush.bf16.msra.mxu0 0
        %1069 = vmatpush.bf16.msra.mxu0 %v1060
        %1070 = vmatmul.bf16.gmra.mxu0 %v1057
        %v1071 = vpop.f32.mrf.mxu0
        %v1072 = vadd.f32 0.0, %v1071
        %v1073 = vpop.f32.mrf.mxu0
        %1074 = vdwg.mxu0
        %v1075 = vadd.f32 %v1051, %v1072
        %v1076 = vadd.f32 %v1075, %v640
        %vm1077 = vcmp.ge.f32.partialorder %v1076, 0.0
        %v1078 = vmul.f32 %v1076, 0.01
        %v1079 = vsel %vm1077, %v1076, %v1078
        %v1080 = vadd.f32 %v1079, %v645
        %1081 = vst [vmem:[#allocation2 + $0x1f] sm:$0xff] %v1080
        %v1082 = vld [vmem:[%s1004] ss:$2 sm:$0xff]
        %v1083 = vld [vmem:[%s1] sm:$0xf]
        %v1084 = vpack.c.bf16 %v1082, %v1082
        %v1085 = vld [vmem:[%s1028] ss:$2 sm:$0xff]
        %v1086 = vld [vmem:[%s1 + $0x4] sm:$0xf]
        %v1087 = vpack.c.bf16 %v1085, %v1085
        %v1089 = vsel %vm432, %v1087, 0
        %v1092 = vsel %vm436, %v1086, 0
        %1094 = vmatpush.bf16.msra.mxu0 0
        %1095 = vmatpush.bf16.msra.mxu0 0
        %1096 = vmatpush.bf16.msra.mxu0 0
        %1097 = vmatpush.bf16.msra.mxu0 0
        %1098 = vmatpush.bf16.msra.mxu0 0
        %1099 = vmatpush.bf16.msra.mxu0 0
        %1100 = vmatpush.bf16.msra.mxu0 0
        %1101 = vmatpush.bf16.msra.mxu0 %v1092
        %1102 = vmatmul.bf16.gmra.mxu0 %v1089
        %v1103 = vpop.f32.mrf.mxu0
        %v1104 = vadd.f32 0.0, %v1103
        %v1105 = vpop.f32.mrf.mxu0
        %1106 = vdwg.mxu0
        %v1108 = vsel %vm432, %v1084, 0
        %v1111 = vsel %vm436, %v1083, 0
        %1113 = vmatpush.bf16.msra.mxu0 0
        %1114 = vmatpush.bf16.msra.mxu0 0
        %1115 = vmatpush.bf16.msra.mxu0 0
        %1116 = vmatpush.bf16.msra.mxu0 0
        %1117 = vmatpush.bf16.msra.mxu0 0
        %1118 = vmatpush.bf16.msra.mxu0 0
        %1119 = vmatpush.bf16.msra.mxu0 0
        %1120 = vmatpush.bf16.msra.mxu0 %v1111
        %1121 = vmatmul.bf16.gmra.mxu0 %v1108
        %v1122 = vpop.f32.mrf.mxu0
        %v1123 = vadd.f32 %v1104, %v1122
        %v1124 = vpop.f32.mrf.mxu0
        %1125 = vdwg.mxu0
        %v1126 = vld [vmem:[%s1052] ss:$2 sm:$0xff]
        %v1127 = vld [vmem:[%s1 + $0x8] sm:$0xf]
        %v1128 = vpack.c.bf16 %v1126, %v1126
        %v1130 = vsel %vm432, %v1128, 0
        %v1133 = vsel %vm436, %v1127, 0
        %1135 = vmatpush.bf16.msra.mxu0 0
        %1136 = vmatpush.bf16.msra.mxu0 0
        %1137 = vmatpush.bf16.msra.mxu0 0
        %1138 = vmatpush.bf16.msra.mxu0 0
        %1139 = vmatpush.bf16.msra.mxu0 0
        %1140 = vmatpush.bf16.msra.mxu0 0
        %1141 = vmatpush.bf16.msra.mxu0 0
        %1142 = vmatpush.bf16.msra.mxu0 %v1133
        %1143 = vmatmul.bf16.gmra.mxu0 %v1130
        %v1144 = vpop.f32.mrf.mxu0
        %v1145 = vadd.f32 0.0, %v1144
        %v1146 = vpop.f32.mrf.mxu0
        %1147 = vdwg.mxu0
        %v1148 = vadd.f32 %v1123, %v1145
        %s1149 = scalar_lea.vmem %s398, 126
        %v1150 = vld [vmem:[%s1149] ss:$2 sm:$0xff]
        %v1151 = vld [vmem:[%s1 + $0xc] sm:$0xf]
        %v1152 = vpack.c.bf16 %v1150, %v1150
        %v1154 = vsel %vm432, %v1152, 0
        %v1157 = vsel %vm436, %v1151, 0
        %1159 = vmatpush.bf16.msra.mxu0 0
        %1160 = vmatpush.bf16.msra.mxu0 0
        %1161 = vmatpush.bf16.msra.mxu0 0
        %1162 = vmatpush.bf16.msra.mxu0 0
        %1163 = vmatpush.bf16.msra.mxu0 0
        %1164 = vmatpush.bf16.msra.mxu0 0
        %1165 = vmatpush.bf16.msra.mxu0 0
        %1166 = vmatpush.bf16.msra.mxu0 %v1157
        %1167 = vmatmul.bf16.gmra.mxu0 %v1154
        %v1168 = vpop.f32.mrf.mxu0
        %v1169 = vadd.f32 0.0, %v1168
        %v1170 = vpop.f32.mrf.mxu0
        %1171 = vdwg.mxu0
        %v1172 = vadd.f32 %v1148, %v1169
        %s1173 = scalar_lea.vmem %s398, 127
        %v1174 = vld [vmem:[%s1173] ss:$2 sm:$0xff]
        %v1175 = vld [vmem:[%s1 + $0x10] sm:$0xf]
        %v1176 = vpack.c.bf16 %v1174, %v1174
        %v1178 = vsel %vm432, %v1176, 0
        %v1181 = vsel %vm436, %v1175, 0
        %1183 = vmatpush.bf16.msra.mxu0 0
        %1184 = vmatpush.bf16.msra.mxu0 0
        %1185 = vmatpush.bf16.msra.mxu0 0
        %1186 = vmatpush.bf16.msra.mxu0 0
        %1187 = vmatpush.bf16.msra.mxu0 0
        %1188 = vmatpush.bf16.msra.mxu0 0
        %1189 = vmatpush.bf16.msra.mxu0 0
        %1190 = vmatpush.bf16.msra.mxu0 %v1181
        %1191 = vmatmul.bf16.gmra.mxu0 %v1178
        %v1192 = vpop.f32.mrf.mxu0
        %v1193 = vadd.f32 0.0, %v1192
        %v1194 = vpop.f32.mrf.mxu0
        %1195 = vdwg.mxu0
        %v1196 = vadd.f32 %v1172, %v1193
        %s1197 = scalar_lea.vmem %s398, 128
        %v1198 = vld [vmem:[%s1197] ss:$2 sm:$0xff]
        %v1199 = vld [vmem:[%s1 + $0x14] sm:$0xf]
        %v1200 = vpack.c.bf16 %v1198, %v1198
        %v1202 = vsel %vm432, %v1200, 0
        %v1205 = vsel %vm436, %v1199, 0
        %1207 = vmatpush.bf16.msra.mxu0 0
        %1208 = vmatpush.bf16.msra.mxu0 0
        %1209 = vmatpush.bf16.msra.mxu0 0
        %1210 = vmatpush.bf16.msra.mxu0 0
        %1211 = vmatpush.bf16.msra.mxu0 0
        %1212 = vmatpush.bf16.msra.mxu0 0
        %1213 = vmatpush.bf16.msra.mxu0 0
        %1214 = vmatpush.bf16.msra.mxu0 %v1205
        %1215 = vmatmul.bf16.gmra.mxu0 %v1202
        %v1216 = vpop.f32.mrf.mxu0
        %v1217 = vadd.f32 0.0, %v1216
        %v1218 = vpop.f32.mrf.mxu0
        %1219 = vdwg.mxu0
        %v1220 = vadd.f32 %v1196, %v1217
        %s1221 = scalar_lea.vmem %s398, 144
        %v1222 = vld [vmem:[%s1221] ss:$2 sm:$0xff]
        %v1223 = vld [vmem:[%s1 + $0x18] sm:$0xf]
        %v1224 = vpack.c.bf16 %v1222, %v1222
        %v1226 = vsel %vm432, %v1224, 0
        %v1229 = vsel %vm436, %v1223, 0
        %1231 = vmatpush.bf16.msra.mxu0 0
        %1232 = vmatpush.bf16.msra.mxu0 0
        %1233 = vmatpush.bf16.msra.mxu0 0
        %1234 = vmatpush.bf16.msra.mxu0 0
        %1235 = vmatpush.bf16.msra.mxu0 0
        %1236 = vmatpush.bf16.msra.mxu0 0
        %1237 = vmatpush.bf16.msra.mxu0 0
        %1238 = vmatpush.bf16.msra.mxu0 %v1229
        %1239 = vmatmul.bf16.gmra.mxu0 %v1226
        %v1240 = vpop.f32.mrf.mxu0
        %v1241 = vadd.f32 0.0, %v1240
        %v1242 = vpop.f32.mrf.mxu0
        %1243 = vdwg.mxu0
        %v1244 = vadd.f32 %v1220, %v1241
        %s1245 = scalar_lea.vmem %s398, 145
        %v1246 = vld [vmem:[%s1245] ss:$2 sm:$0xff]
        %v1247 = vld [vmem:[%s1 + $0x1c] sm:$0xf]
        %v1248 = vpack.c.bf16 %v1246, %v1246
        %v1250 = vsel %vm432, %v1248, 0
        %v1253 = vsel %vm436, %v1247, 0
        %1255 = vmatpush.bf16.msra.mxu0 0
        %1256 = vmatpush.bf16.msra.mxu0 0
        %1257 = vmatpush.bf16.msra.mxu0 0
        %1258 = vmatpush.bf16.msra.mxu0 0
        %1259 = vmatpush.bf16.msra.mxu0 0
        %1260 = vmatpush.bf16.msra.mxu0 0
        %1261 = vmatpush.bf16.msra.mxu0 0
        %1262 = vmatpush.bf16.msra.mxu0 %v1253
        %1263 = vmatmul.bf16.gmra.mxu0 %v1250
        %v1264 = vpop.f32.mrf.mxu0
        %v1265 = vadd.f32 0.0, %v1264
        %v1266 = vpop.f32.mrf.mxu0
        %1267 = vdwg.mxu0
        %v1268 = vadd.f32 %v1244, %v1265
        %s1269 = scalar_lea.vmem %s398, 146
        %v1270 = vld [vmem:[%s1269] ss:$2 sm:$0xff]
        %v1271 = vld [vmem:[%s1 + $0x20] sm:$0xf]
        %v1272 = vpack.c.bf16 %v1270, %v1270
        %v1274 = vsel %vm432, %v1272, 0
        %v1277 = vsel %vm436, %v1271, 0
        %1279 = vmatpush.bf16.msra.mxu0 0
        %1280 = vmatpush.bf16.msra.mxu0 0
        %1281 = vmatpush.bf16.msra.mxu0 0
        %1282 = vmatpush.bf16.msra.mxu0 0
        %1283 = vmatpush.bf16.msra.mxu0 0
        %1284 = vmatpush.bf16.msra.mxu0 0
        %1285 = vmatpush.bf16.msra.mxu0 0
        %1286 = vmatpush.bf16.msra.mxu0 %v1277
        %1287 = vmatmul.bf16.gmra.mxu0 %v1274
        %v1288 = vpop.f32.mrf.mxu0
        %v1289 = vadd.f32 0.0, %v1288
        %v1290 = vpop.f32.mrf.mxu0
        %1291 = vdwg.mxu0
        %v1292 = vadd.f32 %v1268, %v1289
        %v1293 = vadd.f32 %v1292, %v640
        %vm1294 = vcmp.ge.f32.partialorder %v1293, 0.0
        %v1295 = vmul.f32 %v1293, 0.01
        %v1296 = vsel %vm1294, %v1293, %v1295
        %v1297 = vadd.f32 %v1296, %v645
        %1298 = vst [vmem:[#allocation2 + $0x29] sm:$0xff] %v1297
        %v1299 = vld [vmem:[%s1221] ss:$2 sm:$0xff]
        %v1300 = vld [vmem:[%s1] sm:$0xf]
        %v1301 = vpack.c.bf16 %v1299, %v1299
        %v1302 = vld [vmem:[%s1245] ss:$2 sm:$0xff]
        %v1303 = vld [vmem:[%s1 + $0x4] sm:$0xf]
        %v1304 = vpack.c.bf16 %v1302, %v1302
        %v1306 = vsel %vm432, %v1304, 0
        %v1309 = vsel %vm436, %v1303, 0
        %1311 = vmatpush.bf16.msra.mxu0 0
        %1312 = vmatpush.bf16.msra.mxu0 0
        %1313 = vmatpush.bf16.msra.mxu0 0
        %1314 = vmatpush.bf16.msra.mxu0 0
        %1315 = vmatpush.bf16.msra.mxu0 0
        %1316 = vmatpush.bf16.msra.mxu0 0
        %1317 = vmatpush.bf16.msra.mxu0 0
        %1318 = vmatpush.bf16.msra.mxu0 %v1309
        %1319 = vmatmul.bf16.gmra.mxu0 %v1306
        %v1320 = vpop.f32.mrf.mxu0
        %v1321 = vadd.f32 0.0, %v1320
        %v1322 = vpop.f32.mrf.mxu0
        %1323 = vdwg.mxu0
        %v1325 = vsel %vm432, %v1301, 0
        %v1328 = vsel %vm436, %v1300, 0
        %1330 = vmatpush.bf16.msra.mxu0 0
        %1331 = vmatpush.bf16.msra.mxu0 0
        %1332 = vmatpush.bf16.msra.mxu0 0
        %1333 = vmatpush.bf16.msra.mxu0 0
        %1334 = vmatpush.bf16.msra.mxu0 0
        %1335 = vmatpush.bf16.msra.mxu0 0
        %1336 = vmatpush.bf16.msra.mxu0 0
        %1337 = vmatpush.bf16.msra.mxu0 %v1328
        %1338 = vmatmul.bf16.gmra.mxu0 %v1325
        %v1339 = vpop.f32.mrf.mxu0
        %v1340 = vadd.f32 %v1321, %v1339
        %v1341 = vpop.f32.mrf.mxu0
        %1342 = vdwg.mxu0
        %v1343 = vld [vmem:[%s1269] ss:$2 sm:$0xff]
        %v1344 = vld [vmem:[%s1 + $0x8] sm:$0xf]
        %v1345 = vpack.c.bf16 %v1343, %v1343
        %v1347 = vsel %vm432, %v1345, 0
        %v1350 = vsel %vm436, %v1344, 0
        %1352 = vmatpush.bf16.msra.mxu0 0
        %1353 = vmatpush.bf16.msra.mxu0 0
        %1354 = vmatpush.bf16.msra.mxu0 0
        %1355 = vmatpush.bf16.msra.mxu0 0
        %1356 = vmatpush.bf16.msra.mxu0 0
        %1357 = vmatpush.bf16.msra.mxu0 0
        %1358 = vmatpush.bf16.msra.mxu0 0
        %1359 = vmatpush.bf16.msra.mxu0 %v1350
        %1360 = vmatmul.bf16.gmra.mxu0 %v1347
        %v1361 = vpop.f32.mrf.mxu0
        %v1362 = vadd.f32 0.0, %v1361
        %v1363 = vpop.f32.mrf.mxu0
        %1364 = vdwg.mxu0
        %v1365 = vadd.f32 %v1340, %v1362
        %s1366 = scalar_lea.vmem %s398, 162
        %v1367 = vld [vmem:[%s1366] ss:$2 sm:$0xff]
        %v1368 = vld [vmem:[%s1 + $0xc] sm:$0xf]
        %v1369 = vpack.c.bf16 %v1367, %v1367
        %v1371 = vsel %vm432, %v1369, 0
        %v1374 = vsel %vm436, %v1368, 0
        %1376 = vmatpush.bf16.msra.mxu0 0
        %1377 = vmatpush.bf16.msra.mxu0 0
        %1378 = vmatpush.bf16.msra.mxu0 0
        %1379 = vmatpush.bf16.msra.mxu0 0
        %1380 = vmatpush.bf16.msra.mxu0 0
        %1381 = vmatpush.bf16.msra.mxu0 0
        %1382 = vmatpush.bf16.msra.mxu0 0
        %1383 = vmatpush.bf16.msra.mxu0 %v1374
        %1384 = vmatmul.bf16.gmra.mxu0 %v1371
        %v1385 = vpop.f32.mrf.mxu0
        %v1386 = vadd.f32 0.0, %v1385
        %v1387 = vpop.f32.mrf.mxu0
        %1388 = vdwg.mxu0
        %v1389 = vadd.f32 %v1365, %v1386
        %s1390 = scalar_lea.vmem %s398, 163
        %v1391 = vld [vmem:[%s1390] ss:$2 sm:$0xff]
        %v1392 = vld [vmem:[%s1 + $0x10] sm:$0xf]
        %v1393 = vpack.c.bf16 %v1391, %v1391
        %v1395 = vsel %vm432, %v1393, 0
        %v1398 = vsel %vm436, %v1392, 0
        %1400 = vmatpush.bf16.msra.mxu0 0
        %1401 = vmatpush.bf16.msra.mxu0 0
        %1402 = vmatpush.bf16.msra.mxu0 0
        %1403 = vmatpush.bf16.msra.mxu0 0
        %1404 = vmatpush.bf16.msra.mxu0 0
        %1405 = vmatpush.bf16.msra.mxu0 0
        %1406 = vmatpush.bf16.msra.mxu0 0
        %1407 = vmatpush.bf16.msra.mxu0 %v1398
        %1408 = vmatmul.bf16.gmra.mxu0 %v1395
        %v1409 = vpop.f32.mrf.mxu0
        %v1410 = vadd.f32 0.0, %v1409
        %v1411 = vpop.f32.mrf.mxu0
        %1412 = vdwg.mxu0
        %v1413 = vadd.f32 %v1389, %v1410
        %s1414 = scalar_lea.vmem %s398, 164
        %v1415 = vld [vmem:[%s1414] ss:$2 sm:$0xff]
        %v1416 = vld [vmem:[%s1 + $0x14] sm:$0xf]
        %v1417 = vpack.c.bf16 %v1415, %v1415
        %v1419 = vsel %vm432, %v1417, 0
        %v1422 = vsel %vm436, %v1416, 0
        %1424 = vmatpush.bf16.msra.mxu0 0
        %1425 = vmatpush.bf16.msra.mxu0 0
        %1426 = vmatpush.bf16.msra.mxu0 0
        %1427 = vmatpush.bf16.msra.mxu0 0
        %1428 = vmatpush.bf16.msra.mxu0 0
        %1429 = vmatpush.bf16.msra.mxu0 0
        %1430 = vmatpush.bf16.msra.mxu0 0
        %1431 = vmatpush.bf16.msra.mxu0 %v1422
        %1432 = vmatmul.bf16.gmra.mxu0 %v1419
        %v1433 = vpop.f32.mrf.mxu0
        %v1434 = vadd.f32 0.0, %v1433
        %v1435 = vpop.f32.mrf.mxu0
        %1436 = vdwg.mxu0
        %v1437 = vadd.f32 %v1413, %v1434
        %s1438 = scalar_lea.vmem %s398, 180
        %v1439 = vld [vmem:[%s1438] ss:$2 sm:$0xff]
        %v1440 = vld [vmem:[%s1 + $0x18] sm:$0xf]
        %v1441 = vpack.c.bf16 %v1439, %v1439
        %v1443 = vsel %vm432, %v1441, 0
        %v1446 = vsel %vm436, %v1440, 0
        %1448 = vmatpush.bf16.msra.mxu0 0
        %1449 = vmatpush.bf16.msra.mxu0 0
        %1450 = vmatpush.bf16.msra.mxu0 0
        %1451 = vmatpush.bf16.msra.mxu0 0
        %1452 = vmatpush.bf16.msra.mxu0 0
        %1453 = vmatpush.bf16.msra.mxu0 0
        %1454 = vmatpush.bf16.msra.mxu0 0
        %1455 = vmatpush.bf16.msra.mxu0 %v1446
        %1456 = vmatmul.bf16.gmra.mxu0 %v1443
        %v1457 = vpop.f32.mrf.mxu0
        %v1458 = vadd.f32 0.0, %v1457
        %v1459 = vpop.f32.mrf.mxu0
        %1460 = vdwg.mxu0
        %v1461 = vadd.f32 %v1437, %v1458
        %s1462 = scalar_lea.vmem %s398, 181
        %v1463 = vld [vmem:[%s1462] ss:$2 sm:$0xff]
        %v1464 = vld [vmem:[%s1 + $0x1c] sm:$0xf]
        %v1465 = vpack.c.bf16 %v1463, %v1463
        %v1467 = vsel %vm432, %v1465, 0
        %v1470 = vsel %vm436, %v1464, 0
        %1472 = vmatpush.bf16.msra.mxu0 0
        %1473 = vmatpush.bf16.msra.mxu0 0
        %1474 = vmatpush.bf16.msra.mxu0 0
        %1475 = vmatpush.bf16.msra.mxu0 0
        %1476 = vmatpush.bf16.msra.mxu0 0
        %1477 = vmatpush.bf16.msra.mxu0 0
        %1478 = vmatpush.bf16.msra.mxu0 0
        %1479 = vmatpush.bf16.msra.mxu0 %v1470
        %1480 = vmatmul.bf16.gmra.mxu0 %v1467
        %v1481 = vpop.f32.mrf.mxu0
        %v1482 = vadd.f32 0.0, %v1481
        %v1483 = vpop.f32.mrf.mxu0
        %1484 = vdwg.mxu0
        %v1485 = vadd.f32 %v1461, %v1482
        %s1486 = scalar_lea.vmem %s398, 182
        %v1487 = vld [vmem:[%s1486] ss:$2 sm:$0xff]
        %v1488 = vld [vmem:[%s1 + $0x20] sm:$0xf]
        %v1489 = vpack.c.bf16 %v1487, %v1487
        %v1491 = vsel %vm432, %v1489, 0
        %v1494 = vsel %vm436, %v1488, 0
        %1496 = vmatpush.bf16.msra.mxu0 0
        %1497 = vmatpush.bf16.msra.mxu0 0
        %1498 = vmatpush.bf16.msra.mxu0 0
        %1499 = vmatpush.bf16.msra.mxu0 0
        %1500 = vmatpush.bf16.msra.mxu0 0
        %1501 = vmatpush.bf16.msra.mxu0 0
        %1502 = vmatpush.bf16.msra.mxu0 0
        %1503 = vmatpush.bf16.msra.mxu0 %v1494
        %1504 = vmatmul.bf16.gmra.mxu0 %v1491
        %v1505 = vpop.f32.mrf.mxu0
        %v1506 = vadd.f32 0.0, %v1505
        %v1507 = vpop.f32.mrf.mxu0
        %1508 = vdwg.mxu0
        %v1509 = vadd.f32 %v1485, %v1506
        %v1510 = vadd.f32 %v1509, %v640
        %vm1511 = vcmp.ge.f32.partialorder %v1510, 0.0
        %v1512 = vmul.f32 %v1510, 0.01
        %v1513 = vsel %vm1511, %v1510, %v1512
        %v1514 = vadd.f32 %v1513, %v645
        %1515 = vst [vmem:[#allocation2 + $0x33] sm:$0xff] %v1514
        %v1516 = vld [vmem:[%s1438] ss:$2 sm:$0xff]
        %v1517 = vld [vmem:[%s1] sm:$0xf]
        %v1518 = vpack.c.bf16 %v1516, %v1516
        %v1519 = vld [vmem:[%s1462] ss:$2 sm:$0xff]
        %v1520 = vld [vmem:[%s1 + $0x4] sm:$0xf]
        %v1521 = vpack.c.bf16 %v1519, %v1519
        %v1523 = vsel %vm432, %v1521, 0
        %v1526 = vsel %vm436, %v1520, 0
        %1528 = vmatpush.bf16.msra.mxu0 0
        %1529 = vmatpush.bf16.msra.mxu0 0
        %1530 = vmatpush.bf16.msra.mxu0 0
        %1531 = vmatpush.bf16.msra.mxu0 0
        %1532 = vmatpush.bf16.msra.mxu0 0
        %1533 = vmatpush.bf16.msra.mxu0 0
        %1534 = vmatpush.bf16.msra.mxu0 0
        %1535 = vmatpush.bf16.msra.mxu0 %v1526
        %1536 = vmatmul.bf16.gmra.mxu0 %v1523
        %v1537 = vpop.f32.mrf.mxu0
        %v1538 = vadd.f32 0.0, %v1537
        %v1539 = vpop.f32.mrf.mxu0
        %1540 = vdwg.mxu0
        %v1542 = vsel %vm432, %v1518, 0
        %v1545 = vsel %vm436, %v1517, 0
        %1547 = vmatpush.bf16.msra.mxu0 0
        %1548 = vmatpush.bf16.msra.mxu0 0
        %1549 = vmatpush.bf16.msra.mxu0 0
        %1550 = vmatpush.bf16.msra.mxu0 0
        %1551 = vmatpush.bf16.msra.mxu0 0
        %1552 = vmatpush.bf16.msra.mxu0 0
        %1553 = vmatpush.bf16.msra.mxu0 0
        %1554 = vmatpush.bf16.msra.mxu0 %v1545
        %1555 = vmatmul.bf16.gmra.mxu0 %v1542
        %v1556 = vpop.f32.mrf.mxu0
        %v1557 = vadd.f32 %v1538, %v1556
        %v1558 = vpop.f32.mrf.mxu0
        %1559 = vdwg.mxu0
        %v1560 = vld [vmem:[%s1486] ss:$2 sm:$0xff]
        %v1561 = vld [vmem:[%s1 + $0x8] sm:$0xf]
        %v1562 = vpack.c.bf16 %v1560, %v1560
        %v1564 = vsel %vm432, %v1562, 0
        %v1567 = vsel %vm436, %v1561, 0
        %1569 = vmatpush.bf16.msra.mxu0 0
        %1570 = vmatpush.bf16.msra.mxu0 0
        %1571 = vmatpush.bf16.msra.mxu0 0
        %1572 = vmatpush.bf16.msra.mxu0 0
        %1573 = vmatpush.bf16.msra.mxu0 0
        %1574 = vmatpush.bf16.msra.mxu0 0
        %1575 = vmatpush.bf16.msra.mxu0 0
        %1576 = vmatpush.bf16.msra.mxu0 %v1567
        %1577 = vmatmul.bf16.gmra.mxu0 %v1564
        %v1578 = vpop.f32.mrf.mxu0
        %v1579 = vadd.f32 0.0, %v1578
        %v1580 = vpop.f32.mrf.mxu0
        %1581 = vdwg.mxu0
        %v1582 = vadd.f32 %v1557, %v1579
        %s1583 = scalar_lea.vmem %s398, 198
        %v1584 = vld [vmem:[%s1583] ss:$2 sm:$0xff]
        %v1585 = vld [vmem:[%s1 + $0xc] sm:$0xf]
        %v1586 = vpack.c.bf16 %v1584, %v1584
        %v1588 = vsel %vm432, %v1586, 0
        %v1591 = vsel %vm436, %v1585, 0
        %1593 = vmatpush.bf16.msra.mxu0 0
        %1594 = vmatpush.bf16.msra.mxu0 0
        %1595 = vmatpush.bf16.msra.mxu0 0
        %1596 = vmatpush.bf16.msra.mxu0 0
        %1597 = vmatpush.bf16.msra.mxu0 0
        %1598 = vmatpush.bf16.msra.mxu0 0
        %1599 = vmatpush.bf16.msra.mxu0 0
        %1600 = vmatpush.bf16.msra.mxu0 %v1591
        %1601 = vmatmul.bf16.gmra.mxu0 %v1588
        %v1602 = vpop.f32.mrf.mxu0
        %v1603 = vadd.f32 0.0, %v1602
        %v1604 = vpop.f32.mrf.mxu0
        %1605 = vdwg.mxu0
        %v1606 = vadd.f32 %v1582, %v1603
        %s1607 = scalar_lea.vmem %s398, 199
        %v1608 = vld [vmem:[%s1607] ss:$2 sm:$0xff]
        %v1609 = vld [vmem:[%s1 + $0x10] sm:$0xf]
        %v1610 = vpack.c.bf16 %v1608, %v1608
        %v1612 = vsel %vm432, %v1610, 0
        %v1615 = vsel %vm436, %v1609, 0
        %1617 = vmatpush.bf16.msra.mxu0 0
        %1618 = vmatpush.bf16.msra.mxu0 0
        %1619 = vmatpush.bf16.msra.mxu0 0
        %1620 = vmatpush.bf16.msra.mxu0 0
        %1621 = vmatpush.bf16.msra.mxu0 0
        %1622 = vmatpush.bf16.msra.mxu0 0
        %1623 = vmatpush.bf16.msra.mxu0 0
        %1624 = vmatpush.bf16.msra.mxu0 %v1615
        %1625 = vmatmul.bf16.gmra.mxu0 %v1612
        %v1626 = vpop.f32.mrf.mxu0
        %v1627 = vadd.f32 0.0, %v1626
        %v1628 = vpop.f32.mrf.mxu0
        %1629 = vdwg.mxu0
        %v1630 = vadd.f32 %v1606, %v1627
        %s1631 = scalar_lea.vmem %s398, 200
        %v1632 = vld [vmem:[%s1631] ss:$2 sm:$0xff]
        %v1633 = vld [vmem:[%s1 + $0x14] sm:$0xf]
        %v1634 = vpack.c.bf16 %v1632, %v1632
        %v1636 = vsel %vm432, %v1634, 0
        %v1639 = vsel %vm436, %v1633, 0
        %1641 = vmatpush.bf16.msra.mxu0 0
        %1642 = vmatpush.bf16.msra.mxu0 0
        %1643 = vmatpush.bf16.msra.mxu0 0
        %1644 = vmatpush.bf16.msra.mxu0 0
        %1645 = vmatpush.bf16.msra.mxu0 0
        %1646 = vmatpush.bf16.msra.mxu0 0
        %1647 = vmatpush.bf16.msra.mxu0 0
        %1648 = vmatpush.bf16.msra.mxu0 %v1639
        %1649 = vmatmul.bf16.gmra.mxu0 %v1636
        %v1650 = vpop.f32.mrf.mxu0
        %v1651 = vadd.f32 0.0, %v1650
        %v1652 = vpop.f32.mrf.mxu0
        %1653 = vdwg.mxu0
        %v1654 = vadd.f32 %v1630, %v1651
        %s1655 = scalar_lea.vmem %s398, 216
        %v1656 = vld [vmem:[%s1655] ss:$2 sm:$0xff]
        %v1657 = vld [vmem:[%s1 + $0x18] sm:$0xf]
        %v1658 = vpack.c.bf16 %v1656, %v1656
        %v1660 = vsel %vm432, %v1658, 0
        %v1663 = vsel %vm436, %v1657, 0
        %1665 = vmatpush.bf16.msra.mxu0 0
        %1666 = vmatpush.bf16.msra.mxu0 0
        %1667 = vmatpush.bf16.msra.mxu0 0
        %1668 = vmatpush.bf16.msra.mxu0 0
        %1669 = vmatpush.bf16.msra.mxu0 0
        %1670 = vmatpush.bf16.msra.mxu0 0
        %1671 = vmatpush.bf16.msra.mxu0 0
        %1672 = vmatpush.bf16.msra.mxu0 %v1663
        %1673 = vmatmul.bf16.gmra.mxu0 %v1660
        %v1674 = vpop.f32.mrf.mxu0
        %v1675 = vadd.f32 0.0, %v1674
        %v1676 = vpop.f32.mrf.mxu0
        %1677 = vdwg.mxu0
        %v1678 = vadd.f32 %v1654, %v1675
        %s1679 = scalar_lea.vmem %s398, 217
        %v1680 = vld [vmem:[%s1679] ss:$2 sm:$0xff]
        %v1681 = vld [vmem:[%s1 + $0x1c] sm:$0xf]
        %v1682 = vpack.c.bf16 %v1680, %v1680
        %v1684 = vsel %vm432, %v1682, 0
        %v1687 = vsel %vm436, %v1681, 0
        %1689 = vmatpush.bf16.msra.mxu0 0
        %1690 = vmatpush.bf16.msra.mxu0 0
        %1691 = vmatpush.bf16.msra.mxu0 0
        %1692 = vmatpush.bf16.msra.mxu0 0
        %1693 = vmatpush.bf16.msra.mxu0 0
        %1694 = vmatpush.bf16.msra.mxu0 0
        %1695 = vmatpush.bf16.msra.mxu0 0
        %1696 = vmatpush.bf16.msra.mxu0 %v1687
        %1697 = vmatmul.bf16.gmra.mxu0 %v1684
        %v1698 = vpop.f32.mrf.mxu0
        %v1699 = vadd.f32 0.0, %v1698
        %v1700 = vpop.f32.mrf.mxu0
        %1701 = vdwg.mxu0
        %v1702 = vadd.f32 %v1678, %v1699
        %s1703 = scalar_lea.vmem %s398, 218
        %v1704 = vld [vmem:[%s1703] ss:$2 sm:$0xff]
        %v1705 = vld [vmem:[%s1 + $0x20] sm:$0xf]
        %v1706 = vpack.c.bf16 %v1704, %v1704
        %v1708 = vsel %vm432, %v1706, 0
        %v1711 = vsel %vm436, %v1705, 0
        %1713 = vmatpush.bf16.msra.mxu0 0
        %1714 = vmatpush.bf16.msra.mxu0 0
        %1715 = vmatpush.bf16.msra.mxu0 0
        %1716 = vmatpush.bf16.msra.mxu0 0
        %1717 = vmatpush.bf16.msra.mxu0 0
        %1718 = vmatpush.bf16.msra.mxu0 0
        %1719 = vmatpush.bf16.msra.mxu0 0
        %1720 = vmatpush.bf16.msra.mxu0 %v1711
        %1721 = vmatmul.bf16.gmra.mxu0 %v1708
        %v1722 = vpop.f32.mrf.mxu0
        %v1723 = vadd.f32 0.0, %v1722
        %v1724 = vpop.f32.mrf.mxu0
        %1725 = vdwg.mxu0
        %v1726 = vadd.f32 %v1702, %v1723
        %v1727 = vadd.f32 %v1726, %v640
        %vm1728 = vcmp.ge.f32.partialorder %v1727, 0.0
        %v1729 = vmul.f32 %v1727, 0.01
        %v1730 = vsel %vm1728, %v1727, %v1729
        %v1731 = vadd.f32 %v1730, %v645
        %1732 = vst [vmem:[#allocation2 + $0x3d] sm:$0xff] %v1731
        %v1733 = vld [vmem:[%s1655] ss:$2 sm:$0xff]
        %v1734 = vld [vmem:[%s1] sm:$0xf]
        %v1735 = vpack.c.bf16 %v1733, %v1733
        %v1736 = vld [vmem:[%s1679] ss:$2 sm:$0xff]
        %v1737 = vld [vmem:[%s1 + $0x4] sm:$0xf]
        %v1738 = vpack.c.bf16 %v1736, %v1736
        %v1740 = vsel %vm432, %v1738, 0
        %v1743 = vsel %vm436, %v1737, 0
        %1745 = vmatpush.bf16.msra.mxu0 0
        %1746 = vmatpush.bf16.msra.mxu0 0
        %1747 = vmatpush.bf16.msra.mxu0 0
        %1748 = vmatpush.bf16.msra.mxu0 0
        %1749 = vmatpush.bf16.msra.mxu0 0
        %1750 = vmatpush.bf16.msra.mxu0 0
        %1751 = vmatpush.bf16.msra.mxu0 0
        %1752 = vmatpush.bf16.msra.mxu0 %v1743
        %1753 = vmatmul.bf16.gmra.mxu0 %v1740
        %v1754 = vpop.f32.mrf.mxu0
        %v1755 = vadd.f32 0.0, %v1754
        %v1756 = vpop.f32.mrf.mxu0
        %1757 = vdwg.mxu0
        %v1759 = vsel %vm432, %v1735, 0
        %v1762 = vsel %vm436, %v1734, 0
        %1764 = vmatpush.bf16.msra.mxu0 0
        %1765 = vmatpush.bf16.msra.mxu0 0
        %1766 = vmatpush.bf16.msra.mxu0 0
        %1767 = vmatpush.bf16.msra.mxu0 0
        %1768 = vmatpush.bf16.msra.mxu0 0
        %1769 = vmatpush.bf16.msra.mxu0 0
        %1770 = vmatpush.bf16.msra.mxu0 0
        %1771 = vmatpush.bf16.msra.mxu0 %v1762
        %1772 = vmatmul.bf16.gmra.mxu0 %v1759
        %v1773 = vpop.f32.mrf.mxu0
        %v1774 = vadd.f32 %v1755, %v1773
        %v1775 = vpop.f32.mrf.mxu0
        %1776 = vdwg.mxu0
        %v1777 = vld [vmem:[%s1703] ss:$2 sm:$0xff]
        %v1778 = vld [vmem:[%s1 + $0x8] sm:$0xf]
        %v1779 = vpack.c.bf16 %v1777, %v1777
        %v1781 = vsel %vm432, %v1779, 0
        %v1784 = vsel %vm436, %v1778, 0
        %1786 = vmatpush.bf16.msra.mxu0 0
        %1787 = vmatpush.bf16.msra.mxu0 0
        %1788 = vmatpush.bf16.msra.mxu0 0
        %1789 = vmatpush.bf16.msra.mxu0 0
        %1790 = vmatpush.bf16.msra.mxu0 0
        %1791 = vmatpush.bf16.msra.mxu0 0
        %1792 = vmatpush.bf16.msra.mxu0 0
        %1793 = vmatpush.bf16.msra.mxu0 %v1784
        %1794 = vmatmul.bf16.gmra.mxu0 %v1781
        %v1795 = vpop.f32.mrf.mxu0
        %v1796 = vadd.f32 0.0, %v1795
        %v1797 = vpop.f32.mrf.mxu0
        %1798 = vdwg.mxu0
        %v1799 = vadd.f32 %v1774, %v1796
        %s1800 = scalar_lea.vmem %s398, 234
        %v1801 = vld [vmem:[%s1800] ss:$2 sm:$0xff]
        %v1802 = vld [vmem:[%s1 + $0xc] sm:$0xf]
        %v1803 = vpack.c.bf16 %v1801, %v1801
        %v1805 = vsel %vm432, %v1803, 0
        %v1808 = vsel %vm436, %v1802, 0
        %1810 = vmatpush.bf16.msra.mxu0 0
        %1811 = vmatpush.bf16.msra.mxu0 0
        %1812 = vmatpush.bf16.msra.mxu0 0
        %1813 = vmatpush.bf16.msra.mxu0 0
        %1814 = vmatpush.bf16.msra.mxu0 0
        %1815 = vmatpush.bf16.msra.mxu0 0
        %1816 = vmatpush.bf16.msra.mxu0 0
        %1817 = vmatpush.bf16.msra.mxu0 %v1808
        %1818 = vmatmul.bf16.gmra.mxu0 %v1805
        %v1819 = vpop.f32.mrf.mxu0
        %v1820 = vadd.f32 0.0, %v1819
        %v1821 = vpop.f32.mrf.mxu0
        %1822 = vdwg.mxu0
        %v1823 = vadd.f32 %v1799, %v1820
        %s1824 = scalar_lea.vmem %s398, 235
        %v1825 = vld [vmem:[%s1824] ss:$2 sm:$0xff]
        %v1826 = vld [vmem:[%s1 + $0x10] sm:$0xf]
        %v1827 = vpack.c.bf16 %v1825, %v1825
        %v1829 = vsel %vm432, %v1827, 0
        %v1832 = vsel %vm436, %v1826, 0
        %1834 = vmatpush.bf16.msra.mxu0 0
        %1835 = vmatpush.bf16.msra.mxu0 0
        %1836 = vmatpush.bf16.msra.mxu0 0
        %1837 = vmatpush.bf16.msra.mxu0 0
        %1838 = vmatpush.bf16.msra.mxu0 0
        %1839 = vmatpush.bf16.msra.mxu0 0
        %1840 = vmatpush.bf16.msra.mxu0 0
        %1841 = vmatpush.bf16.msra.mxu0 %v1832
        %1842 = vmatmul.bf16.gmra.mxu0 %v1829
        %v1843 = vpop.f32.mrf.mxu0
        %v1844 = vadd.f32 0.0, %v1843
        %v1845 = vpop.f32.mrf.mxu0
        %1846 = vdwg.mxu0
        %v1847 = vadd.f32 %v1823, %v1844
        %s1848 = scalar_lea.vmem %s398, 236
        %v1849 = vld [vmem:[%s1848] ss:$2 sm:$0xff]
        %v1850 = vld [vmem:[%s1 + $0x14] sm:$0xf]
        %v1851 = vpack.c.bf16 %v1849, %v1849
        %v1853 = vsel %vm432, %v1851, 0
        %v1856 = vsel %vm436, %v1850, 0
        %1858 = vmatpush.bf16.msra.mxu0 0
        %1859 = vmatpush.bf16.msra.mxu0 0
        %1860 = vmatpush.bf16.msra.mxu0 0
        %1861 = vmatpush.bf16.msra.mxu0 0
        %1862 = vmatpush.bf16.msra.mxu0 0
        %1863 = vmatpush.bf16.msra.mxu0 0
        %1864 = vmatpush.bf16.msra.mxu0 0
        %1865 = vmatpush.bf16.msra.mxu0 %v1856
        %1866 = vmatmul.bf16.gmra.mxu0 %v1853
        %v1867 = vpop.f32.mrf.mxu0
        %v1868 = vadd.f32 0.0, %v1867
        %v1869 = vpop.f32.mrf.mxu0
        %1870 = vdwg.mxu0
        %v1871 = vadd.f32 %v1847, %v1868
        %s1872 = scalar_lea.vmem %s398, 252
        %v1873 = vld [vmem:[%s1872] ss:$2 sm:$0xff]
        %v1874 = vld [vmem:[%s1 + $0x18] sm:$0xf]
        %v1875 = vpack.c.bf16 %v1873, %v1873
        %v1877 = vsel %vm432, %v1875, 0
        %v1880 = vsel %vm436, %v1874, 0
        %1882 = vmatpush.bf16.msra.mxu0 0
        %1883 = vmatpush.bf16.msra.mxu0 0
        %1884 = vmatpush.bf16.msra.mxu0 0
        %1885 = vmatpush.bf16.msra.mxu0 0
        %1886 = vmatpush.bf16.msra.mxu0 0
        %1887 = vmatpush.bf16.msra.mxu0 0
        %1888 = vmatpush.bf16.msra.mxu0 0
        %1889 = vmatpush.bf16.msra.mxu0 %v1880
        %1890 = vmatmul.bf16.gmra.mxu0 %v1877
        %v1891 = vpop.f32.mrf.mxu0
        %v1892 = vadd.f32 0.0, %v1891
        %v1893 = vpop.f32.mrf.mxu0
        %1894 = vdwg.mxu0
        %v1895 = vadd.f32 %v1871, %v1892
        %s1896 = scalar_lea.vmem %s398, 253
        %v1897 = vld [vmem:[%s1896] ss:$2 sm:$0xff]
        %v1898 = vld [vmem:[%s1 + $0x1c] sm:$0xf]
        %v1899 = vpack.c.bf16 %v1897, %v1897
        %v1901 = vsel %vm432, %v1899, 0
        %v1904 = vsel %vm436, %v1898, 0
        %1906 = vmatpush.bf16.msra.mxu0 0
        %1907 = vmatpush.bf16.msra.mxu0 0
        %1908 = vmatpush.bf16.msra.mxu0 0
        %1909 = vmatpush.bf16.msra.mxu0 0
        %1910 = vmatpush.bf16.msra.mxu0 0
        %1911 = vmatpush.bf16.msra.mxu0 0
        %1912 = vmatpush.bf16.msra.mxu0 0
        %1913 = vmatpush.bf16.msra.mxu0 %v1904
        %1914 = vmatmul.bf16.gmra.mxu0 %v1901
        %v1915 = vpop.f32.mrf.mxu0
        %v1916 = vadd.f32 0.0, %v1915
        %v1917 = vpop.f32.mrf.mxu0
        %1918 = vdwg.mxu0
        %v1919 = vadd.f32 %v1895, %v1916
        %s1920 = scalar_lea.vmem %s398, 254
        %v1921 = vld [vmem:[%s1920] ss:$2 sm:$0xff]
        %v1922 = vld [vmem:[%s1 + $0x20] sm:$0xf]
        %v1923 = vpack.c.bf16 %v1921, %v1921
        %v1925 = vsel %vm432, %v1923, 0
        %v1928 = vsel %vm436, %v1922, 0
        %1930 = vmatpush.bf16.msra.mxu0 0
        %1931 = vmatpush.bf16.msra.mxu0 0
        %1932 = vmatpush.bf16.msra.mxu0 0
        %1933 = vmatpush.bf16.msra.mxu0 0
        %1934 = vmatpush.bf16.msra.mxu0 0
        %1935 = vmatpush.bf16.msra.mxu0 0
        %1936 = vmatpush.bf16.msra.mxu0 0
        %1937 = vmatpush.bf16.msra.mxu0 %v1928
        %1938 = vmatmul.bf16.gmra.mxu0 %v1925
        %v1939 = vpop.f32.mrf.mxu0
        %v1940 = vadd.f32 0.0, %v1939
        %v1941 = vpop.f32.mrf.mxu0
        %1942 = vdwg.mxu0
        %v1943 = vadd.f32 %v1919, %v1940
        %v1944 = vadd.f32 %v1943, %v640
        %vm1945 = vcmp.ge.f32.partialorder %v1944, 0.0
        %v1946 = vmul.f32 %v1944, 0.01
        %v1947 = vsel %vm1945, %v1944, %v1946
        %v1948 = vadd.f32 %v1947, %v645
        %1949 = vst [vmem:[#allocation2 + $0x47] sm:$0xff] %v1948
        %v1950 = vld [vmem:[%s1872] ss:$2 sm:$0xff]
        %v1951 = vld [vmem:[%s1] sm:$0xf]
        %v1952 = vpack.c.bf16 %v1950, %v1950
        %v1953 = vld [vmem:[%s1896] ss:$2 sm:$0xff]
        %v1954 = vld [vmem:[%s1 + $0x4] sm:$0xf]
        %v1955 = vpack.c.bf16 %v1953, %v1953
        %v1957 = vsel %vm432, %v1955, 0
        %v1960 = vsel %vm436, %v1954, 0
        %1962 = vmatpush.bf16.msra.mxu0 0
        %1963 = vmatpush.bf16.msra.mxu0 0
        %1964 = vmatpush.bf16.msra.mxu0 0
        %1965 = vmatpush.bf16.msra.mxu0 0
        %1966 = vmatpush.bf16.msra.mxu0 0
        %1967 = vmatpush.bf16.msra.mxu0 0
        %1968 = vmatpush.bf16.msra.mxu0 0
        %1969 = vmatpush.bf16.msra.mxu0 %v1960
        %1970 = vmatmul.bf16.gmra.mxu0 %v1957
        %v1971 = vpop.f32.mrf.mxu0
        %v1972 = vadd.f32 0.0, %v1971
        %v1973 = vpop.f32.mrf.mxu0
        %1974 = vdwg.mxu0
        %v1976 = vsel %vm432, %v1952, 0
        %v1979 = vsel %vm436, %v1951, 0
        %1981 = vmatpush.bf16.msra.mxu0 0
        %1982 = vmatpush.bf16.msra.mxu0 0
        %1983 = vmatpush.bf16.msra.mxu0 0
        %1984 = vmatpush.bf16.msra.mxu0 0
        %1985 = vmatpush.bf16.msra.mxu0 0
        %1986 = vmatpush.bf16.msra.mxu0 0
        %1987 = vmatpush.bf16.msra.mxu0 0
        %1988 = vmatpush.bf16.msra.mxu0 %v1979
        %1989 = vmatmul.bf16.gmra.mxu0 %v1976
        %v1990 = vpop.f32.mrf.mxu0
        %v1991 = vadd.f32 %v1972, %v1990
        %v1992 = vpop.f32.mrf.mxu0
        %1993 = vdwg.mxu0
        %v1994 = vld [vmem:[%s1920] ss:$2 sm:$0xff]
        %v1995 = vld [vmem:[%s1 + $0x8] sm:$0xf]
        %v1996 = vpack.c.bf16 %v1994, %v1994
        %v1998 = vsel %vm432, %v1996, 0
        %v2001 = vsel %vm436, %v1995, 0
        %2003 = vmatpush.bf16.msra.mxu0 0
        %2004 = vmatpush.bf16.msra.mxu0 0
        %2005 = vmatpush.bf16.msra.mxu0 0
        %2006 = vmatpush.bf16.msra.mxu0 0
        %2007 = vmatpush.bf16.msra.mxu0 0
        %2008 = vmatpush.bf16.msra.mxu0 0
        %2009 = vmatpush.bf16.msra.mxu0 0
        %2010 = vmatpush.bf16.msra.mxu0 %v2001
        %2011 = vmatmul.bf16.gmra.mxu0 %v1998
        %v2012 = vpop.f32.mrf.mxu0
        %v2013 = vadd.f32 0.0, %v2012
        %v2014 = vpop.f32.mrf.mxu0
        %2015 = vdwg.mxu0
        %v2016 = vadd.f32 %v1991, %v2013
        %s2017 = scalar_lea.vmem %s398, 270
        %v2018 = vld [vmem:[%s2017] ss:$2 sm:$0xff]
        %v2019 = vld [vmem:[%s1 + $0xc] sm:$0xf]
        %v2020 = vpack.c.bf16 %v2018, %v2018
        %v2022 = vsel %vm432, %v2020, 0
        %v2025 = vsel %vm436, %v2019, 0
        %2027 = vmatpush.bf16.msra.mxu0 0
        %2028 = vmatpush.bf16.msra.mxu0 0
        %2029 = vmatpush.bf16.msra.mxu0 0
        %2030 = vmatpush.bf16.msra.mxu0 0
        %2031 = vmatpush.bf16.msra.mxu0 0
        %2032 = vmatpush.bf16.msra.mxu0 0
        %2033 = vmatpush.bf16.msra.mxu0 0
        %2034 = vmatpush.bf16.msra.mxu0 %v2025
        %2035 = vmatmul.bf16.gmra.mxu0 %v2022
        %v2036 = vpop.f32.mrf.mxu0
        %v2037 = vadd.f32 0.0, %v2036
        %v2038 = vpop.f32.mrf.mxu0
        %2039 = vdwg.mxu0
        %v2040 = vadd.f32 %v2016, %v2037
        %s2041 = scalar_lea.vmem %s398, 271
        %v2042 = vld [vmem:[%s2041] ss:$2 sm:$0xff]
        %v2043 = vld [vmem:[%s1 + $0x10] sm:$0xf]
        %v2044 = vpack.c.bf16 %v2042, %v2042
        %v2046 = vsel %vm432, %v2044, 0
        %v2049 = vsel %vm436, %v2043, 0
        %2051 = vmatpush.bf16.msra.mxu0 0
        %2052 = vmatpush.bf16.msra.mxu0 0
        %2053 = vmatpush.bf16.msra.mxu0 0
        %2054 = vmatpush.bf16.msra.mxu0 0
        %2055 = vmatpush.bf16.msra.mxu0 0
        %2056 = vmatpush.bf16.msra.mxu0 0
        %2057 = vmatpush.bf16.msra.mxu0 0
        %2058 = vmatpush.bf16.msra.mxu0 %v2049
        %2059 = vmatmul.bf16.gmra.mxu0 %v2046
        %v2060 = vpop.f32.mrf.mxu0
        %v2061 = vadd.f32 0.0, %v2060
        %v2062 = vpop.f32.mrf.mxu0
        %2063 = vdwg.mxu0
        %v2064 = vadd.f32 %v2040, %v2061
        %s2065 = scalar_lea.vmem %s398, 272
        %v2066 = vld [vmem:[%s2065] ss:$2 sm:$0xff]
        %v2067 = vld [vmem:[%s1 + $0x14] sm:$0xf]
        %v2068 = vpack.c.bf16 %v2066, %v2066
        %v2070 = vsel %vm432, %v2068, 0
        %v2073 = vsel %vm436, %v2067, 0
        %2075 = vmatpush.bf16.msra.mxu0 0
        %2076 = vmatpush.bf16.msra.mxu0 0
        %2077 = vmatpush.bf16.msra.mxu0 0
        %2078 = vmatpush.bf16.msra.mxu0 0
        %2079 = vmatpush.bf16.msra.mxu0 0
        %2080 = vmatpush.bf16.msra.mxu0 0
        %2081 = vmatpush.bf16.msra.mxu0 0
        %2082 = vmatpush.bf16.msra.mxu0 %v2073
        %2083 = vmatmul.bf16.gmra.mxu0 %v2070
        %v2084 = vpop.f32.mrf.mxu0
        %v2085 = vadd.f32 0.0, %v2084
        %v2086 = vpop.f32.mrf.mxu0
        %2087 = vdwg.mxu0
        %v2088 = vadd.f32 %v2064, %v2085
        %s2089 = scalar_lea.vmem %s398, 288
        %v2090 = vld [vmem:[%s2089] ss:$2 sm:$0xff]
        %v2091 = vld [vmem:[%s1 + $0x18] sm:$0xf]
        %v2092 = vpack.c.bf16 %v2090, %v2090
        %v2094 = vsel %vm432, %v2092, 0
        %v2097 = vsel %vm436, %v2091, 0
        %2099 = vmatpush.bf16.msra.mxu0 0
        %2100 = vmatpush.bf16.msra.mxu0 0
        %2101 = vmatpush.bf16.msra.mxu0 0
        %2102 = vmatpush.bf16.msra.mxu0 0
        %2103 = vmatpush.bf16.msra.mxu0 0
        %2104 = vmatpush.bf16.msra.mxu0 0
        %2105 = vmatpush.bf16.msra.mxu0 0
        %2106 = vmatpush.bf16.msra.mxu0 %v2097
        %2107 = vmatmul.bf16.gmra.mxu0 %v2094
        %v2108 = vpop.f32.mrf.mxu0
        %v2109 = vadd.f32 0.0, %v2108
        %v2110 = vpop.f32.mrf.mxu0
        %2111 = vdwg.mxu0
        %v2112 = vadd.f32 %v2088, %v2109
        %s2113 = scalar_lea.vmem %s398, 289
        %v2114 = vld [vmem:[%s2113] ss:$2 sm:$0xff]
        %v2115 = vld [vmem:[%s1 + $0x1c] sm:$0xf]
        %v2116 = vpack.c.bf16 %v2114, %v2114
        %v2118 = vsel %vm432, %v2116, 0
        %v2121 = vsel %vm436, %v2115, 0
        %2123 = vmatpush.bf16.msra.mxu0 0
        %2124 = vmatpush.bf16.msra.mxu0 0
        %2125 = vmatpush.bf16.msra.mxu0 0
        %2126 = vmatpush.bf16.msra.mxu0 0
        %2127 = vmatpush.bf16.msra.mxu0 0
        %2128 = vmatpush.bf16.msra.mxu0 0
        %2129 = vmatpush.bf16.msra.mxu0 0
        %2130 = vmatpush.bf16.msra.mxu0 %v2121
        %2131 = vmatmul.bf16.gmra.mxu0 %v2118
        %v2132 = vpop.f32.mrf.mxu0
        %v2133 = vadd.f32 0.0, %v2132
        %v2134 = vpop.f32.mrf.mxu0
        %2135 = vdwg.mxu0
        %v2136 = vadd.f32 %v2112, %v2133
        %s2137 = scalar_lea.vmem %s398, 290
        %v2138 = vld [vmem:[%s2137] ss:$2 sm:$0xff]
        %v2139 = vld [vmem:[%s1 + $0x20] sm:$0xf]
        %v2140 = vpack.c.bf16 %v2138, %v2138
        %v2142 = vsel %vm432, %v2140, 0
        %v2145 = vsel %vm436, %v2139, 0
        %2147 = vmatpush.bf16.msra.mxu0 0
        %2148 = vmatpush.bf16.msra.mxu0 0
        %2149 = vmatpush.bf16.msra.mxu0 0
        %2150 = vmatpush.bf16.msra.mxu0 0
        %2151 = vmatpush.bf16.msra.mxu0 0
        %2152 = vmatpush.bf16.msra.mxu0 0
        %2153 = vmatpush.bf16.msra.mxu0 0
        %2154 = vmatpush.bf16.msra.mxu0 %v2145
        %2155 = vmatmul.bf16.gmra.mxu0 %v2142
        %v2156 = vpop.f32.mrf.mxu0
        %v2157 = vadd.f32 0.0, %v2156
        %v2158 = vpop.f32.mrf.mxu0
        %2159 = vdwg.mxu0
        %v2160 = vadd.f32 %v2136, %v2157
        %v2161 = vadd.f32 %v2160, %v640
        %vm2162 = vcmp.ge.f32.partialorder %v2161, 0.0
        %v2163 = vmul.f32 %v2161, 0.01
        %v2164 = vsel %vm2162, %v2161, %v2163
        %v2165 = vadd.f32 %v2164, %v645
        %2166 = vst [vmem:[#allocation2 + $0x51] sm:$0xff] %v2165
        %v2167 = vld [vmem:[%s4] sm:$0x1]
        %v2168 = vld [vmem:[%s4 + $0x1] sm:$0x1]
        %v2169 = vld [vmem:[#allocation2] ss:$2 sm:$0xf]
        %v2170 = vld [vmem:[%s3] sm:$0xf]
        %v2171 = vld [vmem:[%s3 + $0x4] sm:$0xf]
        %v2172 = vld [vmem:[%s3 + $0x8] sm:$0xf]
        %v2173 = vld [vmem:[%s3 + $0xc] sm:$0xf]
        %v2174 = vld [vmem:[%s3 + $0x10] sm:$0xf]
        %v2175 = vld [vmem:[%s3 + $0x14] sm:$0xf]
        %v2176 = vld [vmem:[%s3 + $0x18] sm:$0xf]
        %v2177 = vld [vmem:[%s3 + $0x1c] sm:$0xf]
        %v2178 = vld [vmem:[%s3 + $0x20] sm:$0xf]
        %v2179 = vld [vmem:[%s3 + $0x24] sm:$0xf]
        %v2180 = vld [vmem:[%s3 + $0x28] sm:$0xf]
        %v2181 = vld [vmem:[%s3 + $0x2c] sm:$0xf]
        %v2182 = vld [vmem:[%s3 + $0x30] sm:$0xf]
        %v2183 = vld [vmem:[%s3 + $0x34] sm:$0xf]
        %v2184 = vld [vmem:[%s3 + $0x38] sm:$0xf]
        %v2185 = vld [vmem:[%s3 + $0x3c] sm:$0xf]
        %v2186 = vpack.c.bf16 %v2169, %v2169
        %s2187 = scalar_lea.vmem [#allocation2], 1
        %v2188 = vld [vmem:[%s2187] ss:$2 sm:$0xf]
        %v2189 = vld [vmem:[%s3 + $0x40] sm:$0xf]
        %v2190 = vld [vmem:[%s3 + $0x44] sm:$0xf]
        %v2191 = vld [vmem:[%s3 + $0x48] sm:$0xf]
        %v2192 = vld [vmem:[%s3 + $0x4c] sm:$0xf]
        %v2193 = vld [vmem:[%s3 + $0x50] sm:$0xf]
        %v2194 = vld [vmem:[%s3 + $0x54] sm:$0xf]
        %v2195 = vld [vmem:[%s3 + $0x58] sm:$0xf]
        %v2196 = vld [vmem:[%s3 + $0x5c] sm:$0xf]
        %v2197 = vld [vmem:[%s3 + $0x60] sm:$0xf]
        %v2198 = vld [vmem:[%s3 + $0x64] sm:$0xf]
        %v2199 = vld [vmem:[%s3 + $0x68] sm:$0xf]
        %v2200 = vld [vmem:[%s3 + $0x6c] sm:$0xf]
        %v2201 = vld [vmem:[%s3 + $0x70] sm:$0xf]
        %v2202 = vld [vmem:[%s3 + $0x74] sm:$0xf]
        %v2203 = vld [vmem:[%s3 + $0x78] sm:$0xf]
        %v2204 = vld [vmem:[%s3 + $0x7c] sm:$0xf]
        %v2205 = vpack.c.bf16 %v2188, %v2188
        %v2222 = vunpack.c.l.b16 %v2189
        %v2223 = vunpack.c.l.b16 %v2190
        %v2224 = vunpack.c.l.b16 %v2191
        %v2225 = vunpack.c.l.b16 %v2192
        %v2226 = vunpack.c.l.b16 %v2193
        %v2227 = vunpack.c.l.b16 %v2194
        %v2228 = vunpack.c.l.b16 %v2195
        %v2229 = vunpack.c.l.b16 %v2196
        %v2230 = vunpack.c.l.b16 %v2197
        %v2231 = vunpack.c.l.b16 %v2198
        %v2232 = vunpack.c.l.b16 %v2199
        %v2233 = vunpack.c.l.b16 %v2200
        %v2234 = vunpack.c.l.b16 %v2201
        %v2235 = vunpack.c.l.b16 %v2202
        %v2236 = vunpack.c.l.b16 %v2203
        %v2237 = vunpack.c.l.b16 %v2204
        %v2238 = vpack.c.b16 %v2223, %v2222
        %v2239 = vpack.c.b16 %v2225, %v2224
        %v2240 = vpack.c.b16 %v2227, %v2226
        %v2241 = vpack.c.b16 %v2229, %v2228
        %v2242 = vpack.c.b16 %v2231, %v2230
        %v2243 = vpack.c.b16 %v2233, %v2232
        %v2244 = vpack.c.b16 %v2235, %v2234
        %v2245 = vpack.c.b16 %v2237, %v2236
        %2254 = vmatpush.bf16.msra.mxu0 %v2245
        %2255 = vmatpush.bf16.msra.mxu0 %v2244
        %2256 = vmatpush.bf16.msra.mxu0 %v2243
        %2257 = vmatpush.bf16.msra.mxu0 %v2242
        %2258 = vmatpush.bf16.msra.mxu0 %v2241
        %2259 = vmatpush.bf16.msra.mxu0 %v2240
        %2260 = vmatpush.bf16.msra.mxu0 %v2239
        %2261 = vmatpush.bf16.msra.mxu0 %v2238
        %2262 = vmatmul.bf16.gmra.mxu0 %v2205
        %v2263 = vpop.f32.mrf.mxu0
        %v2264 = vadd.f32 0.0, %v2263
        %v2265 = vpop.f32.mrf.mxu0
        %2266 = vdwg.mxu0
        %v2283 = vunpack.c.l.b16 %v2170
        %v2284 = vunpack.c.l.b16 %v2171
        %v2285 = vunpack.c.l.b16 %v2172
        %v2286 = vunpack.c.l.b16 %v2173
        %v2287 = vunpack.c.l.b16 %v2174
        %v2288 = vunpack.c.l.b16 %v2175
        %v2289 = vunpack.c.l.b16 %v2176
        %v2290 = vunpack.c.l.b16 %v2177
        %v2291 = vunpack.c.l.b16 %v2178
        %v2292 = vunpack.c.l.b16 %v2179
        %v2293 = vunpack.c.l.b16 %v2180
        %v2294 = vunpack.c.l.b16 %v2181
        %v2295 = vunpack.c.l.b16 %v2182
        %v2296 = vunpack.c.l.b16 %v2183
        %v2297 = vunpack.c.l.b16 %v2184
        %v2298 = vunpack.c.l.b16 %v2185
        %v2299 = vpack.c.b16 %v2284, %v2283
        %v2300 = vpack.c.b16 %v2286, %v2285
        %v2301 = vpack.c.b16 %v2288, %v2287
        %v2302 = vpack.c.b16 %v2290, %v2289
        %v2303 = vpack.c.b16 %v2292, %v2291
        %v2304 = vpack.c.b16 %v2294, %v2293
        %v2305 = vpack.c.b16 %v2296, %v2295
        %v2306 = vpack.c.b16 %v2298, %v2297
        %2315 = vmatpush.bf16.msra.mxu0 %v2306
        %2316 = vmatpush.bf16.msra.mxu0 %v2305
        %2317 = vmatpush.bf16.msra.mxu0 %v2304
        %2318 = vmatpush.bf16.msra.mxu0 %v2303
        %2319 = vmatpush.bf16.msra.mxu0 %v2302
        %2320 = vmatpush.bf16.msra.mxu0 %v2301
        %2321 = vmatpush.bf16.msra.mxu0 %v2300
        %2322 = vmatpush.bf16.msra.mxu0 %v2299
        %2323 = vmatmul.bf16.gmra.mxu0 %v2186
        %v2324 = vpop.f32.mrf.mxu0
        %v2325 = vadd.f32 %v2264, %v2324
        %v2326 = vpop.f32.mrf.mxu0
        %2327 = vdwg.mxu0
        %s2328 = scalar_lea.vmem [#allocation2], 2
        %v2329 = vld [vmem:[%s2328] ss:$2 sm:$0xf]
        %v2330 = vld [vmem:[%s3 + $0x80] sm:$0xf]
        %v2331 = vld [vmem:[%s3 + $0x84] sm:$0xf]
        %v2332 = vld [vmem:[%s3 + $0x88] sm:$0xf]
        %v2333 = vld [vmem:[%s3 + $0x8c] sm:$0xf]
        %v2334 = vld [vmem:[%s3 + $0x90] sm:$0xf]
        %v2335 = vld [vmem:[%s3 + $0x94] sm:$0xf]
        %v2336 = vld [vmem:[%s3 + $0x98] sm:$0xf]
        %v2337 = vld [vmem:[%s3 + $0x9c] sm:$0xf]
        %v2338 = vld [vmem:[%s3 + $0xa0] sm:$0xf]
        %v2339 = vld [vmem:[%s3 + $0xa4] sm:$0xf]
        %v2340 = vld [vmem:[%s3 + $0xa8] sm:$0xf]
        %v2341 = vld [vmem:[%s3 + $0xac] sm:$0xf]
        %v2342 = vld [vmem:[%s3 + $0xb0] sm:$0xf]
        %v2343 = vld [vmem:[%s3 + $0xb4] sm:$0xf]
        %v2344 = vld [vmem:[%s3 + $0xb8] sm:$0xf]
        %v2345 = vld [vmem:[%s3 + $0xbc] sm:$0xf]
        %v2346 = vpack.c.bf16 %v2329, %v2329
        %v2363 = vunpack.c.l.b16 %v2330
        %v2364 = vunpack.c.l.b16 %v2331
        %v2365 = vunpack.c.l.b16 %v2332
        %v2366 = vunpack.c.l.b16 %v2333
        %v2367 = vunpack.c.l.b16 %v2334
        %v2368 = vunpack.c.l.b16 %v2335
        %v2369 = vunpack.c.l.b16 %v2336
        %v2370 = vunpack.c.l.b16 %v2337
        %v2371 = vunpack.c.l.b16 %v2338
        %v2372 = vunpack.c.l.b16 %v2339
        %v2373 = vunpack.c.l.b16 %v2340
        %v2374 = vunpack.c.l.b16 %v2341
        %v2375 = vunpack.c.l.b16 %v2342
        %v2376 = vunpack.c.l.b16 %v2343
        %v2377 = vunpack.c.l.b16 %v2344
        %v2378 = vunpack.c.l.b16 %v2345
        %v2379 = vpack.c.b16 %v2364, %v2363
        %v2380 = vpack.c.b16 %v2366, %v2365
        %v2381 = vpack.c.b16 %v2368, %v2367
        %v2382 = vpack.c.b16 %v2370, %v2369
        %v2383 = vpack.c.b16 %v2372, %v2371
        %v2384 = vpack.c.b16 %v2374, %v2373
        %v2385 = vpack.c.b16 %v2376, %v2375
        %v2386 = vpack.c.b16 %v2378, %v2377
        %2395 = vmatpush.bf16.msra.mxu0 %v2386
        %2396 = vmatpush.bf16.msra.mxu0 %v2385
        %2397 = vmatpush.bf16.msra.mxu0 %v2384
        %2398 = vmatpush.bf16.msra.mxu0 %v2383
        %2399 = vmatpush.bf16.msra.mxu0 %v2382
        %2400 = vmatpush.bf16.msra.mxu0 %v2381
        %2401 = vmatpush.bf16.msra.mxu0 %v2380
        %2402 = vmatpush.bf16.msra.mxu0 %v2379
        %2403 = vmatmul.bf16.gmra.mxu0 %v2346
        %v2404 = vpop.f32.mrf.mxu0
        %v2405 = vadd.f32 0.0, %v2404
        %v2406 = vpop.f32.mrf.mxu0
        %2407 = vdwg.mxu0
        %v2408 = vadd.f32 %v2325, %v2405
        %s2409 = scalar_lea.vmem [#allocation2], 10
        %v2410 = vld [vmem:[%s2409] ss:$2 sm:$0xf]
        %v2411 = vld [vmem:[%s3 + $0xc0] sm:$0xf]
        %v2412 = vld [vmem:[%s3 + $0xc4] sm:$0xf]
        %v2413 = vld [vmem:[%s3 + $0xc8] sm:$0xf]
        %v2414 = vld [vmem:[%s3 + $0xcc] sm:$0xf]
        %v2415 = vld [vmem:[%s3 + $0xd0] sm:$0xf]
        %v2416 = vld [vmem:[%s3 + $0xd4] sm:$0xf]
        %v2417 = vld [vmem:[%s3 + $0xd8] sm:$0xf]
        %v2418 = vld [vmem:[%s3 + $0xdc] sm:$0xf]
        %v2419 = vld [vmem:[%s3 + $0xe0] sm:$0xf]
        %v2420 = vld [vmem:[%s3 + $0xe4] sm:$0xf]
        %v2421 = vld [vmem:[%s3 + $0xe8] sm:$0xf]
        %v2422 = vld [vmem:[%s3 + $0xec] sm:$0xf]
        %v2423 = vld [vmem:[%s3 + $0xf0] sm:$0xf]
        %v2424 = vld [vmem:[%s3 + $0xf4] sm:$0xf]
        %v2425 = vld [vmem:[%s3 + $0xf8] sm:$0xf]
        %v2426 = vld [vmem:[%s3 + $0xfc] sm:$0xf]
        %v2427 = vpack.c.bf16 %v2410, %v2410
        %v2444 = vunpack.c.l.b16 %v2411
        %v2445 = vunpack.c.l.b16 %v2412
        %v2446 = vunpack.c.l.b16 %v2413
        %v2447 = vunpack.c.l.b16 %v2414
        %v2448 = vunpack.c.l.b16 %v2415
        %v2449 = vunpack.c.l.b16 %v2416
        %v2450 = vunpack.c.l.b16 %v2417
        %v2451 = vunpack.c.l.b16 %v2418
        %v2452 = vunpack.c.l.b16 %v2419
        %v2453 = vunpack.c.l.b16 %v2420
        %v2454 = vunpack.c.l.b16 %v2421
        %v2455 = vunpack.c.l.b16 %v2422
        %v2456 = vunpack.c.l.b16 %v2423
        %v2457 = vunpack.c.l.b16 %v2424
        %v2458 = vunpack.c.l.b16 %v2425
        %v2459 = vunpack.c.l.b16 %v2426
        %v2460 = vpack.c.b16 %v2445, %v2444
        %v2461 = vpack.c.b16 %v2447, %v2446
        %v2462 = vpack.c.b16 %v2449, %v2448
        %v2463 = vpack.c.b16 %v2451, %v2450
        %v2464 = vpack.c.b16 %v2453, %v2452
        %v2465 = vpack.c.b16 %v2455, %v2454
        %v2466 = vpack.c.b16 %v2457, %v2456
        %v2467 = vpack.c.b16 %v2459, %v2458
        %2476 = vmatpush.bf16.msra.mxu0 %v2467
        %2477 = vmatpush.bf16.msra.mxu0 %v2466
        %2478 = vmatpush.bf16.msra.mxu0 %v2465
        %2479 = vmatpush.bf16.msra.mxu0 %v2464
        %2480 = vmatpush.bf16.msra.mxu0 %v2463
        %2481 = vmatpush.bf16.msra.mxu0 %v2462
        %2482 = vmatpush.bf16.msra.mxu0 %v2461
        %2483 = vmatpush.bf16.msra.mxu0 %v2460
        %2484 = vmatmul.bf16.gmra.mxu0 %v2427
        %v2485 = vpop.f32.mrf.mxu0
        %v2486 = vadd.f32 0.0, %v2485
        %v2487 = vpop.f32.mrf.mxu0
        %2488 = vdwg.mxu0
        %v2489 = vadd.f32 %v2408, %v2486
        %s2490 = scalar_lea.vmem [#allocation2], 11
        %v2491 = vld [vmem:[%s2490] ss:$2 sm:$0xf]
        %v2492 = vld [vmem:[%s3 + $0x100] sm:$0xf]
        %v2493 = vld [vmem:[%s3 + $0x104] sm:$0xf]
        %v2494 = vld [vmem:[%s3 + $0x108] sm:$0xf]
        %v2495 = vld [vmem:[%s3 + $0x10c] sm:$0xf]
        %v2496 = vld [vmem:[%s3 + $0x110] sm:$0xf]
        %v2497 = vld [vmem:[%s3 + $0x114] sm:$0xf]
        %v2498 = vld [vmem:[%s3 + $0x118] sm:$0xf]
        %v2499 = vld [vmem:[%s3 + $0x11c] sm:$0xf]
        %v2500 = vld [vmem:[%s3 + $0x120] sm:$0xf]
        %v2501 = vld [vmem:[%s3 + $0x124] sm:$0xf]
        %v2502 = vld [vmem:[%s3 + $0x128] sm:$0xf]
        %v2503 = vld [vmem:[%s3 + $0x12c] sm:$0xf]
        %v2504 = vld [vmem:[%s3 + $0x130] sm:$0xf]
        %v2505 = vld [vmem:[%s3 + $0x134] sm:$0xf]
        %v2506 = vld [vmem:[%s3 + $0x138] sm:$0xf]
        %v2507 = vld [vmem:[%s3 + $0x13c] sm:$0xf]
        %v2508 = vpack.c.bf16 %v2491, %v2491
        %v2525 = vunpack.c.l.b16 %v2492
        %v2526 = vunpack.c.l.b16 %v2493
        %v2527 = vunpack.c.l.b16 %v2494
        %v2528 = vunpack.c.l.b16 %v2495
        %v2529 = vunpack.c.l.b16 %v2496
        %v2530 = vunpack.c.l.b16 %v2497
        %v2531 = vunpack.c.l.b16 %v2498
        %v2532 = vunpack.c.l.b16 %v2499
        %v2533 = vunpack.c.l.b16 %v2500
        %v2534 = vunpack.c.l.b16 %v2501
        %v2535 = vunpack.c.l.b16 %v2502
        %v2536 = vunpack.c.l.b16 %v2503
        %v2537 = vunpack.c.l.b16 %v2504
        %v2538 = vunpack.c.l.b16 %v2505
        %v2539 = vunpack.c.l.b16 %v2506
        %v2540 = vunpack.c.l.b16 %v2507
        %v2541 = vpack.c.b16 %v2526, %v2525
        %v2542 = vpack.c.b16 %v2528, %v2527
        %v2543 = vpack.c.b16 %v2530, %v2529
        %v2544 = vpack.c.b16 %v2532, %v2531
        %v2545 = vpack.c.b16 %v2534, %v2533
        %v2546 = vpack.c.b16 %v2536, %v2535
        %v2547 = vpack.c.b16 %v2538, %v2537
        %v2548 = vpack.c.b16 %v2540, %v2539
        %2557 = vmatpush.bf16.msra.mxu0 %v2548
        %2558 = vmatpush.bf16.msra.mxu0 %v2547
        %2559 = vmatpush.bf16.msra.mxu0 %v2546
        %2560 = vmatpush.bf16.msra.mxu0 %v2545
        %2561 = vmatpush.bf16.msra.mxu0 %v2544
        %2562 = vmatpush.bf16.msra.mxu0 %v2543
        %2563 = vmatpush.bf16.msra.mxu0 %v2542
        %2564 = vmatpush.bf16.msra.mxu0 %v2541
        %2565 = vmatmul.bf16.gmra.mxu0 %v2508
        %v2566 = vpop.f32.mrf.mxu0
        %v2567 = vadd.f32 0.0, %v2566
        %v2568 = vpop.f32.mrf.mxu0
        %2569 = vdwg.mxu0
        %v2570 = vadd.f32 %v2489, %v2567
        %s2571 = scalar_lea.vmem [#allocation2], 12
        %v2572 = vld [vmem:[%s2571] ss:$2 sm:$0xf]
        %v2573 = vld [vmem:[%s3 + $0x140] sm:$0xf]
        %v2574 = vld [vmem:[%s3 + $0x144] sm:$0xf]
        %v2575 = vld [vmem:[%s3 + $0x148] sm:$0xf]
        %v2576 = vld [vmem:[%s3 + $0x14c] sm:$0xf]
        %v2577 = vld [vmem:[%s3 + $0x150] sm:$0xf]
        %v2578 = vld [vmem:[%s3 + $0x154] sm:$0xf]
        %v2579 = vld [vmem:[%s3 + $0x158] sm:$0xf]
        %v2580 = vld [vmem:[%s3 + $0x15c] sm:$0xf]
        %v2581 = vld [vmem:[%s3 + $0x160] sm:$0xf]
        %v2582 = vld [vmem:[%s3 + $0x164] sm:$0xf]
        %v2583 = vld [vmem:[%s3 + $0x168] sm:$0xf]
        %v2584 = vld [vmem:[%s3 + $0x16c] sm:$0xf]
        %v2585 = vld [vmem:[%s3 + $0x170] sm:$0xf]
        %v2586 = vld [vmem:[%s3 + $0x174] sm:$0xf]
        %v2587 = vld [vmem:[%s3 + $0x178] sm:$0xf]
        %v2588 = vld [vmem:[%s3 + $0x17c] sm:$0xf]
        %v2589 = vpack.c.bf16 %v2572, %v2572
        %v2606 = vunpack.c.l.b16 %v2573
        %v2607 = vunpack.c.l.b16 %v2574
        %v2608 = vunpack.c.l.b16 %v2575
        %v2609 = vunpack.c.l.b16 %v2576
        %v2610 = vunpack.c.l.b16 %v2577
        %v2611 = vunpack.c.l.b16 %v2578
        %v2612 = vunpack.c.l.b16 %v2579
        %v2613 = vunpack.c.l.b16 %v2580
        %v2614 = vunpack.c.l.b16 %v2581
        %v2615 = vunpack.c.l.b16 %v2582
        %v2616 = vunpack.c.l.b16 %v2583
        %v2617 = vunpack.c.l.b16 %v2584
        %v2618 = vunpack.c.l.b16 %v2585
        %v2619 = vunpack.c.l.b16 %v2586
        %v2620 = vunpack.c.l.b16 %v2587
        %v2621 = vunpack.c.l.b16 %v2588
        %v2622 = vpack.c.b16 %v2607, %v2606
        %v2623 = vpack.c.b16 %v2609, %v2608
        %v2624 = vpack.c.b16 %v2611, %v2610
        %v2625 = vpack.c.b16 %v2613, %v2612
        %v2626 = vpack.c.b16 %v2615, %v2614
        %v2627 = vpack.c.b16 %v2617, %v2616
        %v2628 = vpack.c.b16 %v2619, %v2618
        %v2629 = vpack.c.b16 %v2621, %v2620
        %2638 = vmatpush.bf16.msra.mxu0 %v2629
        %2639 = vmatpush.bf16.msra.mxu0 %v2628
        %2640 = vmatpush.bf16.msra.mxu0 %v2627
        %2641 = vmatpush.bf16.msra.mxu0 %v2626
        %2642 = vmatpush.bf16.msra.mxu0 %v2625
        %2643 = vmatpush.bf16.msra.mxu0 %v2624
        %2644 = vmatpush.bf16.msra.mxu0 %v2623
        %2645 = vmatpush.bf16.msra.mxu0 %v2622
        %2646 = vmatmul.bf16.gmra.mxu0 %v2589
        %v2647 = vpop.f32.mrf.mxu0
        %v2648 = vadd.f32 0.0, %v2647
        %v2649 = vpop.f32.mrf.mxu0
        %2650 = vdwg.mxu0
        %v2651 = vadd.f32 %v2570, %v2648
        %s2652 = scalar_lea.vmem [#allocation2], 20
        %v2653 = vld [vmem:[%s2652] ss:$2 sm:$0xf]
        %v2654 = vld [vmem:[%s3 + $0x180] sm:$0xf]
        %v2655 = vld [vmem:[%s3 + $0x184] sm:$0xf]
        %v2656 = vld [vmem:[%s3 + $0x188] sm:$0xf]
        %v2657 = vld [vmem:[%s3 + $0x18c] sm:$0xf]
        %v2658 = vld [vmem:[%s3 + $0x190] sm:$0xf]
        %v2659 = vld [vmem:[%s3 + $0x194] sm:$0xf]
        %v2660 = vld [vmem:[%s3 + $0x198] sm:$0xf]
        %v2661 = vld [vmem:[%s3 + $0x19c] sm:$0xf]
        %v2662 = vld [vmem:[%s3 + $0x1a0] sm:$0xf]
        %v2663 = vld [vmem:[%s3 + $0x1a4] sm:$0xf]
        %v2664 = vld [vmem:[%s3 + $0x1a8] sm:$0xf]
        %v2665 = vld [vmem:[%s3 + $0x1ac] sm:$0xf]
        %v2666 = vld [vmem:[%s3 + $0x1b0] sm:$0xf]
        %v2667 = vld [vmem:[%s3 + $0x1b4] sm:$0xf]
        %v2668 = vld [vmem:[%s3 + $0x1b8] sm:$0xf]
        %v2669 = vld [vmem:[%s3 + $0x1bc] sm:$0xf]
        %v2670 = vpack.c.bf16 %v2653, %v2653
        %v2687 = vunpack.c.l.b16 %v2654
        %v2688 = vunpack.c.l.b16 %v2655
        %v2689 = vunpack.c.l.b16 %v2656
        %v2690 = vunpack.c.l.b16 %v2657
        %v2691 = vunpack.c.l.b16 %v2658
        %v2692 = vunpack.c.l.b16 %v2659
        %v2693 = vunpack.c.l.b16 %v2660
        %v2694 = vunpack.c.l.b16 %v2661
        %v2695 = vunpack.c.l.b16 %v2662
        %v2696 = vunpack.c.l.b16 %v2663
        %v2697 = vunpack.c.l.b16 %v2664
        %v2698 = vunpack.c.l.b16 %v2665
        %v2699 = vunpack.c.l.b16 %v2666
        %v2700 = vunpack.c.l.b16 %v2667
        %v2701 = vunpack.c.l.b16 %v2668
        %v2702 = vunpack.c.l.b16 %v2669
        %v2703 = vpack.c.b16 %v2688, %v2687
        %v2704 = vpack.c.b16 %v2690, %v2689
        %v2705 = vpack.c.b16 %v2692, %v2691
        %v2706 = vpack.c.b16 %v2694, %v2693
        %v2707 = vpack.c.b16 %v2696, %v2695
        %v2708 = vpack.c.b16 %v2698, %v2697
        %v2709 = vpack.c.b16 %v2700, %v2699
        %v2710 = vpack.c.b16 %v2702, %v2701
        %2719 = vmatpush.bf16.msra.mxu0 %v2710
        %2720 = vmatpush.bf16.msra.mxu0 %v2709
        %2721 = vmatpush.bf16.msra.mxu0 %v2708
        %2722 = vmatpush.bf16.msra.mxu0 %v2707
        %2723 = vmatpush.bf16.msra.mxu0 %v2706
        %2724 = vmatpush.bf16.msra.mxu0 %v2705
        %2725 = vmatpush.bf16.msra.mxu0 %v2704
        %2726 = vmatpush.bf16.msra.mxu0 %v2703
        %2727 = vmatmul.bf16.gmra.mxu0 %v2670
        %v2728 = vpop.f32.mrf.mxu0
        %v2729 = vadd.f32 0.0, %v2728
        %v2730 = vpop.f32.mrf.mxu0
        %2731 = vdwg.mxu0
        %v2732 = vadd.f32 %v2651, %v2729
        %s2733 = scalar_lea.vmem [#allocation2], 21
        %v2734 = vld [vmem:[%s2733] ss:$2 sm:$0xf]
        %v2735 = vld [vmem:[%s3 + $0x1c0] sm:$0xf]
        %v2736 = vld [vmem:[%s3 + $0x1c4] sm:$0xf]
        %v2737 = vld [vmem:[%s3 + $0x1c8] sm:$0xf]
        %v2738 = vld [vmem:[%s3 + $0x1cc] sm:$0xf]
        %v2739 = vld [vmem:[%s3 + $0x1d0] sm:$0xf]
        %v2740 = vld [vmem:[%s3 + $0x1d4] sm:$0xf]
        %v2741 = vld [vmem:[%s3 + $0x1d8] sm:$0xf]
        %v2742 = vld [vmem:[%s3 + $0x1dc] sm:$0xf]
        %v2743 = vld [vmem:[%s3 + $0x1e0] sm:$0xf]
        %v2744 = vld [vmem:[%s3 + $0x1e4] sm:$0xf]
        %v2745 = vld [vmem:[%s3 + $0x1e8] sm:$0xf]
        %v2746 = vld [vmem:[%s3 + $0x1ec] sm:$0xf]
        %v2747 = vld [vmem:[%s3 + $0x1f0] sm:$0xf]
        %v2748 = vld [vmem:[%s3 + $0x1f4] sm:$0xf]
        %v2749 = vld [vmem:[%s3 + $0x1f8] sm:$0xf]
        %v2750 = vld [vmem:[%s3 + $0x1fc] sm:$0xf]
        %v2751 = vpack.c.bf16 %v2734, %v2734
        %v2768 = vunpack.c.l.b16 %v2735
        %v2769 = vunpack.c.l.b16 %v2736
        %v2770 = vunpack.c.l.b16 %v2737
        %v2771 = vunpack.c.l.b16 %v2738
        %v2772 = vunpack.c.l.b16 %v2739
        %v2773 = vunpack.c.l.b16 %v2740
        %v2774 = vunpack.c.l.b16 %v2741
        %v2775 = vunpack.c.l.b16 %v2742
        %v2776 = vunpack.c.l.b16 %v2743
        %v2777 = vunpack.c.l.b16 %v2744
        %v2778 = vunpack.c.l.b16 %v2745
        %v2779 = vunpack.c.l.b16 %v2746
        %v2780 = vunpack.c.l.b16 %v2747
        %v2781 = vunpack.c.l.b16 %v2748
        %v2782 = vunpack.c.l.b16 %v2749
        %v2783 = vunpack.c.l.b16 %v2750
        %v2784 = vpack.c.b16 %v2769, %v2768
        %v2785 = vpack.c.b16 %v2771, %v2770
        %v2786 = vpack.c.b16 %v2773, %v2772
        %v2787 = vpack.c.b16 %v2775, %v2774
        %v2788 = vpack.c.b16 %v2777, %v2776
        %v2789 = vpack.c.b16 %v2779, %v2778
        %v2790 = vpack.c.b16 %v2781, %v2780
        %v2791 = vpack.c.b16 %v2783, %v2782
        %2800 = vmatpush.bf16.msra.mxu0 %v2791
        %2801 = vmatpush.bf16.msra.mxu0 %v2790
        %2802 = vmatpush.bf16.msra.mxu0 %v2789
        %2803 = vmatpush.bf16.msra.mxu0 %v2788
        %2804 = vmatpush.bf16.msra.mxu0 %v2787
        %2805 = vmatpush.bf16.msra.mxu0 %v2786
        %2806 = vmatpush.bf16.msra.mxu0 %v2785
        %2807 = vmatpush.bf16.msra.mxu0 %v2784
        %2808 = vmatmul.bf16.gmra.mxu0 %v2751
        %v2809 = vpop.f32.mrf.mxu0
        %v2810 = vadd.f32 0.0, %v2809
        %v2811 = vpop.f32.mrf.mxu0
        %2812 = vdwg.mxu0
        %v2813 = vadd.f32 %v2732, %v2810
        %s2814 = scalar_lea.vmem [#allocation2], 22
        %v2815 = vld [vmem:[%s2814] ss:$2 sm:$0xf]
        %v2816 = vld [vmem:[%s3 + $0x200] sm:$0xf]
        %v2817 = vld [vmem:[%s3 + $0x204] sm:$0xf]
        %v2818 = vld [vmem:[%s3 + $0x208] sm:$0xf]
        %v2819 = vld [vmem:[%s3 + $0x20c] sm:$0xf]
        %v2820 = vld [vmem:[%s3 + $0x210] sm:$0xf]
        %v2821 = vld [vmem:[%s3 + $0x214] sm:$0xf]
        %v2822 = vld [vmem:[%s3 + $0x218] sm:$0xf]
        %v2823 = vld [vmem:[%s3 + $0x21c] sm:$0xf]
        %v2824 = vld [vmem:[%s3 + $0x220] sm:$0xf]
        %v2825 = vld [vmem:[%s3 + $0x224] sm:$0xf]
        %v2826 = vld [vmem:[%s3 + $0x228] sm:$0xf]
        %v2827 = vld [vmem:[%s3 + $0x22c] sm:$0xf]
        %v2828 = vld [vmem:[%s3 + $0x230] sm:$0xf]
        %v2829 = vld [vmem:[%s3 + $0x234] sm:$0xf]
        %v2830 = vld [vmem:[%s3 + $0x238] sm:$0xf]
        %v2831 = vld [vmem:[%s3 + $0x23c] sm:$0xf]
        %v2832 = vpack.c.bf16 %v2815, %v2815
        %v2849 = vunpack.c.l.b16 %v2816
        %v2850 = vunpack.c.l.b16 %v2817
        %v2851 = vunpack.c.l.b16 %v2818
        %v2852 = vunpack.c.l.b16 %v2819
        %v2853 = vunpack.c.l.b16 %v2820
        %v2854 = vunpack.c.l.b16 %v2821
        %v2855 = vunpack.c.l.b16 %v2822
        %v2856 = vunpack.c.l.b16 %v2823
        %v2857 = vunpack.c.l.b16 %v2824
        %v2858 = vunpack.c.l.b16 %v2825
        %v2859 = vunpack.c.l.b16 %v2826
        %v2860 = vunpack.c.l.b16 %v2827
        %v2861 = vunpack.c.l.b16 %v2828
        %v2862 = vunpack.c.l.b16 %v2829
        %v2863 = vunpack.c.l.b16 %v2830
        %v2864 = vunpack.c.l.b16 %v2831
        %v2865 = vpack.c.b16 %v2850, %v2849
        %v2866 = vpack.c.b16 %v2852, %v2851
        %v2867 = vpack.c.b16 %v2854, %v2853
        %v2868 = vpack.c.b16 %v2856, %v2855
        %v2869 = vpack.c.b16 %v2858, %v2857
        %v2870 = vpack.c.b16 %v2860, %v2859
        %v2871 = vpack.c.b16 %v2862, %v2861
        %v2872 = vpack.c.b16 %v2864, %v2863
        %2881 = vmatpush.bf16.msra.mxu0 %v2872
        %2882 = vmatpush.bf16.msra.mxu0 %v2871
        %2883 = vmatpush.bf16.msra.mxu0 %v2870
        %2884 = vmatpush.bf16.msra.mxu0 %v2869
        %2885 = vmatpush.bf16.msra.mxu0 %v2868
        %2886 = vmatpush.bf16.msra.mxu0 %v2867
        %2887 = vmatpush.bf16.msra.mxu0 %v2866
        %2888 = vmatpush.bf16.msra.mxu0 %v2865
        %2889 = vmatmul.bf16.gmra.mxu0 %v2832
        %v2890 = vpop.f32.mrf.mxu0
        %v2891 = vadd.f32 0.0, %v2890
        %v2892 = vpop.f32.mrf.mxu0
        %2893 = vdwg.mxu0
        %v2894 = vadd.f32 %v2813, %v2891
        %v2895 = vperm.slane %v2167, 0
        %v2896 = vadd.f32 %v2894, %v2895
        %vm2897 = vcmp.ge.f32.partialorder %v2896, 0.0
        %v2898 = vmul.f32 %v2896, 0.01
        %v2899 = vsel %vm2897, %v2896, %v2898
        %v2900 = vperm.slane %v2168, 0
        %v2901 = vadd.f32 %v2899, %v2900
        %2902 = vst [vmem:[#allocation3 + $0x7] sm:$0xf] %v2901
        %v2903 = vld [vmem:[%s2652] ss:$2 sm:$0xf]
        %v2904 = vld [vmem:[%s3] sm:$0xf]
        %v2905 = vld [vmem:[%s3 + $0x4] sm:$0xf]
        %v2906 = vld [vmem:[%s3 + $0x8] sm:$0xf]
        %v2907 = vld [vmem:[%s3 + $0xc] sm:$0xf]
        %v2908 = vld [vmem:[%s3 + $0x10] sm:$0xf]
        %v2909 = vld [vmem:[%s3 + $0x14] sm:$0xf]
        %v2910 = vld [vmem:[%s3 + $0x18] sm:$0xf]
        %v2911 = vld [vmem:[%s3 + $0x1c] sm:$0xf]
        %v2912 = vld [vmem:[%s3 + $0x20] sm:$0xf]
        %v2913 = vld [vmem:[%s3 + $0x24] sm:$0xf]
        %v2914 = vld [vmem:[%s3 + $0x28] sm:$0xf]
        %v2915 = vld [vmem:[%s3 + $0x2c] sm:$0xf]
        %v2916 = vld [vmem:[%s3 + $0x30] sm:$0xf]
        %v2917 = vld [vmem:[%s3 + $0x34] sm:$0xf]
        %v2918 = vld [vmem:[%s3 + $0x38] sm:$0xf]
        %v2919 = vld [vmem:[%s3 + $0x3c] sm:$0xf]
        %v2920 = vpack.c.bf16 %v2903, %v2903
        %v2921 = vld [vmem:[%s2733] ss:$2 sm:$0xf]
        %v2922 = vld [vmem:[%s3 + $0x40] sm:$0xf]
        %v2923 = vld [vmem:[%s3 + $0x44] sm:$0xf]
        %v2924 = vld [vmem:[%s3 + $0x48] sm:$0xf]
        %v2925 = vld [vmem:[%s3 + $0x4c] sm:$0xf]
        %v2926 = vld [vmem:[%s3 + $0x50] sm:$0xf]
        %v2927 = vld [vmem:[%s3 + $0x54] sm:$0xf]
        %v2928 = vld [vmem:[%s3 + $0x58] sm:$0xf]
        %v2929 = vld [vmem:[%s3 + $0x5c] sm:$0xf]
        %v2930 = vld [vmem:[%s3 + $0x60] sm:$0xf]
        %v2931 = vld [vmem:[%s3 + $0x64] sm:$0xf]
        %v2932 = vld [vmem:[%s3 + $0x68] sm:$0xf]
        %v2933 = vld [vmem:[%s3 + $0x6c] sm:$0xf]
        %v2934 = vld [vmem:[%s3 + $0x70] sm:$0xf]
        %v2935 = vld [vmem:[%s3 + $0x74] sm:$0xf]
        %v2936 = vld [vmem:[%s3 + $0x78] sm:$0xf]
        %v2937 = vld [vmem:[%s3 + $0x7c] sm:$0xf]
        %v2938 = vpack.c.bf16 %v2921, %v2921
        %v2955 = vunpack.c.l.b16 %v2922
        %v2956 = vunpack.c.l.b16 %v2923
        %v2957 = vunpack.c.l.b16 %v2924
        %v2958 = vunpack.c.l.b16 %v2925
        %v2959 = vunpack.c.l.b16 %v2926
        %v2960 = vunpack.c.l.b16 %v2927
        %v2961 = vunpack.c.l.b16 %v2928
        %v2962 = vunpack.c.l.b16 %v2929
        %v2963 = vunpack.c.l.b16 %v2930
        %v2964 = vunpack.c.l.b16 %v2931
        %v2965 = vunpack.c.l.b16 %v2932
        %v2966 = vunpack.c.l.b16 %v2933
        %v2967 = vunpack.c.l.b16 %v2934
        %v2968 = vunpack.c.l.b16 %v2935
        %v2969 = vunpack.c.l.b16 %v2936
        %v2970 = vunpack.c.l.b16 %v2937
        %v2971 = vpack.c.b16 %v2956, %v2955
        %v2972 = vpack.c.b16 %v2958, %v2957
        %v2973 = vpack.c.b16 %v2960, %v2959
        %v2974 = vpack.c.b16 %v2962, %v2961
        %v2975 = vpack.c.b16 %v2964, %v2963
        %v2976 = vpack.c.b16 %v2966, %v2965
        %v2977 = vpack.c.b16 %v2968, %v2967
        %v2978 = vpack.c.b16 %v2970, %v2969
        %2987 = vmatpush.bf16.msra.mxu0 %v2978
        %2988 = vmatpush.bf16.msra.mxu0 %v2977
        %2989 = vmatpush.bf16.msra.mxu0 %v2976
        %2990 = vmatpush.bf16.msra.mxu0 %v2975
        %2991 = vmatpush.bf16.msra.mxu0 %v2974
        %2992 = vmatpush.bf16.msra.mxu0 %v2973
        %2993 = vmatpush.bf16.msra.mxu0 %v2972
        %2994 = vmatpush.bf16.msra.mxu0 %v2971
        %2995 = vmatmul.bf16.gmra.mxu0 %v2938
        %v2996 = vpop.f32.mrf.mxu0
        %v2997 = vadd.f32 0.0, %v2996
        %v2998 = vpop.f32.mrf.mxu0
        %2999 = vdwg.mxu0
        %v3016 = vunpack.c.l.b16 %v2904
        %v3017 = vunpack.c.l.b16 %v2905
        %v3018 = vunpack.c.l.b16 %v2906
        %v3019 = vunpack.c.l.b16 %v2907
        %v3020 = vunpack.c.l.b16 %v2908
        %v3021 = vunpack.c.l.b16 %v2909
        %v3022 = vunpack.c.l.b16 %v2910
        %v3023 = vunpack.c.l.b16 %v2911
        %v3024 = vunpack.c.l.b16 %v2912
        %v3025 = vunpack.c.l.b16 %v2913
        %v3026 = vunpack.c.l.b16 %v2914
        %v3027 = vunpack.c.l.b16 %v2915
        %v3028 = vunpack.c.l.b16 %v2916
        %v3029 = vunpack.c.l.b16 %v2917
        %v3030 = vunpack.c.l.b16 %v2918
        %v3031 = vunpack.c.l.b16 %v2919
        %v3032 = vpack.c.b16 %v3017, %v3016
        %v3033 = vpack.c.b16 %v3019, %v3018
        %v3034 = vpack.c.b16 %v3021, %v3020
        %v3035 = vpack.c.b16 %v3023, %v3022
        %v3036 = vpack.c.b16 %v3025, %v3024
        %v3037 = vpack.c.b16 %v3027, %v3026
        %v3038 = vpack.c.b16 %v3029, %v3028
        %v3039 = vpack.c.b16 %v3031, %v3030
        %3048 = vmatpush.bf16.msra.mxu0 %v3039
        %3049 = vmatpush.bf16.msra.mxu0 %v3038
        %3050 = vmatpush.bf16.msra.mxu0 %v3037
        %3051 = vmatpush.bf16.msra.mxu0 %v3036
        %3052 = vmatpush.bf16.msra.mxu0 %v3035
        %3053 = vmatpush.bf16.msra.mxu0 %v3034
        %3054 = vmatpush.bf16.msra.mxu0 %v3033
        %3055 = vmatpush.bf16.msra.mxu0 %v3032
        %3056 = vmatmul.bf16.gmra.mxu0 %v2920
        %v3057 = vpop.f32.mrf.mxu0
        %v3058 = vadd.f32 %v2997, %v3057
        %v3059 = vpop.f32.mrf.mxu0
        %3060 = vdwg.mxu0
        %v3061 = vld [vmem:[%s2814] ss:$2 sm:$0xf]
        %v3062 = vld [vmem:[%s3 + $0x80] sm:$0xf]
        %v3063 = vld [vmem:[%s3 + $0x84] sm:$0xf]
        %v3064 = vld [vmem:[%s3 + $0x88] sm:$0xf]
        %v3065 = vld [vmem:[%s3 + $0x8c] sm:$0xf]
        %v3066 = vld [vmem:[%s3 + $0x90] sm:$0xf]
        %v3067 = vld [vmem:[%s3 + $0x94] sm:$0xf]
        %v3068 = vld [vmem:[%s3 + $0x98] sm:$0xf]
        %v3069 = vld [vmem:[%s3 + $0x9c] sm:$0xf]
        %v3070 = vld [vmem:[%s3 + $0xa0] sm:$0xf]
        %v3071 = vld [vmem:[%s3 + $0xa4] sm:$0xf]
        %v3072 = vld [vmem:[%s3 + $0xa8] sm:$0xf]
        %v3073 = vld [vmem:[%s3 + $0xac] sm:$0xf]
        %v3074 = vld [vmem:[%s3 + $0xb0] sm:$0xf]
        %v3075 = vld [vmem:[%s3 + $0xb4] sm:$0xf]
        %v3076 = vld [vmem:[%s3 + $0xb8] sm:$0xf]
        %v3077 = vld [vmem:[%s3 + $0xbc] sm:$0xf]
        %v3078 = vpack.c.bf16 %v3061, %v3061
        %v3095 = vunpack.c.l.b16 %v3062
        %v3096 = vunpack.c.l.b16 %v3063
        %v3097 = vunpack.c.l.b16 %v3064
        %v3098 = vunpack.c.l.b16 %v3065
        %v3099 = vunpack.c.l.b16 %v3066
        %v3100 = vunpack.c.l.b16 %v3067
        %v3101 = vunpack.c.l.b16 %v3068
        %v3102 = vunpack.c.l.b16 %v3069
        %v3103 = vunpack.c.l.b16 %v3070
        %v3104 = vunpack.c.l.b16 %v3071
        %v3105 = vunpack.c.l.b16 %v3072
        %v3106 = vunpack.c.l.b16 %v3073
        %v3107 = vunpack.c.l.b16 %v3074
        %v3108 = vunpack.c.l.b16 %v3075
        %v3109 = vunpack.c.l.b16 %v3076
        %v3110 = vunpack.c.l.b16 %v3077
        %v3111 = vpack.c.b16 %v3096, %v3095
        %v3112 = vpack.c.b16 %v3098, %v3097
        %v3113 = vpack.c.b16 %v3100, %v3099
        %v3114 = vpack.c.b16 %v3102, %v3101
        %v3115 = vpack.c.b16 %v3104, %v3103
        %v3116 = vpack.c.b16 %v3106, %v3105
        %v3117 = vpack.c.b16 %v3108, %v3107
        %v3118 = vpack.c.b16 %v3110, %v3109
        %3127 = vmatpush.bf16.msra.mxu0 %v3118
        %3128 = vmatpush.bf16.msra.mxu0 %v3117
        %3129 = vmatpush.bf16.msra.mxu0 %v3116
        %3130 = vmatpush.bf16.msra.mxu0 %v3115
        %3131 = vmatpush.bf16.msra.mxu0 %v3114
        %3132 = vmatpush.bf16.msra.mxu0 %v3113
        %3133 = vmatpush.bf16.msra.mxu0 %v3112
        %3134 = vmatpush.bf16.msra.mxu0 %v3111
        %3135 = vmatmul.bf16.gmra.mxu0 %v3078
        %v3136 = vpop.f32.mrf.mxu0
        %v3137 = vadd.f32 0.0, %v3136
        %v3138 = vpop.f32.mrf.mxu0
        %3139 = vdwg.mxu0
        %v3140 = vadd.f32 %v3058, %v3137
        %s3141 = scalar_lea.vmem [#allocation2], 30
        %v3142 = vld [vmem:[%s3141] ss:$2 sm:$0xf]
        %v3143 = vld [vmem:[%s3 + $0xc0] sm:$0xf]
        %v3144 = vld [vmem:[%s3 + $0xc4] sm:$0xf]
        %v3145 = vld [vmem:[%s3 + $0xc8] sm:$0xf]
        %v3146 = vld [vmem:[%s3 + $0xcc] sm:$0xf]
        %v3147 = vld [vmem:[%s3 + $0xd0] sm:$0xf]
        %v3148 = vld [vmem:[%s3 + $0xd4] sm:$0xf]
        %v3149 = vld [vmem:[%s3 + $0xd8] sm:$0xf]
        %v3150 = vld [vmem:[%s3 + $0xdc] sm:$0xf]
        %v3151 = vld [vmem:[%s3 + $0xe0] sm:$0xf]
        %v3152 = vld [vmem:[%s3 + $0xe4] sm:$0xf]
        %v3153 = vld [vmem:[%s3 + $0xe8] sm:$0xf]
        %v3154 = vld [vmem:[%s3 + $0xec] sm:$0xf]
        %v3155 = vld [vmem:[%s3 + $0xf0] sm:$0xf]
        %v3156 = vld [vmem:[%s3 + $0xf4] sm:$0xf]
        %v3157 = vld [vmem:[%s3 + $0xf8] sm:$0xf]
        %v3158 = vld [vmem:[%s3 + $0xfc] sm:$0xf]
        %v3159 = vpack.c.bf16 %v3142, %v3142
        %v3176 = vunpack.c.l.b16 %v3143
        %v3177 = vunpack.c.l.b16 %v3144
        %v3178 = vunpack.c.l.b16 %v3145
        %v3179 = vunpack.c.l.b16 %v3146
        %v3180 = vunpack.c.l.b16 %v3147
        %v3181 = vunpack.c.l.b16 %v3148
        %v3182 = vunpack.c.l.b16 %v3149
        %v3183 = vunpack.c.l.b16 %v3150
        %v3184 = vunpack.c.l.b16 %v3151
        %v3185 = vunpack.c.l.b16 %v3152
        %v3186 = vunpack.c.l.b16 %v3153
        %v3187 = vunpack.c.l.b16 %v3154
        %v3188 = vunpack.c.l.b16 %v3155
        %v3189 = vunpack.c.l.b16 %v3156
        %v3190 = vunpack.c.l.b16 %v3157
        %v3191 = vunpack.c.l.b16 %v3158
        %v3192 = vpack.c.b16 %v3177, %v3176
        %v3193 = vpack.c.b16 %v3179, %v3178
        %v3194 = vpack.c.b16 %v3181, %v3180
        %v3195 = vpack.c.b16 %v3183, %v3182
        %v3196 = vpack.c.b16 %v3185, %v3184
        %v3197 = vpack.c.b16 %v3187, %v3186
        %v3198 = vpack.c.b16 %v3189, %v3188
        %v3199 = vpack.c.b16 %v3191, %v3190
        %3208 = vmatpush.bf16.msra.mxu0 %v3199
        %3209 = vmatpush.bf16.msra.mxu0 %v3198
        %3210 = vmatpush.bf16.msra.mxu0 %v3197
        %3211 = vmatpush.bf16.msra.mxu0 %v3196
        %3212 = vmatpush.bf16.msra.mxu0 %v3195
        %3213 = vmatpush.bf16.msra.mxu0 %v3194
        %3214 = vmatpush.bf16.msra.mxu0 %v3193
        %3215 = vmatpush.bf16.msra.mxu0 %v3192
        %3216 = vmatmul.bf16.gmra.mxu0 %v3159
        %v3217 = vpop.f32.mrf.mxu0
        %v3218 = vadd.f32 0.0, %v3217
        %v3219 = vpop.f32.mrf.mxu0
        %3220 = vdwg.mxu0
        %v3221 = vadd.f32 %v3140, %v3218
        %s3222 = scalar_lea.vmem [#allocation2], 31
        %v3223 = vld [vmem:[%s3222] ss:$2 sm:$0xf]
        %v3224 = vld [vmem:[%s3 + $0x100] sm:$0xf]
        %v3225 = vld [vmem:[%s3 + $0x104] sm:$0xf]
        %v3226 = vld [vmem:[%s3 + $0x108] sm:$0xf]
        %v3227 = vld [vmem:[%s3 + $0x10c] sm:$0xf]
        %v3228 = vld [vmem:[%s3 + $0x110] sm:$0xf]
        %v3229 = vld [vmem:[%s3 + $0x114] sm:$0xf]
        %v3230 = vld [vmem:[%s3 + $0x118] sm:$0xf]
        %v3231 = vld [vmem:[%s3 + $0x11c] sm:$0xf]
        %v3232 = vld [vmem:[%s3 + $0x120] sm:$0xf]
        %v3233 = vld [vmem:[%s3 + $0x124] sm:$0xf]
        %v3234 = vld [vmem:[%s3 + $0x128] sm:$0xf]
        %v3235 = vld [vmem:[%s3 + $0x12c] sm:$0xf]
        %v3236 = vld [vmem:[%s3 + $0x130] sm:$0xf]
        %v3237 = vld [vmem:[%s3 + $0x134] sm:$0xf]
        %v3238 = vld [vmem:[%s3 + $0x138] sm:$0xf]
        %v3239 = vld [vmem:[%s3 + $0x13c] sm:$0xf]
        %v3240 = vpack.c.bf16 %v3223, %v3223
        %v3257 = vunpack.c.l.b16 %v3224
        %v3258 = vunpack.c.l.b16 %v3225
        %v3259 = vunpack.c.l.b16 %v3226
        %v3260 = vunpack.c.l.b16 %v3227
        %v3261 = vunpack.c.l.b16 %v3228
        %v3262 = vunpack.c.l.b16 %v3229
        %v3263 = vunpack.c.l.b16 %v3230
        %v3264 = vunpack.c.l.b16 %v3231
        %v3265 = vunpack.c.l.b16 %v3232
        %v3266 = vunpack.c.l.b16 %v3233
        %v3267 = vunpack.c.l.b16 %v3234
        %v3268 = vunpack.c.l.b16 %v3235
        %v3269 = vunpack.c.l.b16 %v3236
        %v3270 = vunpack.c.l.b16 %v3237
        %v3271 = vunpack.c.l.b16 %v3238
        %v3272 = vunpack.c.l.b16 %v3239
        %v3273 = vpack.c.b16 %v3258, %v3257
        %v3274 = vpack.c.b16 %v3260, %v3259
        %v3275 = vpack.c.b16 %v3262, %v3261
        %v3276 = vpack.c.b16 %v3264, %v3263
        %v3277 = vpack.c.b16 %v3266, %v3265
        %v3278 = vpack.c.b16 %v3268, %v3267
        %v3279 = vpack.c.b16 %v3270, %v3269
        %v3280 = vpack.c.b16 %v3272, %v3271
        %3289 = vmatpush.bf16.msra.mxu0 %v3280
        %3290 = vmatpush.bf16.msra.mxu0 %v3279
        %3291 = vmatpush.bf16.msra.mxu0 %v3278
        %3292 = vmatpush.bf16.msra.mxu0 %v3277
        %3293 = vmatpush.bf16.msra.mxu0 %v3276
        %3294 = vmatpush.bf16.msra.mxu0 %v3275
        %3295 = vmatpush.bf16.msra.mxu0 %v3274
        %3296 = vmatpush.bf16.msra.mxu0 %v3273
        %3297 = vmatmul.bf16.gmra.mxu0 %v3240
        %v3298 = vpop.f32.mrf.mxu0
        %v3299 = vadd.f32 0.0, %v3298
        %v3300 = vpop.f32.mrf.mxu0
        %3301 = vdwg.mxu0
        %v3302 = vadd.f32 %v3221, %v3299
        %s3303 = scalar_lea.vmem [#allocation2], 32
        %v3304 = vld [vmem:[%s3303] ss:$2 sm:$0xf]
        %v3305 = vld [vmem:[%s3 + $0x140] sm:$0xf]
        %v3306 = vld [vmem:[%s3 + $0x144] sm:$0xf]
        %v3307 = vld [vmem:[%s3 + $0x148] sm:$0xf]
        %v3308 = vld [vmem:[%s3 + $0x14c] sm:$0xf]
        %v3309 = vld [vmem:[%s3 + $0x150] sm:$0xf]
        %v3310 = vld [vmem:[%s3 + $0x154] sm:$0xf]
        %v3311 = vld [vmem:[%s3 + $0x158] sm:$0xf]
        %v3312 = vld [vmem:[%s3 + $0x15c] sm:$0xf]
        %v3313 = vld [vmem:[%s3 + $0x160] sm:$0xf]
        %v3314 = vld [vmem:[%s3 + $0x164] sm:$0xf]
        %v3315 = vld [vmem:[%s3 + $0x168] sm:$0xf]
        %v3316 = vld [vmem:[%s3 + $0x16c] sm:$0xf]
        %v3317 = vld [vmem:[%s3 + $0x170] sm:$0xf]
        %v3318 = vld [vmem:[%s3 + $0x174] sm:$0xf]
        %v3319 = vld [vmem:[%s3 + $0x178] sm:$0xf]
        %v3320 = vld [vmem:[%s3 + $0x17c] sm:$0xf]
        %v3321 = vpack.c.bf16 %v3304, %v3304
        %v3338 = vunpack.c.l.b16 %v3305
        %v3339 = vunpack.c.l.b16 %v3306
        %v3340 = vunpack.c.l.b16 %v3307
        %v3341 = vunpack.c.l.b16 %v3308
        %v3342 = vunpack.c.l.b16 %v3309
        %v3343 = vunpack.c.l.b16 %v3310
        %v3344 = vunpack.c.l.b16 %v3311
        %v3345 = vunpack.c.l.b16 %v3312
        %v3346 = vunpack.c.l.b16 %v3313
        %v3347 = vunpack.c.l.b16 %v3314
        %v3348 = vunpack.c.l.b16 %v3315
        %v3349 = vunpack.c.l.b16 %v3316
        %v3350 = vunpack.c.l.b16 %v3317
        %v3351 = vunpack.c.l.b16 %v3318
        %v3352 = vunpack.c.l.b16 %v3319
        %v3353 = vunpack.c.l.b16 %v3320
        %v3354 = vpack.c.b16 %v3339, %v3338
        %v3355 = vpack.c.b16 %v3341, %v3340
        %v3356 = vpack.c.b16 %v3343, %v3342
        %v3357 = vpack.c.b16 %v3345, %v3344
        %v3358 = vpack.c.b16 %v3347, %v3346
        %v3359 = vpack.c.b16 %v3349, %v3348
        %v3360 = vpack.c.b16 %v3351, %v3350
        %v3361 = vpack.c.b16 %v3353, %v3352
        %3370 = vmatpush.bf16.msra.mxu0 %v3361
        %3371 = vmatpush.bf16.msra.mxu0 %v3360
        %3372 = vmatpush.bf16.msra.mxu0 %v3359
        %3373 = vmatpush.bf16.msra.mxu0 %v3358
        %3374 = vmatpush.bf16.msra.mxu0 %v3357
        %3375 = vmatpush.bf16.msra.mxu0 %v3356
        %3376 = vmatpush.bf16.msra.mxu0 %v3355
        %3377 = vmatpush.bf16.msra.mxu0 %v3354
        %3378 = vmatmul.bf16.gmra.mxu0 %v3321
        %v3379 = vpop.f32.mrf.mxu0
        %v3380 = vadd.f32 0.0, %v3379
        %v3381 = vpop.f32.mrf.mxu0
        %3382 = vdwg.mxu0
        %v3383 = vadd.f32 %v3302, %v3380
        %s3384 = scalar_lea.vmem [#allocation2], 40
        %v3385 = vld [vmem:[%s3384] ss:$2 sm:$0xf]
        %v3386 = vld [vmem:[%s3 + $0x180] sm:$0xf]
        %v3387 = vld [vmem:[%s3 + $0x184] sm:$0xf]
        %v3388 = vld [vmem:[%s3 + $0x188] sm:$0xf]
        %v3389 = vld [vmem:[%s3 + $0x18c] sm:$0xf]
        %v3390 = vld [vmem:[%s3 + $0x190] sm:$0xf]
        %v3391 = vld [vmem:[%s3 + $0x194] sm:$0xf]
        %v3392 = vld [vmem:[%s3 + $0x198] sm:$0xf]
        %v3393 = vld [vmem:[%s3 + $0x19c] sm:$0xf]
        %v3394 = vld [vmem:[%s3 + $0x1a0] sm:$0xf]
        %v3395 = vld [vmem:[%s3 + $0x1a4] sm:$0xf]
        %v3396 = vld [vmem:[%s3 + $0x1a8] sm:$0xf]
        %v3397 = vld [vmem:[%s3 + $0x1ac] sm:$0xf]
        %v3398 = vld [vmem:[%s3 + $0x1b0] sm:$0xf]
        %v3399 = vld [vmem:[%s3 + $0x1b4] sm:$0xf]
        %v3400 = vld [vmem:[%s3 + $0x1b8] sm:$0xf]
        %v3401 = vld [vmem:[%s3 + $0x1bc] sm:$0xf]
        %v3402 = vpack.c.bf16 %v3385, %v3385
        %v3419 = vunpack.c.l.b16 %v3386
        %v3420 = vunpack.c.l.b16 %v3387
        %v3421 = vunpack.c.l.b16 %v3388
        %v3422 = vunpack.c.l.b16 %v3389
        %v3423 = vunpack.c.l.b16 %v3390
        %v3424 = vunpack.c.l.b16 %v3391
        %v3425 = vunpack.c.l.b16 %v3392
        %v3426 = vunpack.c.l.b16 %v3393
        %v3427 = vunpack.c.l.b16 %v3394
        %v3428 = vunpack.c.l.b16 %v3395
        %v3429 = vunpack.c.l.b16 %v3396
        %v3430 = vunpack.c.l.b16 %v3397
        %v3431 = vunpack.c.l.b16 %v3398
        %v3432 = vunpack.c.l.b16 %v3399
        %v3433 = vunpack.c.l.b16 %v3400
        %v3434 = vunpack.c.l.b16 %v3401
        %v3435 = vpack.c.b16 %v3420, %v3419
        %v3436 = vpack.c.b16 %v3422, %v3421
        %v3437 = vpack.c.b16 %v3424, %v3423
        %v3438 = vpack.c.b16 %v3426, %v3425
        %v3439 = vpack.c.b16 %v3428, %v3427
        %v3440 = vpack.c.b16 %v3430, %v3429
        %v3441 = vpack.c.b16 %v3432, %v3431
        %v3442 = vpack.c.b16 %v3434, %v3433
        %3451 = vmatpush.bf16.msra.mxu0 %v3442
        %3452 = vmatpush.bf16.msra.mxu0 %v3441
        %3453 = vmatpush.bf16.msra.mxu0 %v3440
        %3454 = vmatpush.bf16.msra.mxu0 %v3439
        %3455 = vmatpush.bf16.msra.mxu0 %v3438
        %3456 = vmatpush.bf16.msra.mxu0 %v3437
        %3457 = vmatpush.bf16.msra.mxu0 %v3436
        %3458 = vmatpush.bf16.msra.mxu0 %v3435
        %3459 = vmatmul.bf16.gmra.mxu0 %v3402
        %v3460 = vpop.f32.mrf.mxu0
        %v3461 = vadd.f32 0.0, %v3460
        %v3462 = vpop.f32.mrf.mxu0
        %3463 = vdwg.mxu0
        %v3464 = vadd.f32 %v3383, %v3461
        %s3465 = scalar_lea.vmem [#allocation2], 41
        %v3466 = vld [vmem:[%s3465] ss:$2 sm:$0xf]
        %v3467 = vld [vmem:[%s3 + $0x1c0] sm:$0xf]
        %v3468 = vld [vmem:[%s3 + $0x1c4] sm:$0xf]
        %v3469 = vld [vmem:[%s3 + $0x1c8] sm:$0xf]
        %v3470 = vld [vmem:[%s3 + $0x1cc] sm:$0xf]
        %v3471 = vld [vmem:[%s3 + $0x1d0] sm:$0xf]
        %v3472 = vld [vmem:[%s3 + $0x1d4] sm:$0xf]
        %v3473 = vld [vmem:[%s3 + $0x1d8] sm:$0xf]
        %v3474 = vld [vmem:[%s3 + $0x1dc] sm:$0xf]
        %v3475 = vld [vmem:[%s3 + $0x1e0] sm:$0xf]
        %v3476 = vld [vmem:[%s3 + $0x1e4] sm:$0xf]
        %v3477 = vld [vmem:[%s3 + $0x1e8] sm:$0xf]
        %v3478 = vld [vmem:[%s3 + $0x1ec] sm:$0xf]
        %v3479 = vld [vmem:[%s3 + $0x1f0] sm:$0xf]
        %v3480 = vld [vmem:[%s3 + $0x1f4] sm:$0xf]
        %v3481 = vld [vmem:[%s3 + $0x1f8] sm:$0xf]
        %v3482 = vld [vmem:[%s3 + $0x1fc] sm:$0xf]
        %v3483 = vpack.c.bf16 %v3466, %v3466
        %v3500 = vunpack.c.l.b16 %v3467
        %v3501 = vunpack.c.l.b16 %v3468
        %v3502 = vunpack.c.l.b16 %v3469
        %v3503 = vunpack.c.l.b16 %v3470
        %v3504 = vunpack.c.l.b16 %v3471
        %v3505 = vunpack.c.l.b16 %v3472
        %v3506 = vunpack.c.l.b16 %v3473
        %v3507 = vunpack.c.l.b16 %v3474
        %v3508 = vunpack.c.l.b16 %v3475
        %v3509 = vunpack.c.l.b16 %v3476
        %v3510 = vunpack.c.l.b16 %v3477
        %v3511 = vunpack.c.l.b16 %v3478
        %v3512 = vunpack.c.l.b16 %v3479
        %v3513 = vunpack.c.l.b16 %v3480
        %v3514 = vunpack.c.l.b16 %v3481
        %v3515 = vunpack.c.l.b16 %v3482
        %v3516 = vpack.c.b16 %v3501, %v3500
        %v3517 = vpack.c.b16 %v3503, %v3502
        %v3518 = vpack.c.b16 %v3505, %v3504
        %v3519 = vpack.c.b16 %v3507, %v3506
        %v3520 = vpack.c.b16 %v3509, %v3508
        %v3521 = vpack.c.b16 %v3511, %v3510
        %v3522 = vpack.c.b16 %v3513, %v3512
        %v3523 = vpack.c.b16 %v3515, %v3514
        %3532 = vmatpush.bf16.msra.mxu0 %v3523
        %3533 = vmatpush.bf16.msra.mxu0 %v3522
        %3534 = vmatpush.bf16.msra.mxu0 %v3521
        %3535 = vmatpush.bf16.msra.mxu0 %v3520
        %3536 = vmatpush.bf16.msra.mxu0 %v3519
        %3537 = vmatpush.bf16.msra.mxu0 %v3518
        %3538 = vmatpush.bf16.msra.mxu0 %v3517
        %3539 = vmatpush.bf16.msra.mxu0 %v3516
        %3540 = vmatmul.bf16.gmra.mxu0 %v3483
        %v3541 = vpop.f32.mrf.mxu0
        %v3542 = vadd.f32 0.0, %v3541
        %v3543 = vpop.f32.mrf.mxu0
        %3544 = vdwg.mxu0
        %v3545 = vadd.f32 %v3464, %v3542
        %s3546 = scalar_lea.vmem [#allocation2], 42
        %v3547 = vld [vmem:[%s3546] ss:$2 sm:$0xf]
        %v3548 = vld [vmem:[%s3 + $0x200] sm:$0xf]
        %v3549 = vld [vmem:[%s3 + $0x204] sm:$0xf]
        %v3550 = vld [vmem:[%s3 + $0x208] sm:$0xf]
        %v3551 = vld [vmem:[%s3 + $0x20c] sm:$0xf]
        %v3552 = vld [vmem:[%s3 + $0x210] sm:$0xf]
        %v3553 = vld [vmem:[%s3 + $0x214] sm:$0xf]
        %v3554 = vld [vmem:[%s3 + $0x218] sm:$0xf]
        %v3555 = vld [vmem:[%s3 + $0x21c] sm:$0xf]
        %v3556 = vld [vmem:[%s3 + $0x220] sm:$0xf]
        %v3557 = vld [vmem:[%s3 + $0x224] sm:$0xf]
        %v3558 = vld [vmem:[%s3 + $0x228] sm:$0xf]
        %v3559 = vld [vmem:[%s3 + $0x22c] sm:$0xf]
        %v3560 = vld [vmem:[%s3 + $0x230] sm:$0xf]
        %v3561 = vld [vmem:[%s3 + $0x234] sm:$0xf]
        %v3562 = vld [vmem:[%s3 + $0x238] sm:$0xf]
        %v3563 = vld [vmem:[%s3 + $0x23c] sm:$0xf]
        %v3564 = vpack.c.bf16 %v3547, %v3547
        %v3581 = vunpack.c.l.b16 %v3548
        %v3582 = vunpack.c.l.b16 %v3549
        %v3583 = vunpack.c.l.b16 %v3550
        %v3584 = vunpack.c.l.b16 %v3551
        %v3585 = vunpack.c.l.b16 %v3552
        %v3586 = vunpack.c.l.b16 %v3553
        %v3587 = vunpack.c.l.b16 %v3554
        %v3588 = vunpack.c.l.b16 %v3555
        %v3589 = vunpack.c.l.b16 %v3556
        %v3590 = vunpack.c.l.b16 %v3557
        %v3591 = vunpack.c.l.b16 %v3558
        %v3592 = vunpack.c.l.b16 %v3559
        %v3593 = vunpack.c.l.b16 %v3560
        %v3594 = vunpack.c.l.b16 %v3561
        %v3595 = vunpack.c.l.b16 %v3562
        %v3596 = vunpack.c.l.b16 %v3563
        %v3597 = vpack.c.b16 %v3582, %v3581
        %v3598 = vpack.c.b16 %v3584, %v3583
        %v3599 = vpack.c.b16 %v3586, %v3585
        %v3600 = vpack.c.b16 %v3588, %v3587
        %v3601 = vpack.c.b16 %v3590, %v3589
        %v3602 = vpack.c.b16 %v3592, %v3591
        %v3603 = vpack.c.b16 %v3594, %v3593
        %v3604 = vpack.c.b16 %v3596, %v3595
        %3613 = vmatpush.bf16.msra.mxu0 %v3604
        %3614 = vmatpush.bf16.msra.mxu0 %v3603
        %3615 = vmatpush.bf16.msra.mxu0 %v3602
        %3616 = vmatpush.bf16.msra.mxu0 %v3601
        %3617 = vmatpush.bf16.msra.mxu0 %v3600
        %3618 = vmatpush.bf16.msra.mxu0 %v3599
        %3619 = vmatpush.bf16.msra.mxu0 %v3598
        %3620 = vmatpush.bf16.msra.mxu0 %v3597
        %3621 = vmatmul.bf16.gmra.mxu0 %v3564
        %v3622 = vpop.f32.mrf.mxu0
        %v3623 = vadd.f32 0.0, %v3622
        %v3624 = vpop.f32.mrf.mxu0
        %3625 = vdwg.mxu0
        %v3626 = vadd.f32 %v3545, %v3623
        %v3627 = vadd.f32 %v3626, %v2895
        %vm3628 = vcmp.ge.f32.partialorder %v3627, 0.0
        %v3629 = vmul.f32 %v3627, 0.01
        %v3630 = vsel %vm3628, %v3627, %v3629
        %v3631 = vadd.f32 %v3630, %v2900
        %3632 = vst [vmem:[#allocation3 + $0xd] sm:$0xf] %v3631
        %v3633 = vld [vmem:[%s3384] ss:$2 sm:$0xf]
        %v3634 = vld [vmem:[%s3] sm:$0xf]
        %v3635 = vld [vmem:[%s3 + $0x4] sm:$0xf]
        %v3636 = vld [vmem:[%s3 + $0x8] sm:$0xf]
        %v3637 = vld [vmem:[%s3 + $0xc] sm:$0xf]
        %v3638 = vld [vmem:[%s3 + $0x10] sm:$0xf]
        %v3639 = vld [vmem:[%s3 + $0x14] sm:$0xf]
        %v3640 = vld [vmem:[%s3 + $0x18] sm:$0xf]
        %v3641 = vld [vmem:[%s3 + $0x1c] sm:$0xf]
        %v3642 = vld [vmem:[%s3 + $0x20] sm:$0xf]
        %v3643 = vld [vmem:[%s3 + $0x24] sm:$0xf]
        %v3644 = vld [vmem:[%s3 + $0x28] sm:$0xf]
        %v3645 = vld [vmem:[%s3 + $0x2c] sm:$0xf]
        %v3646 = vld [vmem:[%s3 + $0x30] sm:$0xf]
        %v3647 = vld [vmem:[%s3 + $0x34] sm:$0xf]
        %v3648 = vld [vmem:[%s3 + $0x38] sm:$0xf]
        %v3649 = vld [vmem:[%s3 + $0x3c] sm:$0xf]
        %v3650 = vpack.c.bf16 %v3633, %v3633
        %v3651 = vld [vmem:[%s3465] ss:$2 sm:$0xf]
        %v3652 = vld [vmem:[%s3 + $0x40] sm:$0xf]
        %v3653 = vld [vmem:[%s3 + $0x44] sm:$0xf]
        %v3654 = vld [vmem:[%s3 + $0x48] sm:$0xf]
        %v3655 = vld [vmem:[%s3 + $0x4c] sm:$0xf]
        %v3656 = vld [vmem:[%s3 + $0x50] sm:$0xf]
        %v3657 = vld [vmem:[%s3 + $0x54] sm:$0xf]
        %v3658 = vld [vmem:[%s3 + $0x58] sm:$0xf]
        %v3659 = vld [vmem:[%s3 + $0x5c] sm:$0xf]
        %v3660 = vld [vmem:[%s3 + $0x60] sm:$0xf]
        %v3661 = vld [vmem:[%s3 + $0x64] sm:$0xf]
        %v3662 = vld [vmem:[%s3 + $0x68] sm:$0xf]
        %v3663 = vld [vmem:[%s3 + $0x6c] sm:$0xf]
        %v3664 = vld [vmem:[%s3 + $0x70] sm:$0xf]
        %v3665 = vld [vmem:[%s3 + $0x74] sm:$0xf]
        %v3666 = vld [vmem:[%s3 + $0x78] sm:$0xf]
        %v3667 = vld [vmem:[%s3 + $0x7c] sm:$0xf]
        %v3668 = vpack.c.bf16 %v3651, %v3651
        %v3685 = vunpack.c.l.b16 %v3652
        %v3686 = vunpack.c.l.b16 %v3653
        %v3687 = vunpack.c.l.b16 %v3654
        %v3688 = vunpack.c.l.b16 %v3655
        %v3689 = vunpack.c.l.b16 %v3656
        %v3690 = vunpack.c.l.b16 %v3657
        %v3691 = vunpack.c.l.b16 %v3658
        %v3692 = vunpack.c.l.b16 %v3659
        %v3693 = vunpack.c.l.b16 %v3660
        %v3694 = vunpack.c.l.b16 %v3661
        %v3695 = vunpack.c.l.b16 %v3662
        %v3696 = vunpack.c.l.b16 %v3663
        %v3697 = vunpack.c.l.b16 %v3664
        %v3698 = vunpack.c.l.b16 %v3665
        %v3699 = vunpack.c.l.b16 %v3666
        %v3700 = vunpack.c.l.b16 %v3667
        %v3701 = vpack.c.b16 %v3686, %v3685
        %v3702 = vpack.c.b16 %v3688, %v3687
        %v3703 = vpack.c.b16 %v3690, %v3689
        %v3704 = vpack.c.b16 %v3692, %v3691
        %v3705 = vpack.c.b16 %v3694, %v3693
        %v3706 = vpack.c.b16 %v3696, %v3695
        %v3707 = vpack.c.b16 %v3698, %v3697
        %v3708 = vpack.c.b16 %v3700, %v3699
        %3717 = vmatpush.bf16.msra.mxu0 %v3708
        %3718 = vmatpush.bf16.msra.mxu0 %v3707
        %3719 = vmatpush.bf16.msra.mxu0 %v3706
        %3720 = vmatpush.bf16.msra.mxu0 %v3705
        %3721 = vmatpush.bf16.msra.mxu0 %v3704
        %3722 = vmatpush.bf16.msra.mxu0 %v3703
        %3723 = vmatpush.bf16.msra.mxu0 %v3702
        %3724 = vmatpush.bf16.msra.mxu0 %v3701
        %3725 = vmatmul.bf16.gmra.mxu0 %v3668
        %v3726 = vpop.f32.mrf.mxu0
        %v3727 = vadd.f32 0.0, %v3726
        %v3728 = vpop.f32.mrf.mxu0
        %3729 = vdwg.mxu0
        %v3746 = vunpack.c.l.b16 %v3634
        %v3747 = vunpack.c.l.b16 %v3635
        %v3748 = vunpack.c.l.b16 %v3636
        %v3749 = vunpack.c.l.b16 %v3637
        %v3750 = vunpack.c.l.b16 %v3638
        %v3751 = vunpack.c.l.b16 %v3639
        %v3752 = vunpack.c.l.b16 %v3640
        %v3753 = vunpack.c.l.b16 %v3641
        %v3754 = vunpack.c.l.b16 %v3642
        %v3755 = vunpack.c.l.b16 %v3643
        %v3756 = vunpack.c.l.b16 %v3644
        %v3757 = vunpack.c.l.b16 %v3645
        %v3758 = vunpack.c.l.b16 %v3646
        %v3759 = vunpack.c.l.b16 %v3647
        %v3760 = vunpack.c.l.b16 %v3648
        %v3761 = vunpack.c.l.b16 %v3649
        %v3762 = vpack.c.b16 %v3747, %v3746
        %v3763 = vpack.c.b16 %v3749, %v3748
        %v3764 = vpack.c.b16 %v3751, %v3750
        %v3765 = vpack.c.b16 %v3753, %v3752
        %v3766 = vpack.c.b16 %v3755, %v3754
        %v3767 = vpack.c.b16 %v3757, %v3756
        %v3768 = vpack.c.b16 %v3759, %v3758
        %v3769 = vpack.c.b16 %v3761, %v3760
        %3778 = vmatpush.bf16.msra.mxu0 %v3769
        %3779 = vmatpush.bf16.msra.mxu0 %v3768
        %3780 = vmatpush.bf16.msra.mxu0 %v3767
        %3781 = vmatpush.bf16.msra.mxu0 %v3766
        %3782 = vmatpush.bf16.msra.mxu0 %v3765
        %3783 = vmatpush.bf16.msra.mxu0 %v3764
        %3784 = vmatpush.bf16.msra.mxu0 %v3763
        %3785 = vmatpush.bf16.msra.mxu0 %v3762
        %3786 = vmatmul.bf16.gmra.mxu0 %v3650
        %v3787 = vpop.f32.mrf.mxu0
        %v3788 = vadd.f32 %v3727, %v3787
        %v3789 = vpop.f32.mrf.mxu0
        %3790 = vdwg.mxu0
        %v3791 = vld [vmem:[%s3546] ss:$2 sm:$0xf]
        %v3792 = vld [vmem:[%s3 + $0x80] sm:$0xf]
        %v3793 = vld [vmem:[%s3 + $0x84] sm:$0xf]
        %v3794 = vld [vmem:[%s3 + $0x88] sm:$0xf]
        %v3795 = vld [vmem:[%s3 + $0x8c] sm:$0xf]
        %v3796 = vld [vmem:[%s3 + $0x90] sm:$0xf]
        %v3797 = vld [vmem:[%s3 + $0x94] sm:$0xf]
        %v3798 = vld [vmem:[%s3 + $0x98] sm:$0xf]
        %v3799 = vld [vmem:[%s3 + $0x9c] sm:$0xf]
        %v3800 = vld [vmem:[%s3 + $0xa0] sm:$0xf]
        %v3801 = vld [vmem:[%s3 + $0xa4] sm:$0xf]
        %v3802 = vld [vmem:[%s3 + $0xa8] sm:$0xf]
        %v3803 = vld [vmem:[%s3 + $0xac] sm:$0xf]
        %v3804 = vld [vmem:[%s3 + $0xb0] sm:$0xf]
        %v3805 = vld [vmem:[%s3 + $0xb4] sm:$0xf]
        %v3806 = vld [vmem:[%s3 + $0xb8] sm:$0xf]
        %v3807 = vld [vmem:[%s3 + $0xbc] sm:$0xf]
        %v3808 = vpack.c.bf16 %v3791, %v3791
        %v3825 = vunpack.c.l.b16 %v3792
        %v3826 = vunpack.c.l.b16 %v3793
        %v3827 = vunpack.c.l.b16 %v3794
        %v3828 = vunpack.c.l.b16 %v3795
        %v3829 = vunpack.c.l.b16 %v3796
        %v3830 = vunpack.c.l.b16 %v3797
        %v3831 = vunpack.c.l.b16 %v3798
        %v3832 = vunpack.c.l.b16 %v3799
        %v3833 = vunpack.c.l.b16 %v3800
        %v3834 = vunpack.c.l.b16 %v3801
        %v3835 = vunpack.c.l.b16 %v3802
        %v3836 = vunpack.c.l.b16 %v3803
        %v3837 = vunpack.c.l.b16 %v3804
        %v3838 = vunpack.c.l.b16 %v3805
        %v3839 = vunpack.c.l.b16 %v3806
        %v3840 = vunpack.c.l.b16 %v3807
        %v3841 = vpack.c.b16 %v3826, %v3825
        %v3842 = vpack.c.b16 %v3828, %v3827
        %v3843 = vpack.c.b16 %v3830, %v3829
        %v3844 = vpack.c.b16 %v3832, %v3831
        %v3845 = vpack.c.b16 %v3834, %v3833
        %v3846 = vpack.c.b16 %v3836, %v3835
        %v3847 = vpack.c.b16 %v3838, %v3837
        %v3848 = vpack.c.b16 %v3840, %v3839
        %3857 = vmatpush.bf16.msra.mxu0 %v3848
        %3858 = vmatpush.bf16.msra.mxu0 %v3847
        %3859 = vmatpush.bf16.msra.mxu0 %v3846
        %3860 = vmatpush.bf16.msra.mxu0 %v3845
        %3861 = vmatpush.bf16.msra.mxu0 %v3844
        %3862 = vmatpush.bf16.msra.mxu0 %v3843
        %3863 = vmatpush.bf16.msra.mxu0 %v3842
        %3864 = vmatpush.bf16.msra.mxu0 %v3841
        %3865 = vmatmul.bf16.gmra.mxu0 %v3808
        %v3866 = vpop.f32.mrf.mxu0
        %v3867 = vadd.f32 0.0, %v3866
        %v3868 = vpop.f32.mrf.mxu0
        %3869 = vdwg.mxu0
        %v3870 = vadd.f32 %v3788, %v3867
        %s3871 = scalar_lea.vmem [#allocation2], 50
        %v3872 = vld [vmem:[%s3871] ss:$2 sm:$0xf]
        %v3873 = vld [vmem:[%s3 + $0xc0] sm:$0xf]
        %v3874 = vld [vmem:[%s3 + $0xc4] sm:$0xf]
        %v3875 = vld [vmem:[%s3 + $0xc8] sm:$0xf]
        %v3876 = vld [vmem:[%s3 + $0xcc] sm:$0xf]
        %v3877 = vld [vmem:[%s3 + $0xd0] sm:$0xf]
        %v3878 = vld [vmem:[%s3 + $0xd4] sm:$0xf]
        %v3879 = vld [vmem:[%s3 + $0xd8] sm:$0xf]
        %v3880 = vld [vmem:[%s3 + $0xdc] sm:$0xf]
        %v3881 = vld [vmem:[%s3 + $0xe0] sm:$0xf]
        %v3882 = vld [vmem:[%s3 + $0xe4] sm:$0xf]
        %v3883 = vld [vmem:[%s3 + $0xe8] sm:$0xf]
        %v3884 = vld [vmem:[%s3 + $0xec] sm:$0xf]
        %v3885 = vld [vmem:[%s3 + $0xf0] sm:$0xf]
        %v3886 = vld [vmem:[%s3 + $0xf4] sm:$0xf]
        %v3887 = vld [vmem:[%s3 + $0xf8] sm:$0xf]
        %v3888 = vld [vmem:[%s3 + $0xfc] sm:$0xf]
        %v3889 = vpack.c.bf16 %v3872, %v3872
        %v3906 = vunpack.c.l.b16 %v3873
        %v3907 = vunpack.c.l.b16 %v3874
        %v3908 = vunpack.c.l.b16 %v3875
        %v3909 = vunpack.c.l.b16 %v3876
        %v3910 = vunpack.c.l.b16 %v3877
        %v3911 = vunpack.c.l.b16 %v3878
        %v3912 = vunpack.c.l.b16 %v3879
        %v3913 = vunpack.c.l.b16 %v3880
        %v3914 = vunpack.c.l.b16 %v3881
        %v3915 = vunpack.c.l.b16 %v3882
        %v3916 = vunpack.c.l.b16 %v3883
        %v3917 = vunpack.c.l.b16 %v3884
        %v3918 = vunpack.c.l.b16 %v3885
        %v3919 = vunpack.c.l.b16 %v3886
        %v3920 = vunpack.c.l.b16 %v3887
        %v3921 = vunpack.c.l.b16 %v3888
        %v3922 = vpack.c.b16 %v3907, %v3906
        %v3923 = vpack.c.b16 %v3909, %v3908
        %v3924 = vpack.c.b16 %v3911, %v3910
        %v3925 = vpack.c.b16 %v3913, %v3912
        %v3926 = vpack.c.b16 %v3915, %v3914
        %v3927 = vpack.c.b16 %v3917, %v3916
        %v3928 = vpack.c.b16 %v3919, %v3918
        %v3929 = vpack.c.b16 %v3921, %v3920
        %3938 = vmatpush.bf16.msra.mxu0 %v3929
        %3939 = vmatpush.bf16.msra.mxu0 %v3928
        %3940 = vmatpush.bf16.msra.mxu0 %v3927
        %3941 = vmatpush.bf16.msra.mxu0 %v3926
        %3942 = vmatpush.bf16.msra.mxu0 %v3925
        %3943 = vmatpush.bf16.msra.mxu0 %v3924
        %3944 = vmatpush.bf16.msra.mxu0 %v3923
        %3945 = vmatpush.bf16.msra.mxu0 %v3922
        %3946 = vmatmul.bf16.gmra.mxu0 %v3889
        %v3947 = vpop.f32.mrf.mxu0
        %v3948 = vadd.f32 0.0, %v3947
        %v3949 = vpop.f32.mrf.mxu0
        %3950 = vdwg.mxu0
        %v3951 = vadd.f32 %v3870, %v3948
        %s3952 = scalar_lea.vmem [#allocation2], 51
        %v3953 = vld [vmem:[%s3952] ss:$2 sm:$0xf]
        %v3954 = vld [vmem:[%s3 + $0x100] sm:$0xf]
        %v3955 = vld [vmem:[%s3 + $0x104] sm:$0xf]
        %v3956 = vld [vmem:[%s3 + $0x108] sm:$0xf]
        %v3957 = vld [vmem:[%s3 + $0x10c] sm:$0xf]
        %v3958 = vld [vmem:[%s3 + $0x110] sm:$0xf]
        %v3959 = vld [vmem:[%s3 + $0x114] sm:$0xf]
        %v3960 = vld [vmem:[%s3 + $0x118] sm:$0xf]
        %v3961 = vld [vmem:[%s3 + $0x11c] sm:$0xf]
        %v3962 = vld [vmem:[%s3 + $0x120] sm:$0xf]
        %v3963 = vld [vmem:[%s3 + $0x124] sm:$0xf]
        %v3964 = vld [vmem:[%s3 + $0x128] sm:$0xf]
        %v3965 = vld [vmem:[%s3 + $0x12c] sm:$0xf]
        %v3966 = vld [vmem:[%s3 + $0x130] sm:$0xf]
        %v3967 = vld [vmem:[%s3 + $0x134] sm:$0xf]
        %v3968 = vld [vmem:[%s3 + $0x138] sm:$0xf]
        %v3969 = vld [vmem:[%s3 + $0x13c] sm:$0xf]
        %v3970 = vpack.c.bf16 %v3953, %v3953
        %v3987 = vunpack.c.l.b16 %v3954
        %v3988 = vunpack.c.l.b16 %v3955
        %v3989 = vunpack.c.l.b16 %v3956
        %v3990 = vunpack.c.l.b16 %v3957
        %v3991 = vunpack.c.l.b16 %v3958
        %v3992 = vunpack.c.l.b16 %v3959
        %v3993 = vunpack.c.l.b16 %v3960
        %v3994 = vunpack.c.l.b16 %v3961
        %v3995 = vunpack.c.l.b16 %v3962
        %v3996 = vunpack.c.l.b16 %v3963
        %v3997 = vunpack.c.l.b16 %v3964
        %v3998 = vunpack.c.l.b16 %v3965
        %v3999 = vunpack.c.l.b16 %v3966
        %v4000 = vunpack.c.l.b16 %v3967
        %v4001 = vunpack.c.l.b16 %v3968
        %v4002 = vunpack.c.l.b16 %v3969
        %v4003 = vpack.c.b16 %v3988, %v3987
        %v4004 = vpack.c.b16 %v3990, %v3989
        %v4005 = vpack.c.b16 %v3992, %v3991
        %v4006 = vpack.c.b16 %v3994, %v3993
        %v4007 = vpack.c.b16 %v3996, %v3995
        %v4008 = vpack.c.b16 %v3998, %v3997
        %v4009 = vpack.c.b16 %v4000, %v3999
        %v4010 = vpack.c.b16 %v4002, %v4001
        %4019 = vmatpush.bf16.msra.mxu0 %v4010
        %4020 = vmatpush.bf16.msra.mxu0 %v4009
        %4021 = vmatpush.bf16.msra.mxu0 %v4008
        %4022 = vmatpush.bf16.msra.mxu0 %v4007
        %4023 = vmatpush.bf16.msra.mxu0 %v4006
        %4024 = vmatpush.bf16.msra.mxu0 %v4005
        %4025 = vmatpush.bf16.msra.mxu0 %v4004
        %4026 = vmatpush.bf16.msra.mxu0 %v4003
        %4027 = vmatmul.bf16.gmra.mxu0 %v3970
        %v4028 = vpop.f32.mrf.mxu0
        %v4029 = vadd.f32 0.0, %v4028
        %v4030 = vpop.f32.mrf.mxu0
        %4031 = vdwg.mxu0
        %v4032 = vadd.f32 %v3951, %v4029
        %s4033 = scalar_lea.vmem [#allocation2], 52
        %v4034 = vld [vmem:[%s4033] ss:$2 sm:$0xf]
        %v4035 = vld [vmem:[%s3 + $0x140] sm:$0xf]
        %v4036 = vld [vmem:[%s3 + $0x144] sm:$0xf]
        %v4037 = vld [vmem:[%s3 + $0x148] sm:$0xf]
        %v4038 = vld [vmem:[%s3 + $0x14c] sm:$0xf]
        %v4039 = vld [vmem:[%s3 + $0x150] sm:$0xf]
        %v4040 = vld [vmem:[%s3 + $0x154] sm:$0xf]
        %v4041 = vld [vmem:[%s3 + $0x158] sm:$0xf]
        %v4042 = vld [vmem:[%s3 + $0x15c] sm:$0xf]
        %v4043 = vld [vmem:[%s3 + $0x160] sm:$0xf]
        %v4044 = vld [vmem:[%s3 + $0x164] sm:$0xf]
        %v4045 = vld [vmem:[%s3 + $0x168] sm:$0xf]
        %v4046 = vld [vmem:[%s3 + $0x16c] sm:$0xf]
        %v4047 = vld [vmem:[%s3 + $0x170] sm:$0xf]
        %v4048 = vld [vmem:[%s3 + $0x174] sm:$0xf]
        %v4049 = vld [vmem:[%s3 + $0x178] sm:$0xf]
        %v4050 = vld [vmem:[%s3 + $0x17c] sm:$0xf]
        %v4051 = vpack.c.bf16 %v4034, %v4034
        %v4068 = vunpack.c.l.b16 %v4035
        %v4069 = vunpack.c.l.b16 %v4036
        %v4070 = vunpack.c.l.b16 %v4037
        %v4071 = vunpack.c.l.b16 %v4038
        %v4072 = vunpack.c.l.b16 %v4039
        %v4073 = vunpack.c.l.b16 %v4040
        %v4074 = vunpack.c.l.b16 %v4041
        %v4075 = vunpack.c.l.b16 %v4042
        %v4076 = vunpack.c.l.b16 %v4043
        %v4077 = vunpack.c.l.b16 %v4044
        %v4078 = vunpack.c.l.b16 %v4045
        %v4079 = vunpack.c.l.b16 %v4046
        %v4080 = vunpack.c.l.b16 %v4047
        %v4081 = vunpack.c.l.b16 %v4048
        %v4082 = vunpack.c.l.b16 %v4049
        %v4083 = vunpack.c.l.b16 %v4050
        %v4084 = vpack.c.b16 %v4069, %v4068
        %v4085 = vpack.c.b16 %v4071, %v4070
        %v4086 = vpack.c.b16 %v4073, %v4072
        %v4087 = vpack.c.b16 %v4075, %v4074
        %v4088 = vpack.c.b16 %v4077, %v4076
        %v4089 = vpack.c.b16 %v4079, %v4078
        %v4090 = vpack.c.b16 %v4081, %v4080
        %v4091 = vpack.c.b16 %v4083, %v4082
        %4100 = vmatpush.bf16.msra.mxu0 %v4091
        %4101 = vmatpush.bf16.msra.mxu0 %v4090
        %4102 = vmatpush.bf16.msra.mxu0 %v4089
        %4103 = vmatpush.bf16.msra.mxu0 %v4088
        %4104 = vmatpush.bf16.msra.mxu0 %v4087
        %4105 = vmatpush.bf16.msra.mxu0 %v4086
        %4106 = vmatpush.bf16.msra.mxu0 %v4085
        %4107 = vmatpush.bf16.msra.mxu0 %v4084
        %4108 = vmatmul.bf16.gmra.mxu0 %v4051
        %v4109 = vpop.f32.mrf.mxu0
        %v4110 = vadd.f32 0.0, %v4109
        %v4111 = vpop.f32.mrf.mxu0
        %4112 = vdwg.mxu0
        %v4113 = vadd.f32 %v4032, %v4110
        %s4114 = scalar_lea.vmem [#allocation2], 60
        %v4115 = vld [vmem:[%s4114] ss:$2 sm:$0xf]
        %v4116 = vld [vmem:[%s3 + $0x180] sm:$0xf]
        %v4117 = vld [vmem:[%s3 + $0x184] sm:$0xf]
        %v4118 = vld [vmem:[%s3 + $0x188] sm:$0xf]
        %v4119 = vld [vmem:[%s3 + $0x18c] sm:$0xf]
        %v4120 = vld [vmem:[%s3 + $0x190] sm:$0xf]
        %v4121 = vld [vmem:[%s3 + $0x194] sm:$0xf]
        %v4122 = vld [vmem:[%s3 + $0x198] sm:$0xf]
        %v4123 = vld [vmem:[%s3 + $0x19c] sm:$0xf]
        %v4124 = vld [vmem:[%s3 + $0x1a0] sm:$0xf]
        %v4125 = vld [vmem:[%s3 + $0x1a4] sm:$0xf]
        %v4126 = vld [vmem:[%s3 + $0x1a8] sm:$0xf]
        %v4127 = vld [vmem:[%s3 + $0x1ac] sm:$0xf]
        %v4128 = vld [vmem:[%s3 + $0x1b0] sm:$0xf]
        %v4129 = vld [vmem:[%s3 + $0x1b4] sm:$0xf]
        %v4130 = vld [vmem:[%s3 + $0x1b8] sm:$0xf]
        %v4131 = vld [vmem:[%s3 + $0x1bc] sm:$0xf]
        %v4132 = vpack.c.bf16 %v4115, %v4115
        %v4149 = vunpack.c.l.b16 %v4116
        %v4150 = vunpack.c.l.b16 %v4117
        %v4151 = vunpack.c.l.b16 %v4118
        %v4152 = vunpack.c.l.b16 %v4119
        %v4153 = vunpack.c.l.b16 %v4120
        %v4154 = vunpack.c.l.b16 %v4121
        %v4155 = vunpack.c.l.b16 %v4122
        %v4156 = vunpack.c.l.b16 %v4123
        %v4157 = vunpack.c.l.b16 %v4124
        %v4158 = vunpack.c.l.b16 %v4125
        %v4159 = vunpack.c.l.b16 %v4126
        %v4160 = vunpack.c.l.b16 %v4127
        %v4161 = vunpack.c.l.b16 %v4128
        %v4162 = vunpack.c.l.b16 %v4129
        %v4163 = vunpack.c.l.b16 %v4130
        %v4164 = vunpack.c.l.b16 %v4131
        %v4165 = vpack.c.b16 %v4150, %v4149
        %v4166 = vpack.c.b16 %v4152, %v4151
        %v4167 = vpack.c.b16 %v4154, %v4153
        %v4168 = vpack.c.b16 %v4156, %v4155
        %v4169 = vpack.c.b16 %v4158, %v4157
        %v4170 = vpack.c.b16 %v4160, %v4159
        %v4171 = vpack.c.b16 %v4162, %v4161
        %v4172 = vpack.c.b16 %v4164, %v4163
        %4181 = vmatpush.bf16.msra.mxu0 %v4172
        %4182 = vmatpush.bf16.msra.mxu0 %v4171
        %4183 = vmatpush.bf16.msra.mxu0 %v4170
        %4184 = vmatpush.bf16.msra.mxu0 %v4169
        %4185 = vmatpush.bf16.msra.mxu0 %v4168
        %4186 = vmatpush.bf16.msra.mxu0 %v4167
        %4187 = vmatpush.bf16.msra.mxu0 %v4166
        %4188 = vmatpush.bf16.msra.mxu0 %v4165
        %4189 = vmatmul.bf16.gmra.mxu0 %v4132
        %v4190 = vpop.f32.mrf.mxu0
        %v4191 = vadd.f32 0.0, %v4190
        %v4192 = vpop.f32.mrf.mxu0
        %4193 = vdwg.mxu0
        %v4194 = vadd.f32 %v4113, %v4191
        %s4195 = scalar_lea.vmem [#allocation2], 61
        %v4196 = vld [vmem:[%s4195] ss:$2 sm:$0xf]
        %v4197 = vld [vmem:[%s3 + $0x1c0] sm:$0xf]
        %v4198 = vld [vmem:[%s3 + $0x1c4] sm:$0xf]
        %v4199 = vld [vmem:[%s3 + $0x1c8] sm:$0xf]
        %v4200 = vld [vmem:[%s3 + $0x1cc] sm:$0xf]
        %v4201 = vld [vmem:[%s3 + $0x1d0] sm:$0xf]
        %v4202 = vld [vmem:[%s3 + $0x1d4] sm:$0xf]
        %v4203 = vld [vmem:[%s3 + $0x1d8] sm:$0xf]
        %v4204 = vld [vmem:[%s3 + $0x1dc] sm:$0xf]
        %v4205 = vld [vmem:[%s3 + $0x1e0] sm:$0xf]
        %v4206 = vld [vmem:[%s3 + $0x1e4] sm:$0xf]
        %v4207 = vld [vmem:[%s3 + $0x1e8] sm:$0xf]
        %v4208 = vld [vmem:[%s3 + $0x1ec] sm:$0xf]
        %v4209 = vld [vmem:[%s3 + $0x1f0] sm:$0xf]
        %v4210 = vld [vmem:[%s3 + $0x1f4] sm:$0xf]
        %v4211 = vld [vmem:[%s3 + $0x1f8] sm:$0xf]
        %v4212 = vld [vmem:[%s3 + $0x1fc] sm:$0xf]
        %v4213 = vpack.c.bf16 %v4196, %v4196
        %v4230 = vunpack.c.l.b16 %v4197
        %v4231 = vunpack.c.l.b16 %v4198
        %v4232 = vunpack.c.l.b16 %v4199
        %v4233 = vunpack.c.l.b16 %v4200
        %v4234 = vunpack.c.l.b16 %v4201
        %v4235 = vunpack.c.l.b16 %v4202
        %v4236 = vunpack.c.l.b16 %v4203
        %v4237 = vunpack.c.l.b16 %v4204
        %v4238 = vunpack.c.l.b16 %v4205
        %v4239 = vunpack.c.l.b16 %v4206
        %v4240 = vunpack.c.l.b16 %v4207
        %v4241 = vunpack.c.l.b16 %v4208
        %v4242 = vunpack.c.l.b16 %v4209
        %v4243 = vunpack.c.l.b16 %v4210
        %v4244 = vunpack.c.l.b16 %v4211
        %v4245 = vunpack.c.l.b16 %v4212
        %v4246 = vpack.c.b16 %v4231, %v4230
        %v4247 = vpack.c.b16 %v4233, %v4232
        %v4248 = vpack.c.b16 %v4235, %v4234
        %v4249 = vpack.c.b16 %v4237, %v4236
        %v4250 = vpack.c.b16 %v4239, %v4238
        %v4251 = vpack.c.b16 %v4241, %v4240
        %v4252 = vpack.c.b16 %v4243, %v4242
        %v4253 = vpack.c.b16 %v4245, %v4244
        %4262 = vmatpush.bf16.msra.mxu0 %v4253
        %4263 = vmatpush.bf16.msra.mxu0 %v4252
        %4264 = vmatpush.bf16.msra.mxu0 %v4251
        %4265 = vmatpush.bf16.msra.mxu0 %v4250
        %4266 = vmatpush.bf16.msra.mxu0 %v4249
        %4267 = vmatpush.bf16.msra.mxu0 %v4248
        %4268 = vmatpush.bf16.msra.mxu0 %v4247
        %4269 = vmatpush.bf16.msra.mxu0 %v4246
        %4270 = vmatmul.bf16.gmra.mxu0 %v4213
        %v4271 = vpop.f32.mrf.mxu0
        %v4272 = vadd.f32 0.0, %v4271
        %v4273 = vpop.f32.mrf.mxu0
        %4274 = vdwg.mxu0
        %v4275 = vadd.f32 %v4194, %v4272
        %s4276 = scalar_lea.vmem [#allocation2], 62
        %v4277 = vld [vmem:[%s4276] ss:$2 sm:$0xf]
        %v4278 = vld [vmem:[%s3 + $0x200] sm:$0xf]
        %v4279 = vld [vmem:[%s3 + $0x204] sm:$0xf]
        %v4280 = vld [vmem:[%s3 + $0x208] sm:$0xf]
        %v4281 = vld [vmem:[%s3 + $0x20c] sm:$0xf]
        %v4282 = vld [vmem:[%s3 + $0x210] sm:$0xf]
        %v4283 = vld [vmem:[%s3 + $0x214] sm:$0xf]
        %v4284 = vld [vmem:[%s3 + $0x218] sm:$0xf]
        %v4285 = vld [vmem:[%s3 + $0x21c] sm:$0xf]
        %v4286 = vld [vmem:[%s3 + $0x220] sm:$0xf]
        %v4287 = vld [vmem:[%s3 + $0x224] sm:$0xf]
        %v4288 = vld [vmem:[%s3 + $0x228] sm:$0xf]
        %v4289 = vld [vmem:[%s3 + $0x22c] sm:$0xf]
        %v4290 = vld [vmem:[%s3 + $0x230] sm:$0xf]
        %v4291 = vld [vmem:[%s3 + $0x234] sm:$0xf]
        %v4292 = vld [vmem:[%s3 + $0x238] sm:$0xf]
        %v4293 = vld [vmem:[%s3 + $0x23c] sm:$0xf]
        %v4294 = vpack.c.bf16 %v4277, %v4277
        %v4311 = vunpack.c.l.b16 %v4278
        %v4312 = vunpack.c.l.b16 %v4279
        %v4313 = vunpack.c.l.b16 %v4280
        %v4314 = vunpack.c.l.b16 %v4281
        %v4315 = vunpack.c.l.b16 %v4282
        %v4316 = vunpack.c.l.b16 %v4283
        %v4317 = vunpack.c.l.b16 %v4284
        %v4318 = vunpack.c.l.b16 %v4285
        %v4319 = vunpack.c.l.b16 %v4286
        %v4320 = vunpack.c.l.b16 %v4287
        %v4321 = vunpack.c.l.b16 %v4288
        %v4322 = vunpack.c.l.b16 %v4289
        %v4323 = vunpack.c.l.b16 %v4290
        %v4324 = vunpack.c.l.b16 %v4291
        %v4325 = vunpack.c.l.b16 %v4292
        %v4326 = vunpack.c.l.b16 %v4293
        %v4327 = vpack.c.b16 %v4312, %v4311
        %v4328 = vpack.c.b16 %v4314, %v4313
        %v4329 = vpack.c.b16 %v4316, %v4315
        %v4330 = vpack.c.b16 %v4318, %v4317
        %v4331 = vpack.c.b16 %v4320, %v4319
        %v4332 = vpack.c.b16 %v4322, %v4321
        %v4333 = vpack.c.b16 %v4324, %v4323
        %v4334 = vpack.c.b16 %v4326, %v4325
        %4343 = vmatpush.bf16.msra.mxu0 %v4334
        %4344 = vmatpush.bf16.msra.mxu0 %v4333
        %4345 = vmatpush.bf16.msra.mxu0 %v4332
        %4346 = vmatpush.bf16.msra.mxu0 %v4331
        %4347 = vmatpush.bf16.msra.mxu0 %v4330
        %4348 = vmatpush.bf16.msra.mxu0 %v4329
        %4349 = vmatpush.bf16.msra.mxu0 %v4328
        %4350 = vmatpush.bf16.msra.mxu0 %v4327
        %4351 = vmatmul.bf16.gmra.mxu0 %v4294
        %v4352 = vpop.f32.mrf.mxu0
        %v4353 = vadd.f32 0.0, %v4352
        %v4354 = vpop.f32.mrf.mxu0
        %4355 = vdwg.mxu0
        %v4356 = vadd.f32 %v4275, %v4353
        %v4357 = vadd.f32 %v4356, %v2895
        %vm4358 = vcmp.ge.f32.partialorder %v4357, 0.0
        %v4359 = vmul.f32 %v4357, 0.01
        %v4360 = vsel %vm4358, %v4357, %v4359
        %v4361 = vadd.f32 %v4360, %v2900
        %4362 = vst [vmem:[#allocation3 + $0x13] sm:$0xf] %v4361
        %v4363 = vld [vmem:[%s4114] ss:$2 sm:$0xf]
        %v4364 = vld [vmem:[%s3] sm:$0xf]
        %v4365 = vld [vmem:[%s3 + $0x4] sm:$0xf]
        %v4366 = vld [vmem:[%s3 + $0x8] sm:$0xf]
        %v4367 = vld [vmem:[%s3 + $0xc] sm:$0xf]
        %v4368 = vld [vmem:[%s3 + $0x10] sm:$0xf]
        %v4369 = vld [vmem:[%s3 + $0x14] sm:$0xf]
        %v4370 = vld [vmem:[%s3 + $0x18] sm:$0xf]
        %v4371 = vld [vmem:[%s3 + $0x1c] sm:$0xf]
        %v4372 = vld [vmem:[%s3 + $0x20] sm:$0xf]
        %v4373 = vld [vmem:[%s3 + $0x24] sm:$0xf]
        %v4374 = vld [vmem:[%s3 + $0x28] sm:$0xf]
        %v4375 = vld [vmem:[%s3 + $0x2c] sm:$0xf]
        %v4376 = vld [vmem:[%s3 + $0x30] sm:$0xf]
        %v4377 = vld [vmem:[%s3 + $0x34] sm:$0xf]
        %v4378 = vld [vmem:[%s3 + $0x38] sm:$0xf]
        %v4379 = vld [vmem:[%s3 + $0x3c] sm:$0xf]
        %v4380 = vpack.c.bf16 %v4363, %v4363
        %v4381 = vld [vmem:[%s4195] ss:$2 sm:$0xf]
        %v4382 = vld [vmem:[%s3 + $0x40] sm:$0xf]
        %v4383 = vld [vmem:[%s3 + $0x44] sm:$0xf]
        %v4384 = vld [vmem:[%s3 + $0x48] sm:$0xf]
        %v4385 = vld [vmem:[%s3 + $0x4c] sm:$0xf]
        %v4386 = vld [vmem:[%s3 + $0x50] sm:$0xf]
        %v4387 = vld [vmem:[%s3 + $0x54] sm:$0xf]
        %v4388 = vld [vmem:[%s3 + $0x58] sm:$0xf]
        %v4389 = vld [vmem:[%s3 + $0x5c] sm:$0xf]
        %v4390 = vld [vmem:[%s3 + $0x60] sm:$0xf]
        %v4391 = vld [vmem:[%s3 + $0x64] sm:$0xf]
        %v4392 = vld [vmem:[%s3 + $0x68] sm:$0xf]
        %v4393 = vld [vmem:[%s3 + $0x6c] sm:$0xf]
        %v4394 = vld [vmem:[%s3 + $0x70] sm:$0xf]
        %v4395 = vld [vmem:[%s3 + $0x74] sm:$0xf]
        %v4396 = vld [vmem:[%s3 + $0x78] sm:$0xf]
        %v4397 = vld [vmem:[%s3 + $0x7c] sm:$0xf]
        %v4398 = vpack.c.bf16 %v4381, %v4381
        %v4415 = vunpack.c.l.b16 %v4382
        %v4416 = vunpack.c.l.b16 %v4383
        %v4417 = vunpack.c.l.b16 %v4384
        %v4418 = vunpack.c.l.b16 %v4385
        %v4419 = vunpack.c.l.b16 %v4386
        %v4420 = vunpack.c.l.b16 %v4387
        %v4421 = vunpack.c.l.b16 %v4388
        %v4422 = vunpack.c.l.b16 %v4389
        %v4423 = vunpack.c.l.b16 %v4390
        %v4424 = vunpack.c.l.b16 %v4391
        %v4425 = vunpack.c.l.b16 %v4392
        %v4426 = vunpack.c.l.b16 %v4393
        %v4427 = vunpack.c.l.b16 %v4394
        %v4428 = vunpack.c.l.b16 %v4395
        %v4429 = vunpack.c.l.b16 %v4396
        %v4430 = vunpack.c.l.b16 %v4397
        %v4431 = vpack.c.b16 %v4416, %v4415
        %v4432 = vpack.c.b16 %v4418, %v4417
        %v4433 = vpack.c.b16 %v4420, %v4419
        %v4434 = vpack.c.b16 %v4422, %v4421
        %v4435 = vpack.c.b16 %v4424, %v4423
        %v4436 = vpack.c.b16 %v4426, %v4425
        %v4437 = vpack.c.b16 %v4428, %v4427
        %v4438 = vpack.c.b16 %v4430, %v4429
        %4447 = vmatpush.bf16.msra.mxu0 %v4438
        %4448 = vmatpush.bf16.msra.mxu0 %v4437
        %4449 = vmatpush.bf16.msra.mxu0 %v4436
        %4450 = vmatpush.bf16.msra.mxu0 %v4435
        %4451 = vmatpush.bf16.msra.mxu0 %v4434
        %4452 = vmatpush.bf16.msra.mxu0 %v4433
        %4453 = vmatpush.bf16.msra.mxu0 %v4432
        %4454 = vmatpush.bf16.msra.mxu0 %v4431
        %4455 = vmatmul.bf16.gmra.mxu0 %v4398
        %v4456 = vpop.f32.mrf.mxu0
        %v4457 = vadd.f32 0.0, %v4456
        %v4458 = vpop.f32.mrf.mxu0
        %4459 = vdwg.mxu0
        %v4476 = vunpack.c.l.b16 %v4364
        %v4477 = vunpack.c.l.b16 %v4365
        %v4478 = vunpack.c.l.b16 %v4366
        %v4479 = vunpack.c.l.b16 %v4367
        %v4480 = vunpack.c.l.b16 %v4368
        %v4481 = vunpack.c.l.b16 %v4369
        %v4482 = vunpack.c.l.b16 %v4370
        %v4483 = vunpack.c.l.b16 %v4371
        %v4484 = vunpack.c.l.b16 %v4372
        %v4485 = vunpack.c.l.b16 %v4373
        %v4486 = vunpack.c.l.b16 %v4374
        %v4487 = vunpack.c.l.b16 %v4375
        %v4488 = vunpack.c.l.b16 %v4376
        %v4489 = vunpack.c.l.b16 %v4377
        %v4490 = vunpack.c.l.b16 %v4378
        %v4491 = vunpack.c.l.b16 %v4379
        %v4492 = vpack.c.b16 %v4477, %v4476
        %v4493 = vpack.c.b16 %v4479, %v4478
        %v4494 = vpack.c.b16 %v4481, %v4480
        %v4495 = vpack.c.b16 %v4483, %v4482
        %v4496 = vpack.c.b16 %v4485, %v4484
        %v4497 = vpack.c.b16 %v4487, %v4486
        %v4498 = vpack.c.b16 %v4489, %v4488
        %v4499 = vpack.c.b16 %v4491, %v4490
        %4508 = vmatpush.bf16.msra.mxu0 %v4499
        %4509 = vmatpush.bf16.msra.mxu0 %v4498
        %4510 = vmatpush.bf16.msra.mxu0 %v4497
        %4511 = vmatpush.bf16.msra.mxu0 %v4496
        %4512 = vmatpush.bf16.msra.mxu0 %v4495
        %4513 = vmatpush.bf16.msra.mxu0 %v4494
        %4514 = vmatpush.bf16.msra.mxu0 %v4493
        %4515 = vmatpush.bf16.msra.mxu0 %v4492
        %4516 = vmatmul.bf16.gmra.mxu0 %v4380
        %v4517 = vpop.f32.mrf.mxu0
        %v4518 = vadd.f32 %v4457, %v4517
        %v4519 = vpop.f32.mrf.mxu0
        %4520 = vdwg.mxu0
        %v4521 = vld [vmem:[%s4276] ss:$2 sm:$0xf]
        %v4522 = vld [vmem:[%s3 + $0x80] sm:$0xf]
        %v4523 = vld [vmem:[%s3 + $0x84] sm:$0xf]
        %v4524 = vld [vmem:[%s3 + $0x88] sm:$0xf]
        %v4525 = vld [vmem:[%s3 + $0x8c] sm:$0xf]
        %v4526 = vld [vmem:[%s3 + $0x90] sm:$0xf]
        %v4527 = vld [vmem:[%s3 + $0x94] sm:$0xf]
        %v4528 = vld [vmem:[%s3 + $0x98] sm:$0xf]
        %v4529 = vld [vmem:[%s3 + $0x9c] sm:$0xf]
        %v4530 = vld [vmem:[%s3 + $0xa0] sm:$0xf]
        %v4531 = vld [vmem:[%s3 + $0xa4] sm:$0xf]
        %v4532 = vld [vmem:[%s3 + $0xa8] sm:$0xf]
        %v4533 = vld [vmem:[%s3 + $0xac] sm:$0xf]
        %v4534 = vld [vmem:[%s3 + $0xb0] sm:$0xf]
        %v4535 = vld [vmem:[%s3 + $0xb4] sm:$0xf]
        %v4536 = vld [vmem:[%s3 + $0xb8] sm:$0xf]
        %v4537 = vld [vmem:[%s3 + $0xbc] sm:$0xf]
        %v4538 = vpack.c.bf16 %v4521, %v4521
        %v4555 = vunpack.c.l.b16 %v4522
        %v4556 = vunpack.c.l.b16 %v4523
        %v4557 = vunpack.c.l.b16 %v4524
        %v4558 = vunpack.c.l.b16 %v4525
        %v4559 = vunpack.c.l.b16 %v4526
        %v4560 = vunpack.c.l.b16 %v4527
        %v4561 = vunpack.c.l.b16 %v4528
        %v4562 = vunpack.c.l.b16 %v4529
        %v4563 = vunpack.c.l.b16 %v4530
        %v4564 = vunpack.c.l.b16 %v4531
        %v4565 = vunpack.c.l.b16 %v4532
        %v4566 = vunpack.c.l.b16 %v4533
        %v4567 = vunpack.c.l.b16 %v4534
        %v4568 = vunpack.c.l.b16 %v4535
        %v4569 = vunpack.c.l.b16 %v4536
        %v4570 = vunpack.c.l.b16 %v4537
        %v4571 = vpack.c.b16 %v4556, %v4555
        %v4572 = vpack.c.b16 %v4558, %v4557
        %v4573 = vpack.c.b16 %v4560, %v4559
        %v4574 = vpack.c.b16 %v4562, %v4561
        %v4575 = vpack.c.b16 %v4564, %v4563
        %v4576 = vpack.c.b16 %v4566, %v4565
        %v4577 = vpack.c.b16 %v4568, %v4567
        %v4578 = vpack.c.b16 %v4570, %v4569
        %4587 = vmatpush.bf16.msra.mxu0 %v4578
        %4588 = vmatpush.bf16.msra.mxu0 %v4577
        %4589 = vmatpush.bf16.msra.mxu0 %v4576
        %4590 = vmatpush.bf16.msra.mxu0 %v4575
        %4591 = vmatpush.bf16.msra.mxu0 %v4574
        %4592 = vmatpush.bf16.msra.mxu0 %v4573
        %4593 = vmatpush.bf16.msra.mxu0 %v4572
        %4594 = vmatpush.bf16.msra.mxu0 %v4571
        %4595 = vmatmul.bf16.gmra.mxu0 %v4538
        %v4596 = vpop.f32.mrf.mxu0
        %v4597 = vadd.f32 0.0, %v4596
        %v4598 = vpop.f32.mrf.mxu0
        %4599 = vdwg.mxu0
        %v4600 = vadd.f32 %v4518, %v4597
        %s4601 = scalar_lea.vmem [#allocation2], 70
        %v4602 = vld [vmem:[%s4601] ss:$2 sm:$0xf]
        %v4603 = vld [vmem:[%s3 + $0xc0] sm:$0xf]
        %v4604 = vld [vmem:[%s3 + $0xc4] sm:$0xf]
        %v4605 = vld [vmem:[%s3 + $0xc8] sm:$0xf]
        %v4606 = vld [vmem:[%s3 + $0xcc] sm:$0xf]
        %v4607 = vld [vmem:[%s3 + $0xd0] sm:$0xf]
        %v4608 = vld [vmem:[%s3 + $0xd4] sm:$0xf]
        %v4609 = vld [vmem:[%s3 + $0xd8] sm:$0xf]
        %v4610 = vld [vmem:[%s3 + $0xdc] sm:$0xf]
        %v4611 = vld [vmem:[%s3 + $0xe0] sm:$0xf]
        %v4612 = vld [vmem:[%s3 + $0xe4] sm:$0xf]
        %v4613 = vld [vmem:[%s3 + $0xe8] sm:$0xf]
        %v4614 = vld [vmem:[%s3 + $0xec] sm:$0xf]
        %v4615 = vld [vmem:[%s3 + $0xf0] sm:$0xf]
        %v4616 = vld [vmem:[%s3 + $0xf4] sm:$0xf]
        %v4617 = vld [vmem:[%s3 + $0xf8] sm:$0xf]
        %v4618 = vld [vmem:[%s3 + $0xfc] sm:$0xf]
        %v4619 = vpack.c.bf16 %v4602, %v4602
        %v4636 = vunpack.c.l.b16 %v4603
        %v4637 = vunpack.c.l.b16 %v4604
        %v4638 = vunpack.c.l.b16 %v4605
        %v4639 = vunpack.c.l.b16 %v4606
        %v4640 = vunpack.c.l.b16 %v4607
        %v4641 = vunpack.c.l.b16 %v4608
        %v4642 = vunpack.c.l.b16 %v4609
        %v4643 = vunpack.c.l.b16 %v4610
        %v4644 = vunpack.c.l.b16 %v4611
        %v4645 = vunpack.c.l.b16 %v4612
        %v4646 = vunpack.c.l.b16 %v4613
        %v4647 = vunpack.c.l.b16 %v4614
        %v4648 = vunpack.c.l.b16 %v4615
        %v4649 = vunpack.c.l.b16 %v4616
        %v4650 = vunpack.c.l.b16 %v4617
        %v4651 = vunpack.c.l.b16 %v4618
        %v4652 = vpack.c.b16 %v4637, %v4636
        %v4653 = vpack.c.b16 %v4639, %v4638
        %v4654 = vpack.c.b16 %v4641, %v4640
        %v4655 = vpack.c.b16 %v4643, %v4642
        %v4656 = vpack.c.b16 %v4645, %v4644
        %v4657 = vpack.c.b16 %v4647, %v4646
        %v4658 = vpack.c.b16 %v4649, %v4648
        %v4659 = vpack.c.b16 %v4651, %v4650
        %4668 = vmatpush.bf16.msra.mxu0 %v4659
        %4669 = vmatpush.bf16.msra.mxu0 %v4658
        %4670 = vmatpush.bf16.msra.mxu0 %v4657
        %4671 = vmatpush.bf16.msra.mxu0 %v4656
        %4672 = vmatpush.bf16.msra.mxu0 %v4655
        %4673 = vmatpush.bf16.msra.mxu0 %v4654
        %4674 = vmatpush.bf16.msra.mxu0 %v4653
        %4675 = vmatpush.bf16.msra.mxu0 %v4652
        %4676 = vmatmul.bf16.gmra.mxu0 %v4619
        %v4677 = vpop.f32.mrf.mxu0
        %v4678 = vadd.f32 0.0, %v4677
        %v4679 = vpop.f32.mrf.mxu0
        %4680 = vdwg.mxu0
        %v4681 = vadd.f32 %v4600, %v4678
        %s4682 = scalar_lea.vmem [#allocation2], 71
        %v4683 = vld [vmem:[%s4682] ss:$2 sm:$0xf]
        %v4684 = vld [vmem:[%s3 + $0x100] sm:$0xf]
        %v4685 = vld [vmem:[%s3 + $0x104] sm:$0xf]
        %v4686 = vld [vmem:[%s3 + $0x108] sm:$0xf]
        %v4687 = vld [vmem:[%s3 + $0x10c] sm:$0xf]
        %v4688 = vld [vmem:[%s3 + $0x110] sm:$0xf]
        %v4689 = vld [vmem:[%s3 + $0x114] sm:$0xf]
        %v4690 = vld [vmem:[%s3 + $0x118] sm:$0xf]
        %v4691 = vld [vmem:[%s3 + $0x11c] sm:$0xf]
        %v4692 = vld [vmem:[%s3 + $0x120] sm:$0xf]
        %v4693 = vld [vmem:[%s3 + $0x124] sm:$0xf]
        %v4694 = vld [vmem:[%s3 + $0x128] sm:$0xf]
        %v4695 = vld [vmem:[%s3 + $0x12c] sm:$0xf]
        %v4696 = vld [vmem:[%s3 + $0x130] sm:$0xf]
        %v4697 = vld [vmem:[%s3 + $0x134] sm:$0xf]
        %v4698 = vld [vmem:[%s3 + $0x138] sm:$0xf]
        %v4699 = vld [vmem:[%s3 + $0x13c] sm:$0xf]
        %v4700 = vpack.c.bf16 %v4683, %v4683
        %v4717 = vunpack.c.l.b16 %v4684
        %v4718 = vunpack.c.l.b16 %v4685
        %v4719 = vunpack.c.l.b16 %v4686
        %v4720 = vunpack.c.l.b16 %v4687
        %v4721 = vunpack.c.l.b16 %v4688
        %v4722 = vunpack.c.l.b16 %v4689
        %v4723 = vunpack.c.l.b16 %v4690
        %v4724 = vunpack.c.l.b16 %v4691
        %v4725 = vunpack.c.l.b16 %v4692
        %v4726 = vunpack.c.l.b16 %v4693
        %v4727 = vunpack.c.l.b16 %v4694
        %v4728 = vunpack.c.l.b16 %v4695
        %v4729 = vunpack.c.l.b16 %v4696
        %v4730 = vunpack.c.l.b16 %v4697
        %v4731 = vunpack.c.l.b16 %v4698
        %v4732 = vunpack.c.l.b16 %v4699
        %v4733 = vpack.c.b16 %v4718, %v4717
        %v4734 = vpack.c.b16 %v4720, %v4719
        %v4735 = vpack.c.b16 %v4722, %v4721
        %v4736 = vpack.c.b16 %v4724, %v4723
        %v4737 = vpack.c.b16 %v4726, %v4725
        %v4738 = vpack.c.b16 %v4728, %v4727
        %v4739 = vpack.c.b16 %v4730, %v4729
        %v4740 = vpack.c.b16 %v4732, %v4731
        %4749 = vmatpush.bf16.msra.mxu0 %v4740
        %4750 = vmatpush.bf16.msra.mxu0 %v4739
        %4751 = vmatpush.bf16.msra.mxu0 %v4738
        %4752 = vmatpush.bf16.msra.mxu0 %v4737
        %4753 = vmatpush.bf16.msra.mxu0 %v4736
        %4754 = vmatpush.bf16.msra.mxu0 %v4735
        %4755 = vmatpush.bf16.msra.mxu0 %v4734
        %4756 = vmatpush.bf16.msra.mxu0 %v4733
        %4757 = vmatmul.bf16.gmra.mxu0 %v4700
        %v4758 = vpop.f32.mrf.mxu0
        %v4759 = vadd.f32 0.0, %v4758
        %v4760 = vpop.f32.mrf.mxu0
        %4761 = vdwg.mxu0
        %v4762 = vadd.f32 %v4681, %v4759
        %s4763 = scalar_lea.vmem [#allocation2], 72
        %v4764 = vld [vmem:[%s4763] ss:$2 sm:$0xf]
        %v4765 = vld [vmem:[%s3 + $0x140] sm:$0xf]
        %v4766 = vld [vmem:[%s3 + $0x144] sm:$0xf]
        %v4767 = vld [vmem:[%s3 + $0x148] sm:$0xf]
        %v4768 = vld [vmem:[%s3 + $0x14c] sm:$0xf]
        %v4769 = vld [vmem:[%s3 + $0x150] sm:$0xf]
        %v4770 = vld [vmem:[%s3 + $0x154] sm:$0xf]
        %v4771 = vld [vmem:[%s3 + $0x158] sm:$0xf]
        %v4772 = vld [vmem:[%s3 + $0x15c] sm:$0xf]
        %v4773 = vld [vmem:[%s3 + $0x160] sm:$0xf]
        %v4774 = vld [vmem:[%s3 + $0x164] sm:$0xf]
        %v4775 = vld [vmem:[%s3 + $0x168] sm:$0xf]
        %v4776 = vld [vmem:[%s3 + $0x16c] sm:$0xf]
        %v4777 = vld [vmem:[%s3 + $0x170] sm:$0xf]
        %v4778 = vld [vmem:[%s3 + $0x174] sm:$0xf]
        %v4779 = vld [vmem:[%s3 + $0x178] sm:$0xf]
        %v4780 = vld [vmem:[%s3 + $0x17c] sm:$0xf]
        %v4781 = vpack.c.bf16 %v4764, %v4764
        %v4798 = vunpack.c.l.b16 %v4765
        %v4799 = vunpack.c.l.b16 %v4766
        %v4800 = vunpack.c.l.b16 %v4767
        %v4801 = vunpack.c.l.b16 %v4768
        %v4802 = vunpack.c.l.b16 %v4769
        %v4803 = vunpack.c.l.b16 %v4770
        %v4804 = vunpack.c.l.b16 %v4771
        %v4805 = vunpack.c.l.b16 %v4772
        %v4806 = vunpack.c.l.b16 %v4773
        %v4807 = vunpack.c.l.b16 %v4774
        %v4808 = vunpack.c.l.b16 %v4775
        %v4809 = vunpack.c.l.b16 %v4776
        %v4810 = vunpack.c.l.b16 %v4777
        %v4811 = vunpack.c.l.b16 %v4778
        %v4812 = vunpack.c.l.b16 %v4779
        %v4813 = vunpack.c.l.b16 %v4780
        %v4814 = vpack.c.b16 %v4799, %v4798
        %v4815 = vpack.c.b16 %v4801, %v4800
        %v4816 = vpack.c.b16 %v4803, %v4802
        %v4817 = vpack.c.b16 %v4805, %v4804
        %v4818 = vpack.c.b16 %v4807, %v4806
        %v4819 = vpack.c.b16 %v4809, %v4808
        %v4820 = vpack.c.b16 %v4811, %v4810
        %v4821 = vpack.c.b16 %v4813, %v4812
        %4830 = vmatpush.bf16.msra.mxu0 %v4821
        %4831 = vmatpush.bf16.msra.mxu0 %v4820
        %4832 = vmatpush.bf16.msra.mxu0 %v4819
        %4833 = vmatpush.bf16.msra.mxu0 %v4818
        %4834 = vmatpush.bf16.msra.mxu0 %v4817
        %4835 = vmatpush.bf16.msra.mxu0 %v4816
        %4836 = vmatpush.bf16.msra.mxu0 %v4815
        %4837 = vmatpush.bf16.msra.mxu0 %v4814
        %4838 = vmatmul.bf16.gmra.mxu0 %v4781
        %v4839 = vpop.f32.mrf.mxu0
        %v4840 = vadd.f32 0.0, %v4839
        %v4841 = vpop.f32.mrf.mxu0
        %4842 = vdwg.mxu0
        %v4843 = vadd.f32 %v4762, %v4840
        %s4844 = scalar_lea.vmem [#allocation2], 80
        %v4845 = vld [vmem:[%s4844] ss:$2 sm:$0xf]
        %v4846 = vld [vmem:[%s3 + $0x180] sm:$0xf]
        %v4847 = vld [vmem:[%s3 + $0x184] sm:$0xf]
        %v4848 = vld [vmem:[%s3 + $0x188] sm:$0xf]
        %v4849 = vld [vmem:[%s3 + $0x18c] sm:$0xf]
        %v4850 = vld [vmem:[%s3 + $0x190] sm:$0xf]
        %v4851 = vld [vmem:[%s3 + $0x194] sm:$0xf]
        %v4852 = vld [vmem:[%s3 + $0x198] sm:$0xf]
        %v4853 = vld [vmem:[%s3 + $0x19c] sm:$0xf]
        %v4854 = vld [vmem:[%s3 + $0x1a0] sm:$0xf]
        %v4855 = vld [vmem:[%s3 + $0x1a4] sm:$0xf]
        %v4856 = vld [vmem:[%s3 + $0x1a8] sm:$0xf]
        %v4857 = vld [vmem:[%s3 + $0x1ac] sm:$0xf]
        %v4858 = vld [vmem:[%s3 + $0x1b0] sm:$0xf]
        %v4859 = vld [vmem:[%s3 + $0x1b4] sm:$0xf]
        %v4860 = vld [vmem:[%s3 + $0x1b8] sm:$0xf]
        %v4861 = vld [vmem:[%s3 + $0x1bc] sm:$0xf]
        %v4862 = vpack.c.bf16 %v4845, %v4845
        %v4879 = vunpack.c.l.b16 %v4846
        %v4880 = vunpack.c.l.b16 %v4847
        %v4881 = vunpack.c.l.b16 %v4848
        %v4882 = vunpack.c.l.b16 %v4849
        %v4883 = vunpack.c.l.b16 %v4850
        %v4884 = vunpack.c.l.b16 %v4851
        %v4885 = vunpack.c.l.b16 %v4852
        %v4886 = vunpack.c.l.b16 %v4853
        %v4887 = vunpack.c.l.b16 %v4854
        %v4888 = vunpack.c.l.b16 %v4855
        %v4889 = vunpack.c.l.b16 %v4856
        %v4890 = vunpack.c.l.b16 %v4857
        %v4891 = vunpack.c.l.b16 %v4858
        %v4892 = vunpack.c.l.b16 %v4859
        %v4893 = vunpack.c.l.b16 %v4860
        %v4894 = vunpack.c.l.b16 %v4861
        %v4895 = vpack.c.b16 %v4880, %v4879
        %v4896 = vpack.c.b16 %v4882, %v4881
        %v4897 = vpack.c.b16 %v4884, %v4883
        %v4898 = vpack.c.b16 %v4886, %v4885
        %v4899 = vpack.c.b16 %v4888, %v4887
        %v4900 = vpack.c.b16 %v4890, %v4889
        %v4901 = vpack.c.b16 %v4892, %v4891
        %v4902 = vpack.c.b16 %v4894, %v4893
        %4911 = vmatpush.bf16.msra.mxu0 %v4902
        %4912 = vmatpush.bf16.msra.mxu0 %v4901
        %4913 = vmatpush.bf16.msra.mxu0 %v4900
        %4914 = vmatpush.bf16.msra.mxu0 %v4899
        %4915 = vmatpush.bf16.msra.mxu0 %v4898
        %4916 = vmatpush.bf16.msra.mxu0 %v4897
        %4917 = vmatpush.bf16.msra.mxu0 %v4896
        %4918 = vmatpush.bf16.msra.mxu0 %v4895
        %4919 = vmatmul.bf16.gmra.mxu0 %v4862
        %v4920 = vpop.f32.mrf.mxu0
        %v4921 = vadd.f32 0.0, %v4920
        %v4922 = vpop.f32.mrf.mxu0
        %4923 = vdwg.mxu0
        %v4924 = vadd.f32 %v4843, %v4921
        %s4925 = scalar_lea.vmem [#allocation2], 81
        %v4926 = vld [vmem:[%s4925] ss:$2 sm:$0xf]
        %v4927 = vld [vmem:[%s3 + $0x1c0] sm:$0xf]
        %v4928 = vld [vmem:[%s3 + $0x1c4] sm:$0xf]
        %v4929 = vld [vmem:[%s3 + $0x1c8] sm:$0xf]
        %v4930 = vld [vmem:[%s3 + $0x1cc] sm:$0xf]
        %v4931 = vld [vmem:[%s3 + $0x1d0] sm:$0xf]
        %v4932 = vld [vmem:[%s3 + $0x1d4] sm:$0xf]
        %v4933 = vld [vmem:[%s3 + $0x1d8] sm:$0xf]
        %v4934 = vld [vmem:[%s3 + $0x1dc] sm:$0xf]
        %v4935 = vld [vmem:[%s3 + $0x1e0] sm:$0xf]
        %v4936 = vld [vmem:[%s3 + $0x1e4] sm:$0xf]
        %v4937 = vld [vmem:[%s3 + $0x1e8] sm:$0xf]
        %v4938 = vld [vmem:[%s3 + $0x1ec] sm:$0xf]
        %v4939 = vld [vmem:[%s3 + $0x1f0] sm:$0xf]
        %v4940 = vld [vmem:[%s3 + $0x1f4] sm:$0xf]
        %v4941 = vld [vmem:[%s3 + $0x1f8] sm:$0xf]
        %v4942 = vld [vmem:[%s3 + $0x1fc] sm:$0xf]
        %v4943 = vpack.c.bf16 %v4926, %v4926
        %v4960 = vunpack.c.l.b16 %v4927
        %v4961 = vunpack.c.l.b16 %v4928
        %v4962 = vunpack.c.l.b16 %v4929
        %v4963 = vunpack.c.l.b16 %v4930
        %v4964 = vunpack.c.l.b16 %v4931
        %v4965 = vunpack.c.l.b16 %v4932
        %v4966 = vunpack.c.l.b16 %v4933
        %v4967 = vunpack.c.l.b16 %v4934
        %v4968 = vunpack.c.l.b16 %v4935
        %v4969 = vunpack.c.l.b16 %v4936
        %v4970 = vunpack.c.l.b16 %v4937
        %v4971 = vunpack.c.l.b16 %v4938
        %v4972 = vunpack.c.l.b16 %v4939
        %v4973 = vunpack.c.l.b16 %v4940
        %v4974 = vunpack.c.l.b16 %v4941
        %v4975 = vunpack.c.l.b16 %v4942
        %v4976 = vpack.c.b16 %v4961, %v4960
        %v4977 = vpack.c.b16 %v4963, %v4962
        %v4978 = vpack.c.b16 %v4965, %v4964
        %v4979 = vpack.c.b16 %v4967, %v4966
        %v4980 = vpack.c.b16 %v4969, %v4968
        %v4981 = vpack.c.b16 %v4971, %v4970
        %v4982 = vpack.c.b16 %v4973, %v4972
        %v4983 = vpack.c.b16 %v4975, %v4974
        %4992 = vmatpush.bf16.msra.mxu0 %v4983
        %4993 = vmatpush.bf16.msra.mxu0 %v4982
        %4994 = vmatpush.bf16.msra.mxu0 %v4981
        %4995 = vmatpush.bf16.msra.mxu0 %v4980
        %4996 = vmatpush.bf16.msra.mxu0 %v4979
        %4997 = vmatpush.bf16.msra.mxu0 %v4978
        %4998 = vmatpush.bf16.msra.mxu0 %v4977
        %4999 = vmatpush.bf16.msra.mxu0 %v4976
        %5000 = vmatmul.bf16.gmra.mxu0 %v4943
        %v5001 = vpop.f32.mrf.mxu0
        %v5002 = vadd.f32 0.0, %v5001
        %v5003 = vpop.f32.mrf.mxu0
        %5004 = vdwg.mxu0
        %v5005 = vadd.f32 %v4924, %v5002
        %s5006 = scalar_lea.vmem [#allocation2], 82
        %v5007 = vld [vmem:[%s5006] ss:$2 sm:$0xf]
        %v5008 = vld [vmem:[%s3 + $0x200] sm:$0xf]
        %v5009 = vld [vmem:[%s3 + $0x204] sm:$0xf]
        %v5010 = vld [vmem:[%s3 + $0x208] sm:$0xf]
        %v5011 = vld [vmem:[%s3 + $0x20c] sm:$0xf]
        %v5012 = vld [vmem:[%s3 + $0x210] sm:$0xf]
        %v5013 = vld [vmem:[%s3 + $0x214] sm:$0xf]
        %v5014 = vld [vmem:[%s3 + $0x218] sm:$0xf]
        %v5015 = vld [vmem:[%s3 + $0x21c] sm:$0xf]
        %v5016 = vld [vmem:[%s3 + $0x220] sm:$0xf]
        %v5017 = vld [vmem:[%s3 + $0x224] sm:$0xf]
        %v5018 = vld [vmem:[%s3 + $0x228] sm:$0xf]
        %v5019 = vld [vmem:[%s3 + $0x22c] sm:$0xf]
        %v5020 = vld [vmem:[%s3 + $0x230] sm:$0xf]
        %v5021 = vld [vmem:[%s3 + $0x234] sm:$0xf]
        %v5022 = vld [vmem:[%s3 + $0x238] sm:$0xf]
        %v5023 = vld [vmem:[%s3 + $0x23c] sm:$0xf]
        %v5024 = vpack.c.bf16 %v5007, %v5007
        %v5041 = vunpack.c.l.b16 %v5008
        %v5042 = vunpack.c.l.b16 %v5009
        %v5043 = vunpack.c.l.b16 %v5010
        %v5044 = vunpack.c.l.b16 %v5011
        %v5045 = vunpack.c.l.b16 %v5012
        %v5046 = vunpack.c.l.b16 %v5013
        %v5047 = vunpack.c.l.b16 %v5014
        %v5048 = vunpack.c.l.b16 %v5015
        %v5049 = vunpack.c.l.b16 %v5016
        %v5050 = vunpack.c.l.b16 %v5017
        %v5051 = vunpack.c.l.b16 %v5018
        %v5052 = vunpack.c.l.b16 %v5019
        %v5053 = vunpack.c.l.b16 %v5020
        %v5054 = vunpack.c.l.b16 %v5021
        %v5055 = vunpack.c.l.b16 %v5022
        %v5056 = vunpack.c.l.b16 %v5023
        %v5057 = vpack.c.b16 %v5042, %v5041
        %v5058 = vpack.c.b16 %v5044, %v5043
        %v5059 = vpack.c.b16 %v5046, %v5045
        %v5060 = vpack.c.b16 %v5048, %v5047
        %v5061 = vpack.c.b16 %v5050, %v5049
        %v5062 = vpack.c.b16 %v5052, %v5051
        %v5063 = vpack.c.b16 %v5054, %v5053
        %v5064 = vpack.c.b16 %v5056, %v5055
        %5073 = vmatpush.bf16.msra.mxu0 %v5064
        %5074 = vmatpush.bf16.msra.mxu0 %v5063
        %5075 = vmatpush.bf16.msra.mxu0 %v5062
        %5076 = vmatpush.bf16.msra.mxu0 %v5061
        %5077 = vmatpush.bf16.msra.mxu0 %v5060
        %5078 = vmatpush.bf16.msra.mxu0 %v5059
        %5079 = vmatpush.bf16.msra.mxu0 %v5058
        %5080 = vmatpush.bf16.msra.mxu0 %v5057
        %5081 = vmatmul.bf16.gmra.mxu0 %v5024
        %v5082 = vpop.f32.mrf.mxu0
        %v5083 = vadd.f32 0.0, %v5082
        %v5084 = vpop.f32.mrf.mxu0
        %5085 = vdwg.mxu0
        %v5086 = vadd.f32 %v5005, %v5083
        %v5087 = vadd.f32 %v5086, %v2895
        %vm5088 = vcmp.ge.f32.partialorder %v5087, 0.0
        %v5089 = vmul.f32 %v5087, 0.01
        %v5090 = vsel %vm5088, %v5087, %v5089
        %v5091 = vadd.f32 %v5090, %v2900
        %5092 = vst [vmem:[#allocation3 + $0x19] sm:$0xf] %v5091
        %v5093 = vld [vmem:[%s6] sm:$0x1]
        %v5094 = vld [vmem:[%s6 + $0x1] sm:$0x1]
        %v5095 = vld [vmem:[#allocation3] ss:$2 sm:$0x3]
        %v5096 = vld [vmem:[%s5] sm:$0xf]
        %v5097 = vld [vmem:[%s5 + $0x4] sm:$0xf]
        %v5098 = vld [vmem:[%s5 + $0x8] sm:$0xf]
        %v5099 = vld [vmem:[%s5 + $0xc] sm:$0xf]
        %v5100 = vld [vmem:[%s5 + $0x10] sm:$0xf]
        %v5101 = vld [vmem:[%s5 + $0x14] sm:$0xf]
        %v5102 = vld [vmem:[%s5 + $0x18] sm:$0xf]
        %v5103 = vld [vmem:[%s5 + $0x1c] sm:$0xf]
        %v5104 = vld [vmem:[%s5 + $0x20] sm:$0xf]
        %v5105 = vld [vmem:[%s5 + $0x24] sm:$0xf]
        %v5106 = vld [vmem:[%s5 + $0x28] sm:$0xf]
        %v5107 = vld [vmem:[%s5 + $0x2c] sm:$0xf]
        %v5108 = vld [vmem:[%s5 + $0x30] sm:$0xf]
        %v5109 = vld [vmem:[%s5 + $0x34] sm:$0xf]
        %v5110 = vld [vmem:[%s5 + $0x38] sm:$0xf]
        %v5111 = vld [vmem:[%s5 + $0x3c] sm:$0xf]
        %v5112 = vpack.c.bf16 %v5095, %v5095
        %s5113 = scalar_lea.vmem [#allocation3], 1
        %v5114 = vld [vmem:[%s5113] ss:$2 sm:$0x3]
        %v5115 = vld [vmem:[%s5 + $0x40] sm:$0xf]
        %v5116 = vld [vmem:[%s5 + $0x44] sm:$0xf]
        %v5117 = vld [vmem:[%s5 + $0x48] sm:$0xf]
        %v5118 = vld [vmem:[%s5 + $0x4c] sm:$0xf]
        %v5119 = vld [vmem:[%s5 + $0x50] sm:$0xf]
        %v5120 = vld [vmem:[%s5 + $0x54] sm:$0xf]
        %v5121 = vld [vmem:[%s5 + $0x58] sm:$0xf]
        %v5122 = vld [vmem:[%s5 + $0x5c] sm:$0xf]
        %v5123 = vld [vmem:[%s5 + $0x60] sm:$0xf]
        %v5124 = vld [vmem:[%s5 + $0x64] sm:$0xf]
        %v5125 = vld [vmem:[%s5 + $0x68] sm:$0xf]
        %v5126 = vld [vmem:[%s5 + $0x6c] sm:$0xf]
        %v5127 = vld [vmem:[%s5 + $0x70] sm:$0xf]
        %v5128 = vld [vmem:[%s5 + $0x74] sm:$0xf]
        %v5129 = vld [vmem:[%s5 + $0x78] sm:$0xf]
        %v5130 = vld [vmem:[%s5 + $0x7c] sm:$0xf]
        %v5131 = vpack.c.bf16 %v5114, %v5114
        %v5148 = vunpack.c.l.b16 %v5115
        %v5149 = vunpack.c.l.b16 %v5116
        %v5150 = vunpack.c.l.b16 %v5117
        %v5151 = vunpack.c.l.b16 %v5118
        %v5152 = vunpack.c.l.b16 %v5119
        %v5153 = vunpack.c.l.b16 %v5120
        %v5154 = vunpack.c.l.b16 %v5121
        %v5155 = vunpack.c.l.b16 %v5122
        %v5156 = vunpack.c.l.b16 %v5123
        %v5157 = vunpack.c.l.b16 %v5124
        %v5158 = vunpack.c.l.b16 %v5125
        %v5159 = vunpack.c.l.b16 %v5126
        %v5160 = vunpack.c.l.b16 %v5127
        %v5161 = vunpack.c.l.b16 %v5128
        %v5162 = vunpack.c.l.b16 %v5129
        %v5163 = vunpack.c.l.b16 %v5130
        %v5164 = vpack.c.b16 %v5149, %v5148
        %v5165 = vpack.c.b16 %v5151, %v5150
        %v5166 = vpack.c.b16 %v5153, %v5152
        %v5167 = vpack.c.b16 %v5155, %v5154
        %v5168 = vpack.c.b16 %v5157, %v5156
        %v5169 = vpack.c.b16 %v5159, %v5158
        %v5170 = vpack.c.b16 %v5161, %v5160
        %v5171 = vpack.c.b16 %v5163, %v5162
        %5180 = vmatpush.bf16.msra.mxu0 %v5171
        %5181 = vmatpush.bf16.msra.mxu0 %v5170
        %5182 = vmatpush.bf16.msra.mxu0 %v5169
        %5183 = vmatpush.bf16.msra.mxu0 %v5168
        %5184 = vmatpush.bf16.msra.mxu0 %v5167
        %5185 = vmatpush.bf16.msra.mxu0 %v5166
        %5186 = vmatpush.bf16.msra.mxu0 %v5165
        %5187 = vmatpush.bf16.msra.mxu0 %v5164
        %5188 = vmatmul.bf16.gmra.mxu0 %v5131
        %v5189 = vpop.f32.mrf.mxu0
        %v5190 = vadd.f32 0.0, %v5189
        %v5191 = vpop.f32.mrf.mxu0
        %5192 = vdwg.mxu0
        %v5209 = vunpack.c.l.b16 %v5096
        %v5210 = vunpack.c.l.b16 %v5097
        %v5211 = vunpack.c.l.b16 %v5098
        %v5212 = vunpack.c.l.b16 %v5099
        %v5213 = vunpack.c.l.b16 %v5100
        %v5214 = vunpack.c.l.b16 %v5101
        %v5215 = vunpack.c.l.b16 %v5102
        %v5216 = vunpack.c.l.b16 %v5103
        %v5217 = vunpack.c.l.b16 %v5104
        %v5218 = vunpack.c.l.b16 %v5105
        %v5219 = vunpack.c.l.b16 %v5106
        %v5220 = vunpack.c.l.b16 %v5107
        %v5221 = vunpack.c.l.b16 %v5108
        %v5222 = vunpack.c.l.b16 %v5109
        %v5223 = vunpack.c.l.b16 %v5110
        %v5224 = vunpack.c.l.b16 %v5111
        %v5225 = vpack.c.b16 %v5210, %v5209
        %v5226 = vpack.c.b16 %v5212, %v5211
        %v5227 = vpack.c.b16 %v5214, %v5213
        %v5228 = vpack.c.b16 %v5216, %v5215
        %v5229 = vpack.c.b16 %v5218, %v5217
        %v5230 = vpack.c.b16 %v5220, %v5219
        %v5231 = vpack.c.b16 %v5222, %v5221
        %v5232 = vpack.c.b16 %v5224, %v5223
        %5241 = vmatpush.bf16.msra.mxu0 %v5232
        %5242 = vmatpush.bf16.msra.mxu0 %v5231
        %5243 = vmatpush.bf16.msra.mxu0 %v5230
        %5244 = vmatpush.bf16.msra.mxu0 %v5229
        %5245 = vmatpush.bf16.msra.mxu0 %v5228
        %5246 = vmatpush.bf16.msra.mxu0 %v5227
        %5247 = vmatpush.bf16.msra.mxu0 %v5226
        %5248 = vmatpush.bf16.msra.mxu0 %v5225
        %5249 = vmatmul.bf16.gmra.mxu0 %v5112
        %v5250 = vpop.f32.mrf.mxu0
        %v5251 = vadd.f32 %v5190, %v5250
        %v5252 = vpop.f32.mrf.mxu0
        %5253 = vdwg.mxu0
        %s5254 = scalar_lea.vmem [#allocation3], 2
        %v5255 = vld [vmem:[%s5254] ss:$2 sm:$0x3]
        %v5256 = vld [vmem:[%s5 + $0x80] sm:$0xf]
        %v5257 = vld [vmem:[%s5 + $0x84] sm:$0xf]
        %v5258 = vld [vmem:[%s5 + $0x88] sm:$0xf]
        %v5259 = vld [vmem:[%s5 + $0x8c] sm:$0xf]
        %v5260 = vld [vmem:[%s5 + $0x90] sm:$0xf]
        %v5261 = vld [vmem:[%s5 + $0x94] sm:$0xf]
        %v5262 = vld [vmem:[%s5 + $0x98] sm:$0xf]
        %v5263 = vld [vmem:[%s5 + $0x9c] sm:$0xf]
        %v5264 = vld [vmem:[%s5 + $0xa0] sm:$0xf]
        %v5265 = vld [vmem:[%s5 + $0xa4] sm:$0xf]
        %v5266 = vld [vmem:[%s5 + $0xa8] sm:$0xf]
        %v5267 = vld [vmem:[%s5 + $0xac] sm:$0xf]
        %v5268 = vld [vmem:[%s5 + $0xb0] sm:$0xf]
        %v5269 = vld [vmem:[%s5 + $0xb4] sm:$0xf]
        %v5270 = vld [vmem:[%s5 + $0xb8] sm:$0xf]
        %v5271 = vld [vmem:[%s5 + $0xbc] sm:$0xf]
        %v5272 = vpack.c.bf16 %v5255, %v5255
        %v5289 = vunpack.c.l.b16 %v5256
        %v5290 = vunpack.c.l.b16 %v5257
        %v5291 = vunpack.c.l.b16 %v5258
        %v5292 = vunpack.c.l.b16 %v5259
        %v5293 = vunpack.c.l.b16 %v5260
        %v5294 = vunpack.c.l.b16 %v5261
        %v5295 = vunpack.c.l.b16 %v5262
        %v5296 = vunpack.c.l.b16 %v5263
        %v5297 = vunpack.c.l.b16 %v5264
        %v5298 = vunpack.c.l.b16 %v5265
        %v5299 = vunpack.c.l.b16 %v5266
        %v5300 = vunpack.c.l.b16 %v5267
        %v5301 = vunpack.c.l.b16 %v5268
        %v5302 = vunpack.c.l.b16 %v5269
        %v5303 = vunpack.c.l.b16 %v5270
        %v5304 = vunpack.c.l.b16 %v5271
        %v5305 = vpack.c.b16 %v5290, %v5289
        %v5306 = vpack.c.b16 %v5292, %v5291
        %v5307 = vpack.c.b16 %v5294, %v5293
        %v5308 = vpack.c.b16 %v5296, %v5295
        %v5309 = vpack.c.b16 %v5298, %v5297
        %v5310 = vpack.c.b16 %v5300, %v5299
        %v5311 = vpack.c.b16 %v5302, %v5301
        %v5312 = vpack.c.b16 %v5304, %v5303
        %5321 = vmatpush.bf16.msra.mxu0 %v5312
        %5322 = vmatpush.bf16.msra.mxu0 %v5311
        %5323 = vmatpush.bf16.msra.mxu0 %v5310
        %5324 = vmatpush.bf16.msra.mxu0 %v5309
        %5325 = vmatpush.bf16.msra.mxu0 %v5308
        %5326 = vmatpush.bf16.msra.mxu0 %v5307
        %5327 = vmatpush.bf16.msra.mxu0 %v5306
        %5328 = vmatpush.bf16.msra.mxu0 %v5305
        %5329 = vmatmul.bf16.gmra.mxu0 %v5272
        %v5330 = vpop.f32.mrf.mxu0
        %v5331 = vadd.f32 0.0, %v5330
        %v5332 = vpop.f32.mrf.mxu0
        %5333 = vdwg.mxu0
        %v5334 = vadd.f32 %v5251, %v5331
        %s5335 = scalar_lea.vmem [#allocation3], 6
        %v5336 = vld [vmem:[%s5335] ss:$2 sm:$0x3]
        %v5337 = vld [vmem:[%s5 + $0xc0] sm:$0xf]
        %v5338 = vld [vmem:[%s5 + $0xc4] sm:$0xf]
        %v5339 = vld [vmem:[%s5 + $0xc8] sm:$0xf]
        %v5340 = vld [vmem:[%s5 + $0xcc] sm:$0xf]
        %v5341 = vld [vmem:[%s5 + $0xd0] sm:$0xf]
        %v5342 = vld [vmem:[%s5 + $0xd4] sm:$0xf]
        %v5343 = vld [vmem:[%s5 + $0xd8] sm:$0xf]
        %v5344 = vld [vmem:[%s5 + $0xdc] sm:$0xf]
        %v5345 = vld [vmem:[%s5 + $0xe0] sm:$0xf]
        %v5346 = vld [vmem:[%s5 + $0xe4] sm:$0xf]
        %v5347 = vld [vmem:[%s5 + $0xe8] sm:$0xf]
        %v5348 = vld [vmem:[%s5 + $0xec] sm:$0xf]
        %v5349 = vld [vmem:[%s5 + $0xf0] sm:$0xf]
        %v5350 = vld [vmem:[%s5 + $0xf4] sm:$0xf]
        %v5351 = vld [vmem:[%s5 + $0xf8] sm:$0xf]
        %v5352 = vld [vmem:[%s5 + $0xfc] sm:$0xf]
        %v5353 = vpack.c.bf16 %v5336, %v5336
        %v5370 = vunpack.c.l.b16 %v5337
        %v5371 = vunpack.c.l.b16 %v5338
        %v5372 = vunpack.c.l.b16 %v5339
        %v5373 = vunpack.c.l.b16 %v5340
        %v5374 = vunpack.c.l.b16 %v5341
        %v5375 = vunpack.c.l.b16 %v5342
        %v5376 = vunpack.c.l.b16 %v5343
        %v5377 = vunpack.c.l.b16 %v5344
        %v5378 = vunpack.c.l.b16 %v5345
        %v5379 = vunpack.c.l.b16 %v5346
        %v5380 = vunpack.c.l.b16 %v5347
        %v5381 = vunpack.c.l.b16 %v5348
        %v5382 = vunpack.c.l.b16 %v5349
        %v5383 = vunpack.c.l.b16 %v5350
        %v5384 = vunpack.c.l.b16 %v5351
        %v5385 = vunpack.c.l.b16 %v5352
        %v5386 = vpack.c.b16 %v5371, %v5370
        %v5387 = vpack.c.b16 %v5373, %v5372
        %v5388 = vpack.c.b16 %v5375, %v5374
        %v5389 = vpack.c.b16 %v5377, %v5376
        %v5390 = vpack.c.b16 %v5379, %v5378
        %v5391 = vpack.c.b16 %v5381, %v5380
        %v5392 = vpack.c.b16 %v5383, %v5382
        %v5393 = vpack.c.b16 %v5385, %v5384
        %5402 = vmatpush.bf16.msra.mxu0 %v5393
        %5403 = vmatpush.bf16.msra.mxu0 %v5392
        %5404 = vmatpush.bf16.msra.mxu0 %v5391
        %5405 = vmatpush.bf16.msra.mxu0 %v5390
        %5406 = vmatpush.bf16.msra.mxu0 %v5389
        %5407 = vmatpush.bf16.msra.mxu0 %v5388
        %5408 = vmatpush.bf16.msra.mxu0 %v5387
        %5409 = vmatpush.bf16.msra.mxu0 %v5386
        %5410 = vmatmul.bf16.gmra.mxu0 %v5353
        %v5411 = vpop.f32.mrf.mxu0
        %v5412 = vadd.f32 0.0, %v5411
        %v5413 = vpop.f32.mrf.mxu0
        %5414 = vdwg.mxu0
        %v5415 = vadd.f32 %v5334, %v5412
        %s5416 = scalar_lea.vmem [#allocation3], 7
        %v5417 = vld [vmem:[%s5416] ss:$2 sm:$0x3]
        %v5418 = vld [vmem:[%s5 + $0x100] sm:$0xf]
        %v5419 = vld [vmem:[%s5 + $0x104] sm:$0xf]
        %v5420 = vld [vmem:[%s5 + $0x108] sm:$0xf]
        %v5421 = vld [vmem:[%s5 + $0x10c] sm:$0xf]
        %v5422 = vld [vmem:[%s5 + $0x110] sm:$0xf]
        %v5423 = vld [vmem:[%s5 + $0x114] sm:$0xf]
        %v5424 = vld [vmem:[%s5 + $0x118] sm:$0xf]
        %v5425 = vld [vmem:[%s5 + $0x11c] sm:$0xf]
        %v5426 = vld [vmem:[%s5 + $0x120] sm:$0xf]
        %v5427 = vld [vmem:[%s5 + $0x124] sm:$0xf]
        %v5428 = vld [vmem:[%s5 + $0x128] sm:$0xf]
        %v5429 = vld [vmem:[%s5 + $0x12c] sm:$0xf]
        %v5430 = vld [vmem:[%s5 + $0x130] sm:$0xf]
        %v5431 = vld [vmem:[%s5 + $0x134] sm:$0xf]
        %v5432 = vld [vmem:[%s5 + $0x138] sm:$0xf]
        %v5433 = vld [vmem:[%s5 + $0x13c] sm:$0xf]
        %v5434 = vpack.c.bf16 %v5417, %v5417
        %v5451 = vunpack.c.l.b16 %v5418
        %v5452 = vunpack.c.l.b16 %v5419
        %v5453 = vunpack.c.l.b16 %v5420
        %v5454 = vunpack.c.l.b16 %v5421
        %v5455 = vunpack.c.l.b16 %v5422
        %v5456 = vunpack.c.l.b16 %v5423
        %v5457 = vunpack.c.l.b16 %v5424
        %v5458 = vunpack.c.l.b16 %v5425
        %v5459 = vunpack.c.l.b16 %v5426
        %v5460 = vunpack.c.l.b16 %v5427
        %v5461 = vunpack.c.l.b16 %v5428
        %v5462 = vunpack.c.l.b16 %v5429
        %v5463 = vunpack.c.l.b16 %v5430
        %v5464 = vunpack.c.l.b16 %v5431
        %v5465 = vunpack.c.l.b16 %v5432
        %v5466 = vunpack.c.l.b16 %v5433
        %v5467 = vpack.c.b16 %v5452, %v5451
        %v5468 = vpack.c.b16 %v5454, %v5453
        %v5469 = vpack.c.b16 %v5456, %v5455
        %v5470 = vpack.c.b16 %v5458, %v5457
        %v5471 = vpack.c.b16 %v5460, %v5459
        %v5472 = vpack.c.b16 %v5462, %v5461
        %v5473 = vpack.c.b16 %v5464, %v5463
        %v5474 = vpack.c.b16 %v5466, %v5465
        %5483 = vmatpush.bf16.msra.mxu0 %v5474
        %5484 = vmatpush.bf16.msra.mxu0 %v5473
        %5485 = vmatpush.bf16.msra.mxu0 %v5472
        %5486 = vmatpush.bf16.msra.mxu0 %v5471
        %5487 = vmatpush.bf16.msra.mxu0 %v5470
        %5488 = vmatpush.bf16.msra.mxu0 %v5469
        %5489 = vmatpush.bf16.msra.mxu0 %v5468
        %5490 = vmatpush.bf16.msra.mxu0 %v5467
        %5491 = vmatmul.bf16.gmra.mxu0 %v5434
        %v5492 = vpop.f32.mrf.mxu0
        %v5493 = vadd.f32 0.0, %v5492
        %v5494 = vpop.f32.mrf.mxu0
        %5495 = vdwg.mxu0
        %v5496 = vadd.f32 %v5415, %v5493
        %s5497 = scalar_lea.vmem [#allocation3], 8
        %v5498 = vld [vmem:[%s5497] ss:$2 sm:$0x3]
        %v5499 = vld [vmem:[%s5 + $0x140] sm:$0xf]
        %v5500 = vld [vmem:[%s5 + $0x144] sm:$0xf]
        %v5501 = vld [vmem:[%s5 + $0x148] sm:$0xf]
        %v5502 = vld [vmem:[%s5 + $0x14c] sm:$0xf]
        %v5503 = vld [vmem:[%s5 + $0x150] sm:$0xf]
        %v5504 = vld [vmem:[%s5 + $0x154] sm:$0xf]
        %v5505 = vld [vmem:[%s5 + $0x158] sm:$0xf]
        %v5506 = vld [vmem:[%s5 + $0x15c] sm:$0xf]
        %v5507 = vld [vmem:[%s5 + $0x160] sm:$0xf]
        %v5508 = vld [vmem:[%s5 + $0x164] sm:$0xf]
        %v5509 = vld [vmem:[%s5 + $0x168] sm:$0xf]
        %v5510 = vld [vmem:[%s5 + $0x16c] sm:$0xf]
        %v5511 = vld [vmem:[%s5 + $0x170] sm:$0xf]
        %v5512 = vld [vmem:[%s5 + $0x174] sm:$0xf]
        %v5513 = vld [vmem:[%s5 + $0x178] sm:$0xf]
        %v5514 = vld [vmem:[%s5 + $0x17c] sm:$0xf]
        %v5515 = vpack.c.bf16 %v5498, %v5498
        %v5532 = vunpack.c.l.b16 %v5499
        %v5533 = vunpack.c.l.b16 %v5500
        %v5534 = vunpack.c.l.b16 %v5501
        %v5535 = vunpack.c.l.b16 %v5502
        %v5536 = vunpack.c.l.b16 %v5503
        %v5537 = vunpack.c.l.b16 %v5504
        %v5538 = vunpack.c.l.b16 %v5505
        %v5539 = vunpack.c.l.b16 %v5506
        %v5540 = vunpack.c.l.b16 %v5507
        %v5541 = vunpack.c.l.b16 %v5508
        %v5542 = vunpack.c.l.b16 %v5509
        %v5543 = vunpack.c.l.b16 %v5510
        %v5544 = vunpack.c.l.b16 %v5511
        %v5545 = vunpack.c.l.b16 %v5512
        %v5546 = vunpack.c.l.b16 %v5513
        %v5547 = vunpack.c.l.b16 %v5514
        %v5548 = vpack.c.b16 %v5533, %v5532
        %v5549 = vpack.c.b16 %v5535, %v5534
        %v5550 = vpack.c.b16 %v5537, %v5536
        %v5551 = vpack.c.b16 %v5539, %v5538
        %v5552 = vpack.c.b16 %v5541, %v5540
        %v5553 = vpack.c.b16 %v5543, %v5542
        %v5554 = vpack.c.b16 %v5545, %v5544
        %v5555 = vpack.c.b16 %v5547, %v5546
        %5564 = vmatpush.bf16.msra.mxu0 %v5555
        %5565 = vmatpush.bf16.msra.mxu0 %v5554
        %5566 = vmatpush.bf16.msra.mxu0 %v5553
        %5567 = vmatpush.bf16.msra.mxu0 %v5552
        %5568 = vmatpush.bf16.msra.mxu0 %v5551
        %5569 = vmatpush.bf16.msra.mxu0 %v5550
        %5570 = vmatpush.bf16.msra.mxu0 %v5549
        %5571 = vmatpush.bf16.msra.mxu0 %v5548
        %5572 = vmatmul.bf16.gmra.mxu0 %v5515
        %v5573 = vpop.f32.mrf.mxu0
        %v5574 = vadd.f32 0.0, %v5573
        %v5575 = vpop.f32.mrf.mxu0
        %5576 = vdwg.mxu0
        %v5577 = vadd.f32 %v5496, %v5574
        %s5578 = scalar_lea.vmem [#allocation3], 12
        %v5579 = vld [vmem:[%s5578] ss:$2 sm:$0x3]
        %v5580 = vld [vmem:[%s5 + $0x180] sm:$0xf]
        %v5581 = vld [vmem:[%s5 + $0x184] sm:$0xf]
        %v5582 = vld [vmem:[%s5 + $0x188] sm:$0xf]
        %v5583 = vld [vmem:[%s5 + $0x18c] sm:$0xf]
        %v5584 = vld [vmem:[%s5 + $0x190] sm:$0xf]
        %v5585 = vld [vmem:[%s5 + $0x194] sm:$0xf]
        %v5586 = vld [vmem:[%s5 + $0x198] sm:$0xf]
        %v5587 = vld [vmem:[%s5 + $0x19c] sm:$0xf]
        %v5588 = vld [vmem:[%s5 + $0x1a0] sm:$0xf]
        %v5589 = vld [vmem:[%s5 + $0x1a4] sm:$0xf]
        %v5590 = vld [vmem:[%s5 + $0x1a8] sm:$0xf]
        %v5591 = vld [vmem:[%s5 + $0x1ac] sm:$0xf]
        %v5592 = vld [vmem:[%s5 + $0x1b0] sm:$0xf]
        %v5593 = vld [vmem:[%s5 + $0x1b4] sm:$0xf]
        %v5594 = vld [vmem:[%s5 + $0x1b8] sm:$0xf]
        %v5595 = vld [vmem:[%s5 + $0x1bc] sm:$0xf]
        %v5596 = vpack.c.bf16 %v5579, %v5579
        %v5613 = vunpack.c.l.b16 %v5580
        %v5614 = vunpack.c.l.b16 %v5581
        %v5615 = vunpack.c.l.b16 %v5582
        %v5616 = vunpack.c.l.b16 %v5583
        %v5617 = vunpack.c.l.b16 %v5584
        %v5618 = vunpack.c.l.b16 %v5585
        %v5619 = vunpack.c.l.b16 %v5586
        %v5620 = vunpack.c.l.b16 %v5587
        %v5621 = vunpack.c.l.b16 %v5588
        %v5622 = vunpack.c.l.b16 %v5589
        %v5623 = vunpack.c.l.b16 %v5590
        %v5624 = vunpack.c.l.b16 %v5591
        %v5625 = vunpack.c.l.b16 %v5592
        %v5626 = vunpack.c.l.b16 %v5593
        %v5627 = vunpack.c.l.b16 %v5594
        %v5628 = vunpack.c.l.b16 %v5595
        %v5629 = vpack.c.b16 %v5614, %v5613
        %v5630 = vpack.c.b16 %v5616, %v5615
        %v5631 = vpack.c.b16 %v5618, %v5617
        %v5632 = vpack.c.b16 %v5620, %v5619
        %v5633 = vpack.c.b16 %v5622, %v5621
        %v5634 = vpack.c.b16 %v5624, %v5623
        %v5635 = vpack.c.b16 %v5626, %v5625
        %v5636 = vpack.c.b16 %v5628, %v5627
        %5645 = vmatpush.bf16.msra.mxu0 %v5636
        %5646 = vmatpush.bf16.msra.mxu0 %v5635
        %5647 = vmatpush.bf16.msra.mxu0 %v5634
        %5648 = vmatpush.bf16.msra.mxu0 %v5633
        %5649 = vmatpush.bf16.msra.mxu0 %v5632
        %5650 = vmatpush.bf16.msra.mxu0 %v5631
        %5651 = vmatpush.bf16.msra.mxu0 %v5630
        %5652 = vmatpush.bf16.msra.mxu0 %v5629
        %5653 = vmatmul.bf16.gmra.mxu0 %v5596
        %v5654 = vpop.f32.mrf.mxu0
        %v5655 = vadd.f32 0.0, %v5654
        %v5656 = vpop.f32.mrf.mxu0
        %5657 = vdwg.mxu0
        %v5658 = vadd.f32 %v5577, %v5655
        %s5659 = scalar_lea.vmem [#allocation3], 13
        %v5660 = vld [vmem:[%s5659] ss:$2 sm:$0x3]
        %v5661 = vld [vmem:[%s5 + $0x1c0] sm:$0xf]
        %v5662 = vld [vmem:[%s5 + $0x1c4] sm:$0xf]
        %v5663 = vld [vmem:[%s5 + $0x1c8] sm:$0xf]
        %v5664 = vld [vmem:[%s5 + $0x1cc] sm:$0xf]
        %v5665 = vld [vmem:[%s5 + $0x1d0] sm:$0xf]
        %v5666 = vld [vmem:[%s5 + $0x1d4] sm:$0xf]
        %v5667 = vld [vmem:[%s5 + $0x1d8] sm:$0xf]
        %v5668 = vld [vmem:[%s5 + $0x1dc] sm:$0xf]
        %v5669 = vld [vmem:[%s5 + $0x1e0] sm:$0xf]
        %v5670 = vld [vmem:[%s5 + $0x1e4] sm:$0xf]
        %v5671 = vld [vmem:[%s5 + $0x1e8] sm:$0xf]
        %v5672 = vld [vmem:[%s5 + $0x1ec] sm:$0xf]
        %v5673 = vld [vmem:[%s5 + $0x1f0] sm:$0xf]
        %v5674 = vld [vmem:[%s5 + $0x1f4] sm:$0xf]
        %v5675 = vld [vmem:[%s5 + $0x1f8] sm:$0xf]
        %v5676 = vld [vmem:[%s5 + $0x1fc] sm:$0xf]
        %v5677 = vpack.c.bf16 %v5660, %v5660
        %v5694 = vunpack.c.l.b16 %v5661
        %v5695 = vunpack.c.l.b16 %v5662
        %v5696 = vunpack.c.l.b16 %v5663
        %v5697 = vunpack.c.l.b16 %v5664
        %v5698 = vunpack.c.l.b16 %v5665
        %v5699 = vunpack.c.l.b16 %v5666
        %v5700 = vunpack.c.l.b16 %v5667
        %v5701 = vunpack.c.l.b16 %v5668
        %v5702 = vunpack.c.l.b16 %v5669
        %v5703 = vunpack.c.l.b16 %v5670
        %v5704 = vunpack.c.l.b16 %v5671
        %v5705 = vunpack.c.l.b16 %v5672
        %v5706 = vunpack.c.l.b16 %v5673
        %v5707 = vunpack.c.l.b16 %v5674
        %v5708 = vunpack.c.l.b16 %v5675
        %v5709 = vunpack.c.l.b16 %v5676
        %v5710 = vpack.c.b16 %v5695, %v5694
        %v5711 = vpack.c.b16 %v5697, %v5696
        %v5712 = vpack.c.b16 %v5699, %v5698
        %v5713 = vpack.c.b16 %v5701, %v5700
        %v5714 = vpack.c.b16 %v5703, %v5702
        %v5715 = vpack.c.b16 %v5705, %v5704
        %v5716 = vpack.c.b16 %v5707, %v5706
        %v5717 = vpack.c.b16 %v5709, %v5708
        %5726 = vmatpush.bf16.msra.mxu0 %v5717
        %5727 = vmatpush.bf16.msra.mxu0 %v5716
        %5728 = vmatpush.bf16.msra.mxu0 %v5715
        %5729 = vmatpush.bf16.msra.mxu0 %v5714
        %5730 = vmatpush.bf16.msra.mxu0 %v5713
        %5731 = vmatpush.bf16.msra.mxu0 %v5712
        %5732 = vmatpush.bf16.msra.mxu0 %v5711
        %5733 = vmatpush.bf16.msra.mxu0 %v5710
        %5734 = vmatmul.bf16.gmra.mxu0 %v5677
        %v5735 = vpop.f32.mrf.mxu0
        %v5736 = vadd.f32 0.0, %v5735
        %v5737 = vpop.f32.mrf.mxu0
        %5738 = vdwg.mxu0
        %v5739 = vadd.f32 %v5658, %v5736
        %s5740 = scalar_lea.vmem [#allocation3], 14
        %v5741 = vld [vmem:[%s5740] ss:$2 sm:$0x3]
        %v5742 = vld [vmem:[%s5 + $0x200] sm:$0xf]
        %v5743 = vld [vmem:[%s5 + $0x204] sm:$0xf]
        %v5744 = vld [vmem:[%s5 + $0x208] sm:$0xf]
        %v5745 = vld [vmem:[%s5 + $0x20c] sm:$0xf]
        %v5746 = vld [vmem:[%s5 + $0x210] sm:$0xf]
        %v5747 = vld [vmem:[%s5 + $0x214] sm:$0xf]
        %v5748 = vld [vmem:[%s5 + $0x218] sm:$0xf]
        %v5749 = vld [vmem:[%s5 + $0x21c] sm:$0xf]
        %v5750 = vld [vmem:[%s5 + $0x220] sm:$0xf]
        %v5751 = vld [vmem:[%s5 + $0x224] sm:$0xf]
        %v5752 = vld [vmem:[%s5 + $0x228] sm:$0xf]
        %v5753 = vld [vmem:[%s5 + $0x22c] sm:$0xf]
        %v5754 = vld [vmem:[%s5 + $0x230] sm:$0xf]
        %v5755 = vld [vmem:[%s5 + $0x234] sm:$0xf]
        %v5756 = vld [vmem:[%s5 + $0x238] sm:$0xf]
        %v5757 = vld [vmem:[%s5 + $0x23c] sm:$0xf]
        %v5758 = vpack.c.bf16 %v5741, %v5741
        %v5775 = vunpack.c.l.b16 %v5742
        %v5776 = vunpack.c.l.b16 %v5743
        %v5777 = vunpack.c.l.b16 %v5744
        %v5778 = vunpack.c.l.b16 %v5745
        %v5779 = vunpack.c.l.b16 %v5746
        %v5780 = vunpack.c.l.b16 %v5747
        %v5781 = vunpack.c.l.b16 %v5748
        %v5782 = vunpack.c.l.b16 %v5749
        %v5783 = vunpack.c.l.b16 %v5750
        %v5784 = vunpack.c.l.b16 %v5751
        %v5785 = vunpack.c.l.b16 %v5752
        %v5786 = vunpack.c.l.b16 %v5753
        %v5787 = vunpack.c.l.b16 %v5754
        %v5788 = vunpack.c.l.b16 %v5755
        %v5789 = vunpack.c.l.b16 %v5756
        %v5790 = vunpack.c.l.b16 %v5757
        %v5791 = vpack.c.b16 %v5776, %v5775
        %v5792 = vpack.c.b16 %v5778, %v5777
        %v5793 = vpack.c.b16 %v5780, %v5779
        %v5794 = vpack.c.b16 %v5782, %v5781
        %v5795 = vpack.c.b16 %v5784, %v5783
        %v5796 = vpack.c.b16 %v5786, %v5785
        %v5797 = vpack.c.b16 %v5788, %v5787
        %v5798 = vpack.c.b16 %v5790, %v5789
        %5807 = vmatpush.bf16.msra.mxu0 %v5798
        %5808 = vmatpush.bf16.msra.mxu0 %v5797
        %5809 = vmatpush.bf16.msra.mxu0 %v5796
        %5810 = vmatpush.bf16.msra.mxu0 %v5795
        %5811 = vmatpush.bf16.msra.mxu0 %v5794
        %5812 = vmatpush.bf16.msra.mxu0 %v5793
        %5813 = vmatpush.bf16.msra.mxu0 %v5792
        %5814 = vmatpush.bf16.msra.mxu0 %v5791
        %5815 = vmatmul.bf16.gmra.mxu0 %v5758
        %v5816 = vpop.f32.mrf.mxu0
        %v5817 = vadd.f32 0.0, %v5816
        %v5818 = vpop.f32.mrf.mxu0
        %5819 = vdwg.mxu0
        %v5820 = vadd.f32 %v5739, %v5817
        %v5821 = vperm.slane %v5093, 0
        %v5822 = vadd.f32 %v5820, %v5821
        %vm5823 = vcmp.ge.f32.partialorder %v5822, 0.0
        %v5824 = vmul.f32 %v5822, 0.01
        %v5825 = vsel %vm5823, %v5822, %v5824
        %v5826 = vperm.slane %v5094, 0
        %v5827 = vadd.f32 %v5825, %v5826
        %5828 = vst [vmem:[#allocation4 + $0x5] sm:$0x3] %v5827
        %v5829 = vld [vmem:[%s5578] ss:$2 sm:$0x3]
        %v5830 = vld [vmem:[%s5] sm:$0xf]
        %v5831 = vld [vmem:[%s5 + $0x4] sm:$0xf]
        %v5832 = vld [vmem:[%s5 + $0x8] sm:$0xf]
        %v5833 = vld [vmem:[%s5 + $0xc] sm:$0xf]
        %v5834 = vld [vmem:[%s5 + $0x10] sm:$0xf]
        %v5835 = vld [vmem:[%s5 + $0x14] sm:$0xf]
        %v5836 = vld [vmem:[%s5 + $0x18] sm:$0xf]
        %v5837 = vld [vmem:[%s5 + $0x1c] sm:$0xf]
        %v5838 = vld [vmem:[%s5 + $0x20] sm:$0xf]
        %v5839 = vld [vmem:[%s5 + $0x24] sm:$0xf]
        %v5840 = vld [vmem:[%s5 + $0x28] sm:$0xf]
        %v5841 = vld [vmem:[%s5 + $0x2c] sm:$0xf]
        %v5842 = vld [vmem:[%s5 + $0x30] sm:$0xf]
        %v5843 = vld [vmem:[%s5 + $0x34] sm:$0xf]
        %v5844 = vld [vmem:[%s5 + $0x38] sm:$0xf]
        %v5845 = vld [vmem:[%s5 + $0x3c] sm:$0xf]
        %v5846 = vpack.c.bf16 %v5829, %v5829
        %v5847 = vld [vmem:[%s5659] ss:$2 sm:$0x3]
        %v5848 = vld [vmem:[%s5 + $0x40] sm:$0xf]
        %v5849 = vld [vmem:[%s5 + $0x44] sm:$0xf]
        %v5850 = vld [vmem:[%s5 + $0x48] sm:$0xf]
        %v5851 = vld [vmem:[%s5 + $0x4c] sm:$0xf]
        %v5852 = vld [vmem:[%s5 + $0x50] sm:$0xf]
        %v5853 = vld [vmem:[%s5 + $0x54] sm:$0xf]
        %v5854 = vld [vmem:[%s5 + $0x58] sm:$0xf]
        %v5855 = vld [vmem:[%s5 + $0x5c] sm:$0xf]
        %v5856 = vld [vmem:[%s5 + $0x60] sm:$0xf]
        %v5857 = vld [vmem:[%s5 + $0x64] sm:$0xf]
        %v5858 = vld [vmem:[%s5 + $0x68] sm:$0xf]
        %v5859 = vld [vmem:[%s5 + $0x6c] sm:$0xf]
        %v5860 = vld [vmem:[%s5 + $0x70] sm:$0xf]
        %v5861 = vld [vmem:[%s5 + $0x74] sm:$0xf]
        %v5862 = vld [vmem:[%s5 + $0x78] sm:$0xf]
        %v5863 = vld [vmem:[%s5 + $0x7c] sm:$0xf]
        %v5864 = vpack.c.bf16 %v5847, %v5847
        %v5881 = vunpack.c.l.b16 %v5848
        %v5882 = vunpack.c.l.b16 %v5849
        %v5883 = vunpack.c.l.b16 %v5850
        %v5884 = vunpack.c.l.b16 %v5851
        %v5885 = vunpack.c.l.b16 %v5852
        %v5886 = vunpack.c.l.b16 %v5853
        %v5887 = vunpack.c.l.b16 %v5854
        %v5888 = vunpack.c.l.b16 %v5855
        %v5889 = vunpack.c.l.b16 %v5856
        %v5890 = vunpack.c.l.b16 %v5857
        %v5891 = vunpack.c.l.b16 %v5858
        %v5892 = vunpack.c.l.b16 %v5859
        %v5893 = vunpack.c.l.b16 %v5860
        %v5894 = vunpack.c.l.b16 %v5861
        %v5895 = vunpack.c.l.b16 %v5862
        %v5896 = vunpack.c.l.b16 %v5863
        %v5897 = vpack.c.b16 %v5882, %v5881
        %v5898 = vpack.c.b16 %v5884, %v5883
        %v5899 = vpack.c.b16 %v5886, %v5885
        %v5900 = vpack.c.b16 %v5888, %v5887
        %v5901 = vpack.c.b16 %v5890, %v5889
        %v5902 = vpack.c.b16 %v5892, %v5891
        %v5903 = vpack.c.b16 %v5894, %v5893
        %v5904 = vpack.c.b16 %v5896, %v5895
        %5913 = vmatpush.bf16.msra.mxu0 %v5904
        %5914 = vmatpush.bf16.msra.mxu0 %v5903
        %5915 = vmatpush.bf16.msra.mxu0 %v5902
        %5916 = vmatpush.bf16.msra.mxu0 %v5901
        %5917 = vmatpush.bf16.msra.mxu0 %v5900
        %5918 = vmatpush.bf16.msra.mxu0 %v5899
        %5919 = vmatpush.bf16.msra.mxu0 %v5898
        %5920 = vmatpush.bf16.msra.mxu0 %v5897
        %5921 = vmatmul.bf16.gmra.mxu0 %v5864
        %v5922 = vpop.f32.mrf.mxu0
        %v5923 = vadd.f32 0.0, %v5922
        %v5924 = vpop.f32.mrf.mxu0
        %5925 = vdwg.mxu0
        %v5942 = vunpack.c.l.b16 %v5830
        %v5943 = vunpack.c.l.b16 %v5831
        %v5944 = vunpack.c.l.b16 %v5832
        %v5945 = vunpack.c.l.b16 %v5833
        %v5946 = vunpack.c.l.b16 %v5834
        %v5947 = vunpack.c.l.b16 %v5835
        %v5948 = vunpack.c.l.b16 %v5836
        %v5949 = vunpack.c.l.b16 %v5837
        %v5950 = vunpack.c.l.b16 %v5838
        %v5951 = vunpack.c.l.b16 %v5839
        %v5952 = vunpack.c.l.b16 %v5840
        %v5953 = vunpack.c.l.b16 %v5841
        %v5954 = vunpack.c.l.b16 %v5842
        %v5955 = vunpack.c.l.b16 %v5843
        %v5956 = vunpack.c.l.b16 %v5844
        %v5957 = vunpack.c.l.b16 %v5845
        %v5958 = vpack.c.b16 %v5943, %v5942
        %v5959 = vpack.c.b16 %v5945, %v5944
        %v5960 = vpack.c.b16 %v5947, %v5946
        %v5961 = vpack.c.b16 %v5949, %v5948
        %v5962 = vpack.c.b16 %v5951, %v5950
        %v5963 = vpack.c.b16 %v5953, %v5952
        %v5964 = vpack.c.b16 %v5955, %v5954
        %v5965 = vpack.c.b16 %v5957, %v5956
        %5974 = vmatpush.bf16.msra.mxu0 %v5965
        %5975 = vmatpush.bf16.msra.mxu0 %v5964
        %5976 = vmatpush.bf16.msra.mxu0 %v5963
        %5977 = vmatpush.bf16.msra.mxu0 %v5962
        %5978 = vmatpush.bf16.msra.mxu0 %v5961
        %5979 = vmatpush.bf16.msra.mxu0 %v5960
        %5980 = vmatpush.bf16.msra.mxu0 %v5959
        %5981 = vmatpush.bf16.msra.mxu0 %v5958
        %5982 = vmatmul.bf16.gmra.mxu0 %v5846
        %v5983 = vpop.f32.mrf.mxu0
        %v5984 = vadd.f32 %v5923, %v5983
        %v5985 = vpop.f32.mrf.mxu0
        %5986 = vdwg.mxu0
        %v5987 = vld [vmem:[%s5740] ss:$2 sm:$0x3]
        %v5988 = vld [vmem:[%s5 + $0x80] sm:$0xf]
        %v5989 = vld [vmem:[%s5 + $0x84] sm:$0xf]
        %v5990 = vld [vmem:[%s5 + $0x88] sm:$0xf]
        %v5991 = vld [vmem:[%s5 + $0x8c] sm:$0xf]
        %v5992 = vld [vmem:[%s5 + $0x90] sm:$0xf]
        %v5993 = vld [vmem:[%s5 + $0x94] sm:$0xf]
        %v5994 = vld [vmem:[%s5 + $0x98] sm:$0xf]
        %v5995 = vld [vmem:[%s5 + $0x9c] sm:$0xf]
        %v5996 = vld [vmem:[%s5 + $0xa0] sm:$0xf]
        %v5997 = vld [vmem:[%s5 + $0xa4] sm:$0xf]
        %v5998 = vld [vmem:[%s5 + $0xa8] sm:$0xf]
        %v5999 = vld [vmem:[%s5 + $0xac] sm:$0xf]
        %v6000 = vld [vmem:[%s5 + $0xb0] sm:$0xf]
        %v6001 = vld [vmem:[%s5 + $0xb4] sm:$0xf]
        %v6002 = vld [vmem:[%s5 + $0xb8] sm:$0xf]
        %v6003 = vld [vmem:[%s5 + $0xbc] sm:$0xf]
        %v6004 = vpack.c.bf16 %v5987, %v5987
        %v6021 = vunpack.c.l.b16 %v5988
        %v6022 = vunpack.c.l.b16 %v5989
        %v6023 = vunpack.c.l.b16 %v5990
        %v6024 = vunpack.c.l.b16 %v5991
        %v6025 = vunpack.c.l.b16 %v5992
        %v6026 = vunpack.c.l.b16 %v5993
        %v6027 = vunpack.c.l.b16 %v5994
        %v6028 = vunpack.c.l.b16 %v5995
        %v6029 = vunpack.c.l.b16 %v5996
        %v6030 = vunpack.c.l.b16 %v5997
        %v6031 = vunpack.c.l.b16 %v5998
        %v6032 = vunpack.c.l.b16 %v5999
        %v6033 = vunpack.c.l.b16 %v6000
        %v6034 = vunpack.c.l.b16 %v6001
        %v6035 = vunpack.c.l.b16 %v6002
        %v6036 = vunpack.c.l.b16 %v6003
        %v6037 = vpack.c.b16 %v6022, %v6021
        %v6038 = vpack.c.b16 %v6024, %v6023
        %v6039 = vpack.c.b16 %v6026, %v6025
        %v6040 = vpack.c.b16 %v6028, %v6027
        %v6041 = vpack.c.b16 %v6030, %v6029
        %v6042 = vpack.c.b16 %v6032, %v6031
        %v6043 = vpack.c.b16 %v6034, %v6033
        %v6044 = vpack.c.b16 %v6036, %v6035
        %6053 = vmatpush.bf16.msra.mxu0 %v6044
        %6054 = vmatpush.bf16.msra.mxu0 %v6043
        %6055 = vmatpush.bf16.msra.mxu0 %v6042
        %6056 = vmatpush.bf16.msra.mxu0 %v6041
        %6057 = vmatpush.bf16.msra.mxu0 %v6040
        %6058 = vmatpush.bf16.msra.mxu0 %v6039
        %6059 = vmatpush.bf16.msra.mxu0 %v6038
        %6060 = vmatpush.bf16.msra.mxu0 %v6037
        %6061 = vmatmul.bf16.gmra.mxu0 %v6004
        %v6062 = vpop.f32.mrf.mxu0
        %v6063 = vadd.f32 0.0, %v6062
        %v6064 = vpop.f32.mrf.mxu0
        %6065 = vdwg.mxu0
        %v6066 = vadd.f32 %v5984, %v6063
        %s6067 = scalar_lea.vmem [#allocation3], 18
        %v6068 = vld [vmem:[%s6067] ss:$2 sm:$0x3]
        %v6069 = vld [vmem:[%s5 + $0xc0] sm:$0xf]
        %v6070 = vld [vmem:[%s5 + $0xc4] sm:$0xf]
        %v6071 = vld [vmem:[%s5 + $0xc8] sm:$0xf]
        %v6072 = vld [vmem:[%s5 + $0xcc] sm:$0xf]
        %v6073 = vld [vmem:[%s5 + $0xd0] sm:$0xf]
        %v6074 = vld [vmem:[%s5 + $0xd4] sm:$0xf]
        %v6075 = vld [vmem:[%s5 + $0xd8] sm:$0xf]
        %v6076 = vld [vmem:[%s5 + $0xdc] sm:$0xf]
        %v6077 = vld [vmem:[%s5 + $0xe0] sm:$0xf]
        %v6078 = vld [vmem:[%s5 + $0xe4] sm:$0xf]
        %v6079 = vld [vmem:[%s5 + $0xe8] sm:$0xf]
        %v6080 = vld [vmem:[%s5 + $0xec] sm:$0xf]
        %v6081 = vld [vmem:[%s5 + $0xf0] sm:$0xf]
        %v6082 = vld [vmem:[%s5 + $0xf4] sm:$0xf]
        %v6083 = vld [vmem:[%s5 + $0xf8] sm:$0xf]
        %v6084 = vld [vmem:[%s5 + $0xfc] sm:$0xf]
        %v6085 = vpack.c.bf16 %v6068, %v6068
        %v6102 = vunpack.c.l.b16 %v6069
        %v6103 = vunpack.c.l.b16 %v6070
        %v6104 = vunpack.c.l.b16 %v6071
        %v6105 = vunpack.c.l.b16 %v6072
        %v6106 = vunpack.c.l.b16 %v6073
        %v6107 = vunpack.c.l.b16 %v6074
        %v6108 = vunpack.c.l.b16 %v6075
        %v6109 = vunpack.c.l.b16 %v6076
        %v6110 = vunpack.c.l.b16 %v6077
        %v6111 = vunpack.c.l.b16 %v6078
        %v6112 = vunpack.c.l.b16 %v6079
        %v6113 = vunpack.c.l.b16 %v6080
        %v6114 = vunpack.c.l.b16 %v6081
        %v6115 = vunpack.c.l.b16 %v6082
        %v6116 = vunpack.c.l.b16 %v6083
        %v6117 = vunpack.c.l.b16 %v6084
        %v6118 = vpack.c.b16 %v6103, %v6102
        %v6119 = vpack.c.b16 %v6105, %v6104
        %v6120 = vpack.c.b16 %v6107, %v6106
        %v6121 = vpack.c.b16 %v6109, %v6108
        %v6122 = vpack.c.b16 %v6111, %v6110
        %v6123 = vpack.c.b16 %v6113, %v6112
        %v6124 = vpack.c.b16 %v6115, %v6114
        %v6125 = vpack.c.b16 %v6117, %v6116
        %6134 = vmatpush.bf16.msra.mxu0 %v6125
        %6135 = vmatpush.bf16.msra.mxu0 %v6124
        %6136 = vmatpush.bf16.msra.mxu0 %v6123
        %6137 = vmatpush.bf16.msra.mxu0 %v6122
        %6138 = vmatpush.bf16.msra.mxu0 %v6121
        %6139 = vmatpush.bf16.msra.mxu0 %v6120
        %6140 = vmatpush.bf16.msra.mxu0 %v6119
        %6141 = vmatpush.bf16.msra.mxu0 %v6118
        %6142 = vmatmul.bf16.gmra.mxu0 %v6085
        %v6143 = vpop.f32.mrf.mxu0
        %v6144 = vadd.f32 0.0, %v6143
        %v6145 = vpop.f32.mrf.mxu0
        %6146 = vdwg.mxu0
        %v6147 = vadd.f32 %v6066, %v6144
        %s6148 = scalar_lea.vmem [#allocation3], 19
        %v6149 = vld [vmem:[%s6148] ss:$2 sm:$0x3]
        %v6150 = vld [vmem:[%s5 + $0x100] sm:$0xf]
        %v6151 = vld [vmem:[%s5 + $0x104] sm:$0xf]
        %v6152 = vld [vmem:[%s5 + $0x108] sm:$0xf]
        %v6153 = vld [vmem:[%s5 + $0x10c] sm:$0xf]
        %v6154 = vld [vmem:[%s5 + $0x110] sm:$0xf]
        %v6155 = vld [vmem:[%s5 + $0x114] sm:$0xf]
        %v6156 = vld [vmem:[%s5 + $0x118] sm:$0xf]
        %v6157 = vld [vmem:[%s5 + $0x11c] sm:$0xf]
        %v6158 = vld [vmem:[%s5 + $0x120] sm:$0xf]
        %v6159 = vld [vmem:[%s5 + $0x124] sm:$0xf]
        %v6160 = vld [vmem:[%s5 + $0x128] sm:$0xf]
        %v6161 = vld [vmem:[%s5 + $0x12c] sm:$0xf]
        %v6162 = vld [vmem:[%s5 + $0x130] sm:$0xf]
        %v6163 = vld [vmem:[%s5 + $0x134] sm:$0xf]
        %v6164 = vld [vmem:[%s5 + $0x138] sm:$0xf]
        %v6165 = vld [vmem:[%s5 + $0x13c] sm:$0xf]
        %v6166 = vpack.c.bf16 %v6149, %v6149
        %v6183 = vunpack.c.l.b16 %v6150
        %v6184 = vunpack.c.l.b16 %v6151
        %v6185 = vunpack.c.l.b16 %v6152
        %v6186 = vunpack.c.l.b16 %v6153
        %v6187 = vunpack.c.l.b16 %v6154
        %v6188 = vunpack.c.l.b16 %v6155
        %v6189 = vunpack.c.l.b16 %v6156
        %v6190 = vunpack.c.l.b16 %v6157
        %v6191 = vunpack.c.l.b16 %v6158
        %v6192 = vunpack.c.l.b16 %v6159
        %v6193 = vunpack.c.l.b16 %v6160
        %v6194 = vunpack.c.l.b16 %v6161
        %v6195 = vunpack.c.l.b16 %v6162
        %v6196 = vunpack.c.l.b16 %v6163
        %v6197 = vunpack.c.l.b16 %v6164
        %v6198 = vunpack.c.l.b16 %v6165
        %v6199 = vpack.c.b16 %v6184, %v6183
        %v6200 = vpack.c.b16 %v6186, %v6185
        %v6201 = vpack.c.b16 %v6188, %v6187
        %v6202 = vpack.c.b16 %v6190, %v6189
        %v6203 = vpack.c.b16 %v6192, %v6191
        %v6204 = vpack.c.b16 %v6194, %v6193
        %v6205 = vpack.c.b16 %v6196, %v6195
        %v6206 = vpack.c.b16 %v6198, %v6197
        %6215 = vmatpush.bf16.msra.mxu0 %v6206
        %6216 = vmatpush.bf16.msra.mxu0 %v6205
        %6217 = vmatpush.bf16.msra.mxu0 %v6204
        %6218 = vmatpush.bf16.msra.mxu0 %v6203
        %6219 = vmatpush.bf16.msra.mxu0 %v6202
        %6220 = vmatpush.bf16.msra.mxu0 %v6201
        %6221 = vmatpush.bf16.msra.mxu0 %v6200
        %6222 = vmatpush.bf16.msra.mxu0 %v6199
        %6223 = vmatmul.bf16.gmra.mxu0 %v6166
        %v6224 = vpop.f32.mrf.mxu0
        %v6225 = vadd.f32 0.0, %v6224
        %v6226 = vpop.f32.mrf.mxu0
        %6227 = vdwg.mxu0
        %v6228 = vadd.f32 %v6147, %v6225
        %s6229 = scalar_lea.vmem [#allocation3], 20
        %v6230 = vld [vmem:[%s6229] ss:$2 sm:$0x3]
        %v6231 = vld [vmem:[%s5 + $0x140] sm:$0xf]
        %v6232 = vld [vmem:[%s5 + $0x144] sm:$0xf]
        %v6233 = vld [vmem:[%s5 + $0x148] sm:$0xf]
        %v6234 = vld [vmem:[%s5 + $0x14c] sm:$0xf]
        %v6235 = vld [vmem:[%s5 + $0x150] sm:$0xf]
        %v6236 = vld [vmem:[%s5 + $0x154] sm:$0xf]
        %v6237 = vld [vmem:[%s5 + $0x158] sm:$0xf]
        %v6238 = vld [vmem:[%s5 + $0x15c] sm:$0xf]
        %v6239 = vld [vmem:[%s5 + $0x160] sm:$0xf]
        %v6240 = vld [vmem:[%s5 + $0x164] sm:$0xf]
        %v6241 = vld [vmem:[%s5 + $0x168] sm:$0xf]
        %v6242 = vld [vmem:[%s5 + $0x16c] sm:$0xf]
        %v6243 = vld [vmem:[%s5 + $0x170] sm:$0xf]
        %v6244 = vld [vmem:[%s5 + $0x174] sm:$0xf]
        %v6245 = vld [vmem:[%s5 + $0x178] sm:$0xf]
        %v6246 = vld [vmem:[%s5 + $0x17c] sm:$0xf]
        %v6247 = vpack.c.bf16 %v6230, %v6230
        %v6264 = vunpack.c.l.b16 %v6231
        %v6265 = vunpack.c.l.b16 %v6232
        %v6266 = vunpack.c.l.b16 %v6233
        %v6267 = vunpack.c.l.b16 %v6234
        %v6268 = vunpack.c.l.b16 %v6235
        %v6269 = vunpack.c.l.b16 %v6236
        %v6270 = vunpack.c.l.b16 %v6237
        %v6271 = vunpack.c.l.b16 %v6238
        %v6272 = vunpack.c.l.b16 %v6239
        %v6273 = vunpack.c.l.b16 %v6240
        %v6274 = vunpack.c.l.b16 %v6241
        %v6275 = vunpack.c.l.b16 %v6242
        %v6276 = vunpack.c.l.b16 %v6243
        %v6277 = vunpack.c.l.b16 %v6244
        %v6278 = vunpack.c.l.b16 %v6245
        %v6279 = vunpack.c.l.b16 %v6246
        %v6280 = vpack.c.b16 %v6265, %v6264
        %v6281 = vpack.c.b16 %v6267, %v6266
        %v6282 = vpack.c.b16 %v6269, %v6268
        %v6283 = vpack.c.b16 %v6271, %v6270
        %v6284 = vpack.c.b16 %v6273, %v6272
        %v6285 = vpack.c.b16 %v6275, %v6274
        %v6286 = vpack.c.b16 %v6277, %v6276
        %v6287 = vpack.c.b16 %v6279, %v6278
        %6296 = vmatpush.bf16.msra.mxu0 %v6287
        %6297 = vmatpush.bf16.msra.mxu0 %v6286
        %6298 = vmatpush.bf16.msra.mxu0 %v6285
        %6299 = vmatpush.bf16.msra.mxu0 %v6284
        %6300 = vmatpush.bf16.msra.mxu0 %v6283
        %6301 = vmatpush.bf16.msra.mxu0 %v6282
        %6302 = vmatpush.bf16.msra.mxu0 %v6281
        %6303 = vmatpush.bf16.msra.mxu0 %v6280
        %6304 = vmatmul.bf16.gmra.mxu0 %v6247
        %v6305 = vpop.f32.mrf.mxu0
        %v6306 = vadd.f32 0.0, %v6305
        %v6307 = vpop.f32.mrf.mxu0
        %6308 = vdwg.mxu0
        %v6309 = vadd.f32 %v6228, %v6306
        %s6310 = scalar_lea.vmem [#allocation3], 24
        %v6311 = vld [vmem:[%s6310] ss:$2 sm:$0x3]
        %v6312 = vld [vmem:[%s5 + $0x180] sm:$0xf]
        %v6313 = vld [vmem:[%s5 + $0x184] sm:$0xf]
        %v6314 = vld [vmem:[%s5 + $0x188] sm:$0xf]
        %v6315 = vld [vmem:[%s5 + $0x18c] sm:$0xf]
        %v6316 = vld [vmem:[%s5 + $0x190] sm:$0xf]
        %v6317 = vld [vmem:[%s5 + $0x194] sm:$0xf]
        %v6318 = vld [vmem:[%s5 + $0x198] sm:$0xf]
        %v6319 = vld [vmem:[%s5 + $0x19c] sm:$0xf]
        %v6320 = vld [vmem:[%s5 + $0x1a0] sm:$0xf]
        %v6321 = vld [vmem:[%s5 + $0x1a4] sm:$0xf]
        %v6322 = vld [vmem:[%s5 + $0x1a8] sm:$0xf]
        %v6323 = vld [vmem:[%s5 + $0x1ac] sm:$0xf]
        %v6324 = vld [vmem:[%s5 + $0x1b0] sm:$0xf]
        %v6325 = vld [vmem:[%s5 + $0x1b4] sm:$0xf]
        %v6326 = vld [vmem:[%s5 + $0x1b8] sm:$0xf]
        %v6327 = vld [vmem:[%s5 + $0x1bc] sm:$0xf]
        %v6328 = vpack.c.bf16 %v6311, %v6311
        %v6345 = vunpack.c.l.b16 %v6312
        %v6346 = vunpack.c.l.b16 %v6313
        %v6347 = vunpack.c.l.b16 %v6314
        %v6348 = vunpack.c.l.b16 %v6315
        %v6349 = vunpack.c.l.b16 %v6316
        %v6350 = vunpack.c.l.b16 %v6317
        %v6351 = vunpack.c.l.b16 %v6318
        %v6352 = vunpack.c.l.b16 %v6319
        %v6353 = vunpack.c.l.b16 %v6320
        %v6354 = vunpack.c.l.b16 %v6321
        %v6355 = vunpack.c.l.b16 %v6322
        %v6356 = vunpack.c.l.b16 %v6323
        %v6357 = vunpack.c.l.b16 %v6324
        %v6358 = vunpack.c.l.b16 %v6325
        %v6359 = vunpack.c.l.b16 %v6326
        %v6360 = vunpack.c.l.b16 %v6327
        %v6361 = vpack.c.b16 %v6346, %v6345
        %v6362 = vpack.c.b16 %v6348, %v6347
        %v6363 = vpack.c.b16 %v6350, %v6349
        %v6364 = vpack.c.b16 %v6352, %v6351
        %v6365 = vpack.c.b16 %v6354, %v6353
        %v6366 = vpack.c.b16 %v6356, %v6355
        %v6367 = vpack.c.b16 %v6358, %v6357
        %v6368 = vpack.c.b16 %v6360, %v6359
        %6377 = vmatpush.bf16.msra.mxu0 %v6368
        %6378 = vmatpush.bf16.msra.mxu0 %v6367
        %6379 = vmatpush.bf16.msra.mxu0 %v6366
        %6380 = vmatpush.bf16.msra.mxu0 %v6365
        %6381 = vmatpush.bf16.msra.mxu0 %v6364
        %6382 = vmatpush.bf16.msra.mxu0 %v6363
        %6383 = vmatpush.bf16.msra.mxu0 %v6362
        %6384 = vmatpush.bf16.msra.mxu0 %v6361
        %6385 = vmatmul.bf16.gmra.mxu0 %v6328
        %v6386 = vpop.f32.mrf.mxu0
        %v6387 = vadd.f32 0.0, %v6386
        %v6388 = vpop.f32.mrf.mxu0
        %6389 = vdwg.mxu0
        %v6390 = vadd.f32 %v6309, %v6387
        %s6391 = scalar_lea.vmem [#allocation3], 25
        %v6392 = vld [vmem:[%s6391] ss:$2 sm:$0x3]
        %v6393 = vld [vmem:[%s5 + $0x1c0] sm:$0xf]
        %v6394 = vld [vmem:[%s5 + $0x1c4] sm:$0xf]
        %v6395 = vld [vmem:[%s5 + $0x1c8] sm:$0xf]
        %v6396 = vld [vmem:[%s5 + $0x1cc] sm:$0xf]
        %v6397 = vld [vmem:[%s5 + $0x1d0] sm:$0xf]
        %v6398 = vld [vmem:[%s5 + $0x1d4] sm:$0xf]
        %v6399 = vld [vmem:[%s5 + $0x1d8] sm:$0xf]
        %v6400 = vld [vmem:[%s5 + $0x1dc] sm:$0xf]
        %v6401 = vld [vmem:[%s5 + $0x1e0] sm:$0xf]
        %v6402 = vld [vmem:[%s5 + $0x1e4] sm:$0xf]
        %v6403 = vld [vmem:[%s5 + $0x1e8] sm:$0xf]
        %v6404 = vld [vmem:[%s5 + $0x1ec] sm:$0xf]
        %v6405 = vld [vmem:[%s5 + $0x1f0] sm:$0xf]
        %v6406 = vld [vmem:[%s5 + $0x1f4] sm:$0xf]
        %v6407 = vld [vmem:[%s5 + $0x1f8] sm:$0xf]
        %v6408 = vld [vmem:[%s5 + $0x1fc] sm:$0xf]
        %v6409 = vpack.c.bf16 %v6392, %v6392
        %v6426 = vunpack.c.l.b16 %v6393
        %v6427 = vunpack.c.l.b16 %v6394
        %v6428 = vunpack.c.l.b16 %v6395
        %v6429 = vunpack.c.l.b16 %v6396
        %v6430 = vunpack.c.l.b16 %v6397
        %v6431 = vunpack.c.l.b16 %v6398
        %v6432 = vunpack.c.l.b16 %v6399
        %v6433 = vunpack.c.l.b16 %v6400
        %v6434 = vunpack.c.l.b16 %v6401
        %v6435 = vunpack.c.l.b16 %v6402
        %v6436 = vunpack.c.l.b16 %v6403
        %v6437 = vunpack.c.l.b16 %v6404
        %v6438 = vunpack.c.l.b16 %v6405
        %v6439 = vunpack.c.l.b16 %v6406
        %v6440 = vunpack.c.l.b16 %v6407
        %v6441 = vunpack.c.l.b16 %v6408
        %v6442 = vpack.c.b16 %v6427, %v6426
        %v6443 = vpack.c.b16 %v6429, %v6428
        %v6444 = vpack.c.b16 %v6431, %v6430
        %v6445 = vpack.c.b16 %v6433, %v6432
        %v6446 = vpack.c.b16 %v6435, %v6434
        %v6447 = vpack.c.b16 %v6437, %v6436
        %v6448 = vpack.c.b16 %v6439, %v6438
        %v6449 = vpack.c.b16 %v6441, %v6440
        %6458 = vmatpush.bf16.msra.mxu0 %v6449
        %6459 = vmatpush.bf16.msra.mxu0 %v6448
        %6460 = vmatpush.bf16.msra.mxu0 %v6447
        %6461 = vmatpush.bf16.msra.mxu0 %v6446
        %6462 = vmatpush.bf16.msra.mxu0 %v6445
        %6463 = vmatpush.bf16.msra.mxu0 %v6444
        %6464 = vmatpush.bf16.msra.mxu0 %v6443
        %6465 = vmatpush.bf16.msra.mxu0 %v6442
        %6466 = vmatmul.bf16.gmra.mxu0 %v6409
        %v6467 = vpop.f32.mrf.mxu0
        %v6468 = vadd.f32 0.0, %v6467
        %v6469 = vpop.f32.mrf.mxu0
        %6470 = vdwg.mxu0
        %v6471 = vadd.f32 %v6390, %v6468
        %s6472 = scalar_lea.vmem [#allocation3], 26
        %v6473 = vld [vmem:[%s6472] ss:$2 sm:$0x3]
        %v6474 = vld [vmem:[%s5 + $0x200] sm:$0xf]
        %v6475 = vld [vmem:[%s5 + $0x204] sm:$0xf]
        %v6476 = vld [vmem:[%s5 + $0x208] sm:$0xf]
        %v6477 = vld [vmem:[%s5 + $0x20c] sm:$0xf]
        %v6478 = vld [vmem:[%s5 + $0x210] sm:$0xf]
        %v6479 = vld [vmem:[%s5 + $0x214] sm:$0xf]
        %v6480 = vld [vmem:[%s5 + $0x218] sm:$0xf]
        %v6481 = vld [vmem:[%s5 + $0x21c] sm:$0xf]
        %v6482 = vld [vmem:[%s5 + $0x220] sm:$0xf]
        %v6483 = vld [vmem:[%s5 + $0x224] sm:$0xf]
        %v6484 = vld [vmem:[%s5 + $0x228] sm:$0xf]
        %v6485 = vld [vmem:[%s5 + $0x22c] sm:$0xf]
        %v6486 = vld [vmem:[%s5 + $0x230] sm:$0xf]
        %v6487 = vld [vmem:[%s5 + $0x234] sm:$0xf]
        %v6488 = vld [vmem:[%s5 + $0x238] sm:$0xf]
        %v6489 = vld [vmem:[%s5 + $0x23c] sm:$0xf]
        %v6490 = vpack.c.bf16 %v6473, %v6473
        %v6507 = vunpack.c.l.b16 %v6474
        %v6508 = vunpack.c.l.b16 %v6475
        %v6509 = vunpack.c.l.b16 %v6476
        %v6510 = vunpack.c.l.b16 %v6477
        %v6511 = vunpack.c.l.b16 %v6478
        %v6512 = vunpack.c.l.b16 %v6479
        %v6513 = vunpack.c.l.b16 %v6480
        %v6514 = vunpack.c.l.b16 %v6481
        %v6515 = vunpack.c.l.b16 %v6482
        %v6516 = vunpack.c.l.b16 %v6483
        %v6517 = vunpack.c.l.b16 %v6484
        %v6518 = vunpack.c.l.b16 %v6485
        %v6519 = vunpack.c.l.b16 %v6486
        %v6520 = vunpack.c.l.b16 %v6487
        %v6521 = vunpack.c.l.b16 %v6488
        %v6522 = vunpack.c.l.b16 %v6489
        %v6523 = vpack.c.b16 %v6508, %v6507
        %v6524 = vpack.c.b16 %v6510, %v6509
        %v6525 = vpack.c.b16 %v6512, %v6511
        %v6526 = vpack.c.b16 %v6514, %v6513
        %v6527 = vpack.c.b16 %v6516, %v6515
        %v6528 = vpack.c.b16 %v6518, %v6517
        %v6529 = vpack.c.b16 %v6520, %v6519
        %v6530 = vpack.c.b16 %v6522, %v6521
        %6539 = vmatpush.bf16.msra.mxu0 %v6530
        %6540 = vmatpush.bf16.msra.mxu0 %v6529
        %6541 = vmatpush.bf16.msra.mxu0 %v6528
        %6542 = vmatpush.bf16.msra.mxu0 %v6527
        %6543 = vmatpush.bf16.msra.mxu0 %v6526
        %6544 = vmatpush.bf16.msra.mxu0 %v6525
        %6545 = vmatpush.bf16.msra.mxu0 %v6524
        %6546 = vmatpush.bf16.msra.mxu0 %v6523
        %6547 = vmatmul.bf16.gmra.mxu0 %v6490
        %v6548 = vpop.f32.mrf.mxu0
        %v6549 = vadd.f32 0.0, %v6548
        %v6550 = vpop.f32.mrf.mxu0
        %6551 = vdwg.mxu0
        %v6552 = vadd.f32 %v6471, %v6549
        %v6553 = vadd.f32 %v6552, %v5821
        %vm6554 = vcmp.ge.f32.partialorder %v6553, 0.0
        %v6555 = vmul.f32 %v6553, 0.01
        %v6556 = vsel %vm6554, %v6553, %v6555
        %v6557 = vadd.f32 %v6556, %v5826
        %6558 = vst [vmem:[#allocation4 + $0x9] sm:$0x3] %v6557
        %v6559 = vld [vmem:[%s8] sm:$0x1]
        %v6560 = vld [vmem:[%s8 + $0x1] sm:$0x1]
        %v6561 = vld [vmem:[#allocation4] sm:$0x1]
        %v6562 = vld [vmem:[#allocation7] sm:$0xf]
        %v6563 = vld [vmem:[#allocation7 + $0x4] sm:$0xf]
        %v6564 = vld [vmem:[#allocation7 + $0x8] sm:$0xf]
        %v6565 = vld [vmem:[#allocation7 + $0xc] sm:$0xf]
        %v6566 = vld [vmem:[#allocation7 + $0x10] sm:$0xf]
        %v6567 = vld [vmem:[#allocation7 + $0x14] sm:$0xf]
        %v6568 = vld [vmem:[#allocation7 + $0x18] sm:$0xf]
        %v6569 = vld [vmem:[#allocation7 + $0x1c] sm:$0xf]
        %v6570 = vld [vmem:[#allocation7 + $0x20] sm:$0xf]
        %v6571 = vld [vmem:[#allocation7 + $0x24] sm:$0xf]
        %v6572 = vld [vmem:[#allocation7 + $0x28] sm:$0xf]
        %v6573 = vld [vmem:[#allocation7 + $0x2c] sm:$0xf]
        %v6574 = vld [vmem:[#allocation7 + $0x30] sm:$0xf]
        %v6575 = vld [vmem:[#allocation7 + $0x34] sm:$0xf]
        %v6576 = vld [vmem:[#allocation7 + $0x38] sm:$0xf]
        %v6577 = vld [vmem:[#allocation7 + $0x3c] sm:$0xf]
        %v6578 = vpack.c.bf16 %v6561, %v6561
        %v6579 = vld [vmem:[#allocation4 + $0x1] sm:$0x1]
        %v6580 = vld [vmem:[#allocation7 + $0x40] sm:$0xf]
        %v6581 = vld [vmem:[#allocation7 + $0x44] sm:$0xf]
        %v6582 = vld [vmem:[#allocation7 + $0x48] sm:$0xf]
        %v6583 = vld [vmem:[#allocation7 + $0x4c] sm:$0xf]
        %v6584 = vld [vmem:[#allocation7 + $0x50] sm:$0xf]
        %v6585 = vld [vmem:[#allocation7 + $0x54] sm:$0xf]
        %v6586 = vld [vmem:[#allocation7 + $0x58] sm:$0xf]
        %v6587 = vld [vmem:[#allocation7 + $0x5c] sm:$0xf]
        %v6588 = vld [vmem:[#allocation7 + $0x60] sm:$0xf]
        %v6589 = vld [vmem:[#allocation7 + $0x64] sm:$0xf]
        %v6590 = vld [vmem:[#allocation7 + $0x68] sm:$0xf]
        %v6591 = vld [vmem:[#allocation7 + $0x6c] sm:$0xf]
        %v6592 = vld [vmem:[#allocation7 + $0x70] sm:$0xf]
        %v6593 = vld [vmem:[#allocation7 + $0x74] sm:$0xf]
        %v6594 = vld [vmem:[#allocation7 + $0x78] sm:$0xf]
        %v6595 = vld [vmem:[#allocation7 + $0x7c] sm:$0xf]
        %v6596 = vpack.c.bf16 %v6579, %v6579
        %v6613 = vunpack.c.l.b16 %v6580
        %v6614 = vunpack.c.l.b16 %v6581
        %v6615 = vunpack.c.l.b16 %v6582
        %v6616 = vunpack.c.l.b16 %v6583
        %v6617 = vunpack.c.l.b16 %v6584
        %v6618 = vunpack.c.l.b16 %v6585
        %v6619 = vunpack.c.l.b16 %v6586
        %v6620 = vunpack.c.l.b16 %v6587
        %v6621 = vunpack.c.l.b16 %v6588
        %v6622 = vunpack.c.l.b16 %v6589
        %v6623 = vunpack.c.l.b16 %v6590
        %v6624 = vunpack.c.l.b16 %v6591
        %v6625 = vunpack.c.l.b16 %v6592
        %v6626 = vunpack.c.l.b16 %v6593
        %v6627 = vunpack.c.l.b16 %v6594
        %v6628 = vunpack.c.l.b16 %v6595
        %v6629 = vpack.c.b16 %v6614, %v6613
        %v6630 = vpack.c.b16 %v6616, %v6615
        %v6631 = vpack.c.b16 %v6618, %v6617
        %v6632 = vpack.c.b16 %v6620, %v6619
        %v6633 = vpack.c.b16 %v6622, %v6621
        %v6634 = vpack.c.b16 %v6624, %v6623
        %v6635 = vpack.c.b16 %v6626, %v6625
        %v6636 = vpack.c.b16 %v6628, %v6627
        %6645 = vmatpush.bf16.msra.mxu0 %v6636
        %6646 = vmatpush.bf16.msra.mxu0 %v6635
        %6647 = vmatpush.bf16.msra.mxu0 %v6634
        %6648 = vmatpush.bf16.msra.mxu0 %v6633
        %6649 = vmatpush.bf16.msra.mxu0 %v6632
        %6650 = vmatpush.bf16.msra.mxu0 %v6631
        %6651 = vmatpush.bf16.msra.mxu0 %v6630
        %6652 = vmatpush.bf16.msra.mxu0 %v6629
        %6653 = vmatmul.bf16.gmra.mxu0 %v6596
        %v6654 = vpop.f32.mrf.mxu0
        %v6655 = vadd.f32 0.0, %v6654
        %v6656 = vpop.f32.mrf.mxu0
        %6657 = vdwg.mxu0
        %v6674 = vunpack.c.l.b16 %v6562
        %v6675 = vunpack.c.l.b16 %v6563
        %v6676 = vunpack.c.l.b16 %v6564
        %v6677 = vunpack.c.l.b16 %v6565
        %v6678 = vunpack.c.l.b16 %v6566
        %v6679 = vunpack.c.l.b16 %v6567
        %v6680 = vunpack.c.l.b16 %v6568
        %v6681 = vunpack.c.l.b16 %v6569
        %v6682 = vunpack.c.l.b16 %v6570
        %v6683 = vunpack.c.l.b16 %v6571
        %v6684 = vunpack.c.l.b16 %v6572
        %v6685 = vunpack.c.l.b16 %v6573
        %v6686 = vunpack.c.l.b16 %v6574
        %v6687 = vunpack.c.l.b16 %v6575
        %v6688 = vunpack.c.l.b16 %v6576
        %v6689 = vunpack.c.l.b16 %v6577
        %v6690 = vpack.c.b16 %v6675, %v6674
        %v6691 = vpack.c.b16 %v6677, %v6676
        %v6692 = vpack.c.b16 %v6679, %v6678
        %v6693 = vpack.c.b16 %v6681, %v6680
        %v6694 = vpack.c.b16 %v6683, %v6682
        %v6695 = vpack.c.b16 %v6685, %v6684
        %v6696 = vpack.c.b16 %v6687, %v6686
        %v6697 = vpack.c.b16 %v6689, %v6688
        %6706 = vmatpush.bf16.msra.mxu0 %v6697
        %6707 = vmatpush.bf16.msra.mxu0 %v6696
        %6708 = vmatpush.bf16.msra.mxu0 %v6695
        %6709 = vmatpush.bf16.msra.mxu0 %v6694
        %6710 = vmatpush.bf16.msra.mxu0 %v6693
        %6711 = vmatpush.bf16.msra.mxu0 %v6692
        %6712 = vmatpush.bf16.msra.mxu0 %v6691
        %6713 = vmatpush.bf16.msra.mxu0 %v6690
        %6714 = vmatmul.bf16.gmra.mxu0 %v6578
        %v6715 = vpop.f32.mrf.mxu0
        %v6716 = vadd.f32 %v6655, %v6715
        %v6717 = vpop.f32.mrf.mxu0
        %6718 = vdwg.mxu0
        %v6719 = vld [vmem:[#allocation4 + $0x2] sm:$0x1]
        %v6720 = vld [vmem:[#allocation7 + $0x80] sm:$0xf]
        %v6721 = vld [vmem:[#allocation7 + $0x84] sm:$0xf]
        %v6722 = vld [vmem:[#allocation7 + $0x88] sm:$0xf]
        %v6723 = vld [vmem:[#allocation7 + $0x8c] sm:$0xf]
        %v6724 = vld [vmem:[#allocation7 + $0x90] sm:$0xf]
        %v6725 = vld [vmem:[#allocation7 + $0x94] sm:$0xf]
        %v6726 = vld [vmem:[#allocation7 + $0x98] sm:$0xf]
        %v6727 = vld [vmem:[#allocation7 + $0x9c] sm:$0xf]
        %v6728 = vld [vmem:[#allocation7 + $0xa0] sm:$0xf]
        %v6729 = vld [vmem:[#allocation7 + $0xa4] sm:$0xf]
        %v6730 = vld [vmem:[#allocation7 + $0xa8] sm:$0xf]
        %v6731 = vld [vmem:[#allocation7 + $0xac] sm:$0xf]
        %v6732 = vld [vmem:[#allocation7 + $0xb0] sm:$0xf]
        %v6733 = vld [vmem:[#allocation7 + $0xb4] sm:$0xf]
        %v6734 = vld [vmem:[#allocation7 + $0xb8] sm:$0xf]
        %v6735 = vld [vmem:[#allocation7 + $0xbc] sm:$0xf]
        %v6736 = vpack.c.bf16 %v6719, %v6719
        %v6753 = vunpack.c.l.b16 %v6720
        %v6754 = vunpack.c.l.b16 %v6721
        %v6755 = vunpack.c.l.b16 %v6722
        %v6756 = vunpack.c.l.b16 %v6723
        %v6757 = vunpack.c.l.b16 %v6724
        %v6758 = vunpack.c.l.b16 %v6725
        %v6759 = vunpack.c.l.b16 %v6726
        %v6760 = vunpack.c.l.b16 %v6727
        %v6761 = vunpack.c.l.b16 %v6728
        %v6762 = vunpack.c.l.b16 %v6729
        %v6763 = vunpack.c.l.b16 %v6730
        %v6764 = vunpack.c.l.b16 %v6731
        %v6765 = vunpack.c.l.b16 %v6732
        %v6766 = vunpack.c.l.b16 %v6733
        %v6767 = vunpack.c.l.b16 %v6734
        %v6768 = vunpack.c.l.b16 %v6735
        %v6769 = vpack.c.b16 %v6754, %v6753
        %v6770 = vpack.c.b16 %v6756, %v6755
        %v6771 = vpack.c.b16 %v6758, %v6757
        %v6772 = vpack.c.b16 %v6760, %v6759
        %v6773 = vpack.c.b16 %v6762, %v6761
        %v6774 = vpack.c.b16 %v6764, %v6763
        %v6775 = vpack.c.b16 %v6766, %v6765
        %v6776 = vpack.c.b16 %v6768, %v6767
        %6785 = vmatpush.bf16.msra.mxu0 %v6776
        %6786 = vmatpush.bf16.msra.mxu0 %v6775
        %6787 = vmatpush.bf16.msra.mxu0 %v6774
        %6788 = vmatpush.bf16.msra.mxu0 %v6773
        %6789 = vmatpush.bf16.msra.mxu0 %v6772
        %6790 = vmatpush.bf16.msra.mxu0 %v6771
        %6791 = vmatpush.bf16.msra.mxu0 %v6770
        %6792 = vmatpush.bf16.msra.mxu0 %v6769
        %6793 = vmatmul.bf16.gmra.mxu0 %v6736
        %v6794 = vpop.f32.mrf.mxu0
        %v6795 = vadd.f32 0.0, %v6794
        %v6796 = vpop.f32.mrf.mxu0
        %6797 = vdwg.mxu0
        %v6798 = vadd.f32 %v6716, %v6795
        %v6799 = vld [vmem:[#allocation4 + $0x4] sm:$0x1]
        %v6800 = vld [vmem:[#allocation7 + $0xc0] sm:$0xf]
        %v6801 = vld [vmem:[#allocation7 + $0xc4] sm:$0xf]
        %v6802 = vld [vmem:[#allocation7 + $0xc8] sm:$0xf]
        %v6803 = vld [vmem:[#allocation7 + $0xcc] sm:$0xf]
        %v6804 = vld [vmem:[#allocation7 + $0xd0] sm:$0xf]
        %v6805 = vld [vmem:[#allocation7 + $0xd4] sm:$0xf]
        %v6806 = vld [vmem:[#allocation7 + $0xd8] sm:$0xf]
        %v6807 = vld [vmem:[#allocation7 + $0xdc] sm:$0xf]
        %v6808 = vld [vmem:[#allocation7 + $0xe0] sm:$0xf]
        %v6809 = vld [vmem:[#allocation7 + $0xe4] sm:$0xf]
        %v6810 = vld [vmem:[#allocation7 + $0xe8] sm:$0xf]
        %v6811 = vld [vmem:[#allocation7 + $0xec] sm:$0xf]
        %v6812 = vld [vmem:[#allocation7 + $0xf0] sm:$0xf]
        %v6813 = vld [vmem:[#allocation7 + $0xf4] sm:$0xf]
        %v6814 = vld [vmem:[#allocation7 + $0xf8] sm:$0xf]
        %v6815 = vld [vmem:[#allocation7 + $0xfc] sm:$0xf]
        %v6816 = vpack.c.bf16 %v6799, %v6799
        %v6833 = vunpack.c.l.b16 %v6800
        %v6834 = vunpack.c.l.b16 %v6801
        %v6835 = vunpack.c.l.b16 %v6802
        %v6836 = vunpack.c.l.b16 %v6803
        %v6837 = vunpack.c.l.b16 %v6804
        %v6838 = vunpack.c.l.b16 %v6805
        %v6839 = vunpack.c.l.b16 %v6806
        %v6840 = vunpack.c.l.b16 %v6807
        %v6841 = vunpack.c.l.b16 %v6808
        %v6842 = vunpack.c.l.b16 %v6809
        %v6843 = vunpack.c.l.b16 %v6810
        %v6844 = vunpack.c.l.b16 %v6811
        %v6845 = vunpack.c.l.b16 %v6812
        %v6846 = vunpack.c.l.b16 %v6813
        %v6847 = vunpack.c.l.b16 %v6814
        %v6848 = vunpack.c.l.b16 %v6815
        %v6849 = vpack.c.b16 %v6834, %v6833
        %v6850 = vpack.c.b16 %v6836, %v6835
        %v6851 = vpack.c.b16 %v6838, %v6837
        %v6852 = vpack.c.b16 %v6840, %v6839
        %v6853 = vpack.c.b16 %v6842, %v6841
        %v6854 = vpack.c.b16 %v6844, %v6843
        %v6855 = vpack.c.b16 %v6846, %v6845
        %v6856 = vpack.c.b16 %v6848, %v6847
        %6865 = vmatpush.bf16.msra.mxu0 %v6856
        %6866 = vmatpush.bf16.msra.mxu0 %v6855
        %6867 = vmatpush.bf16.msra.mxu0 %v6854
        %6868 = vmatpush.bf16.msra.mxu0 %v6853
        %6869 = vmatpush.bf16.msra.mxu0 %v6852
        %6870 = vmatpush.bf16.msra.mxu0 %v6851
        %6871 = vmatpush.bf16.msra.mxu0 %v6850
        %6872 = vmatpush.bf16.msra.mxu0 %v6849
        %6873 = vmatmul.bf16.gmra.mxu0 %v6816
        %v6874 = vpop.f32.mrf.mxu0
        %v6875 = vadd.f32 0.0, %v6874
        %v6876 = vpop.f32.mrf.mxu0
        %6877 = vdwg.mxu0
        %v6878 = vadd.f32 %v6798, %v6875
        %v6879 = vld [vmem:[#allocation4 + $0x5] sm:$0x1]
        %v6880 = vld [vmem:[#allocation7 + $0x100] sm:$0xf]
        %v6881 = vld [vmem:[#allocation7 + $0x104] sm:$0xf]
        %v6882 = vld [vmem:[#allocation7 + $0x108] sm:$0xf]
        %v6883 = vld [vmem:[#allocation7 + $0x10c] sm:$0xf]
        %v6884 = vld [vmem:[#allocation7 + $0x110] sm:$0xf]
        %v6885 = vld [vmem:[#allocation7 + $0x114] sm:$0xf]
        %v6886 = vld [vmem:[#allocation7 + $0x118] sm:$0xf]
        %v6887 = vld [vmem:[#allocation7 + $0x11c] sm:$0xf]
        %v6888 = vld [vmem:[#allocation7 + $0x120] sm:$0xf]
        %v6889 = vld [vmem:[#allocation7 + $0x124] sm:$0xf]
        %v6890 = vld [vmem:[#allocation7 + $0x128] sm:$0xf]
        %v6891 = vld [vmem:[#allocation7 + $0x12c] sm:$0xf]
        %v6892 = vld [vmem:[#allocation7 + $0x130] sm:$0xf]
        %v6893 = vld [vmem:[#allocation7 + $0x134] sm:$0xf]
        %v6894 = vld [vmem:[#allocation7 + $0x138] sm:$0xf]
        %v6895 = vld [vmem:[#allocation7 + $0x13c] sm:$0xf]
        %v6896 = vpack.c.bf16 %v6879, %v6879
        %v6913 = vunpack.c.l.b16 %v6880
        %v6914 = vunpack.c.l.b16 %v6881
        %v6915 = vunpack.c.l.b16 %v6882
        %v6916 = vunpack.c.l.b16 %v6883
        %v6917 = vunpack.c.l.b16 %v6884
        %v6918 = vunpack.c.l.b16 %v6885
        %v6919 = vunpack.c.l.b16 %v6886
        %v6920 = vunpack.c.l.b16 %v6887
        %v6921 = vunpack.c.l.b16 %v6888
        %v6922 = vunpack.c.l.b16 %v6889
        %v6923 = vunpack.c.l.b16 %v6890
        %v6924 = vunpack.c.l.b16 %v6891
        %v6925 = vunpack.c.l.b16 %v6892
        %v6926 = vunpack.c.l.b16 %v6893
        %v6927 = vunpack.c.l.b16 %v6894
        %v6928 = vunpack.c.l.b16 %v6895
        %v6929 = vpack.c.b16 %v6914, %v6913
        %v6930 = vpack.c.b16 %v6916, %v6915
        %v6931 = vpack.c.b16 %v6918, %v6917
        %v6932 = vpack.c.b16 %v6920, %v6919
        %v6933 = vpack.c.b16 %v6922, %v6921
        %v6934 = vpack.c.b16 %v6924, %v6923
        %v6935 = vpack.c.b16 %v6926, %v6925
        %v6936 = vpack.c.b16 %v6928, %v6927
        %6945 = vmatpush.bf16.msra.mxu0 %v6936
        %6946 = vmatpush.bf16.msra.mxu0 %v6935
        %6947 = vmatpush.bf16.msra.mxu0 %v6934
        %6948 = vmatpush.bf16.msra.mxu0 %v6933
        %6949 = vmatpush.bf16.msra.mxu0 %v6932
        %6950 = vmatpush.bf16.msra.mxu0 %v6931
        %6951 = vmatpush.bf16.msra.mxu0 %v6930
        %6952 = vmatpush.bf16.msra.mxu0 %v6929
        %6953 = vmatmul.bf16.gmra.mxu0 %v6896
        %v6954 = vpop.f32.mrf.mxu0
        %v6955 = vadd.f32 0.0, %v6954
        %v6956 = vpop.f32.mrf.mxu0
        %6957 = vdwg.mxu0
        %v6958 = vadd.f32 %v6878, %v6955
        %v6959 = vld [vmem:[#allocation4 + $0x6] sm:$0x1]
        %v6960 = vld [vmem:[#allocation7 + $0x140] sm:$0xf]
        %v6961 = vld [vmem:[#allocation7 + $0x144] sm:$0xf]
        %v6962 = vld [vmem:[#allocation7 + $0x148] sm:$0xf]
        %v6963 = vld [vmem:[#allocation7 + $0x14c] sm:$0xf]
        %v6964 = vld [vmem:[#allocation7 + $0x150] sm:$0xf]
        %v6965 = vld [vmem:[#allocation7 + $0x154] sm:$0xf]
        %v6966 = vld [vmem:[#allocation7 + $0x158] sm:$0xf]
        %v6967 = vld [vmem:[#allocation7 + $0x15c] sm:$0xf]
        %v6968 = vld [vmem:[#allocation7 + $0x160] sm:$0xf]
        %v6969 = vld [vmem:[#allocation7 + $0x164] sm:$0xf]
        %v6970 = vld [vmem:[#allocation7 + $0x168] sm:$0xf]
        %v6971 = vld [vmem:[#allocation7 + $0x16c] sm:$0xf]
        %v6972 = vld [vmem:[#allocation7 + $0x170] sm:$0xf]
        %v6973 = vld [vmem:[#allocation7 + $0x174] sm:$0xf]
        %v6974 = vld [vmem:[#allocation7 + $0x178] sm:$0xf]
        %v6975 = vld [vmem:[#allocation7 + $0x17c] sm:$0xf]
        %v6976 = vpack.c.bf16 %v6959, %v6959
        %v6993 = vunpack.c.l.b16 %v6960
        %v6994 = vunpack.c.l.b16 %v6961
        %v6995 = vunpack.c.l.b16 %v6962
        %v6996 = vunpack.c.l.b16 %v6963
        %v6997 = vunpack.c.l.b16 %v6964
        %v6998 = vunpack.c.l.b16 %v6965
        %v6999 = vunpack.c.l.b16 %v6966
        %v7000 = vunpack.c.l.b16 %v6967
        %v7001 = vunpack.c.l.b16 %v6968
        %v7002 = vunpack.c.l.b16 %v6969
        %v7003 = vunpack.c.l.b16 %v6970
        %v7004 = vunpack.c.l.b16 %v6971
        %v7005 = vunpack.c.l.b16 %v6972
        %v7006 = vunpack.c.l.b16 %v6973
        %v7007 = vunpack.c.l.b16 %v6974
        %v7008 = vunpack.c.l.b16 %v6975
        %v7009 = vpack.c.b16 %v6994, %v6993
        %v7010 = vpack.c.b16 %v6996, %v6995
        %v7011 = vpack.c.b16 %v6998, %v6997
        %v7012 = vpack.c.b16 %v7000, %v6999
        %v7013 = vpack.c.b16 %v7002, %v7001
        %v7014 = vpack.c.b16 %v7004, %v7003
        %v7015 = vpack.c.b16 %v7006, %v7005
        %v7016 = vpack.c.b16 %v7008, %v7007
        %7025 = vmatpush.bf16.msra.mxu0 %v7016
        %7026 = vmatpush.bf16.msra.mxu0 %v7015
        %7027 = vmatpush.bf16.msra.mxu0 %v7014
        %7028 = vmatpush.bf16.msra.mxu0 %v7013
        %7029 = vmatpush.bf16.msra.mxu0 %v7012
        %7030 = vmatpush.bf16.msra.mxu0 %v7011
        %7031 = vmatpush.bf16.msra.mxu0 %v7010
        %7032 = vmatpush.bf16.msra.mxu0 %v7009
        %7033 = vmatmul.bf16.gmra.mxu0 %v6976
        %v7034 = vpop.f32.mrf.mxu0
        %v7035 = vadd.f32 0.0, %v7034
        %v7036 = vpop.f32.mrf.mxu0
        %7037 = vdwg.mxu0
        %v7038 = vadd.f32 %v6958, %v7035
        %v7039 = vld [vmem:[#allocation4 + $0x8] sm:$0x1]
        %v7040 = vld [vmem:[#allocation7 + $0x180] sm:$0xf]
        %v7041 = vld [vmem:[#allocation7 + $0x184] sm:$0xf]
        %v7042 = vld [vmem:[#allocation7 + $0x188] sm:$0xf]
        %v7043 = vld [vmem:[#allocation7 + $0x18c] sm:$0xf]
        %v7044 = vld [vmem:[#allocation7 + $0x190] sm:$0xf]
        %v7045 = vld [vmem:[#allocation7 + $0x194] sm:$0xf]
        %v7046 = vld [vmem:[#allocation7 + $0x198] sm:$0xf]
        %v7047 = vld [vmem:[#allocation7 + $0x19c] sm:$0xf]
        %v7048 = vld [vmem:[#allocation7 + $0x1a0] sm:$0xf]
        %v7049 = vld [vmem:[#allocation7 + $0x1a4] sm:$0xf]
        %v7050 = vld [vmem:[#allocation7 + $0x1a8] sm:$0xf]
        %v7051 = vld [vmem:[#allocation7 + $0x1ac] sm:$0xf]
        %v7052 = vld [vmem:[#allocation7 + $0x1b0] sm:$0xf]
        %v7053 = vld [vmem:[#allocation7 + $0x1b4] sm:$0xf]
        %v7054 = vld [vmem:[#allocation7 + $0x1b8] sm:$0xf]
        %v7055 = vld [vmem:[#allocation7 + $0x1bc] sm:$0xf]
        %v7056 = vpack.c.bf16 %v7039, %v7039
        %v7073 = vunpack.c.l.b16 %v7040
        %v7074 = vunpack.c.l.b16 %v7041
        %v7075 = vunpack.c.l.b16 %v7042
        %v7076 = vunpack.c.l.b16 %v7043
        %v7077 = vunpack.c.l.b16 %v7044
        %v7078 = vunpack.c.l.b16 %v7045
        %v7079 = vunpack.c.l.b16 %v7046
        %v7080 = vunpack.c.l.b16 %v7047
        %v7081 = vunpack.c.l.b16 %v7048
        %v7082 = vunpack.c.l.b16 %v7049
        %v7083 = vunpack.c.l.b16 %v7050
        %v7084 = vunpack.c.l.b16 %v7051
        %v7085 = vunpack.c.l.b16 %v7052
        %v7086 = vunpack.c.l.b16 %v7053
        %v7087 = vunpack.c.l.b16 %v7054
        %v7088 = vunpack.c.l.b16 %v7055
        %v7089 = vpack.c.b16 %v7074, %v7073
        %v7090 = vpack.c.b16 %v7076, %v7075
        %v7091 = vpack.c.b16 %v7078, %v7077
        %v7092 = vpack.c.b16 %v7080, %v7079
        %v7093 = vpack.c.b16 %v7082, %v7081
        %v7094 = vpack.c.b16 %v7084, %v7083
        %v7095 = vpack.c.b16 %v7086, %v7085
        %v7096 = vpack.c.b16 %v7088, %v7087
        %7105 = vmatpush.bf16.msra.mxu0 %v7096
        %7106 = vmatpush.bf16.msra.mxu0 %v7095
        %7107 = vmatpush.bf16.msra.mxu0 %v7094
        %7108 = vmatpush.bf16.msra.mxu0 %v7093
        %7109 = vmatpush.bf16.msra.mxu0 %v7092
        %7110 = vmatpush.bf16.msra.mxu0 %v7091
        %7111 = vmatpush.bf16.msra.mxu0 %v7090
        %7112 = vmatpush.bf16.msra.mxu0 %v7089
        %7113 = vmatmul.bf16.gmra.mxu0 %v7056
        %v7114 = vpop.f32.mrf.mxu0
        %v7115 = vadd.f32 0.0, %v7114
        %v7116 = vpop.f32.mrf.mxu0
        %7117 = vdwg.mxu0
        %v7118 = vadd.f32 %v7038, %v7115
        %v7119 = vld [vmem:[#allocation4 + $0x9] sm:$0x1]
        %v7120 = vld [vmem:[#allocation7 + $0x1c0] sm:$0xf]
        %v7121 = vld [vmem:[#allocation7 + $0x1c4] sm:$0xf]
        %v7122 = vld [vmem:[#allocation7 + $0x1c8] sm:$0xf]
        %v7123 = vld [vmem:[#allocation7 + $0x1cc] sm:$0xf]
        %v7124 = vld [vmem:[#allocation7 + $0x1d0] sm:$0xf]
        %v7125 = vld [vmem:[#allocation7 + $0x1d4] sm:$0xf]
        %v7126 = vld [vmem:[#allocation7 + $0x1d8] sm:$0xf]
        %v7127 = vld [vmem:[#allocation7 + $0x1dc] sm:$0xf]
        %v7128 = vld [vmem:[#allocation7 + $0x1e0] sm:$0xf]
        %v7129 = vld [vmem:[#allocation7 + $0x1e4] sm:$0xf]
        %v7130 = vld [vmem:[#allocation7 + $0x1e8] sm:$0xf]
        %v7131 = vld [vmem:[#allocation7 + $0x1ec] sm:$0xf]
        %v7132 = vld [vmem:[#allocation7 + $0x1f0] sm:$0xf]
        %v7133 = vld [vmem:[#allocation7 + $0x1f4] sm:$0xf]
        %v7134 = vld [vmem:[#allocation7 + $0x1f8] sm:$0xf]
        %v7135 = vld [vmem:[#allocation7 + $0x1fc] sm:$0xf]
        %v7136 = vpack.c.bf16 %v7119, %v7119
        %v7153 = vunpack.c.l.b16 %v7120
        %v7154 = vunpack.c.l.b16 %v7121
        %v7155 = vunpack.c.l.b16 %v7122
        %v7156 = vunpack.c.l.b16 %v7123
        %v7157 = vunpack.c.l.b16 %v7124
        %v7158 = vunpack.c.l.b16 %v7125
        %v7159 = vunpack.c.l.b16 %v7126
        %v7160 = vunpack.c.l.b16 %v7127
        %v7161 = vunpack.c.l.b16 %v7128
        %v7162 = vunpack.c.l.b16 %v7129
        %v7163 = vunpack.c.l.b16 %v7130
        %v7164 = vunpack.c.l.b16 %v7131
        %v7165 = vunpack.c.l.b16 %v7132
        %v7166 = vunpack.c.l.b16 %v7133
        %v7167 = vunpack.c.l.b16 %v7134
        %v7168 = vunpack.c.l.b16 %v7135
        %v7169 = vpack.c.b16 %v7154, %v7153
        %v7170 = vpack.c.b16 %v7156, %v7155
        %v7171 = vpack.c.b16 %v7158, %v7157
        %v7172 = vpack.c.b16 %v7160, %v7159
        %v7173 = vpack.c.b16 %v7162, %v7161
        %v7174 = vpack.c.b16 %v7164, %v7163
        %v7175 = vpack.c.b16 %v7166, %v7165
        %v7176 = vpack.c.b16 %v7168, %v7167
        %7185 = vmatpush.bf16.msra.mxu0 %v7176
        %7186 = vmatpush.bf16.msra.mxu0 %v7175
        %7187 = vmatpush.bf16.msra.mxu0 %v7174
        %7188 = vmatpush.bf16.msra.mxu0 %v7173
        %7189 = vmatpush.bf16.msra.mxu0 %v7172
        %7190 = vmatpush.bf16.msra.mxu0 %v7171
        %7191 = vmatpush.bf16.msra.mxu0 %v7170
        %7192 = vmatpush.bf16.msra.mxu0 %v7169
        %7193 = vmatmul.bf16.gmra.mxu0 %v7136
        %v7194 = vpop.f32.mrf.mxu0
        %v7195 = vadd.f32 0.0, %v7194
        %v7196 = vpop.f32.mrf.mxu0
        %7197 = vdwg.mxu0
        %v7198 = vadd.f32 %v7118, %v7195
        %v7199 = vld [vmem:[#allocation4 + $0xa] sm:$0x1]
        %v7200 = vld [vmem:[#allocation7 + $0x200] sm:$0xf]
        %v7201 = vld [vmem:[#allocation7 + $0x204] sm:$0xf]
        %v7202 = vld [vmem:[#allocation7 + $0x208] sm:$0xf]
        %v7203 = vld [vmem:[#allocation7 + $0x20c] sm:$0xf]
        %v7204 = vld [vmem:[#allocation7 + $0x210] sm:$0xf]
        %v7205 = vld [vmem:[#allocation7 + $0x214] sm:$0xf]
        %v7206 = vld [vmem:[#allocation7 + $0x218] sm:$0xf]
        %v7207 = vld [vmem:[#allocation7 + $0x21c] sm:$0xf]
        %v7208 = vld [vmem:[#allocation7 + $0x220] sm:$0xf]
        %v7209 = vld [vmem:[#allocation7 + $0x224] sm:$0xf]
        %v7210 = vld [vmem:[#allocation7 + $0x228] sm:$0xf]
        %v7211 = vld [vmem:[#allocation7 + $0x22c] sm:$0xf]
        %v7212 = vld [vmem:[#allocation7 + $0x230] sm:$0xf]
        %v7213 = vld [vmem:[#allocation7 + $0x234] sm:$0xf]
        %v7214 = vld [vmem:[#allocation7 + $0x238] sm:$0xf]
        %v7215 = vld [vmem:[#allocation7 + $0x23c] sm:$0xf]
        %v7216 = vpack.c.bf16 %v7199, %v7199
        %v7233 = vunpack.c.l.b16 %v7200
        %v7234 = vunpack.c.l.b16 %v7201
        %v7235 = vunpack.c.l.b16 %v7202
        %v7236 = vunpack.c.l.b16 %v7203
        %v7237 = vunpack.c.l.b16 %v7204
        %v7238 = vunpack.c.l.b16 %v7205
        %v7239 = vunpack.c.l.b16 %v7206
        %v7240 = vunpack.c.l.b16 %v7207
        %v7241 = vunpack.c.l.b16 %v7208
        %v7242 = vunpack.c.l.b16 %v7209
        %v7243 = vunpack.c.l.b16 %v7210
        %v7244 = vunpack.c.l.b16 %v7211
        %v7245 = vunpack.c.l.b16 %v7212
        %v7246 = vunpack.c.l.b16 %v7213
        %v7247 = vunpack.c.l.b16 %v7214
        %v7248 = vunpack.c.l.b16 %v7215
        %v7249 = vpack.c.b16 %v7234, %v7233
        %v7250 = vpack.c.b16 %v7236, %v7235
        %v7251 = vpack.c.b16 %v7238, %v7237
        %v7252 = vpack.c.b16 %v7240, %v7239
        %v7253 = vpack.c.b16 %v7242, %v7241
        %v7254 = vpack.c.b16 %v7244, %v7243
        %v7255 = vpack.c.b16 %v7246, %v7245
        %v7256 = vpack.c.b16 %v7248, %v7247
        %7265 = vmatpush.bf16.msra.mxu0 %v7256
        %7266 = vmatpush.bf16.msra.mxu0 %v7255
        %7267 = vmatpush.bf16.msra.mxu0 %v7254
        %7268 = vmatpush.bf16.msra.mxu0 %v7253
        %7269 = vmatpush.bf16.msra.mxu0 %v7252
        %7270 = vmatpush.bf16.msra.mxu0 %v7251
        %7271 = vmatpush.bf16.msra.mxu0 %v7250
        %7272 = vmatpush.bf16.msra.mxu0 %v7249
        %7273 = vmatmul.bf16.gmra.mxu0 %v7216
        %v7274 = vpop.f32.mrf.mxu0
        %v7275 = vadd.f32 0.0, %v7274
        %v7276 = vpop.f32.mrf.mxu0
        %7277 = vdwg.mxu0
        %v7278 = vadd.f32 %v7198, %v7275
        %v7279 = vadd.f32 %v7278, %v6559
        %vm7280 = vcmp.ge.f32.partialorder %v7279, 0.0
        %v7281 = vmul.f32 %v7279, 0.01
        %v7282 = vsel %vm7280, %v7279, %v7281
        %v7283 = vadd.f32 %v7282, %v6560
        %7284 = vst [vmem:[#allocation5] sm:$0x1] %v7283
        %v7285 = vld [vmem:[#allocation5] sm:$0x1]
        %v7286 = vld [vmem:[%s9] sm:$0x1]
        %v7287 = vmul.f32 %v7285, %v7286
        %vm7288 = vcmask 1040384
        %v7289 = vsel %vm7288, %v7287, 0.0
        %7290 = vadd.xlane.f32.xlu0 %v7289
        %v7291 = vpop.xlane.xlu0 %7290
        %v7292 = vadd.f32 %v7291, 0.0
        %v7293 = vld [vmem:[#allocation6] sm:$0x1]
        %v7294 = vadd.f32 %v7292, %v7293
        %v7295 = vand.u32 2147483647, %v7294
        %v7296 = vsub.f32 0.0, %v7295
        %v7297 = vmul.f32 %v7296, 1.442695
        %v7298 = vpow.pop %v7297
        %vm7299 = vcmp.ge.f32.partialorder %v7294, 0.0
        %v7300 = vadd.f32 %v7298, 1.0
        %v7301 = vrcp.pop %v7300
        %v7302 = vmul.f32 %v7300, %v7301
        %v7303 = vsub.f32 1.0, %v7302
        %v7304 = vmul.f32 %v7301, %v7303
        %v7305 = vadd.f32 %v7301, %v7304
        %vm7306 = vweird.f32 %v7300
        %vm7307 = vweird.f32 %v7301
        %vm7308 = vmor %vm7306, %vm7307
        %v7309 = vsel %vm7308, %v7301, %v7305
        %v7310 = vand.u32 2147483647, %v7300
        %vm7311 = vcmp.eq.f32.partialorder %v7310, 8.507059e+37
        %v7312 = vand.u32 %v7300, 2147483648
        %v7313 = vor.u32 1.1754944e-38, %v7312
        %v7314 = vsel %vm7311, %v7313, %v7309
        %v7315 = vmul.f32 1.0, %v7314
        %v7316 = vmul.f32 %v7298, %v7314
        %v7317 = vsel %vm7299, %v7315, %v7316
        %vm7318 = vcmask 0
        %7319 = vst.msk [vmem:[%s401] sm:$0x1] %vm7318, %v7317
        %p7320 = scmp.lt.s32.totalorder %s25, 1
        %s7321 = scalar_select %p7320, %s25, 1
        %s7322 = scalar_lea.vmem %s11, %s7321
        // Predicated region
        $region69: #{discriminator_forward.1} parent=63 // pred_check
          %p7323 = pneg %p279
        $region70: #{discriminator_forward.1} parent=63 // pred_check_branch
          %7325 = sbr.rel (%p7323) target = $region72
        $region71: #{discriminator_forward.1} parent=63 // pred_region
          _
        $region72: #{discriminator_forward.1} parent=63 // pred_fallthru
          _
      $region64: #{discriminator_forward.1} parent=5 // pred_fallthru
        _
      %p7326 = scmp.le.s32.totalorder 2, %s20
      // Predicated region
      $region73: #{discriminator_forward.1} parent=5 // pred_check
        %p7327 = pneg %p7326
      $region74: #{discriminator_forward.1} parent=5 // pred_check_branch
        %7329 = sbr.rel (%p7327) target = $region76
      $region75: #{discriminator_forward.1} parent=5 // pred_region
        %s7330 = ssub.s32 %s20, 2
        // Predicated region
        $region77: #{discriminator_forward.1} parent=75 // pred_check
          %p7331 = pneg %p285
        $region78: #{discriminator_forward.1} parent=75 // pred_check_branch
          %7333 = sbr.rel (%p7331) target = $region80
        $region79: #{discriminator_forward.1} parent=75 // pred_region
          %p7334 = scmp.lt.s32.totalorder %s26, 1
          %s7335 = scalar_select %p7334, %s26, 1
          %s7336 = scalar_lea.vmem %s11, %s7335
        $region80: #{discriminator_forward.1} parent=75 // pred_fallthru
          _
      $region76: #{discriminator_forward.1} parent=5 // pred_fallthru
        _
    $region6: #{discriminator_forward.1} parent=1 // loop_footer
      %s24 = sadd.s32 1, %s20
    $region7: #{discriminator_forward.1} parent=1 // loop_footer_branch
      %19 = sbr.rel target = $region3
    $region8: #{discriminator_forward.1} parent=1 // loop_exit
      _
    %7337 = vsyncpa [#allocation8], 1
    %s7338 = scalar_lea.sflag [#allocation8], 1
    %7339 = vsyncpa %s7338, 1

</llo_original>
